<compile_context>
chip_gen: v7x
topology: tpu7x:2x2x1
jax: 0.10.0
libtpu: 0.0.40
codegen_flags: <defaults>
</compile_context>

<pallas_src>
import functools
import math

import jax
import jax.numpy as jnp
from jax import lax
from jax.experimental import pallas as pl
from jax.experimental.pallas import tpu as pltpu


# ----------------------------- in-kernel helpers -----------------------------

def _layernorm(x, gamma, beta, eps=1e-5):
    x = x.astype(jnp.float32)
    mu = jnp.mean(x, axis=-1, keepdims=True)
    var = jnp.mean((x - mu) ** 2, axis=-1, keepdims=True)
    return (x - mu) * lax.rsqrt(var + eps) * gamma + beta


def _gelu(x):
    # tanh-approximate GELU (single EUP tanh).
    c = math.sqrt(2.0 / math.pi)
    return 0.5 * x * (1.0 + jnp.tanh(c * (x + 0.044715 * x * x * x)))


def _mm(x, w, b=None):
    # bf16 MXU matmul with f32 accumulation; weights are stored bf16.
    y = jnp.dot(x.astype(jnp.bfloat16), w, preferred_element_type=jnp.float32)
    return y if b is None else y + b


def _softmax_rows(s):
    s = s - jnp.max(s, axis=-1, keepdims=True)
    p = jnp.exp(s)
    return p * pl.reciprocal(jnp.sum(p, axis=-1, keepdims=True), approx=True)


# --------------------------------- kernels -----------------------------------

def bigru_kernel(len_ref, emb_ref, wi_ref, wh_ref, bi_ref, bh_ref,
                 out_ref, hn_ref, gi_ref):
    """One GRU direction per grid step (grid=(2,): 0 = forward, 1 = backward).

    Packed-sequence semantics emulated with per-step length masking: the state
    only advances while t < len and padded output positions are written as 0.
    Gate order along 3H is [r | z | n].
    """
    S, B, H = emb_ref.shape
    H3 = 3 * H
    d = pl.program_id(0)
    is_fwd = d == 0
    lens = len_ref[...]                                   # (B, 1) int32

    # Hoisted input-gate projection: one (S*B, H) @ (H, 3H) bf16 MXU matmul.
    x2d = emb_ref[...].reshape(S * B, H).astype(jnp.bfloat16)
    gi = jnp.dot(x2d, wi_ref[...], preferred_element_type=jnp.float32) + bi_ref[...]
    gi_ref[...] = gi.reshape(S, B, H3).astype(jnp.bfloat16)     # bf16 scratch

    def body(i, h):
        t = jnp.where(is_fwd, i, S - 1 - i)
        # Recurrent gates: one fused bf16 (B,H)@(H,3H) matmul, f32 accumulation.
        gh = jnp.dot(h.astype(jnp.bfloat16), wh_ref[...],
                     preferred_element_type=jnp.float32) + bh_ref[...]
        gi_t = gi_ref[t].astype(jnp.float32)              # (B, 3H)
        r = jax.nn.sigmoid(gi_t[:, 0:H] + gh[:, 0:H])
        z = jax.nn.sigmoid(gi_t[:, H:2 * H] + gh[:, H:2 * H])
        n = jnp.tanh(gi_t[:, 2 * H:H3] + r * gh[:, 2 * H:H3])
        h_new = (1.0 - z) * n + z * h
        valid = t < lens                                  # (B, 1)
        h = jnp.where(valid, h_new, h)
        out_ref[t] = jnp.where(valid, h, 0.0)             # pad positions -> 0
        return h

    h0 = jnp.zeros((B, H), jnp.float32)
    hn_ref[...] = lax.fori_loop(0, S, body, h0,
                                unroll=(True if S <= 16 else 8))


def self_attn_ln_kernel(x_ref, wqkv_ref, bqkv_ref, wo_ref, bo_ref,
                        g_ref, b_ref, o_ref, *, num_heads):
    """Fused self-attention + residual + LayerNorm for one batch block."""
    Bb, S, E = x_ref.shape
    hd = E // num_heads
    scale = 1.0 / math.sqrt(hd)

    x2 = x_ref[...].reshape(Bb * S, E)                    # f32
    qkv = _mm(x2, wqkv_ref[...], bqkv_ref[...])           # (Bb*S, 3E) f32
    q = (qkv[:, 0:E] * scale).astype(jnp.bfloat16).reshape(Bb, S, E)
    k = qkv[:, E:2 * E].astype(jnp.bfloat16).reshape(Bb, S, E)
    v = qkv[:, 2 * E:3 * E].astype(jnp.bfloat16).reshape(Bb, S, E)

    ctx = []
    for h in range(num_heads):
        sl = slice(h * hd, (h + 1) * hd)
        s = jnp.einsum('bqd,bkd->bqk', q[..., sl], k[..., sl],
                       preferred_element_type=jnp.float32)        # (Bb, S, S)
        p = _softmax_rows(s)
        ctx.append(jnp.einsum('bqk,bkd->bqd', p.astype(jnp.bfloat16), v[..., sl],
                              preferred_element_type=jnp.float32))
    attn = jnp.concatenate(ctx, axis=-1).reshape(Bb * S, E)
    attn = _mm(attn, wo_ref[...], bo_ref[...])
    o_ref[...] = _layernorm(attn + x2, g_ref[...], b_ref[...]).reshape(Bb, S, E)


def mem_attn_gate_ln_kernel(x_ref, kmem_ref, vmem_ref, wq_ref, bq_ref,
                            wo_ref, bo_ref, wgo_ref, wgm_ref, bg_ref,
                            g_ref, b_ref, o_ref, *, num_heads):
    """Fused memory-attention + sigmoid gate + residual + LayerNorm.

    kmem/vmem are the memory K/V projections, computed ONCE outside the
    batch grid (shared across all batch rows), already bf16.
    """
    Bb, S, E = x_ref.shape
    hd = E // num_heads
    scale = 1.0 / math.sqrt(hd)

    x2 = x_ref[...].reshape(Bb * S, E)
    q = (_mm(x2, wq_ref[...], bq_ref[...]) * scale).astype(jnp.bfloat16)
    kb = kmem_ref[...]                                    # (M, E) bf16
    vb = vmem_ref[...]

    ctx = []
    for h in range(num_heads):
        sl = slice(h * hd, (h + 1) * hd)
        s = jnp.einsum('qd,kd->qk', q[:, sl], kb[:, sl],
                       preferred_element_type=jnp.float32)        # (Bb*S, M)
        p = _softmax_rows(s)
        ctx.append(jnp.dot(p.astype(jnp.bfloat16), vb[:, sl],
                           preferred_element_type=jnp.float32))
    m_out = _mm(jnp.concatenate(ctx, axis=-1), wo_ref[...], bo_ref[...])

    # memory_gate: Linear(2E -> E) on cat([x, m_out]) split into two matmuls.
    gate = jax.nn.sigmoid(_mm(x2, wgo_ref[...], bg_ref[...]) + _mm(m_out, wgm_ref[...]))
    o_ref[...] = _layernorm(x2 + gate * m_out, g_ref[...], b_ref[...]).reshape(Bb, S, E)


def head_kernel(z_ref,
                wp_ref, bp_ref, gp_ref, bep_ref,    # projection Linear + LN (+GELU)
                g3_ref, be3_ref,                    # layer_norm3
                w1_ref, b1_ref, ga_ref, bea_ref,    # output_layer Linear1 + LN (+GELU)
                w2_ref, b2_ref, gb_ref, beb_ref,    # output_layer Linear2 + LN
                w3_ref, b3_ref,                     # final vocab Linear (V-tiled)
                out_ref, pred_ref, h2_ref):
    """Projection head; vocab projection tiled over V with grid axis 1."""
    j = pl.program_id(1)
    Bb, S, E = z_ref.shape

    @pl.when(j == 0)
    def _():
        z = z_ref[...].reshape(Bb * S, E)
        p = _mm(z, wp_ref[...], bp_ref[...])
        p = _gelu(_layernorm(p, gp_ref[...], bep_ref[...]))
        outp = _layernorm(p, g3_ref[...], be3_ref[...])
        out_ref[...] = outp.reshape(Bb, S, outp.shape[-1])
        h1 = _gelu(_layernorm(_mm(outp, w1_ref[...], b1_ref[...]),
                              ga_ref[...], bea_ref[...]))
        h2 = _layernorm(_mm(h1, w2_ref[...], b2_ref[...]), gb_ref[...], beb_ref[...])
        h2_ref[...] = h2.astype(jnp.bfloat16)             # persists across V tiles

    logits = (jnp.dot(h2_ref[...], w3_ref[...], preferred_element_type=jnp.float32)
              + b3_ref[...])
    pred_ref[...] = logits.reshape(Bb, S, logits.shape[-1]).astype(pred_ref.dtype)


# ------------------------------ spec helpers ----------------------------------

def _zero_map(nd, *_):
    return (0,) * nd


def _shared_specs(arrays):
    return [pl.BlockSpec(a.shape, functools.partial(_zero_map, a.ndim)) for a in arrays]


# ------------------------------ parameters -----------------------------------

def init_params(key, vocab_size, hidden_size, memory_size):
    H = hidden_size
    E = 2 * H
    V = vocab_size
    ks = iter(jax.random.split(key, 64))

    def w(shape, scale=0.1, dtype=jnp.bfloat16):
        return (scale * jax.random.normal(next(ks), shape, jnp.float32)).astype(dtype)

    zeros = lambda s: jnp.zeros(s, jnp.float32)
    ones = lambda s: jnp.ones(s, jnp.float32)

    p = {}
    emb = 0.1 * jax.random.normal(next(ks), (V, H), jnp.float32)
    emb = emb.at[0].set(0.0)                              # padding_idx=0
    p["emb"] = emb
    p["pos"] = 0.1 * jax.random.normal(next(ks), (512, H), jnp.float32)

    # BiGRU: direction-stacked [forward, backward] weights; gate order [r|z|n].
    p["gru_wi"] = w((2, H, 3 * H))                        # bf16
    p["gru_wh"] = w((2, H, 3 * H))                        # bf16 (bf16 recurrence)
    p["gru_bi"] = zeros((2, 1, 3 * H))
    p["gru_bh"] = zeros((2, 1, 3 * H))

    # self-attention: fused QKV projection.
    p["sa_wqkv"] = w((E, 3 * E)); p["sa_bqkv"] = zeros((1, 3 * E))
    p["sa_wo"] = w((E, E)); p["sa_bo"] = zeros((1, E))

    # memory attention.
    p["ma_wq"] = w((E, E)); p["ma_bq"] = zeros((1, E))
    p["ma_wk"] = w((E, E)); p["ma_bk"] = zeros((1, E))
    p["ma_wv"] = w((E, E)); p["ma_bv"] = zeros((1, E))
    p["ma_wo"] = w((E, E)); p["ma_bo"] = zeros((1, E))
    p["memory"] = 0.02 * jax.random.normal(next(ks), (memory_size, E), jnp.float32)
    p["gate_wo"] = w((E, E)); p["gate_wm"] = w((E, E)); p["gate_b"] = zeros((1, E))

    p["ln1_g"] = ones((1, E)); p["ln1_b"] = zeros((1, E))
    p["ln2_g"] = ones((1, E)); p["ln2_b"] = zeros((1, E))

    p["proj_w"] = w((E, H)); p["proj_b"] = zeros((1, H))
    p["proj_ln_g"] = ones((1, H)); p["proj_ln_b"] = zeros((1, H))
    p["ln3_g"] = ones((1, H)); p["ln3_b"] = zeros((1, H))
    p["out_w1"] = w((H, 2 * H)); p["out_b1"] = zeros((1, 2 * H))
    p["out_ln1_g"] = ones((1, 2 * H)); p["out_ln1_b"] = zeros((1, 2 * H))
    p["out_w2"] = w((2 * H, H)); p["out_b2"] = zeros((1, H))
    p["out_ln2_g"] = ones((1, H)); p["out_ln2_b"] = zeros((1, H))
    # final vocab projection initialized from the (cloned) embedding weight.
    p["out_w3"] = jnp.transpose(emb).astype(jnp.bfloat16)
    p["out_b3"] = zeros((1, V))
    return p


# -------------------------------- forward ------------------------------------

def resonance_forward(params, x, lengths, *, num_heads=4, block_b=None, tile_v=None):
    B, S = x.shape
    V, H = params["emb"].shape
    E = 2 * H
    f32 = jnp.float32

    # ---- embedding + positional encoding, gathered directly time-major ----
    xc = jnp.clip(x, 0, V - 1)
    emb_t = (params["emb"][xc.T] + params["pos"][:S][:, None, :]).astype(f32)  # (S,B,H)
    len2d = lengths.reshape(B, 1).astype(jnp.int32)

    # ---- bidirectional GRU: grid=(2,) over direction (both TCs on v7x) ----
    vmem_est = (4 * S * B * H                  # emb (resident, f32)
                + 2 * 2 * (2 * H * 3 * H)      # wi, wh bf16, double-buffered
                + 2 * S * B * 3 * H            # gi scratch (bf16)
                + 2 * 4 * S * B * H            # out block, double-buffered
                + 2 * 4 * B * H                # h_n
                + (1 << 20))
    gru_cp = pltpu.CompilerParams(
        dimension_semantics=("parallel",),
        vmem_limit_bytes=int(max(2 * vmem_est, 32 * 1024 * 1024)))

    out_dir, hidden = pl.pallas_call(
        bigru_kernel,
        out_shape=(jax.ShapeDtypeStruct((2, S, B, H), f32),
                   jax.ShapeDtypeStruct((2, B, H), f32)),
        grid=(2,),
        in_specs=[
            pl.BlockSpec((B, 1), lambda d: (0, 0)),               # lengths
            pl.BlockSpec((S, B, H), lambda d: (0, 0, 0)),         # embeddings
            pl.BlockSpec((None, H, 3 * H), lambda d: (d, 0, 0)),  # Wi (per dir)
            pl.BlockSpec((None, H, 3 * H), lambda d: (d, 0, 0)),  # Wh (per dir)
            pl.BlockSpec((None, 1, 3 * H), lambda d: (d, 0, 0)),  # bi
            pl.BlockSpec((None, 1, 3 * H), lambda d: (d, 0, 0)),  # bh
        ],
        out_specs=(pl.BlockSpec((None, S, B, H), lambda d: (d, 0, 0, 0)),
                   pl.BlockSpec((None, B, H), lambda d: (d, 0, 0))),
        scratch_shapes=[pltpu.VMEM((S, B, 3 * H), jnp.bfloat16)],
        compiler_params=gru_cp,
    )(len2d, emb_t, params["gru_wi"], params["gru_wh"],
      params["gru_bi"], params["gru_bh"])

    # concat directions + batch-major relayout in one fused XLA pass.
    gru_out = jnp.transpose(jnp.concatenate([out_dir[0], out_dir[1]], axis=-1),
                            (1, 0, 2))                             # (B, S, 2H)

    # ---- batch blocking for attention / head kernels ----
    if block_b is None:
        block_b = B // 2 if (B % 2 == 0 and B >= 2) else 1
    assert B % block_b == 0
    nb = B // block_b
    parallel = pltpu.CompilerParams(dimension_semantics=("parallel",))

    def batched_spec(trailing):
        n = len(trailing)
        return pl.BlockSpec((block_b,) + tuple(trailing),
                            lambda i, *rest, _n=n: (i,) + (0,) * _n)

    # ---- fused self-attention + residual + LayerNorm ----
    sa_shared = (params["sa_wqkv"], params["sa_bqkv"], params["sa_wo"], params["sa_bo"],
                 params["ln1_g"], params["ln1_b"])
    out1 = pl.pallas_call(
        functools.partial(self_attn_ln_kernel, num_heads=num_heads),
        out_shape=jax.ShapeDtypeStruct((B, S, E), f32),
        grid=(nb,),
        in_specs=[batched_spec((S, E))] + _shared_specs(sa_shared),
        out_specs=batched_spec((S, E)),
        compiler_params=parallel,
    )(gru_out, *sa_shared)

    # ---- memory K/V projected once, shared across the batch grid ----
    mem_bf = params["memory"].astype(jnp.bfloat16)
    mem_k = (jnp.dot(mem_bf, params["ma_wk"], preferred_element_type=f32)
             + params["ma_bk"]).astype(jnp.bfloat16)
    mem_v = (jnp.dot(mem_bf, params["ma_wv"], preferred_element_type=f32)
             + params["ma_bv"]).astype(jnp.bfloat16)

    ma_shared = (mem_k, mem_v, params["ma_wq"], params["ma_bq"],
                 params["ma_wo"], params["ma_bo"],
                 params["gate_wo"], params["gate_wm"], params["gate_b"],
                 params["ln2_g"], params["ln2_b"])
    out2 = pl.pallas_call(
        functools.partial(mem_attn_gate_ln_kernel, num_heads=num_heads),
        out_shape=jax.ShapeDtypeStruct((B, S, E), f32),
        grid=(nb,),
        in_specs=[batched_spec((S, E))] + _shared_specs(ma_shared),
        out_specs=batched_spec((S, E)),
        compiler_params=parallel,
    )(out1, *ma_shared)

    # ---- memory buffer update (tiny; stays in XLA, faithful to reference:
    #      softmax over dim=0, which is a singleton axis) ----
    last_state = out2[:, -1][None]                                   # (1, B, E)
    aw = jnp.matmul(params["memory"], jnp.swapaxes(last_state, 1, 2))  # (1, M, B)
    aw = jax.nn.softmax(aw / math.sqrt(E), axis=0)
    mem_update = jnp.matmul(aw, last_state)                          # (1, M, E)
    new_memory = 0.95 * params["memory"] + 0.05 * mem_update[0]

    # ---- projection head + output layer, vocab projection tiled over V ----
    if tile_v is None:
        if V % 128 != 0:
            tile_v = V
        else:
            tile_v = min(V, 2048)
            while V % tile_v != 0:
                tile_v -= 128
    assert V % tile_v == 0
    nv = V // tile_v

    head_fixed = (params["proj_w"], params["proj_b"], params["proj_ln_g"], params["proj_ln_b"],
                  params["ln3_g"], params["ln3_b"],
                  params["out_w1"], params["out_b1"], params["out_ln1_g"], params["out_ln1_b"],
                  params["out_w2"], params["out_b2"], params["out_ln2_g"], params["out_ln2_b"])
    out3, pred = pl.pallas_call(
        head_kernel,
        out_shape=(jax.ShapeDtypeStruct((B, S, H), f32),
                   jax.ShapeDtypeStruct((B, S, V), jnp.bfloat16)),
        grid=(nb, nv),
        in_specs=([pl.BlockSpec((block_b, S, E), lambda i, j: (i, 0, 0))]
                  + _shared_specs(head_fixed)
                  + [pl.BlockSpec((H, tile_v), lambda i, j: (0, j)),     # vocab W tile
                     pl.BlockSpec((1, tile_v), lambda i, j: (0, j))]),   # vocab b tile
        out_specs=(pl.BlockSpec((block_b, S, H), lambda i, j: (i, 0, 0)),
                   pl.BlockSpec((block_b, S, tile_v), lambda i, j: (i, 0, j))),
        scratch_shapes=[pltpu.VMEM((block_b * S, H), jnp.bfloat16)],
        compiler_params=pltpu.CompilerParams(
            dimension_semantics=("parallel", "arbitrary")),
    )(out2, *head_fixed, params["out_w3"], params["out_b3"])

    return pred, out3, hidden, new_memory


# ---------------------------------- main --------------------------------------

if __name__ == "__main__":
    B, S = 2, 8
    H = 64          # hidden_size -> bidirectional_size E = 128, 4 heads of dim 32
    V = 256         # vocab_size (small demo)
    M = 32          # memory_size

    key = jax.random.PRNGKey(0)
    kp, kx = jax.random.split(key)
    params = init_params(kp, V, H, M)

    x = jax.random.randint(kx, (B, S), 0, V, dtype=jnp.int32)
    lengths = jnp.array([S, 5], dtype=jnp.int32)   # max(lengths) == S

    # tile_v=128 exercises the V-tiled vocab-projection grid axis (2 tiles).
    fwd = jax.jit(functools.partial(resonance_forward, tile_v=128))
    pred, out, hidden, new_memory = fwd(params, x, lengths)
    jax.block_until_ready((pred, out, hidden, new_memory))

    assert pred.shape == (B, S, V)
    assert out.shape == (B, S, H)
    assert hidden.shape == (2, B, H)
    assert new_memory.shape == (M, 2 * H)
    assert bool(jnp.all(jnp.isfinite(pred.astype(jnp.float32))))
    assert bool(jnp.all(jnp.isfinite(new_memory)))
    print("KERNEL_OK")
</pallas_src>

<mosaic_0001>
module attributes {stable_mosaic.version = 11 : i64} {
  func.func @bigru_kernel(%arg0: i32, %arg1: memref<2x1xi32, #tpu.memory_space<vmem>>, %arg2: memref<8x2x64xf32, #tpu.memory_space<vmem>>, %arg3: memref<1x64x192xbf16, #tpu.memory_space<vmem>>, %arg4: memref<1x64x192xbf16, #tpu.memory_space<vmem>>, %arg5: memref<1x1x192xf32, #tpu.memory_space<vmem>>, %arg6: memref<1x1x192xf32, #tpu.memory_space<vmem>>, %arg7: memref<1x8x2x64xf32, #tpu.memory_space<vmem>>, %arg8: memref<1x2x64xf32, #tpu.memory_space<vmem>>, %arg9: memref<8x2x192xbf16, #tpu.memory_space<vmem>>) attributes {dimension_semantics = [#tpu.dimension_semantics<parallel>], iteration_bounds = array<i64: 2>, scalar_prefetch = 0 : i64, scratch_operands = 1 : i64, tpu.core_type = #tpu.core_type<tc>, window_params = [{pipeline_mode = #tpu.pipeline_mode<synchronous>, transform_indices = @transform_0, window_bounds = array<i64: 2, 1>}, {pipeline_mode = #tpu.pipeline_mode<synchronous>, transform_indices = @transform_1, window_bounds = array<i64: 8, 2, 64>}, {transform_indices = @transform_2, window_bounds = array<i64: 1, 64, 192>}, {transform_indices = @transform_3, window_bounds = array<i64: 1, 64, 192>}, {transform_indices = @transform_4, window_bounds = array<i64: 1, 1, 192>}, {transform_indices = @transform_5, window_bounds = array<i64: 1, 1, 192>}, {transform_indices = @transform_6, window_bounds = array<i64: 1, 8, 2, 64>}, {transform_indices = @transform_7, window_bounds = array<i64: 1, 2, 64>}]} {
    %c0_i32 = arith.constant 0 : i32
    %0 = arith.cmpi eq, %arg0, %c0_i32 : i32
    %c0 = arith.constant 0 : index
    %c0_0 = arith.constant 0 : index
    %1 = vector.load %arg1[%c0, %c0_0] : memref<2x1xi32, #tpu.memory_space<vmem>>, vector<2x1xi32>
    %c0_1 = arith.constant 0 : index
    %c0_2 = arith.constant 0 : index
    %c0_3 = arith.constant 0 : index
    %2 = vector.load %arg2[%c0_1, %c0_2, %c0_3] : memref<8x2x64xf32, #tpu.memory_space<vmem>>, vector<8x2x64xf32>
    %3 = vector.shape_cast %2 : vector<8x2x64xf32> to vector<16x64xf32>
    %4 = arith.truncf %3 : vector<16x64xf32> to vector<16x64xbf16>
    %c0_4 = arith.constant 0 : index
    %c0_5 = arith.constant 0 : index
    %c0_6 = arith.constant 0 : index
    %5 = vector.load %arg3[%c0_4, %c0_5, %c0_6] : memref<1x64x192xbf16, #tpu.memory_space<vmem>>, vector<1x64x192xbf16>
    %6 = vector.shape_cast %5 : vector<1x64x192xbf16> to vector<64x192xbf16>
    %cst = arith.constant dense<0.000000e+00> : vector<16x192xf32>
    %7 = tpu.matmul %4, %6, %cst {dimension_numbers = #tpu.dot_dimension_numbers<[1], [0], [0], [1], [0, 0, 1, 1], [], []>} : vector<16x64xbf16>, vector<64x192xbf16>, vector<16x192xf32> -> vector<16x192xf32>
    %c0_7 = arith.constant 0 : index
    %c0_8 = arith.constant 0 : index
    %c0_9 = arith.constant 0 : index
    %8 = vector.load %arg5[%c0_7, %c0_8, %c0_9] : memref<1x1x192xf32, #tpu.memory_space<vmem>>, vector<1x1x192xf32>
    %9 = vector.shape_cast %8 : vector<1x1x192xf32> to vector<1x192xf32>
    %10 = vector.broadcast %9 : vector<1x192xf32> to vector<16x192xf32>
    %11 = arith.addf %7, %10 : vector<16x192xf32>
    %12 = vector.shape_cast %11 : vector<16x192xf32> to vector<8x2x192xf32>
    %13 = arith.truncf %12 : vector<8x2x192xf32> to vector<8x2x192xbf16>
    %c0_10 = arith.constant 0 : index
    %c0_11 = arith.constant 0 : index
    %c0_12 = arith.constant 0 : index
    %14 = vector.load %arg9[%c0_10, %c0_11, %c0_12] : memref<8x2x192xbf16, #tpu.memory_space<vmem>>, vector<8x2x192xbf16>
    tpu.vector_store %arg9[%c0_10, %c0_11, %c0_12], %13 {strides = array<i32>} : memref<8x2x192xbf16, #tpu.memory_space<vmem>>, vector<8x2x192xbf16>,
    %cst_13 = arith.constant 0.000000e+00 : f32
    %15 = vector.broadcast %cst_13 : f32 to vector<2x64xf32>
    %c0_i32_14 = arith.constant 0 : i32
    %c7_i32 = arith.constant 7 : i32
    %16 = arith.subi %c7_i32, %c0_i32_14 : i32
    %17 = arith.select %0, %c0_i32_14, %16 : i32
    %18 = arith.truncf %15 : vector<2x64xf32> to vector<2x64xbf16>
    %c0_15 = arith.constant 0 : index
    %c0_16 = arith.constant 0 : index
    %c0_17 = arith.constant 0 : index
    %19 = vector.load %arg4[%c0_15, %c0_16, %c0_17] : memref<1x64x192xbf16, #tpu.memory_space<vmem>>, vector<1x64x192xbf16>
    %20 = vector.shape_cast %19 : vector<1x64x192xbf16> to vector<64x192xbf16>
    %cst_18 = arith.constant dense<0.000000e+00> : vector<2x192xf32>
    %21 = tpu.matmul %18, %20, %cst_18 {dimension_numbers = #tpu.dot_dimension_numbers<[1], [0], [0], [1], [0, 0, 1, 1], [], []>} : vector<2x64xbf16>, vector<64x192xbf16>, vector<2x192xf32> -> vector<2x192xf32>
    %c0_19 = arith.constant 0 : index
    %c0_20 = arith.constant 0 : index
    %c0_21 = arith.constant 0 : index
    %22 = vector.load %arg6[%c0_19, %c0_20, %c0_21] : memref<1x1x192xf32, #tpu.memory_space<vmem>>, vector<1x1x192xf32>
    %23 = vector.shape_cast %22 : vector<1x1x192xf32> to vector<1x192xf32>
    %24 = vector.broadcast %23 : vector<1x192xf32> to vector<2x192xf32>
    %25 = arith.addf %21, %24 : vector<2x192xf32>
    %26 = arith.index_cast %17 : i32 to index
    %c0_22 = arith.constant 0 : index
    %c0_23 = arith.constant 0 : index
    %27 = vector.load %arg9[%26, %c0_22, %c0_23] : memref<8x2x192xbf16, #tpu.memory_space<vmem>>, vector<1x2x192xbf16>
    %28 = vector.shape_cast %27 : vector<1x2x192xbf16> to vector<2x192xbf16>
    %29 = arith.extf %28 : vector<2x192xbf16> to vector<2x192xf32>
    %30 = vector.extract_strided_slice %29 {offsets = [0, 0], sizes = [2, 64], strides = [1, 1]} : vector<2x192xf32> to vector<2x64xf32>
    %31 = vector.extract_strided_slice %25 {offsets = [0, 0], sizes = [2, 64], strides = [1, 1]} : vector<2x192xf32> to vector<2x64xf32>
    %32 = arith.addf %30, %31 : vector<2x64xf32>
    %33 = arith.negf %32 : vector<2x64xf32>
    %34 = math.exp %33 : vector<2x64xf32>
    %cst_24 = arith.constant 1.000000e+00 : f32
    %35 = vector.broadcast %cst_24 : f32 to vector<2x64xf32>
    %36 = arith.addf %35, %34 : vector<2x64xf32>
    %37 = arith.divf %35, %36 : vector<2x64xf32>
    %38 = vector.extract_strided_slice %29 {offsets = [0, 64], sizes = [2, 64], strides = [1, 1]} : vector<2x192xf32> to vector<2x64xf32>
    %39 = vector.extract_strided_slice %25 {offsets = [0, 64], sizes = [2, 64], strides = [1, 1]} : vector<2x192xf32> to vector<2x64xf32>
    %40 = arith.addf %38, %39 : vector<2x64xf32>
    %41 = arith.negf %40 : vector<2x64xf32>
    %42 = math.exp %41 : vector<2x64xf32>
    %cst_25 = arith.constant 1.000000e+00 : f32
    %43 = vector.broadcast %cst_25 : f32 to vector<2x64xf32>
    %44 = arith.addf %43, %42 : vector<2x64xf32>
    %45 = arith.divf %43, %44 : vector<2x64xf32>
    %46 = vector.extract_strided_slice %29 {offsets = [0, 128], sizes = [2, 64], strides = [1, 1]} : vector<2x192xf32> to vector<2x64xf32>
    %47 = vector.extract_strided_slice %25 {offsets = [0, 128], sizes = [2, 64], strides = [1, 1]} : vector<2x192xf32> to vector<2x64xf32>
    %48 = arith.mulf %37, %47 : vector<2x64xf32>
    %49 = arith.addf %46, %48 : vector<2x64xf32>
    %50 = math.tanh %49 : vector<2x64xf32>
    %cst_26 = arith.constant 1.000000e+00 : f32
    %51 = vector.broadcast %cst_26 : f32 to vector<2x64xf32>
    %52 = arith.subf %51, %45 : vector<2x64xf32>
    %53 = arith.mulf %52, %50 : vector<2x64xf32>
    %54 = arith.mulf %45, %15 : vector<2x64xf32>
    %55 = arith.addf %53, %54 : vector<2x64xf32>
    %56 = vector.broadcast %17 : i32 to vector<2x1xi32>
    %57 = arith.cmpi slt, %56, %1 : vector<2x1xi32>
    %58 = vector.shape_cast %57 : vector<2x1xi1> to vector<2x1xi1>
    %59 = vector.broadcast %58 : vector<2x1xi1> to vector<2x64xi1>
    %60 = arith.select %59, %55, %15 : vector<2x64xi1>, vector<2x64xf32>
    %cst_27 = arith.constant 0.000000e+00 : f32
    %61 = vector.shape_cast %57 : vector<2x1xi1> to vector<2x1xi1>
    %62 = vector.broadcast %61 : vector<2x1xi1> to vector<2x64xi1>
    %63 = vector.broadcast %cst_27 : f32 to vector<2x64xf32>
    %64 = arith.select %62, %60, %63 : vector<2x64xi1>, vector<2x64xf32>
    %c0_28 = arith.constant 0 : index
    %65 = arith.index_cast %17 : i32 to index
    %c0_29 = arith.constant 0 : index
    %c0_30 = arith.constant 0 : index
    %66 = vector.load %arg7[%c0_28, %65, %c0_29, %c0_30] : memref<1x8x2x64xf32, #tpu.memory_space<vmem>>, vector<1x1x2x64xf32>
    %67 = vector.shape_cast %66 : vector<1x1x2x64xf32> to vector<2x64xf32>
    %68 = vector.shape_cast %64 : vector<2x64xf32> to vector<1x1x2x64xf32>
    tpu.vector_store %arg7[%c0_28, %65, %c0_29, %c0_30], %68 {strides = array<i32>} : memref<1x8x2x64xf32, #tpu.memory_space<vmem>>, vector<1x1x2x64xf32>,
    %c1_i32 = arith.constant 1 : i32
    %c7_i32_31 = arith.constant 7 : i32
    %69 = arith.subi %c7_i32_31, %c1_i32 : i32
    %70 = arith.select %0, %c1_i32, %69 : i32
    %71 = arith.truncf %60 : vector<2x64xf32> to vector<2x64xbf16>
    %c0_32 = arith.constant 0 : index
    %c0_33 = arith.constant 0 : index
    %c0_34 = arith.constant 0 : index
    %72 = vector.load %arg4[%c0_32, %c0_33, %c0_34] : memref<1x64x192xbf16, #tpu.memory_space<vmem>>, vector<1x64x192xbf16>
    %73 = vector.shape_cast %72 : vector<1x64x192xbf16> to vector<64x192xbf16>
    %cst_35 = arith.constant dense<0.000000e+00> : vector<2x192xf32>
    %74 = tpu.matmul %71, %73, %cst_35 {dimension_numbers = #tpu.dot_dimension_numbers<[1], [0], [0], [1], [0, 0, 1, 1], [], []>} : vector<2x64xbf16>, vector<64x192xbf16>, vector<2x192xf32> -> vector<2x192xf32>
    %c0_36 = arith.constant 0 : index
    %c0_37 = arith.constant 0 : index
    %c0_38 = arith.constant 0 : index
    %75 = vector.load %arg6[%c0_36, %c0_37, %c0_38] : memref<1x1x192xf32, #tpu.memory_space<vmem>>, vector<1x1x192xf32>
    %76 = vector.shape_cast %75 : vector<1x1x192xf32> to vector<1x192xf32>
    %77 = vector.broadcast %76 : vector<1x192xf32> to vector<2x192xf32>
    %78 = arith.addf %74, %77 : vector<2x192xf32>
    %79 = arith.index_cast %70 : i32 to index
    %c0_39 = arith.constant 0 : index
    %c0_40 = arith.constant 0 : index
    %80 = vector.load %arg9[%79, %c0_39, %c0_40] : memref<8x2x192xbf16, #tpu.memory_space<vmem>>, vector<1x2x192xbf16>
    %81 = vector.shape_cast %80 : vector<1x2x192xbf16> to vector<2x192xbf16>
    %82 = arith.extf %81 : vector<2x192xbf16> to vector<2x192xf32>
    %83 = vector.extract_strided_slice %82 {offsets = [0, 0], sizes = [2, 64], strides = [1, 1]} : vector<2x192xf32> to vector<2x64xf32>
    %84 = vector.extract_strided_slice %78 {offsets = [0, 0], sizes = [2, 64], strides = [1, 1]} : vector<2x192xf32> to vector<2x64xf32>
    %85 = arith.addf %83, %84 : vector<2x64xf32>
    %86 = arith.negf %85 : vector<2x64xf32>
    %87 = math.exp %86 : vector<2x64xf32>
    %cst_41 = arith.constant 1.000000e+00 : f32
    %88 = vector.broadcast %cst_41 : f32 to vector<2x64xf32>
    %89 = arith.addf %88, %87 : vector<2x64xf32>
    %90 = arith.divf %88, %89 : vector<2x64xf32>
    %91 = vector.extract_strided_slice %82 {offsets = [0, 64], sizes = [2, 64], strides = [1, 1]} : vector<2x192xf32> to vector<2x64xf32>
    %92 = vector.extract_strided_slice %78 {offsets = [0, 64], sizes = [2, 64], strides = [1, 1]} : vector<2x192xf32> to vector<2x64xf32>
    %93 = arith.addf %91, %92 : vector<2x64xf32>
    %94 = arith.negf %93 : vector<2x64xf32>
    %95 = math.exp %94 : vector<2x64xf32>
    %cst_42 = arith.constant 1.000000e+00 : f32
    %96 = vector.broadcast %cst_42 : f32 to vector<2x64xf32>
    %97 = arith.addf %96, %95 : vector<2x64xf32>
    %98 = arith.divf %96, %97 : vector<2x64xf32>
    %99 = vector.extract_strided_slice %82 {offsets = [0, 128], sizes = [2, 64], strides = [1, 1]} : vector<2x192xf32> to vector<2x64xf32>
    %100 = vector.extract_strided_slice %78 {offsets = [0, 128], sizes = [2, 64], strides = [1, 1]} : vector<2x192xf32> to vector<2x64xf32>
    %101 = arith.mulf %90, %100 : vector<2x64xf32>
    %102 = arith.addf %99, %101 : vector<2x64xf32>
    %103 = math.tanh %102 : vector<2x64xf32>
    %cst_43 = arith.constant 1.000000e+00 : f32
    %104 = vector.broadcast %cst_43 : f32 to vector<2x64xf32>
    %105 = arith.subf %104, %98 : vector<2x64xf32>
    %106 = arith.mulf %105, %103 : vector<2x64xf32>
    %107 = arith.mulf %98, %60 : vector<2x64xf32>
    %108 = arith.addf %106, %107 : vector<2x64xf32>
    %109 = vector.broadcast %70 : i32 to vector<2x1xi32>
    %110 = arith.cmpi slt, %109, %1 : vector<2x1xi32>
    %111 = vector.shape_cast %110 : vector<2x1xi1> to vector<2x1xi1>
    %112 = vector.broadcast %111 : vector<2x1xi1> to vector<2x64xi1>
    %113 = arith.select %112, %108, %60 : vector<2x64xi1>, vector<2x64xf32>
    %cst_44 = arith.constant 0.000000e+00 : f32
    %114 = vector.shape_cast %110 : vector<2x1xi1> to vector<2x1xi1>
    %115 = vector.broadcast %114 : vector<2x1xi1> to vector<2x64xi1>
    %116 = vector.broadcast %cst_44 : f32 to vector<2x64xf32>
    %117 = arith.select %115, %113, %116 : vector<2x64xi1>, vector<2x64xf32>
    %c0_45 = arith.constant 0 : index
    %118 = arith.index_cast %70 : i32 to index
    %c0_46 = arith.constant 0 : index
    %c0_47 = arith.constant 0 : index
    %119 = vector.load %arg7[%c0_45, %118, %c0_46, %c0_47] : memref<1x8x2x64xf32, #tpu.memory_space<vmem>>, vector<1x1x2x64xf32>
    %120 = vector.shape_cast %119 : vector<1x1x2x64xf32> to vector<2x64xf32>
    %121 = vector.shape_cast %117 : vector<2x64xf32> to vector<1x1x2x64xf32>
    tpu.vector_store %arg7[%c0_45, %118, %c0_46, %c0_47], %121 {strides = array<i32>} : memref<1x8x2x64xf32, #tpu.memory_space<vmem>>, vector<1x1x2x64xf32>,
    %c2_i32 = arith.constant 2 : i32
    %c7_i32_48 = arith.constant 7 : i32
    %122 = arith.subi %c7_i32_48, %c2_i32 : i32
    %123 = arith.select %0, %c2_i32, %122 : i32
    %124 = arith.truncf %113 : vector<2x64xf32> to vector<2x64xbf16>
    %c0_49 = arith.constant 0 : index
    %c0_50 = arith.constant 0 : index
    %c0_51 = arith.constant 0 : index
    %125 = vector.load %arg4[%c0_49, %c0_50, %c0_51] : memref<1x64x192xbf16, #tpu.memory_space<vmem>>, vector<1x64x192xbf16>
    %126 = vector.shape_cast %125 : vector<1x64x192xbf16> to vector<64x192xbf16>
    %cst_52 = arith.constant dense<0.000000e+00> : vector<2x192xf32>
    %127 = tpu.matmul %124, %126, %cst_52 {dimension_numbers = #tpu.dot_dimension_numbers<[1], [0], [0], [1], [0, 0, 1, 1], [], []>} : vector<2x64xbf16>, vector<64x192xbf16>, vector<2x192xf32> -> vector<2x192xf32>
    %c0_53 = arith.constant 0 : index
    %c0_54 = arith.constant 0 : index
    %c0_55 = arith.constant 0 : index
    %128 = vector.load %arg6[%c0_53, %c0_54, %c0_55] : memref<1x1x192xf32, #tpu.memory_space<vmem>>, vector<1x1x192xf32>
    %129 = vector.shape_cast %128 : vector<1x1x192xf32> to vector<1x192xf32>
    %130 = vector.broadcast %129 : vector<1x192xf32> to vector<2x192xf32>
    %131 = arith.addf %127, %130 : vector<2x192xf32>
    %132 = arith.index_cast %123 : i32 to index
    %c0_56 = arith.constant 0 : index
    %c0_57 = arith.constant 0 : index
    %133 = vector.load %arg9[%132, %c0_56, %c0_57] : memref<8x2x192xbf16, #tpu.memory_space<vmem>>, vector<1x2x192xbf16>
    %134 = vector.shape_cast %133 : vector<1x2x192xbf16> to vector<2x192xbf16>
    %135 = arith.extf %134 : vector<2x192xbf16> to vector<2x192xf32>
    %136 = vector.extract_strided_slice %135 {offsets = [0, 0], sizes = [2, 64], strides = [1, 1]} : vector<2x192xf32> to vector<2x64xf32>
    %137 = vector.extract_strided_slice %131 {offsets = [0, 0], sizes = [2, 64], strides = [1, 1]} : vector<2x192xf32> to vector<2x64xf32>
    %138 = arith.addf %136, %137 : vector<2x64xf32>
    %139 = arith.negf %138 : vector<2x64xf32>
    %140 = math.exp %139 : vector<2x64xf32>
    %cst_58 = arith.constant 1.000000e+00 : f32
    %141 = vector.broadcast %cst_58 : f32 to vector<2x64xf32>
    %142 = arith.addf %141, %140 : vector<2x64xf32>
    %143 = arith.divf %141, %142 : vector<2x64xf32>
    %144 = vector.extract_strided_slice %135 {offsets = [0, 64], sizes = [2, 64], strides = [1, 1]} : vector<2x192xf32> to vector<2x64xf32>
    %145 = vector.extract_strided_slice %131 {offsets = [0, 64], sizes = [2, 64], strides = [1, 1]} : vector<2x192xf32> to vector<2x64xf32>
    %146 = arith.addf %144, %145 : vector<2x64xf32>
    %147 = arith.negf %146 : vector<2x64xf32>
    %148 = math.exp %147 : vector<2x64xf32>
    %cst_59 = arith.constant 1.000000e+00 : f32
    %149 = vector.broadcast %cst_59 : f32 to vector<2x64xf32>
    %150 = arith.addf %149, %148 : vector<2x64xf32>
    %151 = arith.divf %149, %150 : vector<2x64xf32>
    %152 = vector.extract_strided_slice %135 {offsets = [0, 128], sizes = [2, 64], strides = [1, 1]} : vector<2x192xf32> to vector<2x64xf32>
    %153 = vector.extract_strided_slice %131 {offsets = [0, 128], sizes = [2, 64], strides = [1, 1]} : vector<2x192xf32> to vector<2x64xf32>
    %154 = arith.mulf %143, %153 : vector<2x64xf32>
    %155 = arith.addf %152, %154 : vector<2x64xf32>
    %156 = math.tanh %155 : vector<2x64xf32>
    %cst_60 = arith.constant 1.000000e+00 : f32
    %157 = vector.broadcast %cst_60 : f32 to vector<2x64xf32>
    %158 = arith.subf %157, %151 : vector<2x64xf32>
    %159 = arith.mulf %158, %156 : vector<2x64xf32>
    %160 = arith.mulf %151, %113 : vector<2x64xf32>
    %161 = arith.addf %159, %160 : vector<2x64xf32>
    %162 = vector.broadcast %123 : i32 to vector<2x1xi32>
    %163 = arith.cmpi slt, %162, %1 : vector<2x1xi32>
    %164 = vector.shape_cast %163 : vector<2x1xi1> to vector<2x1xi1>
    %165 = vector.broadcast %164 : vector<2x1xi1> to vector<2x64xi1>
    %166 = arith.select %165, %161, %113 : vector<2x64xi1>, vector<2x64xf32>
    %cst_61 = arith.constant 0.000000e+00 : f32
    %167 = vector.shape_cast %163 : vector<2x1xi1> to vector<2x1xi1>
    %168 = vector.broadcast %167 : vector<2x1xi1> to vector<2x64xi1>
    %169 = vector.broadcast %cst_61 : f32 to vector<2x64xf32>
    %170 = arith.select %168, %166, %169 : vector<2x64xi1>, vector<2x64xf32>
    %c0_62 = arith.constant 0 : index
    %171 = arith.index_cast %123 : i32 to index
    %c0_63 = arith.constant 0 : index
    %c0_64 = arith.constant 0 : index
    %172 = vector.load %arg7[%c0_62, %171, %c0_63, %c0_64] : memref<1x8x2x64xf32, #tpu.memory_space<vmem>>, vector<1x1x2x64xf32>
    %173 = vector.shape_cast %172 : vector<1x1x2x64xf32> to vector<2x64xf32>
    %174 = vector.shape_cast %170 : vector<2x64xf32> to vector<1x1x2x64xf32>
    tpu.vector_store %arg7[%c0_62, %171, %c0_63, %c0_64], %174 {strides = array<i32>} : memref<1x8x2x64xf32, #tpu.memory_space<vmem>>, vector<1x1x2x64xf32>,
    %c3_i32 = arith.constant 3 : i32
    %c7_i32_65 = arith.constant 7 : i32
    %175 = arith.subi %c7_i32_65, %c3_i32 : i32
    %176 = arith.select %0, %c3_i32, %175 : i32
    %177 = arith.truncf %166 : vector<2x64xf32> to vector<2x64xbf16>
    %c0_66 = arith.constant 0 : index
    %c0_67 = arith.constant 0 : index
    %c0_68 = arith.constant 0 : index
    %178 = vector.load %arg4[%c0_66, %c0_67, %c0_68] : memref<1x64x192xbf16, #tpu.memory_space<vmem>>, vector<1x64x192xbf16>
    %179 = vector.shape_cast %178 : vector<1x64x192xbf16> to vector<64x192xbf16>
    %cst_69 = arith.constant dense<0.000000e+00> : vector<2x192xf32>
    %180 = tpu.matmul %177, %179, %cst_69 {dimension_numbers = #tpu.dot_dimension_numbers<[1], [0], [0], [1], [0, 0, 1, 1], [], []>} : vector<2x64xbf16>, vector<64x192xbf16>, vector<2x192xf32> -> vector<2x192xf32>
    %c0_70 = arith.constant 0 : index
    %c0_71 = arith.constant 0 : index
    %c0_72 = arith.constant 0 : index
    %181 = vector.load %arg6[%c0_70, %c0_71, %c0_72] : memref<1x1x192xf32, #tpu.memory_space<vmem>>, vector<1x1x192xf32>
    %182 = vector.shape_cast %181 : vector<1x1x192xf32> to vector<1x192xf32>
    %183 = vector.broadcast %182 : vector<1x192xf32> to vector<2x192xf32>
    %184 = arith.addf %180, %183 : vector<2x192xf32>
    %185 = arith.index_cast %176 : i32 to index
    %c0_73 = arith.constant 0 : index
    %c0_74 = arith.constant 0 : index
    %186 = vector.load %arg9[%185, %c0_73, %c0_74] : memref<8x2x192xbf16, #tpu.memory_space<vmem>>, vector<1x2x192xbf16>
    %187 = vector.shape_cast %186 : vector<1x2x192xbf16> to vector<2x192xbf16>
    %188 = arith.extf %187 : vector<2x192xbf16> to vector<2x192xf32>
    %189 = vector.extract_strided_slice %188 {offsets = [0, 0], sizes = [2, 64], strides = [1, 1]} : vector<2x192xf32> to vector<2x64xf32>
    %190 = vector.extract_strided_slice %184 {offsets = [0, 0], sizes = [2, 64], strides = [1, 1]} : vector<2x192xf32> to vector<2x64xf32>
    %191 = arith.addf %189, %190 : vector<2x64xf32>
    %192 = arith.negf %191 : vector<2x64xf32>
    %193 = math.exp %192 : vector<2x64xf32>
    %cst_75 = arith.constant 1.000000e+00 : f32
    %194 = vector.broadcast %cst_75 : f32 to vector<2x64xf32>
    %195 = arith.addf %194, %193 : vector<2x64xf32>
    %196 = arith.divf %194, %195 : vector<2x64xf32>
    %197 = vector.extract_strided_slice %188 {offsets = [0, 64], sizes = [2, 64], strides = [1, 1]} : vector<2x192xf32> to vector<2x64xf32>
    %198 = vector.extract_strided_slice %184 {offsets = [0, 64], sizes = [2, 64], strides = [1, 1]} : vector<2x192xf32> to vector<2x64xf32>
    %199 = arith.addf %197, %198 : vector<2x64xf32>
    %200 = arith.negf %199 : vector<2x64xf32>
    %201 = math.exp %200 : vector<2x64xf32>
    %cst_76 = arith.constant 1.000000e+00 : f32
    %202 = vector.broadcast %cst_76 : f32 to vector<2x64xf32>
    %203 = arith.addf %202, %201 : vector<2x64xf32>
    %204 = arith.divf %202, %203 : vector<2x64xf32>
    %205 = vector.extract_strided_slice %188 {offsets = [0, 128], sizes = [2, 64], strides = [1, 1]} : vector<2x192xf32> to vector<2x64xf32>
    %206 = vector.extract_strided_slice %184 {offsets = [0, 128], sizes = [2, 64], strides = [1, 1]} : vector<2x192xf32> to vector<2x64xf32>
    %207 = arith.mulf %196, %206 : vector<2x64xf32>
    %208 = arith.addf %205, %207 : vector<2x64xf32>
    %209 = math.tanh %208 : vector<2x64xf32>
    %cst_77 = arith.constant 1.000000e+00 : f32
    %210 = vector.broadcast %cst_77 : f32 to vector<2x64xf32>
    %211 = arith.subf %210, %204 : vector<2x64xf32>
    %212 = arith.mulf %211, %209 : vector<2x64xf32>
    %213 = arith.mulf %204, %166 : vector<2x64xf32>
    %214 = arith.addf %212, %213 : vector<2x64xf32>
    %215 = vector.broadcast %176 : i32 to vector<2x1xi32>
    %216 = arith.cmpi slt, %215, %1 : vector<2x1xi32>
    %217 = vector.shape_cast %216 : vector<2x1xi1> to vector<2x1xi1>
    %218 = vector.broadcast %217 : vector<2x1xi1> to vector<2x64xi1>
    %219 = arith.select %218, %214, %166 : vector<2x64xi1>, vector<2x64xf32>
    %cst_78 = arith.constant 0.000000e+00 : f32
    %220 = vector.shape_cast %216 : vector<2x1xi1> to vector<2x1xi1>
    %221 = vector.broadcast %220 : vector<2x1xi1> to vector<2x64xi1>
    %222 = vector.broadcast %cst_78 : f32 to vector<2x64xf32>
    %223 = arith.select %221, %219, %222 : vector<2x64xi1>, vector<2x64xf32>
    %c0_79 = arith.constant 0 : index
    %224 = arith.index_cast %176 : i32 to index
    %c0_80 = arith.constant 0 : index
    %c0_81 = arith.constant 0 : index
    %225 = vector.load %arg7[%c0_79, %224, %c0_80, %c0_81] : memref<1x8x2x64xf32, #tpu.memory_space<vmem>>, vector<1x1x2x64xf32>
    %226 = vector.shape_cast %225 : vector<1x1x2x64xf32> to vector<2x64xf32>
    %227 = vector.shape_cast %223 : vector<2x64xf32> to vector<1x1x2x64xf32>
    tpu.vector_store %arg7[%c0_79, %224, %c0_80, %c0_81], %227 {strides = array<i32>} : memref<1x8x2x64xf32, #tpu.memory_space<vmem>>, vector<1x1x2x64xf32>,
    %c4_i32 = arith.constant 4 : i32
    %c7_i32_82 = arith.constant 7 : i32
    %228 = arith.subi %c7_i32_82, %c4_i32 : i32
    %229 = arith.select %0, %c4_i32, %228 : i32
    %230 = arith.truncf %219 : vector<2x64xf32> to vector<2x64xbf16>
    %c0_83 = arith.constant 0 : index
    %c0_84 = arith.constant 0 : index
    %c0_85 = arith.constant 0 : index
    %231 = vector.load %arg4[%c0_83, %c0_84, %c0_85] : memref<1x64x192xbf16, #tpu.memory_space<vmem>>, vector<1x64x192xbf16>
    %232 = vector.shape_cast %231 : vector<1x64x192xbf16> to vector<64x192xbf16>
    %cst_86 = arith.constant dense<0.000000e+00> : vector<2x192xf32>
    %233 = tpu.matmul %230, %232, %cst_86 {dimension_numbers = #tpu.dot_dimension_numbers<[1], [0], [0], [1], [0, 0, 1, 1], [], []>} : vector<2x64xbf16>, vector<64x192xbf16>, vector<2x192xf32> -> vector<2x192xf32>
    %c0_87 = arith.constant 0 : index
    %c0_88 = arith.constant 0 : index
    %c0_89 = arith.constant 0 : index
    %234 = vector.load %arg6[%c0_87, %c0_88, %c0_89] : memref<1x1x192xf32, #tpu.memory_space<vmem>>, vector<1x1x192xf32>
    %235 = vector.shape_cast %234 : vector<1x1x192xf32> to vector<1x192xf32>
    %236 = vector.broadcast %235 : vector<1x192xf32> to vector<2x192xf32>
    %237 = arith.addf %233, %236 : vector<2x192xf32>
    %238 = arith.index_cast %229 : i32 to index
    %c0_90 = arith.constant 0 : index
    %c0_91 = arith.constant 0 : index
    %239 = vector.load %arg9[%238, %c0_90, %c0_91] : memref<8x2x192xbf16, #tpu.memory_space<vmem>>, vector<1x2x192xbf16>
    %240 = vector.shape_cast %239 : vector<1x2x192xbf16> to vector<2x192xbf16>
    %241 = arith.extf %240 : vector<2x192xbf16> to vector<2x192xf32>
    %242 = vector.extract_strided_slice %241 {offsets = [0, 0], sizes = [2, 64], strides = [1, 1]} : vector<2x192xf32> to vector<2x64xf32>
    %243 = vector.extract_strided_slice %237 {offsets = [0, 0], sizes = [2, 64], strides = [1, 1]} : vector<2x192xf32> to vector<2x64xf32>
    %244 = arith.addf %242, %243 : vector<2x64xf32>
    %245 = arith.negf %244 : vector<2x64xf32>
    %246 = math.exp %245 : vector<2x64xf32>
    %cst_92 = arith.constant 1.000000e+00 : f32
    %247 = vector.broadcast %cst_92 : f32 to vector<2x64xf32>
    %248 = arith.addf %247, %246 : vector<2x64xf32>
    %249 = arith.divf %247, %248 : vector<2x64xf32>
    %250 = vector.extract_strided_slice %241 {offsets = [0, 64], sizes = [2, 64], strides = [1, 1]} : vector<2x192xf32> to vector<2x64xf32>
    %251 = vector.extract_strided_slice %237 {offsets = [0, 64], sizes = [2, 64], strides = [1, 1]} : vector<2x192xf32> to vector<2x64xf32>
    %252 = arith.addf %250, %251 : vector<2x64xf32>
    %253 = arith.negf %252 : vector<2x64xf32>
    %254 = math.exp %253 : vector<2x64xf32>
    %cst_93 = arith.constant 1.000000e+00 : f32
    %255 = vector.broadcast %cst_93 : f32 to vector<2x64xf32>
    %256 = arith.addf %255, %254 : vector<2x64xf32>
    %257 = arith.divf %255, %256 : vector<2x64xf32>
    %258 = vector.extract_strided_slice %241 {offsets = [0, 128], sizes = [2, 64], strides = [1, 1]} : vector<2x192xf32> to vector<2x64xf32>
    %259 = vector.extract_strided_slice %237 {offsets = [0, 128], sizes = [2, 64], strides = [1, 1]} : vector<2x192xf32> to vector<2x64xf32>
    %260 = arith.mulf %249, %259 : vector<2x64xf32>
    %261 = arith.addf %258, %260 : vector<2x64xf32>
    %262 = math.tanh %261 : vector<2x64xf32>
    %cst_94 = arith.constant 1.000000e+00 : f32
    %263 = vector.broadcast %cst_94 : f32 to vector<2x64xf32>
    %264 = arith.subf %263, %257 : vector<2x64xf32>
    %265 = arith.mulf %264, %262 : vector<2x64xf32>
    %266 = arith.mulf %257, %219 : vector<2x64xf32>
    %267 = arith.addf %265, %266 : vector<2x64xf32>
    %268 = vector.broadcast %229 : i32 to vector<2x1xi32>
    %269 = arith.cmpi slt, %268, %1 : vector<2x1xi32>
    %270 = vector.shape_cast %269 : vector<2x1xi1> to vector<2x1xi1>
    %271 = vector.broadcast %270 : vector<2x1xi1> to vector<2x64xi1>
    %272 = arith.select %271, %267, %219 : vector<2x64xi1>, vector<2x64xf32>
    %cst_95 = arith.constant 0.000000e+00 : f32
    %273 = vector.shape_cast %269 : vector<2x1xi1> to vector<2x1xi1>
    %274 = vector.broadcast %273 : vector<2x1xi1> to vector<2x64xi1>
    %275 = vector.broadcast %cst_95 : f32 to vector<2x64xf32>
    %276 = arith.select %274, %272, %275 : vector<2x64xi1>, vector<2x64xf32>
    %c0_96 = arith.constant 0 : index
    %277 = arith.index_cast %229 : i32 to index
    %c0_97 = arith.constant 0 : index
    %c0_98 = arith.constant 0 : index
    %278 = vector.load %arg7[%c0_96, %277, %c0_97, %c0_98] : memref<1x8x2x64xf32, #tpu.memory_space<vmem>>, vector<1x1x2x64xf32>
    %279 = vector.shape_cast %278 : vector<1x1x2x64xf32> to vector<2x64xf32>
    %280 = vector.shape_cast %276 : vector<2x64xf32> to vector<1x1x2x64xf32>
    tpu.vector_store %arg7[%c0_96, %277, %c0_97, %c0_98], %280 {strides = array<i32>} : memref<1x8x2x64xf32, #tpu.memory_space<vmem>>, vector<1x1x2x64xf32>,
    %c5_i32 = arith.constant 5 : i32
    %c7_i32_99 = arith.constant 7 : i32
    %281 = arith.subi %c7_i32_99, %c5_i32 : i32
    %282 = arith.select %0, %c5_i32, %281 : i32
    %283 = arith.truncf %272 : vector<2x64xf32> to vector<2x64xbf16>
    %c0_100 = arith.constant 0 : index
    %c0_101 = arith.constant 0 : index
    %c0_102 = arith.constant 0 : index
    %284 = vector.load %arg4[%c0_100, %c0_101, %c0_102] : memref<1x64x192xbf16, #tpu.memory_space<vmem>>, vector<1x64x192xbf16>
    %285 = vector.shape_cast %284 : vector<1x64x192xbf16> to vector<64x192xbf16>
    %cst_103 = arith.constant dense<0.000000e+00> : vector<2x192xf32>
    %286 = tpu.matmul %283, %285, %cst_103 {dimension_numbers = #tpu.dot_dimension_numbers<[1], [0], [0], [1], [0, 0, 1, 1], [], []>} : vector<2x64xbf16>, vector<64x192xbf16>, vector<2x192xf32> -> vector<2x192xf32>
    %c0_104 = arith.constant 0 : index
    %c0_105 = arith.constant 0 : index
    %c0_106 = arith.constant 0 : index
    %287 = vector.load %arg6[%c0_104, %c0_105, %c0_106] : memref<1x1x192xf32, #tpu.memory_space<vmem>>, vector<1x1x192xf32>
    %288 = vector.shape_cast %287 : vector<1x1x192xf32> to vector<1x192xf32>
    %289 = vector.broadcast %288 : vector<1x192xf32> to vector<2x192xf32>
    %290 = arith.addf %286, %289 : vector<2x192xf32>
    %291 = arith.index_cast %282 : i32 to index
    %c0_107 = arith.constant 0 : index
    %c0_108 = arith.constant 0 : index
    %292 = vector.load %arg9[%291, %c0_107, %c0_108] : memref<8x2x192xbf16, #tpu.memory_space<vmem>>, vector<1x2x192xbf16>
    %293 = vector.shape_cast %292 : vector<1x2x192xbf16> to vector<2x192xbf16>
    %294 = arith.extf %293 : vector<2x192xbf16> to vector<2x192xf32>
    %295 = vector.extract_strided_slice %294 {offsets = [0, 0], sizes = [2, 64], strides = [1, 1]} : vector<2x192xf32> to vector<2x64xf32>
    %296 = vector.extract_strided_slice %290 {offsets = [0, 0], sizes = [2, 64], strides = [1, 1]} : vector<2x192xf32> to vector<2x64xf32>
    %297 = arith.addf %295, %296 : vector<2x64xf32>
    %298 = arith.negf %297 : vector<2x64xf32>
    %299 = math.exp %298 : vector<2x64xf32>
    %cst_109 = arith.constant 1.000000e+00 : f32
    %300 = vector.broadcast %cst_109 : f32 to vector<2x64xf32>
    %301 = arith.addf %300, %299 : vector<2x64xf32>
    %302 = arith.divf %300, %301 : vector<2x64xf32>
    %303 = vector.extract_strided_slice %294 {offsets = [0, 64], sizes = [2, 64], strides = [1, 1]} : vector<2x192xf32> to vector<2x64xf32>
    %304 = vector.extract_strided_slice %290 {offsets = [0, 64], sizes = [2, 64], strides = [1, 1]} : vector<2x192xf32> to vector<2x64xf32>
    %305 = arith.addf %303, %304 : vector<2x64xf32>
    %306 = arith.negf %305 : vector<2x64xf32>
    %307 = math.exp %306 : vector<2x64xf32>
    %cst_110 = arith.constant 1.000000e+00 : f32
    %308 = vector.broadcast %cst_110 : f32 to vector<2x64xf32>
    %309 = arith.addf %308, %307 : vector<2x64xf32>
    %310 = arith.divf %308, %309 : vector<2x64xf32>
    %311 = vector.extract_strided_slice %294 {offsets = [0, 128], sizes = [2, 64], strides = [1, 1]} : vector<2x192xf32> to vector<2x64xf32>
    %312 = vector.extract_strided_slice %290 {offsets = [0, 128], sizes = [2, 64], strides = [1, 1]} : vector<2x192xf32> to vector<2x64xf32>
    %313 = arith.mulf %302, %312 : vector<2x64xf32>
    %314 = arith.addf %311, %313 : vector<2x64xf32>
    %315 = math.tanh %314 : vector<2x64xf32>
    %cst_111 = arith.constant 1.000000e+00 : f32
    %316 = vector.broadcast %cst_111 : f32 to vector<2x64xf32>
    %317 = arith.subf %316, %310 : vector<2x64xf32>
    %318 = arith.mulf %317, %315 : vector<2x64xf32>
    %319 = arith.mulf %310, %272 : vector<2x64xf32>
    %320 = arith.addf %318, %319 : vector<2x64xf32>
    %321 = vector.broadcast %282 : i32 to vector<2x1xi32>
    %322 = arith.cmpi slt, %321, %1 : vector<2x1xi32>
    %323 = vector.shape_cast %322 : vector<2x1xi1> to vector<2x1xi1>
    %324 = vector.broadcast %323 : vector<2x1xi1> to vector<2x64xi1>
    %325 = arith.select %324, %320, %272 : vector<2x64xi1>, vector<2x64xf32>
    %cst_112 = arith.constant 0.000000e+00 : f32
    %326 = vector.shape_cast %322 : vector<2x1xi1> to vector<2x1xi1>
    %327 = vector.broadcast %326 : vector<2x1xi1> to vector<2x64xi1>
    %328 = vector.broadcast %cst_112 : f32 to vector<2x64xf32>
    %329 = arith.select %327, %325, %328 : vector<2x64xi1>, vector<2x64xf32>
    %c0_113 = arith.constant 0 : index
    %330 = arith.index_cast %282 : i32 to index
    %c0_114 = arith.constant 0 : index
    %c0_115 = arith.constant 0 : index
    %331 = vector.load %arg7[%c0_113, %330, %c0_114, %c0_115] : memref<1x8x2x64xf32, #tpu.memory_space<vmem>>, vector<1x1x2x64xf32>
    %332 = vector.shape_cast %331 : vector<1x1x2x64xf32> to vector<2x64xf32>
    %333 = vector.shape_cast %329 : vector<2x64xf32> to vector<1x1x2x64xf32>
    tpu.vector_store %arg7[%c0_113, %330, %c0_114, %c0_115], %333 {strides = array<i32>} : memref<1x8x2x64xf32, #tpu.memory_space<vmem>>, vector<1x1x2x64xf32>,
    %c6_i32 = arith.constant 6 : i32
    %c7_i32_116 = arith.constant 7 : i32
    %334 = arith.subi %c7_i32_116, %c6_i32 : i32
    %335 = arith.select %0, %c6_i32, %334 : i32
    %336 = arith.truncf %325 : vector<2x64xf32> to vector<2x64xbf16>
    %c0_117 = arith.constant 0 : index
    %c0_118 = arith.constant 0 : index
    %c0_119 = arith.constant 0 : index
    %337 = vector.load %arg4[%c0_117, %c0_118, %c0_119] : memref<1x64x192xbf16, #tpu.memory_space<vmem>>, vector<1x64x192xbf16>
    %338 = vector.shape_cast %337 : vector<1x64x192xbf16> to vector<64x192xbf16>
    %cst_120 = arith.constant dense<0.000000e+00> : vector<2x192xf32>
    %339 = tpu.matmul %336, %338, %cst_120 {dimension_numbers = #tpu.dot_dimension_numbers<[1], [0], [0], [1], [0, 0, 1, 1], [], []>} : vector<2x64xbf16>, vector<64x192xbf16>, vector<2x192xf32> -> vector<2x192xf32>
    %c0_121 = arith.constant 0 : index
    %c0_122 = arith.constant 0 : index
    %c0_123 = arith.constant 0 : index
    %340 = vector.load %arg6[%c0_121, %c0_122, %c0_123] : memref<1x1x192xf32, #tpu.memory_space<vmem>>, vector<1x1x192xf32>
    %341 = vector.shape_cast %340 : vector<1x1x192xf32> to vector<1x192xf32>
    %342 = vector.broadcast %341 : vector<1x192xf32> to vector<2x192xf32>
    %343 = arith.addf %339, %342 : vector<2x192xf32>
    %344 = arith.index_cast %335 : i32 to index
    %c0_124 = arith.constant 0 : index
    %c0_125 = arith.constant 0 : index
    %345 = vector.load %arg9[%344, %c0_124, %c0_125] : memref<8x2x192xbf16, #tpu.memory_space<vmem>>, vector<1x2x192xbf16>
    %346 = vector.shape_cast %345 : vector<1x2x192xbf16> to vector<2x192xbf16>
    %347 = arith.extf %346 : vector<2x192xbf16> to vector<2x192xf32>
    %348 = vector.extract_strided_slice %347 {offsets = [0, 0], sizes = [2, 64], strides = [1, 1]} : vector<2x192xf32> to vector<2x64xf32>
    %349 = vector.extract_strided_slice %343 {offsets = [0, 0], sizes = [2, 64], strides = [1, 1]} : vector<2x192xf32> to vector<2x64xf32>
    %350 = arith.addf %348, %349 : vector<2x64xf32>
    %351 = arith.negf %350 : vector<2x64xf32>
    %352 = math.exp %351 : vector<2x64xf32>
    %cst_126 = arith.constant 1.000000e+00 : f32
    %353 = vector.broadcast %cst_126 : f32 to vector<2x64xf32>
    %354 = arith.addf %353, %352 : vector<2x64xf32>
    %355 = arith.divf %353, %354 : vector<2x64xf32>
    %356 = vector.extract_strided_slice %347 {offsets = [0, 64], sizes = [2, 64], strides = [1, 1]} : vector<2x192xf32> to vector<2x64xf32>
    %357 = vector.extract_strided_slice %343 {offsets = [0, 64], sizes = [2, 64], strides = [1, 1]} : vector<2x192xf32> to vector<2x64xf32>
    %358 = arith.addf %356, %357 : vector<2x64xf32>
    %359 = arith.negf %358 : vector<2x64xf32>
    %360 = math.exp %359 : vector<2x64xf32>
    %cst_127 = arith.constant 1.000000e+00 : f32
    %361 = vector.broadcast %cst_127 : f32 to vector<2x64xf32>
    %362 = arith.addf %361, %360 : vector<2x64xf32>
    %363 = arith.divf %361, %362 : vector<2x64xf32>
    %364 = vector.extract_strided_slice %347 {offsets = [0, 128], sizes = [2, 64], strides = [1, 1]} : vector<2x192xf32> to vector<2x64xf32>
    %365 = vector.extract_strided_slice %343 {offsets = [0, 128], sizes = [2, 64], strides = [1, 1]} : vector<2x192xf32> to vector<2x64xf32>
    %366 = arith.mulf %355, %365 : vector<2x64xf32>
    %367 = arith.addf %364, %366 : vector<2x64xf32>
    %368 = math.tanh %367 : vector<2x64xf32>
    %cst_128 = arith.constant 1.000000e+00 : f32
    %369 = vector.broadcast %cst_128 : f32 to vector<2x64xf32>
    %370 = arith.subf %369, %363 : vector<2x64xf32>
    %371 = arith.mulf %370, %368 : vector<2x64xf32>
    %372 = arith.mulf %363, %325 : vector<2x64xf32>
    %373 = arith.addf %371, %372 : vector<2x64xf32>
    %374 = vector.broadcast %335 : i32 to vector<2x1xi32>
    %375 = arith.cmpi slt, %374, %1 : vector<2x1xi32>
    %376 = vector.shape_cast %375 : vector<2x1xi1> to vector<2x1xi1>
    %377 = vector.broadcast %376 : vector<2x1xi1> to vector<2x64xi1>
    %378 = arith.select %377, %373, %325 : vector<2x64xi1>, vector<2x64xf32>
    %cst_129 = arith.constant 0.000000e+00 : f32
    %379 = vector.shape_cast %375 : vector<2x1xi1> to vector<2x1xi1>
    %380 = vector.broadcast %379 : vector<2x1xi1> to vector<2x64xi1>
    %381 = vector.broadcast %cst_129 : f32 to vector<2x64xf32>
    %382 = arith.select %380, %378, %381 : vector<2x64xi1>, vector<2x64xf32>
    %c0_130 = arith.constant 0 : index
    %383 = arith.index_cast %335 : i32 to index
    %c0_131 = arith.constant 0 : index
    %c0_132 = arith.constant 0 : index
    %384 = vector.load %arg7[%c0_130, %383, %c0_131, %c0_132] : memref<1x8x2x64xf32, #tpu.memory_space<vmem>>, vector<1x1x2x64xf32>
    %385 = vector.shape_cast %384 : vector<1x1x2x64xf32> to vector<2x64xf32>
    %386 = vector.shape_cast %382 : vector<2x64xf32> to vector<1x1x2x64xf32>
    tpu.vector_store %arg7[%c0_130, %383, %c0_131, %c0_132], %386 {strides = array<i32>} : memref<1x8x2x64xf32, #tpu.memory_space<vmem>>, vector<1x1x2x64xf32>,
    %c7_i32_133 = arith.constant 7 : i32
    %c7_i32_134 = arith.constant 7 : i32
    %387 = arith.subi %c7_i32_134, %c7_i32_133 : i32
    %388 = arith.select %0, %c7_i32_133, %387 : i32
    %389 = arith.truncf %378 : vector<2x64xf32> to vector<2x64xbf16>
    %c0_135 = arith.constant 0 : index
    %c0_136 = arith.constant 0 : index
    %c0_137 = arith.constant 0 : index
    %390 = vector.load %arg4[%c0_135, %c0_136, %c0_137] : memref<1x64x192xbf16, #tpu.memory_space<vmem>>, vector<1x64x192xbf16>
    %391 = vector.shape_cast %390 : vector<1x64x192xbf16> to vector<64x192xbf16>
    %cst_138 = arith.constant dense<0.000000e+00> : vector<2x192xf32>
    %392 = tpu.matmul %389, %391, %cst_138 {dimension_numbers = #tpu.dot_dimension_numbers<[1], [0], [0], [1], [0, 0, 1, 1], [], []>} : vector<2x64xbf16>, vector<64x192xbf16>, vector<2x192xf32> -> vector<2x192xf32>
    %c0_139 = arith.constant 0 : index
    %c0_140 = arith.constant 0 : index
    %c0_141 = arith.constant 0 : index
    %393 = vector.load %arg6[%c0_139, %c0_140, %c0_141] : memref<1x1x192xf32, #tpu.memory_space<vmem>>, vector<1x1x192xf32>
    %394 = vector.shape_cast %393 : vector<1x1x192xf32> to vector<1x192xf32>
    %395 = vector.broadcast %394 : vector<1x192xf32> to vector<2x192xf32>
    %396 = arith.addf %392, %395 : vector<2x192xf32>
    %397 = arith.index_cast %388 : i32 to index
    %c0_142 = arith.constant 0 : index
    %c0_143 = arith.constant 0 : index
    %398 = vector.load %arg9[%397, %c0_142, %c0_143] : memref<8x2x192xbf16, #tpu.memory_space<vmem>>, vector<1x2x192xbf16>
    %399 = vector.shape_cast %398 : vector<1x2x192xbf16> to vector<2x192xbf16>
    %400 = arith.extf %399 : vector<2x192xbf16> to vector<2x192xf32>
    %401 = vector.extract_strided_slice %400 {offsets = [0, 0], sizes = [2, 64], strides = [1, 1]} : vector<2x192xf32> to vector<2x64xf32>
    %402 = vector.extract_strided_slice %396 {offsets = [0, 0], sizes = [2, 64], strides = [1, 1]} : vector<2x192xf32> to vector<2x64xf32>
    %403 = arith.addf %401, %402 : vector<2x64xf32>
    %404 = arith.negf %403 : vector<2x64xf32>
    %405 = math.exp %404 : vector<2x64xf32>
    %cst_144 = arith.constant 1.000000e+00 : f32
    %406 = vector.broadcast %cst_144 : f32 to vector<2x64xf32>
    %407 = arith.addf %406, %405 : vector<2x64xf32>
    %408 = arith.divf %406, %407 : vector<2x64xf32>
    %409 = vector.extract_strided_slice %400 {offsets = [0, 64], sizes = [2, 64], strides = [1, 1]} : vector<2x192xf32> to vector<2x64xf32>
    %410 = vector.extract_strided_slice %396 {offsets = [0, 64], sizes = [2, 64], strides = [1, 1]} : vector<2x192xf32> to vector<2x64xf32>
    %411 = arith.addf %409, %410 : vector<2x64xf32>
    %412 = arith.negf %411 : vector<2x64xf32>
    %413 = math.exp %412 : vector<2x64xf32>
    %cst_145 = arith.constant 1.000000e+00 : f32
    %414 = vector.broadcast %cst_145 : f32 to vector<2x64xf32>
    %415 = arith.addf %414, %413 : vector<2x64xf32>
    %416 = arith.divf %414, %415 : vector<2x64xf32>
    %417 = vector.extract_strided_slice %400 {offsets = [0, 128], sizes = [2, 64], strides = [1, 1]} : vector<2x192xf32> to vector<2x64xf32>
    %418 = vector.extract_strided_slice %396 {offsets = [0, 128], sizes = [2, 64], strides = [1, 1]} : vector<2x192xf32> to vector<2x64xf32>
    %419 = arith.mulf %408, %418 : vector<2x64xf32>
    %420 = arith.addf %417, %419 : vector<2x64xf32>
    %421 = math.tanh %420 : vector<2x64xf32>
    %cst_146 = arith.constant 1.000000e+00 : f32
    %422 = vector.broadcast %cst_146 : f32 to vector<2x64xf32>
    %423 = arith.subf %422, %416 : vector<2x64xf32>
    %424 = arith.mulf %423, %421 : vector<2x64xf32>
    %425 = arith.mulf %416, %378 : vector<2x64xf32>
    %426 = arith.addf %424, %425 : vector<2x64xf32>
    %427 = vector.broadcast %388 : i32 to vector<2x1xi32>
    %428 = arith.cmpi slt, %427, %1 : vector<2x1xi32>
    %429 = vector.shape_cast %428 : vector<2x1xi1> to vector<2x1xi1>
    %430 = vector.broadcast %429 : vector<2x1xi1> to vector<2x64xi1>
    %431 = arith.select %430, %426, %378 : vector<2x64xi1>, vector<2x64xf32>
    %cst_147 = arith.constant 0.000000e+00 : f32
    %432 = vector.shape_cast %428 : vector<2x1xi1> to vector<2x1xi1>
    %433 = vector.broadcast %432 : vector<2x1xi1> to vector<2x64xi1>
    %434 = vector.broadcast %cst_147 : f32 to vector<2x64xf32>
    %435 = arith.select %433, %431, %434 : vector<2x64xi1>, vector<2x64xf32>
    %c0_148 = arith.constant 0 : index
    %436 = arith.index_cast %388 : i32 to index
    %c0_149 = arith.constant 0 : index
    %c0_150 = arith.constant 0 : index
    %437 = vector.load %arg7[%c0_148, %436, %c0_149, %c0_150] : memref<1x8x2x64xf32, #tpu.memory_space<vmem>>, vector<1x1x2x64xf32>
    %438 = vector.shape_cast %437 : vector<1x1x2x64xf32> to vector<2x64xf32>
    %439 = vector.shape_cast %435 : vector<2x64xf32> to vector<1x1x2x64xf32>
    tpu.vector_store %arg7[%c0_148, %436, %c0_149, %c0_150], %439 {strides = array<i32>} : memref<1x8x2x64xf32, #tpu.memory_space<vmem>>, vector<1x1x2x64xf32>,
    %c8_i32 = arith.constant 8 : i32
    %c0_151 = arith.constant 0 : index
    %c0_152 = arith.constant 0 : index
    %c0_153 = arith.constant 0 : index
    %440 = vector.load %arg8[%c0_151, %c0_152, %c0_153] : memref<1x2x64xf32, #tpu.memory_space<vmem>>, vector<1x2x64xf32>
    %441 = vector.shape_cast %440 : vector<1x2x64xf32> to vector<2x64xf32>
    %442 = vector.shape_cast %431 : vector<2x64xf32> to vector<1x2x64xf32>
    tpu.vector_store %arg8[%c0_151, %c0_152, %c0_153], %442 {strides = array<i32>} : memref<1x2x64xf32, #tpu.memory_space<vmem>>, vector<1x2x64xf32>,
    return
  }
  func.func @transform_0(%arg0: i32) -> (i32, i32) {
    %c0_i32 = arith.constant 0 : i32
    %c0_i32_0 = arith.constant 0 : i32
    %c0_i32_1 = arith.constant 0 : i32
    return %c0_i32, %c0_i32_0 : i32, i32
  }
  func.func @transform_1(%arg0: i32) -> (i32, i32, i32) {
    %c0_i32 = arith.constant 0 : i32
    %c0_i32_0 = arith.constant 0 : i32
    %c0_i32_1 = arith.constant 0 : i32
    %c0_i32_2 = arith.constant 0 : i32
    return %c0_i32, %c0_i32_0, %c0_i32_1 : i32, i32, i32
  }
  func.func @transform_2(%arg0: i32) -> (i32, i32, i32) {
    %c0_i32 = arith.constant 0 : i32
    %c0_i32_0 = arith.constant 0 : i32
    %c0_i32_1 = arith.constant 0 : i32
    return %arg0, %c0_i32, %c0_i32_0 : i32, i32, i32
  }
  func.func @transform_3(%arg0: i32) -> (i32, i32, i32) {
    %c0_i32 = arith.constant 0 : i32
    %c0_i32_0 = arith.constant 0 : i32
    %c0_i32_1 = arith.constant 0 : i32
    return %arg0, %c0_i32, %c0_i32_0 : i32, i32, i32
  }
  func.func @transform_4(%arg0: i32) -> (i32, i32, i32) {
    %c0_i32 = arith.constant 0 : i32
    %c0_i32_0 = arith.constant 0 : i32
    %c0_i32_1 = arith.constant 0 : i32
    return %arg0, %c0_i32, %c0_i32_0 : i32, i32, i32
  }
  func.func @transform_5(%arg0: i32) -> (i32, i32, i32) {
    %c0_i32 = arith.constant 0 : i32
    %c0_i32_0 = arith.constant 0 : i32
    %c0_i32_1 = arith.constant 0 : i32
    return %arg0, %c0_i32, %c0_i32_0 : i32, i32, i32
  }
  func.func @transform_6(%arg0: i32) -> (i32, i32, i32, i32) {
    %c0_i32 = arith.constant 0 : i32
    %c0_i32_0 = arith.constant 0 : i32
    %c0_i32_1 = arith.constant 0 : i32
    %c0_i32_2 = arith.constant 0 : i32
    return %arg0, %c0_i32, %c0_i32_0, %c0_i32_1 : i32, i32, i32, i32
  }
  func.func @transform_7(%arg0: i32) -> (i32, i32, i32) {
    %c0_i32 = arith.constant 0 : i32
    %c0_i32_0 = arith.constant 0 : i32
    %c0_i32_1 = arith.constant 0 : i32
    return %arg0, %c0_i32, %c0_i32_0 : i32, i32, i32
  }
}

module attributes {stable_mosaic.version = 11 : i64} {
  func.func @self_attn_ln_kernel(%arg0: i32, %arg1: memref<1x8x128xf32, #tpu.memory_space<vmem>>, %arg2: memref<128x384xbf16, #tpu.memory_space<vmem>>, %arg3: memref<1x384xf32, #tpu.memory_space<vmem>>, %arg4: memref<128x128xbf16, #tpu.memory_space<vmem>>, %arg5: memref<1x128xf32, #tpu.memory_space<vmem>>, %arg6: memref<1x128xf32, #tpu.memory_space<vmem>>, %arg7: memref<1x128xf32, #tpu.memory_space<vmem>>, %arg8: memref<1x8x128xf32, #tpu.memory_space<vmem>>) attributes {dimension_semantics = [#tpu.dimension_semantics<parallel>], iteration_bounds = array<i64: 2>, scalar_prefetch = 0 : i64, scratch_operands = 0 : i64, tpu.core_type = #tpu.core_type<tc>, window_params = [{transform_indices = @transform_0, window_bounds = array<i64: 1, 8, 128>}, {pipeline_mode = #tpu.pipeline_mode<synchronous>, transform_indices = @transform_1, window_bounds = array<i64: 128, 384>}, {pipeline_mode = #tpu.pipeline_mode<synchronous>, transform_indices = @transform_2, window_bounds = array<i64: 1, 384>}, {pipeline_mode = #tpu.pipeline_mode<synchronous>, transform_indices = @transform_3, window_bounds = array<i64: 128, 128>}, {pipeline_mode = #tpu.pipeline_mode<synchronous>, transform_indices = @transform_4, window_bounds = array<i64: 1, 128>}, {pipeline_mode = #tpu.pipeline_mode<synchronous>, transform_indices = @transform_5, window_bounds = array<i64: 1, 128>}, {pipeline_mode = #tpu.pipeline_mode<synchronous>, transform_indices = @transform_6, window_bounds = array<i64: 1, 128>}, {transform_indices = @transform_7, window_bounds = array<i64: 1, 8, 128>}]} {
    %c0 = arith.constant 0 : index
    %c0_0 = arith.constant 0 : index
    %c0_1 = arith.constant 0 : index
    %0 = vector.load %arg1[%c0, %c0_0, %c0_1] : memref<1x8x128xf32, #tpu.memory_space<vmem>>, vector<1x8x128xf32>
    %1 = vector.shape_cast %0 : vector<1x8x128xf32> to vector<8x128xf32>
    %c0_2 = arith.constant 0 : index
    %c0_3 = arith.constant 0 : index
    %2 = vector.load %arg2[%c0_2, %c0_3] : memref<128x384xbf16, #tpu.memory_space<vmem>>, vector<128x384xbf16>
    %c0_4 = arith.constant 0 : index
    %c0_5 = arith.constant 0 : index
    %3 = vector.load %arg3[%c0_4, %c0_5] : memref<1x384xf32, #tpu.memory_space<vmem>>, vector<1x384xf32>
    %4 = arith.truncf %1 : vector<8x128xf32> to vector<8x128xbf16>
    %cst = arith.constant dense<0.000000e+00> : vector<8x384xf32>
    %5 = tpu.matmul %4, %2, %cst {dimension_numbers = #tpu.dot_dimension_numbers<[1], [0], [0], [1], [0, 0, 1, 1], [], []>} : vector<8x128xbf16>, vector<128x384xbf16>, vector<8x384xf32> -> vector<8x384xf32>
    %6 = vector.broadcast %3 : vector<1x384xf32> to vector<8x384xf32>
    %7 = arith.addf %5, %6 : vector<8x384xf32>
    %8 = vector.extract_strided_slice %7 {offsets = [0, 0], sizes = [8, 128], strides = [1, 1]} : vector<8x384xf32> to vector<8x128xf32>
    %cst_6 = arith.constant 0.176776692 : f32
    %9 = vector.broadcast %cst_6 : f32 to vector<8x128xf32>
    %10 = arith.mulf %8, %9 : vector<8x128xf32>
    %11 = arith.truncf %10 : vector<8x128xf32> to vector<8x128xbf16>
    %12 = vector.shape_cast %11 : vector<8x128xbf16> to vector<1x8x128xbf16>
    %13 = vector.extract_strided_slice %7 {offsets = [0, 128], sizes = [8, 128], strides = [1, 1]} : vector<8x384xf32> to vector<8x128xf32>
    %14 = arith.truncf %13 : vector<8x128xf32> to vector<8x128xbf16>
    %15 = vector.shape_cast %14 : vector<8x128xbf16> to vector<1x8x128xbf16>
    %16 = vector.extract_strided_slice %7 {offsets = [0, 256], sizes = [8, 128], strides = [1, 1]} : vector<8x384xf32> to vector<8x128xf32>
    %17 = arith.truncf %16 : vector<8x128xf32> to vector<8x128xbf16>
    %18 = vector.shape_cast %17 : vector<8x128xbf16> to vector<1x8x128xbf16>
    %19 = vector.extract_strided_slice %12 {offsets = [0, 0, 0], sizes = [1, 8, 32], strides = [1, 1, 1]} : vector<1x8x128xbf16> to vector<1x8x32xbf16>
    %20 = vector.extract_strided_slice %15 {offsets = [0, 0, 0], sizes = [1, 8, 32], strides = [1, 1, 1]} : vector<1x8x128xbf16> to vector<1x8x32xbf16>
    "tpu.trace_start"() <{level = 10 : i32, message = "bqd,bkd->bqk"}> : () -> ()
    %cst_7 = arith.constant dense<0.000000e+00> : vector<1x8x8xf32>
    %21 = tpu.matmul %19, %20, %cst_7 {dimension_numbers = #tpu.dot_dimension_numbers<[2], [2], [1], [1], [0, 0, 0, 1, 1, 1], [0], [0]>} : vector<1x8x32xbf16>, vector<1x8x32xbf16>, vector<1x8x8xf32> -> vector<1x8x8xf32>
    "tpu.trace_stop"() : () -> ()
    %cst_8 = arith.constant dense<0xFF800000> : vector<1x8xf32>
    %22 = vector.multi_reduction <maximumf>, %21, %cst_8 [2] : vector<1x8x8xf32> to vector<1x8xf32>
    %23 = vector.shape_cast %22 : vector<1x8xf32> to vector<1x8x1xf32>
    %24 = vector.broadcast %23 : vector<1x8x1xf32> to vector<1x8x8xf32>
    %25 = arith.subf %21, %24 : vector<1x8x8xf32>
    %26 = math.exp %25 : vector<1x8x8xf32>
    %cst_9 = arith.constant dense<0.000000e+00> : vector<1x8xf32>
    %27 = vector.multi_reduction <add>, %26, %cst_9 [2] : vector<1x8x8xf32> to vector<1x8xf32>
    %28 = vector.shape_cast %27 : vector<1x8xf32> to vector<1x8x1xf32>
    %29 = tpu.reciprocal %28 {approx = true} : vector<1x8x1xf32> -> vector<1x8x1xf32>
    %30 = vector.broadcast %29 : vector<1x8x1xf32> to vector<1x8x8xf32>
    %31 = arith.mulf %26, %30 : vector<1x8x8xf32>
    %32 = arith.truncf %31 : vector<1x8x8xf32> to vector<1x8x8xbf16>
    %33 = vector.extract_strided_slice %18 {offsets = [0, 0, 0], sizes = [1, 8, 32], strides = [1, 1, 1]} : vector<1x8x128xbf16> to vector<1x8x32xbf16>
    "tpu.trace_start"() <{level = 10 : i32, message = "bqk,bkd->bqd"}> : () -> ()
    %cst_10 = arith.constant dense<0.000000e+00> : vector<1x8x32xf32>
    %34 = tpu.matmul %32, %33, %cst_10 {dimension_numbers = #tpu.dot_dimension_numbers<[2], [1], [1], [2], [0, 0, 0, 1, 1, 2], [0], [0]>} : vector<1x8x8xbf16>, vector<1x8x32xbf16>, vector<1x8x32xf32> -> vector<1x8x32xf32>
    "tpu.trace_stop"() : () -> ()
    %35 = vector.extract_strided_slice %12 {offsets = [0, 0, 32], sizes = [1, 8, 32], strides = [1, 1, 1]} : vector<1x8x128xbf16> to vector<1x8x32xbf16>
    %36 = vector.extract_strided_slice %15 {offsets = [0, 0, 32], sizes = [1, 8, 32], strides = [1, 1, 1]} : vector<1x8x128xbf16> to vector<1x8x32xbf16>
    "tpu.trace_start"() <{level = 10 : i32, message = "bqd,bkd->bqk"}> : () -> ()
    %cst_11 = arith.constant dense<0.000000e+00> : vector<1x8x8xf32>
    %37 = tpu.matmul %35, %36, %cst_11 {dimension_numbers = #tpu.dot_dimension_numbers<[2], [2], [1], [1], [0, 0, 0, 1, 1, 1], [0], [0]>} : vector<1x8x32xbf16>, vector<1x8x32xbf16>, vector<1x8x8xf32> -> vector<1x8x8xf32>
    "tpu.trace_stop"() : () -> ()
    %cst_12 = arith.constant dense<0xFF800000> : vector<1x8xf32>
    %38 = vector.multi_reduction <maximumf>, %37, %cst_12 [2] : vector<1x8x8xf32> to vector<1x8xf32>
    %39 = vector.shape_cast %38 : vector<1x8xf32> to vector<1x8x1xf32>
    %40 = vector.broadcast %39 : vector<1x8x1xf32> to vector<1x8x8xf32>
    %41 = arith.subf %37, %40 : vector<1x8x8xf32>
    %42 = math.exp %41 : vector<1x8x8xf32>
    %cst_13 = arith.constant dense<0.000000e+00> : vector<1x8xf32>
    %43 = vector.multi_reduction <add>, %42, %cst_13 [2] : vector<1x8x8xf32> to vector<1x8xf32>
    %44 = vector.shape_cast %43 : vector<1x8xf32> to vector<1x8x1xf32>
    %45 = tpu.reciprocal %44 {approx = true} : vector<1x8x1xf32> -> vector<1x8x1xf32>
    %46 = vector.broadcast %45 : vector<1x8x1xf32> to vector<1x8x8xf32>
    %47 = arith.mulf %42, %46 : vector<1x8x8xf32>
    %48 = arith.truncf %47 : vector<1x8x8xf32> to vector<1x8x8xbf16>
    %49 = vector.extract_strided_slice %18 {offsets = [0, 0, 32], sizes = [1, 8, 32], strides = [1, 1, 1]} : vector<1x8x128xbf16> to vector<1x8x32xbf16>
    "tpu.trace_start"() <{level = 10 : i32, message = "bqk,bkd->bqd"}> : () -> ()
    %cst_14 = arith.constant dense<0.000000e+00> : vector<1x8x32xf32>
    %50 = tpu.matmul %48, %49, %cst_14 {dimension_numbers = #tpu.dot_dimension_numbers<[2], [1], [1], [2], [0, 0, 0, 1, 1, 2], [0], [0]>} : vector<1x8x8xbf16>, vector<1x8x32xbf16>, vector<1x8x32xf32> -> vector<1x8x32xf32>
    "tpu.trace_stop"() : () -> ()
    %51 = vector.extract_strided_slice %12 {offsets = [0, 0, 64], sizes = [1, 8, 32], strides = [1, 1, 1]} : vector<1x8x128xbf16> to vector<1x8x32xbf16>
    %52 = vector.extract_strided_slice %15 {offsets = [0, 0, 64], sizes = [1, 8, 32], strides = [1, 1, 1]} : vector<1x8x128xbf16> to vector<1x8x32xbf16>
    "tpu.trace_start"() <{level = 10 : i32, message = "bqd,bkd->bqk"}> : () -> ()
    %cst_15 = arith.constant dense<0.000000e+00> : vector<1x8x8xf32>
    %53 = tpu.matmul %51, %52, %cst_15 {dimension_numbers = #tpu.dot_dimension_numbers<[2], [2], [1], [1], [0, 0, 0, 1, 1, 1], [0], [0]>} : vector<1x8x32xbf16>, vector<1x8x32xbf16>, vector<1x8x8xf32> -> vector<1x8x8xf32>
    "tpu.trace_stop"() : () -> ()
    %cst_16 = arith.constant dense<0xFF800000> : vector<1x8xf32>
    %54 = vector.multi_reduction <maximumf>, %53, %cst_16 [2] : vector<1x8x8xf32> to vector<1x8xf32>
    %55 = vector.shape_cast %54 : vector<1x8xf32> to vector<1x8x1xf32>
    %56 = vector.broadcast %55 : vector<1x8x1xf32> to vector<1x8x8xf32>
    %57 = arith.subf %53, %56 : vector<1x8x8xf32>
    %58 = math.exp %57 : vector<1x8x8xf32>
    %cst_17 = arith.constant dense<0.000000e+00> : vector<1x8xf32>
    %59 = vector.multi_reduction <add>, %58, %cst_17 [2] : vector<1x8x8xf32> to vector<1x8xf32>
    %60 = vector.shape_cast %59 : vector<1x8xf32> to vector<1x8x1xf32>
    %61 = tpu.reciprocal %60 {approx = true} : vector<1x8x1xf32> -> vector<1x8x1xf32>
    %62 = vector.broadcast %61 : vector<1x8x1xf32> to vector<1x8x8xf32>
    %63 = arith.mulf %58, %62 : vector<1x8x8xf32>
    %64 = arith.truncf %63 : vector<1x8x8xf32> to vector<1x8x8xbf16>
    %65 = vector.extract_strided_slice %18 {offsets = [0, 0, 64], sizes = [1, 8, 32], strides = [1, 1, 1]} : vector<1x8x128xbf16> to vector<1x8x32xbf16>
    "tpu.trace_start"() <{level = 10 : i32, message = "bqk,bkd->bqd"}> : () -> ()
    %cst_18 = arith.constant dense<0.000000e+00> : vector<1x8x32xf32>
    %66 = tpu.matmul %64, %65, %cst_18 {dimension_numbers = #tpu.dot_dimension_numbers<[2], [1], [1], [2], [0, 0, 0, 1, 1, 2], [0], [0]>} : vector<1x8x8xbf16>, vector<1x8x32xbf16>, vector<1x8x32xf32> -> vector<1x8x32xf32>
    "tpu.trace_stop"() : () -> ()
    %67 = vector.extract_strided_slice %12 {offsets = [0, 0, 96], sizes = [1, 8, 32], strides = [1, 1, 1]} : vector<1x8x128xbf16> to vector<1x8x32xbf16>
    %68 = vector.extract_strided_slice %15 {offsets = [0, 0, 96], sizes = [1, 8, 32], strides = [1, 1, 1]} : vector<1x8x128xbf16> to vector<1x8x32xbf16>
    "tpu.trace_start"() <{level = 10 : i32, message = "bqd,bkd->bqk"}> : () -> ()
    %cst_19 = arith.constant dense<0.000000e+00> : vector<1x8x8xf32>
    %69 = tpu.matmul %67, %68, %cst_19 {dimension_numbers = #tpu.dot_dimension_numbers<[2], [2], [1], [1], [0, 0, 0, 1, 1, 1], [0], [0]>} : vector<1x8x32xbf16>, vector<1x8x32xbf16>, vector<1x8x8xf32> -> vector<1x8x8xf32>
    "tpu.trace_stop"() : () -> ()
    %cst_20 = arith.constant dense<0xFF800000> : vector<1x8xf32>
    %70 = vector.multi_reduction <maximumf>, %69, %cst_20 [2] : vector<1x8x8xf32> to vector<1x8xf32>
    %71 = vector.shape_cast %70 : vector<1x8xf32> to vector<1x8x1xf32>
    %72 = vector.broadcast %71 : vector<1x8x1xf32> to vector<1x8x8xf32>
    %73 = arith.subf %69, %72 : vector<1x8x8xf32>
    %74 = math.exp %73 : vector<1x8x8xf32>
    %cst_21 = arith.constant dense<0.000000e+00> : vector<1x8xf32>
    %75 = vector.multi_reduction <add>, %74, %cst_21 [2] : vector<1x8x8xf32> to vector<1x8xf32>
    %76 = vector.shape_cast %75 : vector<1x8xf32> to vector<1x8x1xf32>
    %77 = tpu.reciprocal %76 {approx = true} : vector<1x8x1xf32> -> vector<1x8x1xf32>
    %78 = vector.broadcast %77 : vector<1x8x1xf32> to vector<1x8x8xf32>
    %79 = arith.mulf %74, %78 : vector<1x8x8xf32>
    %80 = arith.truncf %79 : vector<1x8x8xf32> to vector<1x8x8xbf16>
    %81 = vector.extract_strided_slice %18 {offsets = [0, 0, 96], sizes = [1, 8, 32], strides = [1, 1, 1]} : vector<1x8x128xbf16> to vector<1x8x32xbf16>
    "tpu.trace_start"() <{level = 10 : i32, message = "bqk,bkd->bqd"}> : () -> ()
    %cst_22 = arith.constant dense<0.000000e+00> : vector<1x8x32xf32>
    %82 = tpu.matmul %80, %81, %cst_22 {dimension_numbers = #tpu.dot_dimension_numbers<[2], [1], [1], [2], [0, 0, 0, 1, 1, 2], [0], [0]>} : vector<1x8x8xbf16>, vector<1x8x32xbf16>, vector<1x8x32xf32> -> vector<1x8x32xf32>
    "tpu.trace_stop"() : () -> ()
    %83 = tpu.concatenate %34, %50, %66, %82 in 2 : vector<1x8x32xf32>, vector<1x8x32xf32>, vector<1x8x32xf32>, vector<1x8x32xf32> -> vector<1x8x128xf32>
    %84 = vector.shape_cast %83 : vector<1x8x128xf32> to vector<8x128xf32>
    %c0_23 = arith.constant 0 : index
    %c0_24 = arith.constant 0 : index
    %85 = vector.load %arg4[%c0_23, %c0_24] : memref<128x128xbf16, #tpu.memory_space<vmem>>, vector<128x128xbf16>
    %c0_25 = arith.constant 0 : index
    %c0_26 = arith.constant 0 : index
    %86 = vector.load %arg5[%c0_25, %c0_26] : memref<1x128xf32, #tpu.memory_space<vmem>>, vector<1x128xf32>
    %87 = arith.truncf %84 : vector<8x128xf32> to vector<8x128xbf16>
    %cst_27 = arith.constant dense<0.000000e+00> : vector<8x128xf32>
    %88 = tpu.matmul %87, %85, %cst_27 {dimension_numbers = #tpu.dot_dimension_numbers<[1], [0], [0], [1], [0, 0, 1, 1], [], []>} : vector<8x128xbf16>, vector<128x128xbf16>, vector<8x128xf32> -> vector<8x128xf32>
    %89 = vector.broadcast %86 : vector<1x128xf32> to vector<8x128xf32>
    %90 = arith.addf %88, %89 : vector<8x128xf32>
    %91 = arith.addf %90, %1 : vector<8x128xf32>
    %c0_28 = arith.constant 0 : index
    %c0_29 = arith.constant 0 : index
    %92 = vector.load %arg6[%c0_28, %c0_29] : memref<1x128xf32, #tpu.memory_space<vmem>>, vector<1x128xf32>
    %c0_30 = arith.constant 0 : index
    %c0_31 = arith.constant 0 : index
    %93 = vector.load %arg7[%c0_30, %c0_31] : memref<1x128xf32, #tpu.memory_space<vmem>>, vector<1x128xf32>
    %cst_32 = arith.constant dense<0.000000e+00> : vector<8xf32>
    %94 = vector.multi_reduction <add>, %91, %cst_32 [1] : vector<8x128xf32> to vector<8xf32>
    %95 = vector.shape_cast %94 : vector<8xf32> to vector<8x1xf32>
    %cst_33 = arith.constant 1.280000e+02 : f32
    %96 = vector.broadcast %cst_33 : f32 to vector<8x1xf32>
    %97 = arith.divf %95, %96 : vector<8x1xf32>
    %98 = vector.broadcast %97 : vector<8x1xf32> to vector<8x128xf32>
    %99 = arith.subf %91, %98 : vector<8x128xf32>
    %100 = arith.mulf %99, %99 : vector<8x128xf32>
    %cst_34 = arith.constant dense<0.000000e+00> : vector<8xf32>
    %101 = vector.multi_reduction <add>, %100, %cst_34 [1] : vector<8x128xf32> to vector<8xf32>
    %102 = vector.shape_cast %101 : vector<8xf32> to vector<8x1xf32>
    %cst_35 = arith.constant 1.280000e+02 : f32
    %103 = vector.broadcast %cst_35 : f32 to vector<8x1xf32>
    %104 = arith.divf %102, %103 : vector<8x1xf32>
    %105 = vector.broadcast %97 : vector<8x1xf32> to vector<8x128xf32>
    %106 = arith.subf %91, %105 : vector<8x128xf32>
    %cst_36 = arith.constant 9.99999974E-6 : f32
    %107 = vector.broadcast %cst_36 : f32 to vector<8x1xf32>
    %108 = arith.addf %104, %107 : vector<8x1xf32>
    %109 = math.rsqrt %108 : vector<8x1xf32>
    %110 = vector.broadcast %109 : vector<8x1xf32> to vector<8x128xf32>
    %111 = arith.mulf %106, %110 : vector<8x128xf32>
    %112 = vector.broadcast %92 : vector<1x128xf32> to vector<8x128xf32>
    %113 = arith.mulf %111, %112 : vector<8x128xf32>
    %114 = vector.broadcast %93 : vector<1x128xf32> to vector<8x128xf32>
    %115 = arith.addf %113, %114 : vector<8x128xf32>
    %116 = vector.shape_cast %115 : vector<8x128xf32> to vector<1x8x128xf32>
    %c0_37 = arith.constant 0 : index
    %c0_38 = arith.constant 0 : index
    %c0_39 = arith.constant 0 : index
    %117 = vector.load %arg8[%c0_37, %c0_38, %c0_39] : memref<1x8x128xf32, #tpu.memory_space<vmem>>, vector<1x8x128xf32>
    tpu.vector_store %arg8[%c0_37, %c0_38, %c0_39], %116 {strides = array<i32>} : memref<1x8x128xf32, #tpu.memory_space<vmem>>, vector<1x8x128xf32>,
    return
  }
  func.func @transform_0(%arg0: i32) -> (i32, i32, i32) {
    %c0_i32 = arith.constant 0 : i32
    %c0_i32_0 = arith.constant 0 : i32
    %c0_i32_1 = arith.constant 0 : i32
    return %arg0, %c0_i32, %c0_i32_0 : i32, i32, i32
  }
  func.func @transform_1(%arg0: i32) -> (i32, i32) {
    %c0_i32 = arith.constant 0 : i32
    %c0_i32_0 = arith.constant 0 : i32
    %c0_i32_1 = arith.constant 0 : i32
    return %c0_i32, %c0_i32_0 : i32, i32
  }
  func.func @transform_2(%arg0: i32) -> (i32, i32) {
    %c0_i32 = arith.constant 0 : i32
    %c0_i32_0 = arith.constant 0 : i32
    %c0_i32_1 = arith.constant 0 : i32
    return %c0_i32, %c0_i32_0 : i32, i32
  }
  func.func @transform_3(%arg0: i32) -> (i32, i32) {
    %c0_i32 = arith.constant 0 : i32
    %c0_i32_0 = arith.constant 0 : i32
    %c0_i32_1 = arith.constant 0 : i32
    return %c0_i32, %c0_i32_0 : i32, i32
  }
  func.func @transform_4(%arg0: i32) -> (i32, i32) {
    %c0_i32 = arith.constant 0 : i32
    %c0_i32_0 = arith.constant 0 : i32
    %c0_i32_1 = arith.constant 0 : i32
    return %c0_i32, %c0_i32_0 : i32, i32
  }
  func.func @transform_5(%arg0: i32) -> (i32, i32) {
    %c0_i32 = arith.constant 0 : i32
    %c0_i32_0 = arith.constant 0 : i32
    %c0_i32_1 = arith.constant 0 : i32
    return %c0_i32, %c0_i32_0 : i32, i32
  }
  func.func @transform_6(%arg0: i32) -> (i32, i32) {
    %c0_i32 = arith.constant 0 : i32
    %c0_i32_0 = arith.constant 0 : i32
    %c0_i32_1 = arith.constant 0 : i32
    return %c0_i32, %c0_i32_0 : i32, i32
  }
  func.func @transform_7(%arg0: i32) -> (i32, i32, i32) {
    %c0_i32 = arith.constant 0 : i32
    %c0_i32_0 = arith.constant 0 : i32
    %c0_i32_1 = arith.constant 0 : i32
    return %arg0, %c0_i32, %c0_i32_0 : i32, i32, i32
  }
}

module attributes {stable_mosaic.version = 11 : i64} {
  func.func @mem_attn_gate_ln_kernel(%arg0: i32, %arg1: memref<1x8x128xf32, #tpu.memory_space<vmem>>, %arg2: memref<32x128xbf16, #tpu.memory_space<vmem>>, %arg3: memref<32x128xbf16, #tpu.memory_space<vmem>>, %arg4: memref<128x128xbf16, #tpu.memory_space<vmem>>, %arg5: memref<1x128xf32, #tpu.memory_space<vmem>>, %arg6: memref<128x128xbf16, #tpu.memory_space<vmem>>, %arg7: memref<1x128xf32, #tpu.memory_space<vmem>>, %arg8: memref<128x128xbf16, #tpu.memory_space<vmem>>, %arg9: memref<128x128xbf16, #tpu.memory_space<vmem>>, %arg10: memref<1x128xf32, #tpu.memory_space<vmem>>, %arg11: memref<1x128xf32, #tpu.memory_space<vmem>>, %arg12: memref<1x128xf32, #tpu.memory_space<vmem>>, %arg13: memref<1x8x128xf32, #tpu.memory_space<vmem>>) attributes {dimension_semantics = [#tpu.dimension_semantics<parallel>], iteration_bounds = array<i64: 2>, scalar_prefetch = 0 : i64, scratch_operands = 0 : i64, tpu.core_type = #tpu.core_type<tc>, window_params = [{transform_indices = @transform_0, window_bounds = array<i64: 1, 8, 128>}, {pipeline_mode = #tpu.pipeline_mode<synchronous>, transform_indices = @transform_1, window_bounds = array<i64: 32, 128>}, {pipeline_mode = #tpu.pipeline_mode<synchronous>, transform_indices = @transform_2, window_bounds = array<i64: 32, 128>}, {pipeline_mode = #tpu.pipeline_mode<synchronous>, transform_indices = @transform_3, window_bounds = array<i64: 128, 128>}, {pipeline_mode = #tpu.pipeline_mode<synchronous>, transform_indices = @transform_4, window_bounds = array<i64: 1, 128>}, {pipeline_mode = #tpu.pipeline_mode<synchronous>, transform_indices = @transform_5, window_bounds = array<i64: 128, 128>}, {pipeline_mode = #tpu.pipeline_mode<synchronous>, transform_indices = @transform_6, window_bounds = array<i64: 1, 128>}, {pipeline_mode = #tpu.pipeline_mode<synchronous>, transform_indices = @transform_7, window_bounds = array<i64: 128, 128>}, {pipeline_mode = #tpu.pipeline_mode<synchronous>, transform_indices = @transform_8, window_bounds = array<i64: 128, 128>}, {pipeline_mode = #tpu.pipeline_mode<synchronous>, transform_indices = @transform_9, window_bounds = array<i64: 1, 128>}, {pipeline_mode = #tpu.pipeline_mode<synchronous>, transform_indices = @transform_10, window_bounds = array<i64: 1, 128>}, {pipeline_mode = #tpu.pipeline_mode<synchronous>, transform_indices = @transform_11, window_bounds = array<i64: 1, 128>}, {transform_indices = @transform_12, window_bounds = array<i64: 1, 8, 128>}]} {
    %c0 = arith.constant 0 : index
    %c0_0 = arith.constant 0 : index
    %c0_1 = arith.constant 0 : index
    %0 = vector.load %arg1[%c0, %c0_0, %c0_1] : memref<1x8x128xf32, #tpu.memory_space<vmem>>, vector<1x8x128xf32>
    %1 = vector.shape_cast %0 : vector<1x8x128xf32> to vector<8x128xf32>
    %c0_2 = arith.constant 0 : index
    %c0_3 = arith.constant 0 : index
    %2 = vector.load %arg4[%c0_2, %c0_3] : memref<128x128xbf16, #tpu.memory_space<vmem>>, vector<128x128xbf16>
    %c0_4 = arith.constant 0 : index
    %c0_5 = arith.constant 0 : index
    %3 = vector.load %arg5[%c0_4, %c0_5] : memref<1x128xf32, #tpu.memory_space<vmem>>, vector<1x128xf32>
    %4 = arith.truncf %1 : vector<8x128xf32> to vector<8x128xbf16>
    %cst = arith.constant dense<0.000000e+00> : vector<8x128xf32>
    %5 = tpu.matmul %4, %2, %cst {dimension_numbers = #tpu.dot_dimension_numbers<[1], [0], [0], [1], [0, 0, 1, 1], [], []>} : vector<8x128xbf16>, vector<128x128xbf16>, vector<8x128xf32> -> vector<8x128xf32>
    %6 = vector.broadcast %3 : vector<1x128xf32> to vector<8x128xf32>
    %7 = arith.addf %5, %6 : vector<8x128xf32>
    %cst_6 = arith.constant 0.176776692 : f32
    %8 = vector.broadcast %cst_6 : f32 to vector<8x128xf32>
    %9 = arith.mulf %7, %8 : vector<8x128xf32>
    %10 = arith.truncf %9 : vector<8x128xf32> to vector<8x128xbf16>
    %c0_7 = arith.constant 0 : index
    %c0_8 = arith.constant 0 : index
    %11 = vector.load %arg2[%c0_7, %c0_8] : memref<32x128xbf16, #tpu.memory_space<vmem>>, vector<32x128xbf16>
    %c0_9 = arith.constant 0 : index
    %c0_10 = arith.constant 0 : index
    %12 = vector.load %arg3[%c0_9, %c0_10] : memref<32x128xbf16, #tpu.memory_space<vmem>>, vector<32x128xbf16>
    %13 = vector.extract_strided_slice %10 {offsets = [0, 0], sizes = [8, 32], strides = [1, 1]} : vector<8x128xbf16> to vector<8x32xbf16>
    %14 = vector.extract_strided_slice %11 {offsets = [0, 0], sizes = [32, 32], strides = [1, 1]} : vector<32x128xbf16> to vector<32x32xbf16>
    "tpu.trace_start"() <{level = 10 : i32, message = "qd,kd->qk"}> : () -> ()
    %cst_11 = arith.constant dense<0.000000e+00> : vector<8x32xf32>
    %15 = tpu.matmul %13, %14, %cst_11 {dimension_numbers = #tpu.dot_dimension_numbers<[1], [1], [0], [0], [0, 0, 1, 0], [], []>} : vector<8x32xbf16>, vector<32x32xbf16>, vector<8x32xf32> -> vector<8x32xf32>
    "tpu.trace_stop"() : () -> ()
    %cst_12 = arith.constant dense<0xFF800000> : vector<8xf32>
    %16 = vector.multi_reduction <maximumf>, %15, %cst_12 [1] : vector<8x32xf32> to vector<8xf32>
    %17 = vector.shape_cast %16 : vector<8xf32> to vector<8x1xf32>
    %18 = vector.broadcast %17 : vector<8x1xf32> to vector<8x32xf32>
    %19 = arith.subf %15, %18 : vector<8x32xf32>
    %20 = math.exp %19 : vector<8x32xf32>
    %cst_13 = arith.constant dense<0.000000e+00> : vector<8xf32>
    %21 = vector.multi_reduction <add>, %20, %cst_13 [1] : vector<8x32xf32> to vector<8xf32>
    %22 = vector.shape_cast %21 : vector<8xf32> to vector<8x1xf32>
    %23 = tpu.reciprocal %22 {approx = true} : vector<8x1xf32> -> vector<8x1xf32>
    %24 = vector.broadcast %23 : vector<8x1xf32> to vector<8x32xf32>
    %25 = arith.mulf %20, %24 : vector<8x32xf32>
    %26 = arith.truncf %25 : vector<8x32xf32> to vector<8x32xbf16>
    %27 = vector.extract_strided_slice %12 {offsets = [0, 0], sizes = [32, 32], strides = [1, 1]} : vector<32x128xbf16> to vector<32x32xbf16>
    %cst_14 = arith.constant dense<0.000000e+00> : vector<8x32xf32>
    %28 = tpu.matmul %26, %27, %cst_14 {dimension_numbers = #tpu.dot_dimension_numbers<[1], [0], [0], [1], [0, 0, 1, 1], [], []>} : vector<8x32xbf16>, vector<32x32xbf16>, vector<8x32xf32> -> vector<8x32xf32>
    %29 = vector.extract_strided_slice %10 {offsets = [0, 32], sizes = [8, 32], strides = [1, 1]} : vector<8x128xbf16> to vector<8x32xbf16>
    %30 = vector.extract_strided_slice %11 {offsets = [0, 32], sizes = [32, 32], strides = [1, 1]} : vector<32x128xbf16> to vector<32x32xbf16>
    "tpu.trace_start"() <{level = 10 : i32, message = "qd,kd->qk"}> : () -> ()
    %cst_15 = arith.constant dense<0.000000e+00> : vector<8x32xf32>
    %31 = tpu.matmul %29, %30, %cst_15 {dimension_numbers = #tpu.dot_dimension_numbers<[1], [1], [0], [0], [0, 0, 1, 0], [], []>} : vector<8x32xbf16>, vector<32x32xbf16>, vector<8x32xf32> -> vector<8x32xf32>
    "tpu.trace_stop"() : () -> ()
    %cst_16 = arith.constant dense<0xFF800000> : vector<8xf32>
    %32 = vector.multi_reduction <maximumf>, %31, %cst_16 [1] : vector<8x32xf32> to vector<8xf32>
    %33 = vector.shape_cast %32 : vector<8xf32> to vector<8x1xf32>
    %34 = vector.broadcast %33 : vector<8x1xf32> to vector<8x32xf32>
    %35 = arith.subf %31, %34 : vector<8x32xf32>
    %36 = math.exp %35 : vector<8x32xf32>
    %cst_17 = arith.constant dense<0.000000e+00> : vector<8xf32>
    %37 = vector.multi_reduction <add>, %36, %cst_17 [1] : vector<8x32xf32> to vector<8xf32>
    %38 = vector.shape_cast %37 : vector<8xf32> to vector<8x1xf32>
    %39 = tpu.reciprocal %38 {approx = true} : vector<8x1xf32> -> vector<8x1xf32>
    %40 = vector.broadcast %39 : vector<8x1xf32> to vector<8x32xf32>
    %41 = arith.mulf %36, %40 : vector<8x32xf32>
    %42 = arith.truncf %41 : vector<8x32xf32> to vector<8x32xbf16>
    %43 = vector.extract_strided_slice %12 {offsets = [0, 32], sizes = [32, 32], strides = [1, 1]} : vector<32x128xbf16> to vector<32x32xbf16>
    %cst_18 = arith.constant dense<0.000000e+00> : vector<8x32xf32>
    %44 = tpu.matmul %42, %43, %cst_18 {dimension_numbers = #tpu.dot_dimension_numbers<[1], [0], [0], [1], [0, 0, 1, 1], [], []>} : vector<8x32xbf16>, vector<32x32xbf16>, vector<8x32xf32> -> vector<8x32xf32>
    %45 = vector.extract_strided_slice %10 {offsets = [0, 64], sizes = [8, 32], strides = [1, 1]} : vector<8x128xbf16> to vector<8x32xbf16>
    %46 = vector.extract_strided_slice %11 {offsets = [0, 64], sizes = [32, 32], strides = [1, 1]} : vector<32x128xbf16> to vector<32x32xbf16>
    "tpu.trace_start"() <{level = 10 : i32, message = "qd,kd->qk"}> : () -> ()
    %cst_19 = arith.constant dense<0.000000e+00> : vector<8x32xf32>
    %47 = tpu.matmul %45, %46, %cst_19 {dimension_numbers = #tpu.dot_dimension_numbers<[1], [1], [0], [0], [0, 0, 1, 0], [], []>} : vector<8x32xbf16>, vector<32x32xbf16>, vector<8x32xf32> -> vector<8x32xf32>
    "tpu.trace_stop"() : () -> ()
    %cst_20 = arith.constant dense<0xFF800000> : vector<8xf32>
    %48 = vector.multi_reduction <maximumf>, %47, %cst_20 [1] : vector<8x32xf32> to vector<8xf32>
    %49 = vector.shape_cast %48 : vector<8xf32> to vector<8x1xf32>
    %50 = vector.broadcast %49 : vector<8x1xf32> to vector<8x32xf32>
    %51 = arith.subf %47, %50 : vector<8x32xf32>
    %52 = math.exp %51 : vector<8x32xf32>
    %cst_21 = arith.constant dense<0.000000e+00> : vector<8xf32>
    %53 = vector.multi_reduction <add>, %52, %cst_21 [1] : vector<8x32xf32> to vector<8xf32>
    %54 = vector.shape_cast %53 : vector<8xf32> to vector<8x1xf32>
    %55 = tpu.reciprocal %54 {approx = true} : vector<8x1xf32> -> vector<8x1xf32>
    %56 = vector.broadcast %55 : vector<8x1xf32> to vector<8x32xf32>
    %57 = arith.mulf %52, %56 : vector<8x32xf32>
    %58 = arith.truncf %57 : vector<8x32xf32> to vector<8x32xbf16>
    %59 = vector.extract_strided_slice %12 {offsets = [0, 64], sizes = [32, 32], strides = [1, 1]} : vector<32x128xbf16> to vector<32x32xbf16>
    %cst_22 = arith.constant dense<0.000000e+00> : vector<8x32xf32>
    %60 = tpu.matmul %58, %59, %cst_22 {dimension_numbers = #tpu.dot_dimension_numbers<[1], [0], [0], [1], [0, 0, 1, 1], [], []>} : vector<8x32xbf16>, vector<32x32xbf16>, vector<8x32xf32> -> vector<8x32xf32>
    %61 = vector.extract_strided_slice %10 {offsets = [0, 96], sizes = [8, 32], strides = [1, 1]} : vector<8x128xbf16> to vector<8x32xbf16>
    %62 = vector.extract_strided_slice %11 {offsets = [0, 96], sizes = [32, 32], strides = [1, 1]} : vector<32x128xbf16> to vector<32x32xbf16>
    "tpu.trace_start"() <{level = 10 : i32, message = "qd,kd->qk"}> : () -> ()
    %cst_23 = arith.constant dense<0.000000e+00> : vector<8x32xf32>
    %63 = tpu.matmul %61, %62, %cst_23 {dimension_numbers = #tpu.dot_dimension_numbers<[1], [1], [0], [0], [0, 0, 1, 0], [], []>} : vector<8x32xbf16>, vector<32x32xbf16>, vector<8x32xf32> -> vector<8x32xf32>
    "tpu.trace_stop"() : () -> ()
    %cst_24 = arith.constant dense<0xFF800000> : vector<8xf32>
    %64 = vector.multi_reduction <maximumf>, %63, %cst_24 [1] : vector<8x32xf32> to vector<8xf32>
    %65 = vector.shape_cast %64 : vector<8xf32> to vector<8x1xf32>
    %66 = vector.broadcast %65 : vector<8x1xf32> to vector<8x32xf32>
    %67 = arith.subf %63, %66 : vector<8x32xf32>
    %68 = math.exp %67 : vector<8x32xf32>
    %cst_25 = arith.constant dense<0.000000e+00> : vector<8xf32>
    %69 = vector.multi_reduction <add>, %68, %cst_25 [1] : vector<8x32xf32> to vector<8xf32>
    %70 = vector.shape_cast %69 : vector<8xf32> to vector<8x1xf32>
    %71 = tpu.reciprocal %70 {approx = true} : vector<8x1xf32> -> vector<8x1xf32>
    %72 = vector.broadcast %71 : vector<8x1xf32> to vector<8x32xf32>
    %73 = arith.mulf %68, %72 : vector<8x32xf32>
    %74 = arith.truncf %73 : vector<8x32xf32> to vector<8x32xbf16>
    %75 = vector.extract_strided_slice %12 {offsets = [0, 96], sizes = [32, 32], strides = [1, 1]} : vector<32x128xbf16> to vector<32x32xbf16>
    %cst_26 = arith.constant dense<0.000000e+00> : vector<8x32xf32>
    %76 = tpu.matmul %74, %75, %cst_26 {dimension_numbers = #tpu.dot_dimension_numbers<[1], [0], [0], [1], [0, 0, 1, 1], [], []>} : vector<8x32xbf16>, vector<32x32xbf16>, vector<8x32xf32> -> vector<8x32xf32>
    %77 = tpu.concatenate %28, %44, %60, %76 in 1 : vector<8x32xf32>, vector<8x32xf32>, vector<8x32xf32>, vector<8x32xf32> -> vector<8x128xf32>
    %c0_27 = arith.constant 0 : index
    %c0_28 = arith.constant 0 : index
    %78 = vector.load %arg6[%c0_27, %c0_28] : memref<128x128xbf16, #tpu.memory_space<vmem>>, vector<128x128xbf16>
    %c0_29 = arith.constant 0 : index
    %c0_30 = arith.constant 0 : index
    %79 = vector.load %arg7[%c0_29, %c0_30] : memref<1x128xf32, #tpu.memory_space<vmem>>, vector<1x128xf32>
    %80 = arith.truncf %77 : vector<8x128xf32> to vector<8x128xbf16>
    %cst_31 = arith.constant dense<0.000000e+00> : vector<8x128xf32>
    %81 = tpu.matmul %80, %78, %cst_31 {dimension_numbers = #tpu.dot_dimension_numbers<[1], [0], [0], [1], [0, 0, 1, 1], [], []>} : vector<8x128xbf16>, vector<128x128xbf16>, vector<8x128xf32> -> vector<8x128xf32>
    %82 = vector.broadcast %79 : vector<1x128xf32> to vector<8x128xf32>
    %83 = arith.addf %81, %82 : vector<8x128xf32>
    %c0_32 = arith.constant 0 : index
    %c0_33 = arith.constant 0 : index
    %84 = vector.load %arg8[%c0_32, %c0_33] : memref<128x128xbf16, #tpu.memory_space<vmem>>, vector<128x128xbf16>
    %c0_34 = arith.constant 0 : index
    %c0_35 = arith.constant 0 : index
    %85 = vector.load %arg10[%c0_34, %c0_35] : memref<1x128xf32, #tpu.memory_space<vmem>>, vector<1x128xf32>
    %86 = arith.truncf %1 : vector<8x128xf32> to vector<8x128xbf16>
    %cst_36 = arith.constant dense<0.000000e+00> : vector<8x128xf32>
    %87 = tpu.matmul %86, %84, %cst_36 {dimension_numbers = #tpu.dot_dimension_numbers<[1], [0], [0], [1], [0, 0, 1, 1], [], []>} : vector<8x128xbf16>, vector<128x128xbf16>, vector<8x128xf32> -> vector<8x128xf32>
    %88 = vector.broadcast %85 : vector<1x128xf32> to vector<8x128xf32>
    %89 = arith.addf %87, %88 : vector<8x128xf32>
    %c0_37 = arith.constant 0 : index
    %c0_38 = arith.constant 0 : index
    %90 = vector.load %arg9[%c0_37, %c0_38] : memref<128x128xbf16, #tpu.memory_space<vmem>>, vector<128x128xbf16>
    %91 = arith.truncf %83 : vector<8x128xf32> to vector<8x128xbf16>
    %cst_39 = arith.constant dense<0.000000e+00> : vector<8x128xf32>
    %92 = tpu.matmul %91, %90, %cst_39 {dimension_numbers = #tpu.dot_dimension_numbers<[1], [0], [0], [1], [0, 0, 1, 1], [], []>} : vector<8x128xbf16>, vector<128x128xbf16>, vector<8x128xf32> -> vector<8x128xf32>
    %93 = arith.addf %89, %92 : vector<8x128xf32>
    %94 = arith.negf %93 : vector<8x128xf32>
    %95 = math.exp %94 : vector<8x128xf32>
    %cst_40 = arith.constant 1.000000e+00 : f32
    %96 = vector.broadcast %cst_40 : f32 to vector<8x128xf32>
    %97 = arith.addf %96, %95 : vector<8x128xf32>
    %98 = arith.divf %96, %97 : vector<8x128xf32>
    %99 = arith.mulf %98, %83 : vector<8x128xf32>
    %100 = arith.addf %1, %99 : vector<8x128xf32>
    %c0_41 = arith.constant 0 : index
    %c0_42 = arith.constant 0 : index
    %101 = vector.load %arg11[%c0_41, %c0_42] : memref<1x128xf32, #tpu.memory_space<vmem>>, vector<1x128xf32>
    %c0_43 = arith.constant 0 : index
    %c0_44 = arith.constant 0 : index
    %102 = vector.load %arg12[%c0_43, %c0_44] : memref<1x128xf32, #tpu.memory_space<vmem>>, vector<1x128xf32>
    %cst_45 = arith.constant dense<0.000000e+00> : vector<8xf32>
    %103 = vector.multi_reduction <add>, %100, %cst_45 [1] : vector<8x128xf32> to vector<8xf32>
    %104 = vector.shape_cast %103 : vector<8xf32> to vector<8x1xf32>
    %cst_46 = arith.constant 1.280000e+02 : f32
    %105 = vector.broadcast %cst_46 : f32 to vector<8x1xf32>
    %106 = arith.divf %104, %105 : vector<8x1xf32>
    %107 = vector.broadcast %106 : vector<8x1xf32> to vector<8x128xf32>
    %108 = arith.subf %100, %107 : vector<8x128xf32>
    %109 = arith.mulf %108, %108 : vector<8x128xf32>
    %cst_47 = arith.constant dense<0.000000e+00> : vector<8xf32>
    %110 = vector.multi_reduction <add>, %109, %cst_47 [1] : vector<8x128xf32> to vector<8xf32>
    %111 = vector.shape_cast %110 : vector<8xf32> to vector<8x1xf32>
    %cst_48 = arith.constant 1.280000e+02 : f32
    %112 = vector.broadcast %cst_48 : f32 to vector<8x1xf32>
    %113 = arith.divf %111, %112 : vector<8x1xf32>
    %114 = vector.broadcast %106 : vector<8x1xf32> to vector<8x128xf32>
    %115 = arith.subf %100, %114 : vector<8x128xf32>
    %cst_49 = arith.constant 9.99999974E-6 : f32
    %116 = vector.broadcast %cst_49 : f32 to vector<8x1xf32>
    %117 = arith.addf %113, %116 : vector<8x1xf32>
    %118 = math.rsqrt %117 : vector<8x1xf32>
    %119 = vector.broadcast %118 : vector<8x1xf32> to vector<8x128xf32>
    %120 = arith.mulf %115, %119 : vector<8x128xf32>
    %121 = vector.broadcast %101 : vector<1x128xf32> to vector<8x128xf32>
    %122 = arith.mulf %120, %121 : vector<8x128xf32>
    %123 = vector.broadcast %102 : vector<1x128xf32> to vector<8x128xf32>
    %124 = arith.addf %122, %123 : vector<8x128xf32>
    %125 = vector.shape_cast %124 : vector<8x128xf32> to vector<1x8x128xf32>
    %c0_50 = arith.constant 0 : index
    %c0_51 = arith.constant 0 : index
    %c0_52 = arith.constant 0 : index
    %126 = vector.load %arg13[%c0_50, %c0_51, %c0_52] : memref<1x8x128xf32, #tpu.memory_space<vmem>>, vector<1x8x128xf32>
    tpu.vector_store %arg13[%c0_50, %c0_51, %c0_52], %125 {strides = array<i32>} : memref<1x8x128xf32, #tpu.memory_space<vmem>>, vector<1x8x128xf32>,
    return
  }
  func.func @transform_0(%arg0: i32) -> (i32, i32, i32) {
    %c0_i32 = arith.constant 0 : i32
    %c0_i32_0 = arith.constant 0 : i32
    %c0_i32_1 = arith.constant 0 : i32
    return %arg0, %c0_i32, %c0_i32_0 : i32, i32, i32
  }
  func.func @transform_1(%arg0: i32) -> (i32, i32) {
    %c0_i32 = arith.constant 0 : i32
    %c0_i32_0 = arith.constant 0 : i32
    %c0_i32_1 = arith.constant 0 : i32
    return %c0_i32, %c0_i32_0 : i32, i32
  }
  func.func @transform_2(%arg0: i32) -> (i32, i32) {
    %c0_i32 = arith.constant 0 : i32
    %c0_i32_0 = arith.constant 0 : i32
    %c0_i32_1 = arith.constant 0 : i32
    return %c0_i32, %c0_i32_0 : i32, i32
  }
  func.func @transform_3(%arg0: i32) -> (i32, i32) {
    %c0_i32 = arith.constant 0 : i32
    %c0_i32_0 = arith.constant 0 : i32
    %c0_i32_1 = arith.constant 0 : i32
    return %c0_i32, %c0_i32_0 : i32, i32
  }
  func.func @transform_4(%arg0: i32) -> (i32, i32) {
    %c0_i32 = arith.constant 0 : i32
    %c0_i32_0 = arith.constant 0 : i32
    %c0_i32_1 = arith.constant 0 : i32
    return %c0_i32, %c0_i32_0 : i32, i32
  }
  func.func @transform_5(%arg0: i32) -> (i32, i32) {
    %c0_i32 = arith.constant 0 : i32
    %c0_i32_0 = arith.constant 0 : i32
    %c0_i32_1 = arith.constant 0 : i32
    return %c0_i32, %c0_i32_0 : i32, i32
  }
  func.func @transform_6(%arg0: i32) -> (i32, i32) {
    %c0_i32 = arith.constant 0 : i32
    %c0_i32_0 = arith.constant 0 : i32
    %c0_i32_1 = arith.constant 0 : i32
    return %c0_i32, %c0_i32_0 : i32, i32
  }
  func.func @transform_7(%arg0: i32) -> (i32, i32) {
    %c0_i32 = arith.constant 0 : i32
    %c0_i32_0 = arith.constant 0 : i32
    %c0_i32_1 = arith.constant 0 : i32
    return %c0_i32, %c0_i32_0 : i32, i32
  }
  func.func @transform_8(%arg0: i32) -> (i32, i32) {
    %c0_i32 = arith.constant 0 : i32
    %c0_i32_0 = arith.constant 0 : i32
    %c0_i32_1 = arith.constant 0 : i32
    return %c0_i32, %c0_i32_0 : i32, i32
  }
  func.func @transform_9(%arg0: i32) -> (i32, i32) {
    %c0_i32 = arith.constant 0 : i32
    %c0_i32_0 = arith.constant 0 : i32
    %c0_i32_1 = arith.constant 0 : i32
    return %c0_i32, %c0_i32_0 : i32, i32
  }
  func.func @transform_10(%arg0: i32) -> (i32, i32) {
    %c0_i32 = arith.constant 0 : i32
    %c0_i32_0 = arith.constant 0 : i32
    %c0_i32_1 = arith.constant 0 : i32
    return %c0_i32, %c0_i32_0 : i32, i32
  }
  func.func @transform_11(%arg0: i32) -> (i32, i32) {
    %c0_i32 = arith.constant 0 : i32
    %c0_i32_0 = arith.constant 0 : i32
    %c0_i32_1 = arith.constant 0 : i32
    return %c0_i32, %c0_i32_0 : i32, i32
  }
  func.func @transform_12(%arg0: i32) -> (i32, i32, i32) {
    %c0_i32 = arith.constant 0 : i32
    %c0_i32_0 = arith.constant 0 : i32
    %c0_i32_1 = arith.constant 0 : i32
    return %arg0, %c0_i32, %c0_i32_0 : i32, i32, i32
  }
}

module attributes {stable_mosaic.version = 11 : i64} {
  func.func @head_kernel(%arg0: i32, %arg1: i32, %arg2: memref<1x8x128xf32, #tpu.memory_space<vmem>>, %arg3: memref<128x64xbf16, #tpu.memory_space<vmem>>, %arg4: memref<1x64xf32, #tpu.memory_space<vmem>>, %arg5: memref<1x64xf32, #tpu.memory_space<vmem>>, %arg6: memref<1x64xf32, #tpu.memory_space<vmem>>, %arg7: memref<1x64xf32, #tpu.memory_space<vmem>>, %arg8: memref<1x64xf32, #tpu.memory_space<vmem>>, %arg9: memref<64x128xbf16, #tpu.memory_space<vmem>>, %arg10: memref<1x128xf32, #tpu.memory_space<vmem>>, %arg11: memref<1x128xf32, #tpu.memory_space<vmem>>, %arg12: memref<1x128xf32, #tpu.memory_space<vmem>>, %arg13: memref<128x64xbf16, #tpu.memory_space<vmem>>, %arg14: memref<1x64xf32, #tpu.memory_space<vmem>>, %arg15: memref<1x64xf32, #tpu.memory_space<vmem>>, %arg16: memref<1x64xf32, #tpu.memory_space<vmem>>, %arg17: memref<64x128xbf16, #tpu.memory_space<vmem>>, %arg18: memref<1x128xf32, #tpu.memory_space<vmem>>, %arg19: memref<1x8x64xf32, #tpu.memory_space<vmem>>, %arg20: memref<1x8x128xbf16, #tpu.memory_space<vmem>>, %arg21: memref<8x64xbf16, #tpu.memory_space<vmem>>) attributes {dimension_semantics = [#tpu.dimension_semantics<parallel>, #tpu.dimension_semantics<arbitrary>], iteration_bounds = array<i64: 2, 2>, scalar_prefetch = 0 : i64, scratch_operands = 1 : i64, tpu.core_type = #tpu.core_type<tc>, window_params = [{transform_indices = @transform_0, window_bounds = array<i64: 1, 8, 128>}, {pipeline_mode = #tpu.pipeline_mode<synchronous>, transform_indices = @transform_1, window_bounds = array<i64: 128, 64>}, {pipeline_mode = #tpu.pipeline_mode<synchronous>, transform_indices = @transform_2, window_bounds = array<i64: 1, 64>}, {pipeline_mode = #tpu.pipeline_mode<synchronous>, transform_indices = @transform_3, window_bounds = array<i64: 1, 64>}, {pipeline_mode = #tpu.pipeline_mode<synchronous>, transform_indices = @transform_4, window_bounds = array<i64: 1, 64>}, {pipeline_mode = #tpu.pipeline_mode<synchronous>, transform_indices = @transform_5, window_bounds = array<i64: 1, 64>}, {pipeline_mode = #tpu.pipeline_mode<synchronous>, transform_indices = @transform_6, window_bounds = array<i64: 1, 64>}, {pipeline_mode = #tpu.pipeline_mode<synchronous>, transform_indices = @transform_7, window_bounds = array<i64: 64, 128>}, {pipeline_mode = #tpu.pipeline_mode<synchronous>, transform_indices = @transform_8, window_bounds = array<i64: 1, 128>}, {pipeline_mode = #tpu.pipeline_mode<synchronous>, transform_indices = @transform_9, window_bounds = array<i64: 1, 128>}, {pipeline_mode = #tpu.pipeline_mode<synchronous>, transform_indices = @transform_10, window_bounds = array<i64: 1, 128>}, {pipeline_mode = #tpu.pipeline_mode<synchronous>, transform_indices = @transform_11, window_bounds = array<i64: 128, 64>}, {pipeline_mode = #tpu.pipeline_mode<synchronous>, transform_indices = @transform_12, window_bounds = array<i64: 1, 64>}, {pipeline_mode = #tpu.pipeline_mode<synchronous>, transform_indices = @transform_13, window_bounds = array<i64: 1, 64>}, {pipeline_mode = #tpu.pipeline_mode<synchronous>, transform_indices = @transform_14, window_bounds = array<i64: 1, 64>}, {transform_indices = @transform_15, window_bounds = array<i64: 64, 128>}, {transform_indices = @transform_16, window_bounds = array<i64: 1, 128>}, {transform_indices = @transform_17, window_bounds = array<i64: 1, 8, 64>}, {transform_indices = @transform_18, window_bounds = array<i64: 1, 8, 128>}]} {
    %c0_i32 = arith.constant 0 : i32
    %0 = arith.cmpi eq, %arg1, %c0_i32 : i32
    %1 = arith.extui %0 : i1 to i32
    %c0_i32_0 = arith.constant 0 : i32
    %2 = arith.cmpi ne, %1, %c0_i32_0 : i32
    scf.if %2 {
      %c0_9 = arith.constant 0 : index
      %c0_10 = arith.constant 0 : index
      %c0_11 = arith.constant 0 : index
      %12 = vector.load %arg2[%c0_9, %c0_10, %c0_11] : memref<1x8x128xf32, #tpu.memory_space<vmem>>, vector<1x8x128xf32>
      %13 = vector.shape_cast %12 : vector<1x8x128xf32> to vector<8x128xf32>
      %c0_12 = arith.constant 0 : index
      %c0_13 = arith.constant 0 : index
      %14 = vector.load %arg3[%c0_12, %c0_13] : memref<128x64xbf16, #tpu.memory_space<vmem>>, vector<128x64xbf16>
      %c0_14 = arith.constant 0 : index
      %c0_15 = arith.constant 0 : index
      %15 = vector.load %arg4[%c0_14, %c0_15] : memref<1x64xf32, #tpu.memory_space<vmem>>, vector<1x64xf32>
      %16 = arith.truncf %13 : vector<8x128xf32> to vector<8x128xbf16>
      %cst_16 = arith.constant dense<0.000000e+00> : vector<8x64xf32>
      %17 = tpu.matmul %16, %14, %cst_16 {dimension_numbers = #tpu.dot_dimension_numbers<[1], [0], [0], [1], [0, 0, 1, 1], [], []>} : vector<8x128xbf16>, vector<128x64xbf16>, vector<8x64xf32> -> vector<8x64xf32>
      %18 = vector.broadcast %15 : vector<1x64xf32> to vector<8x64xf32>
      %19 = arith.addf %17, %18 : vector<8x64xf32>
      %c0_17 = arith.constant 0 : index
      %c0_18 = arith.constant 0 : index
      %20 = vector.load %arg5[%c0_17, %c0_18] : memref<1x64xf32, #tpu.memory_space<vmem>>, vector<1x64xf32>
      %c0_19 = arith.constant 0 : index
      %c0_20 = arith.constant 0 : index
      %21 = vector.load %arg6[%c0_19, %c0_20] : memref<1x64xf32, #tpu.memory_space<vmem>>, vector<1x64xf32>
      %cst_21 = arith.constant dense<0.000000e+00> : vector<8xf32>
      %22 = vector.multi_reduction <add>, %19, %cst_21 [1] : vector<8x64xf32> to vector<8xf32>
      %23 = vector.shape_cast %22 : vector<8xf32> to vector<8x1xf32>
      %cst_22 = arith.constant 6.400000e+01 : f32
      %24 = vector.broadcast %cst_22 : f32 to vector<8x1xf32>
      %25 = arith.divf %23, %24 : vector<8x1xf32>
      %26 = vector.broadcast %25 : vector<8x1xf32> to vector<8x64xf32>
      %27 = arith.subf %19, %26 : vector<8x64xf32>
      %28 = arith.mulf %27, %27 : vector<8x64xf32>
      %cst_23 = arith.constant dense<0.000000e+00> : vector<8xf32>
      %29 = vector.multi_reduction <add>, %28, %cst_23 [1] : vector<8x64xf32> to vector<8xf32>
      %30 = vector.shape_cast %29 : vector<8xf32> to vector<8x1xf32>
      %cst_24 = arith.constant 6.400000e+01 : f32
      %31 = vector.broadcast %cst_24 : f32 to vector<8x1xf32>
      %32 = arith.divf %30, %31 : vector<8x1xf32>
      %33 = vector.broadcast %25 : vector<8x1xf32> to vector<8x64xf32>
      %34 = arith.subf %19, %33 : vector<8x64xf32>
      %cst_25 = arith.constant 9.99999974E-6 : f32
      %35 = vector.broadcast %cst_25 : f32 to vector<8x1xf32>
      %36 = arith.addf %32, %35 : vector<8x1xf32>
      %37 = math.rsqrt %36 : vector<8x1xf32>
      %38 = vector.broadcast %37 : vector<8x1xf32> to vector<8x64xf32>
      %39 = arith.mulf %34, %38 : vector<8x64xf32>
      %40 = vector.broadcast %20 : vector<1x64xf32> to vector<8x64xf32>
      %41 = arith.mulf %39, %40 : vector<8x64xf32>
      %42 = vector.broadcast %21 : vector<1x64xf32> to vector<8x64xf32>
      %43 = arith.addf %41, %42 : vector<8x64xf32>
      %cst_26 = arith.constant 5.000000e-01 : f32
      %44 = vector.broadcast %cst_26 : f32 to vector<8x64xf32>
      %45 = arith.mulf %44, %43 : vector<8x64xf32>
      %cst_27 = arith.constant 4.471500e-02 : f32
      %46 = vector.broadcast %cst_27 : f32 to vector<8x64xf32>
      %47 = arith.mulf %46, %43 : vector<8x64xf32>
      %48 = arith.mulf %47, %43 : vector<8x64xf32>
      %49 = arith.mulf %48, %43 : vector<8x64xf32>
      %50 = arith.addf %43, %49 : vector<8x64xf32>
      %cst_28 = arith.constant 0.797884583 : f32
      %51 = vector.broadcast %cst_28 : f32 to vector<8x64xf32>
      %52 = arith.mulf %51, %50 : vector<8x64xf32>
      %53 = math.tanh %52 : vector<8x64xf32>
      %cst_29 = arith.constant 1.000000e+00 : f32
      %54 = vector.broadcast %cst_29 : f32 to vector<8x64xf32>
      %55 = arith.addf %54, %53 : vector<8x64xf32>
      %56 = arith.mulf %45, %55 : vector<8x64xf32>
      %c0_30 = arith.constant 0 : index
      %c0_31 = arith.constant 0 : index
      %57 = vector.load %arg7[%c0_30, %c0_31] : memref<1x64xf32, #tpu.memory_space<vmem>>, vector<1x64xf32>
      %c0_32 = arith.constant 0 : index
      %c0_33 = arith.constant 0 : index
      %58 = vector.load %arg8[%c0_32, %c0_33] : memref<1x64xf32, #tpu.memory_space<vmem>>, vector<1x64xf32>
      %cst_34 = arith.constant dense<0.000000e+00> : vector<8xf32>
      %59 = vector.multi_reduction <add>, %56, %cst_34 [1] : vector<8x64xf32> to vector<8xf32>
      %60 = vector.shape_cast %59 : vector<8xf32> to vector<8x1xf32>
      %cst_35 = arith.constant 6.400000e+01 : f32
      %61 = vector.broadcast %cst_35 : f32 to vector<8x1xf32>
      %62 = arith.divf %60, %61 : vector<8x1xf32>
      %63 = vector.broadcast %62 : vector<8x1xf32> to vector<8x64xf32>
      %64 = arith.subf %56, %63 : vector<8x64xf32>
      %65 = arith.mulf %64, %64 : vector<8x64xf32>
      %cst_36 = arith.constant dense<0.000000e+00> : vector<8xf32>
      %66 = vector.multi_reduction <add>, %65, %cst_36 [1] : vector<8x64xf32> to vector<8xf32>
      %67 = vector.shape_cast %66 : vector<8xf32> to vector<8x1xf32>
      %cst_37 = arith.constant 6.400000e+01 : f32
      %68 = vector.broadcast %cst_37 : f32 to vector<8x1xf32>
      %69 = arith.divf %67, %68 : vector<8x1xf32>
      %70 = vector.broadcast %62 : vector<8x1xf32> to vector<8x64xf32>
      %71 = arith.subf %56, %70 : vector<8x64xf32>
      %cst_38 = arith.constant 9.99999974E-6 : f32
      %72 = vector.broadcast %cst_38 : f32 to vector<8x1xf32>
      %73 = arith.addf %69, %72 : vector<8x1xf32>
      %74 = math.rsqrt %73 : vector<8x1xf32>
      %75 = vector.broadcast %74 : vector<8x1xf32> to vector<8x64xf32>
      %76 = arith.mulf %71, %75 : vector<8x64xf32>
      %77 = vector.broadcast %57 : vector<1x64xf32> to vector<8x64xf32>
      %78 = arith.mulf %76, %77 : vector<8x64xf32>
      %79 = vector.broadcast %58 : vector<1x64xf32> to vector<8x64xf32>
      %80 = arith.addf %78, %79 : vector<8x64xf32>
      %81 = vector.shape_cast %80 : vector<8x64xf32> to vector<1x8x64xf32>
      %c0_39 = arith.constant 0 : index
      %c0_40 = arith.constant 0 : index
      %c0_41 = arith.constant 0 : index
      %82 = vector.load %arg19[%c0_39, %c0_40, %c0_41] : memref<1x8x64xf32, #tpu.memory_space<vmem>>, vector<1x8x64xf32>
      tpu.vector_store %arg19[%c0_39, %c0_40, %c0_41], %81 {strides = array<i32>} : memref<1x8x64xf32, #tpu.memory_space<vmem>>, vector<1x8x64xf32>,
      %c0_42 = arith.constant 0 : index
      %c0_43 = arith.constant 0 : index
      %83 = vector.load %arg9[%c0_42, %c0_43] : memref<64x128xbf16, #tpu.memory_space<vmem>>, vector<64x128xbf16>
      %c0_44 = arith.constant 0 : index
      %c0_45 = arith.constant 0 : index
      %84 = vector.load %arg10[%c0_44, %c0_45] : memref<1x128xf32, #tpu.memory_space<vmem>>, vector<1x128xf32>
      %85 = arith.truncf %80 : vector<8x64xf32> to vector<8x64xbf16>
      %cst_46 = arith.constant dense<0.000000e+00> : vector<8x128xf32>
      %86 = tpu.matmul %85, %83, %cst_46 {dimension_numbers = #tpu.dot_dimension_numbers<[1], [0], [0], [1], [0, 0, 1, 1], [], []>} : vector<8x64xbf16>, vector<64x128xbf16>, vector<8x128xf32> -> vector<8x128xf32>
      %87 = vector.broadcast %84 : vector<1x128xf32> to vector<8x128xf32>
      %88 = arith.addf %86, %87 : vector<8x128xf32>
      %c0_47 = arith.constant 0 : index
      %c0_48 = arith.constant 0 : index
      %89 = vector.load %arg11[%c0_47, %c0_48] : memref<1x128xf32, #tpu.memory_space<vmem>>, vector<1x128xf32>
      %c0_49 = arith.constant 0 : index
      %c0_50 = arith.constant 0 : index
      %90 = vector.load %arg12[%c0_49, %c0_50] : memref<1x128xf32, #tpu.memory_space<vmem>>, vector<1x128xf32>
      %cst_51 = arith.constant dense<0.000000e+00> : vector<8xf32>
      %91 = vector.multi_reduction <add>, %88, %cst_51 [1] : vector<8x128xf32> to vector<8xf32>
      %92 = vector.shape_cast %91 : vector<8xf32> to vector<8x1xf32>
      %cst_52 = arith.constant 1.280000e+02 : f32
      %93 = vector.broadcast %cst_52 : f32 to vector<8x1xf32>
      %94 = arith.divf %92, %93 : vector<8x1xf32>
      %95 = vector.broadcast %94 : vector<8x1xf32> to vector<8x128xf32>
      %96 = arith.subf %88, %95 : vector<8x128xf32>
      %97 = arith.mulf %96, %96 : vector<8x128xf32>
      %cst_53 = arith.constant dense<0.000000e+00> : vector<8xf32>
      %98 = vector.multi_reduction <add>, %97, %cst_53 [1] : vector<8x128xf32> to vector<8xf32>
      %99 = vector.shape_cast %98 : vector<8xf32> to vector<8x1xf32>
      %cst_54 = arith.constant 1.280000e+02 : f32
      %100 = vector.broadcast %cst_54 : f32 to vector<8x1xf32>
      %101 = arith.divf %99, %100 : vector<8x1xf32>
      %102 = vector.broadcast %94 : vector<8x1xf32> to vector<8x128xf32>
      %103 = arith.subf %88, %102 : vector<8x128xf32>
      %cst_55 = arith.constant 9.99999974E-6 : f32
      %104 = vector.broadcast %cst_55 : f32 to vector<8x1xf32>
      %105 = arith.addf %101, %104 : vector<8x1xf32>
      %106 = math.rsqrt %105 : vector<8x1xf32>
      %107 = vector.broadcast %106 : vector<8x1xf32> to vector<8x128xf32>
      %108 = arith.mulf %103, %107 : vector<8x128xf32>
      %109 = vector.broadcast %89 : vector<1x128xf32> to vector<8x128xf32>
      %110 = arith.mulf %108, %109 : vector<8x128xf32>
      %111 = vector.broadcast %90 : vector<1x128xf32> to vector<8x128xf32>
      %112 = arith.addf %110, %111 : vector<8x128xf32>
      %cst_56 = arith.constant 5.000000e-01 : f32
      %113 = vector.broadcast %cst_56 : f32 to vector<8x128xf32>
      %114 = arith.mulf %113, %112 : vector<8x128xf32>
      %cst_57 = arith.constant 4.471500e-02 : f32
      %115 = vector.broadcast %cst_57 : f32 to vector<8x128xf32>
      %116 = arith.mulf %115, %112 : vector<8x128xf32>
      %117 = arith.mulf %116, %112 : vector<8x128xf32>
      %118 = arith.mulf %117, %112 : vector<8x128xf32>
      %119 = arith.addf %112, %118 : vector<8x128xf32>
      %cst_58 = arith.constant 0.797884583 : f32
      %120 = vector.broadcast %cst_58 : f32 to vector<8x128xf32>
      %121 = arith.mulf %120, %119 : vector<8x128xf32>
      %122 = math.tanh %121 : vector<8x128xf32>
      %cst_59 = arith.constant 1.000000e+00 : f32
      %123 = vector.broadcast %cst_59 : f32 to vector<8x128xf32>
      %124 = arith.addf %123, %122 : vector<8x128xf32>
      %125 = arith.mulf %114, %124 : vector<8x128xf32>
      %c0_60 = arith.constant 0 : index
      %c0_61 = arith.constant 0 : index
      %126 = vector.load %arg13[%c0_60, %c0_61] : memref<128x64xbf16, #tpu.memory_space<vmem>>, vector<128x64xbf16>
      %c0_62 = arith.constant 0 : index
      %c0_63 = arith.constant 0 : index
      %127 = vector.load %arg14[%c0_62, %c0_63] : memref<1x64xf32, #tpu.memory_space<vmem>>, vector<1x64xf32>
      %128 = arith.truncf %125 : vector<8x128xf32> to vector<8x128xbf16>
      %cst_64 = arith.constant dense<0.000000e+00> : vector<8x64xf32>
      %129 = tpu.matmul %128, %126, %cst_64 {dimension_numbers = #tpu.dot_dimension_numbers<[1], [0], [0], [1], [0, 0, 1, 1], [], []>} : vector<8x128xbf16>, vector<128x64xbf16>, vector<8x64xf32> -> vector<8x64xf32>
      %130 = vector.broadcast %127 : vector<1x64xf32> to vector<8x64xf32>
      %131 = arith.addf %129, %130 : vector<8x64xf32>
      %c0_65 = arith.constant 0 : index
      %c0_66 = arith.constant 0 : index
      %132 = vector.load %arg15[%c0_65, %c0_66] : memref<1x64xf32, #tpu.memory_space<vmem>>, vector<1x64xf32>
      %c0_67 = arith.constant 0 : index
      %c0_68 = arith.constant 0 : index
      %133 = vector.load %arg16[%c0_67, %c0_68] : memref<1x64xf32, #tpu.memory_space<vmem>>, vector<1x64xf32>
      %cst_69 = arith.constant dense<0.000000e+00> : vector<8xf32>
      %134 = vector.multi_reduction <add>, %131, %cst_69 [1] : vector<8x64xf32> to vector<8xf32>
      %135 = vector.shape_cast %134 : vector<8xf32> to vector<8x1xf32>
      %cst_70 = arith.constant 6.400000e+01 : f32
      %136 = vector.broadcast %cst_70 : f32 to vector<8x1xf32>
      %137 = arith.divf %135, %136 : vector<8x1xf32>
      %138 = vector.broadcast %137 : vector<8x1xf32> to vector<8x64xf32>
      %139 = arith.subf %131, %138 : vector<8x64xf32>
      %140 = arith.mulf %139, %139 : vector<8x64xf32>
      %cst_71 = arith.constant dense<0.000000e+00> : vector<8xf32>
      %141 = vector.multi_reduction <add>, %140, %cst_71 [1] : vector<8x64xf32> to vector<8xf32>
      %142 = vector.shape_cast %141 : vector<8xf32> to vector<8x1xf32>
      %cst_72 = arith.constant 6.400000e+01 : f32
      %143 = vector.broadcast %cst_72 : f32 to vector<8x1xf32>
      %144 = arith.divf %142, %143 : vector<8x1xf32>
      %145 = vector.broadcast %137 : vector<8x1xf32> to vector<8x64xf32>
      %146 = arith.subf %131, %145 : vector<8x64xf32>
      %cst_73 = arith.constant 9.99999974E-6 : f32
      %147 = vector.broadcast %cst_73 : f32 to vector<8x1xf32>
      %148 = arith.addf %144, %147 : vector<8x1xf32>
      %149 = math.rsqrt %148 : vector<8x1xf32>
      %150 = vector.broadcast %149 : vector<8x1xf32> to vector<8x64xf32>
      %151 = arith.mulf %146, %150 : vector<8x64xf32>
      %152 = vector.broadcast %132 : vector<1x64xf32> to vector<8x64xf32>
      %153 = arith.mulf %151, %152 : vector<8x64xf32>
      %154 = vector.broadcast %133 : vector<1x64xf32> to vector<8x64xf32>
      %155 = arith.addf %153, %154 : vector<8x64xf32>
      %156 = arith.truncf %155 : vector<8x64xf32> to vector<8x64xbf16>
      %c0_74 = arith.constant 0 : index
      %c0_75 = arith.constant 0 : index
      %157 = vector.load %arg21[%c0_74, %c0_75] : memref<8x64xbf16, #tpu.memory_space<vmem>>, vector<8x64xbf16>
      tpu.vector_store %arg21[%c0_74, %c0_75], %156 {strides = array<i32>} : memref<8x64xbf16, #tpu.memory_space<vmem>>, vector<8x64xbf16>,
    } else {
    }
    %c0 = arith.constant 0 : index
    %c0_1 = arith.constant 0 : index
    %3 = vector.load %arg21[%c0, %c0_1] : memref<8x64xbf16, #tpu.memory_space<vmem>>, vector<8x64xbf16>
    %c0_2 = arith.constant 0 : index
    %c0_3 = arith.constant 0 : index
    %4 = vector.load %arg17[%c0_2, %c0_3] : memref<64x128xbf16, #tpu.memory_space<vmem>>, vector<64x128xbf16>
    %cst = arith.constant dense<0.000000e+00> : vector<8x128xf32>
    %5 = tpu.matmul %3, %4, %cst {dimension_numbers = #tpu.dot_dimension_numbers<[1], [0], [0], [1], [0, 0, 1, 1], [], []>} : vector<8x64xbf16>, vector<64x128xbf16>, vector<8x128xf32> -> vector<8x128xf32>
    %c0_4 = arith.constant 0 : index
    %c0_5 = arith.constant 0 : index
    %6 = vector.load %arg18[%c0_4, %c0_5] : memref<1x128xf32, #tpu.memory_space<vmem>>, vector<1x128xf32>
    %7 = vector.broadcast %6 : vector<1x128xf32> to vector<8x128xf32>
    %8 = arith.addf %5, %7 : vector<8x128xf32>
    %9 = vector.shape_cast %8 : vector<8x128xf32> to vector<1x8x128xf32>
    %10 = arith.truncf %9 : vector<1x8x128xf32> to vector<1x8x128xbf16>
    %c0_6 = arith.constant 0 : index
    %c0_7 = arith.constant 0 : index
    %c0_8 = arith.constant 0 : index
    %11 = vector.load %arg20[%c0_6, %c0_7, %c0_8] : memref<1x8x128xbf16, #tpu.memory_space<vmem>>, vector<1x8x128xbf16>
    tpu.vector_store %arg20[%c0_6, %c0_7, %c0_8], %10 {strides = array<i32>} : memref<1x8x128xbf16, #tpu.memory_space<vmem>>, vector<1x8x128xbf16>,
    return
  }
  func.func @transform_0(%arg0: i32, %arg1: i32) -> (i32, i32, i32) {
    %c0_i32 = arith.constant 0 : i32
    %c0_i32_0 = arith.constant 0 : i32
    %c0_i32_1 = arith.constant 0 : i32
    return %arg0, %c0_i32, %c0_i32_0 : i32, i32, i32
  }
  func.func @transform_1(%arg0: i32, %arg1: i32) -> (i32, i32) {
    %c0_i32 = arith.constant 0 : i32
    %c0_i32_0 = arith.constant 0 : i32
    %c0_i32_1 = arith.constant 0 : i32
    return %c0_i32, %c0_i32_0 : i32, i32
  }
  func.func @transform_2(%arg0: i32, %arg1: i32) -> (i32, i32) {
    %c0_i32 = arith.constant 0 : i32
    %c0_i32_0 = arith.constant 0 : i32
    %c0_i32_1 = arith.constant 0 : i32
    return %c0_i32, %c0_i32_0 : i32, i32
  }
  func.func @transform_3(%arg0: i32, %arg1: i32) -> (i32, i32) {
    %c0_i32 = arith.constant 0 : i32
    %c0_i32_0 = arith.constant 0 : i32
    %c0_i32_1 = arith.constant 0 : i32
    return %c0_i32, %c0_i32_0 : i32, i32
  }
  func.func @transform_4(%arg0: i32, %arg1: i32) -> (i32, i32) {
    %c0_i32 = arith.constant 0 : i32
    %c0_i32_0 = arith.constant 0 : i32
    %c0_i32_1 = arith.constant 0 : i32
    return %c0_i32, %c0_i32_0 : i32, i32
  }
  func.func @transform_5(%arg0: i32, %arg1: i32) -> (i32, i32) {
    %c0_i32 = arith.constant 0 : i32
    %c0_i32_0 = arith.constant 0 : i32
    %c0_i32_1 = arith.constant 0 : i32
    return %c0_i32, %c0_i32_0 : i32, i32
  }
  func.func @transform_6(%arg0: i32, %arg1: i32) -> (i32, i32) {
    %c0_i32 = arith.constant 0 : i32
    %c0_i32_0 = arith.constant 0 : i32
    %c0_i32_1 = arith.constant 0 : i32
    return %c0_i32, %c0_i32_0 : i32, i32
  }
  func.func @transform_7(%arg0: i32, %arg1: i32) -> (i32, i32) {
    %c0_i32 = arith.constant 0 : i32
    %c0_i32_0 = arith.constant 0 : i32
    %c0_i32_1 = arith.constant 0 : i32
    return %c0_i32, %c0_i32_0 : i32, i32
  }
  func.func @transform_8(%arg0: i32, %arg1: i32) -> (i32, i32) {
    %c0_i32 = arith.constant 0 : i32
    %c0_i32_0 = arith.constant 0 : i32
    %c0_i32_1 = arith.constant 0 : i32
    return %c0_i32, %c0_i32_0 : i32, i32
  }
  func.func @transform_9(%arg0: i32, %arg1: i32) -> (i32, i32) {
    %c0_i32 = arith.constant 0 : i32
    %c0_i32_0 = arith.constant 0 : i32
    %c0_i32_1 = arith.constant 0 : i32
    return %c0_i32, %c0_i32_0 : i32, i32
  }
  func.func @transform_10(%arg0: i32, %arg1: i32) -> (i32, i32) {
    %c0_i32 = arith.constant 0 : i32
    %c0_i32_0 = arith.constant 0 : i32
    %c0_i32_1 = arith.constant 0 : i32
    return %c0_i32, %c0_i32_0 : i32, i32
  }
  func.func @transform_11(%arg0: i32, %arg1: i32) -> (i32, i32) {
    %c0_i32 = arith.constant 0 : i32
    %c0_i32_0 = arith.constant 0 : i32
    %c0_i32_1 = arith.constant 0 : i32
    return %c0_i32, %c0_i32_0 : i32, i32
  }
  func.func @transform_12(%arg0: i32, %arg1: i32) -> (i32, i32) {
    %c0_i32 = arith.constant 0 : i32
    %c0_i32_0 = arith.constant 0 : i32
    %c0_i32_1 = arith.constant 0 : i32
    return %c0_i32, %c0_i32_0 : i32, i32
  }
  func.func @transform_13(%arg0: i32, %arg1: i32) -> (i32, i32) {
    %c0_i32 = arith.constant 0 : i32
    %c0_i32_0 = arith.constant 0 : i32
    %c0_i32_1 = arith.constant 0 : i32
    return %c0_i32, %c0_i32_0 : i32, i32
  }
  func.func @transform_14(%arg0: i32, %arg1: i32) -> (i32, i32) {
    %c0_i32 = arith.constant 0 : i32
    %c0_i32_0 = arith.constant 0 : i32
    %c0_i32_1 = arith.constant 0 : i32
    return %c0_i32, %c0_i32_0 : i32, i32
  }
  func.func @transform_15(%arg0: i32, %arg1: i32) -> (i32, i32) {
    %c0_i32 = arith.constant 0 : i32
    %c0_i32_0 = arith.constant 0 : i32
    return %c0_i32, %arg1 : i32, i32
  }
  func.func @transform_16(%arg0: i32, %arg1: i32) -> (i32, i32) {
    %c0_i32 = arith.constant 0 : i32
    %c0_i32_0 = arith.constant 0 : i32
    return %c0_i32, %arg1 : i32, i32
  }
  func.func @transform_17(%arg0: i32, %arg1: i32) -> (i32, i32, i32) {
    %c0_i32 = arith.constant 0 : i32
    %c0_i32_0 = arith.constant 0 : i32
    %c0_i32_1 = arith.constant 0 : i32
    return %arg0, %c0_i32, %c0_i32_0 : i32, i32, i32
  }
  func.func @transform_18(%arg0: i32, %arg1: i32) -> (i32, i32, i32) {
    %c0_i32 = arith.constant 0 : i32
    %c0_i32_0 = arith.constant 0 : i32
    return %arg0, %c0_i32, %arg1 : i32, i32, i32
  }
}

</mosaic_0001>

<llo_original>
// kernel: resonance_forward.6
$region0: #{resonance_forward.6}
  #allocation0 [shape = 'u32[]', space=smem, size = 0x4, offset = 0x4, fixed_abs, tag = 'smem constant byte address 0x4 - core index']
  #allocation1 [shape = 'u32[144,128]{1,0:T(1,128)}', space=vmem, size = 0x12000, scoped, tag = 'internal scratch']
  %s0 = inlined_call_operand.vmem [shape: f32[2,8,128], index: 0, kind: input, shape index: {}]
  %s1 = inlined_call_operand.vmem [shape: bf16[32,128], index: 1, kind: input, shape index: {}]
  %s2 = inlined_call_operand.vmem [shape: bf16[32,128], index: 2, kind: input, shape index: {}]
  %s3 = inlined_call_operand.vmem [shape: bf16[128,128], index: 3, kind: input, shape index: {}]
  %s4 = inlined_call_operand.vmem [shape: f32[1,128], index: 4, kind: input, shape index: {}]
  %s5 = inlined_call_operand.vmem [shape: bf16[128,128], index: 5, kind: input, shape index: {}]
  %s6 = inlined_call_operand.vmem [shape: f32[1,128], index: 6, kind: input, shape index: {}]
  %s7 = inlined_call_operand.vmem [shape: bf16[128,128], index: 7, kind: input, shape index: {}]
  %s8 = inlined_call_operand.vmem [shape: bf16[128,128], index: 8, kind: input, shape index: {}]
  %s9 = inlined_call_operand.vmem [shape: f32[1,128], index: 9, kind: input, shape index: {}]
  %s10 = inlined_call_operand.vmem [shape: f32[1,128], index: 10, kind: input, shape index: {}]
  %s11 = inlined_call_operand.vmem [shape: f32[1,128], index: 11, kind: input, shape index: {}]
  %s12 = inlined_call_operand.vmem [shape: f32[2,8,128], index: 12, kind: output, shape index: {}]
  %s13 = sld [smem:[#allocation0]]
  $region81: #{resonance_forward.6} parent=0
    _
  %s15 = ssub.s32 1, %s13
  %s16 = scalar_select 0, %s15, %s13
  loop: start=0, step=1, limit=4
  $region2: #{resonance_forward.6} parent=0 // loop_pre_header
    _
  $region3: #{resonance_forward.6} parent=0 // loop_header
    %s18 = sphi 0, %s22
    %p19 = scmp.ge.s32.totalorder %s18, 4
    %s28 = sphi 0, %s30
    %s31 = sphi 0, %s28
    %s32 = sphi 0, %s31
    %s48 = sphi 0, %s32
    %s52 = sphi 0, %s52
    %s54 = sphi 0, %s52
    %s55 = sphi 0, %s54
    %s69 = sphi 0, %s55
    %s73 = sphi 0, %s73
    %s75 = sphi 0, %s73
    %s76 = sphi 0, %s75
    %s90 = sphi 0, %s76
    %s94 = sphi 0, %s94
    %s96 = sphi 0, %s94
    %s97 = sphi 0, %s96
    %s111 = sphi 0, %s97
    %s115 = sphi 0, %s115
    %s117 = sphi 0, %s115
    %s118 = sphi 0, %s117
    %s132 = sphi 0, %s118
    %s136 = sphi 0, %s136
    %s138 = sphi 0, %s136
    %s139 = sphi 0, %s138
    %s153 = sphi 0, %s139
    %s157 = sphi 0, %s157
    %s159 = sphi 0, %s157
    %s160 = sphi 0, %s159
    %s174 = sphi 0, %s160
    %s178 = sphi 0, %s178
    %s180 = sphi 0, %s178
    %s181 = sphi 0, %s180
    %s195 = sphi 0, %s181
    %s199 = sphi 0, %s199
    %s201 = sphi 0, %s199
    %s202 = sphi 0, %s201
    %s216 = sphi 0, %s202
    %s220 = sphi 0, %s220
    %s222 = sphi 0, %s220
    %s223 = sphi 0, %s222
    %s237 = sphi 0, %s223
    %s241 = sphi 0, %s241
    %s243 = sphi 0, %s241
    %s244 = sphi 0, %s243
    %s258 = sphi 0, %s244
    %s262 = sphi 0, %s262
    %s264 = sphi 0, %s262
    %s265 = sphi 0, %s264
    %s279 = sphi 0, %s265
    %s285 = sphi 0, %s287
    %s288 = sphi 0, %s285
    %s289 = sphi 0, %s288
    %s305 = sphi 0, %s289
  $region4: #{resonance_forward.6} parent=0 // loop_header_branch
    %21 = sbr.rel (%p19) target = $region8
  $region5: #{resonance_forward.6} parent=0 // loop_body
    %s23 = ssub.s32 %s18, 1
    %s24 = ssub.s32 %s18, 2
    %s25 = sadd.s32 %s18, 1
    %s26 = ssub.s32 %s18, %s25
    %p27 = scmp.eq.s32.totalorder %s26, 0
    %s29 = sadd.s32 %s28, 1
    %s30 = scalar_select %p27, %s28, %s29
    %p33 = pneg %p27
    %p34 = scmp.eq.s32.totalorder %s18, 1
    %p35 = por %p33, %p34
    %p36 = scmp.ne.s32.totalorder %s28, %s31
    %p37 = scmp.eq.s32.totalorder %s18, 0
    %p38 = por %p36, %p37
    %p39 = scmp.ne.s32.totalorder %s28, %s31
    %p40 = scmp.eq.s32.totalorder %s23, 1
    %p41 = por %p39, %p40
    %p42 = scmp.ne.s32.totalorder %s31, %s32
    %p43 = scmp.eq.s32.totalorder %s23, 0
    %p44 = por %p42, %p43
    %p45 = scmp.ne.s32.totalorder %s31, %s32
    %p46 = scmp.eq.s32.totalorder %s24, 1
    %p47 = por %p45, %p46
    %p49 = scmp.ne.s32.totalorder %s32, %s48
    %p50 = scmp.eq.s32.totalorder %s24, 0
    %p51 = por %p49, %p50
    %s53 = sadd.s32 %s52, 1
    %p56 = scmp.eq.s32.totalorder %s18, 1
    %p57 = scmp.ne.s32.totalorder %s52, %s54
    %p58 = scmp.eq.s32.totalorder %s18, 0
    %p59 = por %p57, %p58
    %p60 = scmp.ne.s32.totalorder %s52, %s54
    %p61 = scmp.eq.s32.totalorder %s23, 1
    %p62 = por %p60, %p61
    %p63 = scmp.ne.s32.totalorder %s54, %s55
    %p64 = scmp.eq.s32.totalorder %s23, 0
    %p65 = por %p63, %p64
    %p66 = scmp.ne.s32.totalorder %s54, %s55
    %p67 = scmp.eq.s32.totalorder %s24, 1
    %p68 = por %p66, %p67
    %p70 = scmp.ne.s32.totalorder %s55, %s69
    %p71 = scmp.eq.s32.totalorder %s24, 0
    %p72 = por %p70, %p71
    %s74 = sadd.s32 %s73, 1
    %p77 = scmp.eq.s32.totalorder %s18, 1
    %p78 = scmp.ne.s32.totalorder %s73, %s75
    %p79 = scmp.eq.s32.totalorder %s18, 0
    %p80 = por %p78, %p79
    %p81 = scmp.ne.s32.totalorder %s73, %s75
    %p82 = scmp.eq.s32.totalorder %s23, 1
    %p83 = por %p81, %p82
    %p84 = scmp.ne.s32.totalorder %s75, %s76
    %p85 = scmp.eq.s32.totalorder %s23, 0
    %p86 = por %p84, %p85
    %p87 = scmp.ne.s32.totalorder %s75, %s76
    %p88 = scmp.eq.s32.totalorder %s24, 1
    %p89 = por %p87, %p88
    %p91 = scmp.ne.s32.totalorder %s76, %s90
    %p92 = scmp.eq.s32.totalorder %s24, 0
    %p93 = por %p91, %p92
    %s95 = sadd.s32 %s94, 1
    %p98 = scmp.eq.s32.totalorder %s18, 1
    %p99 = scmp.ne.s32.totalorder %s94, %s96
    %p100 = scmp.eq.s32.totalorder %s18, 0
    %p101 = por %p99, %p100
    %p102 = scmp.ne.s32.totalorder %s94, %s96
    %p103 = scmp.eq.s32.totalorder %s23, 1
    %p104 = por %p102, %p103
    %p105 = scmp.ne.s32.totalorder %s96, %s97
    %p106 = scmp.eq.s32.totalorder %s23, 0
    %p107 = por %p105, %p106
    %p108 = scmp.ne.s32.totalorder %s96, %s97
    %p109 = scmp.eq.s32.totalorder %s24, 1
    %p110 = por %p108, %p109
    %p112 = scmp.ne.s32.totalorder %s97, %s111
    %p113 = scmp.eq.s32.totalorder %s24, 0
    %p114 = por %p112, %p113
    %s116 = sadd.s32 %s115, 1
    %p119 = scmp.eq.s32.totalorder %s18, 1
    %p120 = scmp.ne.s32.totalorder %s115, %s117
    %p121 = scmp.eq.s32.totalorder %s18, 0
    %p122 = por %p120, %p121
    %p123 = scmp.ne.s32.totalorder %s115, %s117
    %p124 = scmp.eq.s32.totalorder %s23, 1
    %p125 = por %p123, %p124
    %p126 = scmp.ne.s32.totalorder %s117, %s118
    %p127 = scmp.eq.s32.totalorder %s23, 0
    %p128 = por %p126, %p127
    %p129 = scmp.ne.s32.totalorder %s117, %s118
    %p130 = scmp.eq.s32.totalorder %s24, 1
    %p131 = por %p129, %p130
    %p133 = scmp.ne.s32.totalorder %s118, %s132
    %p134 = scmp.eq.s32.totalorder %s24, 0
    %p135 = por %p133, %p134
    %s137 = sadd.s32 %s136, 1
    %p140 = scmp.eq.s32.totalorder %s18, 1
    %p141 = scmp.ne.s32.totalorder %s136, %s138
    %p142 = scmp.eq.s32.totalorder %s18, 0
    %p143 = por %p141, %p142
    %p144 = scmp.ne.s32.totalorder %s136, %s138
    %p145 = scmp.eq.s32.totalorder %s23, 1
    %p146 = por %p144, %p145
    %p147 = scmp.ne.s32.totalorder %s138, %s139
    %p148 = scmp.eq.s32.totalorder %s23, 0
    %p149 = por %p147, %p148
    %p150 = scmp.ne.s32.totalorder %s138, %s139
    %p151 = scmp.eq.s32.totalorder %s24, 1
    %p152 = por %p150, %p151
    %p154 = scmp.ne.s32.totalorder %s139, %s153
    %p155 = scmp.eq.s32.totalorder %s24, 0
    %p156 = por %p154, %p155
    %s158 = sadd.s32 %s157, 1
    %p161 = scmp.eq.s32.totalorder %s18, 1
    %p162 = scmp.ne.s32.totalorder %s157, %s159
    %p163 = scmp.eq.s32.totalorder %s18, 0
    %p164 = por %p162, %p163
    %p165 = scmp.ne.s32.totalorder %s157, %s159
    %p166 = scmp.eq.s32.totalorder %s23, 1
    %p167 = por %p165, %p166
    %p168 = scmp.ne.s32.totalorder %s159, %s160
    %p169 = scmp.eq.s32.totalorder %s23, 0
    %p170 = por %p168, %p169
    %p171 = scmp.ne.s32.totalorder %s159, %s160
    %p172 = scmp.eq.s32.totalorder %s24, 1
    %p173 = por %p171, %p172
    %p175 = scmp.ne.s32.totalorder %s160, %s174
    %p176 = scmp.eq.s32.totalorder %s24, 0
    %p177 = por %p175, %p176
    %s179 = sadd.s32 %s178, 1
    %p182 = scmp.eq.s32.totalorder %s18, 1
    %p183 = scmp.ne.s32.totalorder %s178, %s180
    %p184 = scmp.eq.s32.totalorder %s18, 0
    %p185 = por %p183, %p184
    %p186 = scmp.ne.s32.totalorder %s178, %s180
    %p187 = scmp.eq.s32.totalorder %s23, 1
    %p188 = por %p186, %p187
    %p189 = scmp.ne.s32.totalorder %s180, %s181
    %p190 = scmp.eq.s32.totalorder %s23, 0
    %p191 = por %p189, %p190
    %p192 = scmp.ne.s32.totalorder %s180, %s181
    %p193 = scmp.eq.s32.totalorder %s24, 1
    %p194 = por %p192, %p193
    %p196 = scmp.ne.s32.totalorder %s181, %s195
    %p197 = scmp.eq.s32.totalorder %s24, 0
    %p198 = por %p196, %p197
    %s200 = sadd.s32 %s199, 1
    %p203 = scmp.eq.s32.totalorder %s18, 1
    %p204 = scmp.ne.s32.totalorder %s199, %s201
    %p205 = scmp.eq.s32.totalorder %s18, 0
    %p206 = por %p204, %p205
    %p207 = scmp.ne.s32.totalorder %s199, %s201
    %p208 = scmp.eq.s32.totalorder %s23, 1
    %p209 = por %p207, %p208
    %p210 = scmp.ne.s32.totalorder %s201, %s202
    %p211 = scmp.eq.s32.totalorder %s23, 0
    %p212 = por %p210, %p211
    %p213 = scmp.ne.s32.totalorder %s201, %s202
    %p214 = scmp.eq.s32.totalorder %s24, 1
    %p215 = por %p213, %p214
    %p217 = scmp.ne.s32.totalorder %s202, %s216
    %p218 = scmp.eq.s32.totalorder %s24, 0
    %p219 = por %p217, %p218
    %s221 = sadd.s32 %s220, 1
    %p224 = scmp.eq.s32.totalorder %s18, 1
    %p225 = scmp.ne.s32.totalorder %s220, %s222
    %p226 = scmp.eq.s32.totalorder %s18, 0
    %p227 = por %p225, %p226
    %p228 = scmp.ne.s32.totalorder %s220, %s222
    %p229 = scmp.eq.s32.totalorder %s23, 1
    %p230 = por %p228, %p229
    %p231 = scmp.ne.s32.totalorder %s222, %s223
    %p232 = scmp.eq.s32.totalorder %s23, 0
    %p233 = por %p231, %p232
    %p234 = scmp.ne.s32.totalorder %s222, %s223
    %p235 = scmp.eq.s32.totalorder %s24, 1
    %p236 = por %p234, %p235
    %p238 = scmp.ne.s32.totalorder %s223, %s237
    %p239 = scmp.eq.s32.totalorder %s24, 0
    %p240 = por %p238, %p239
    %s242 = sadd.s32 %s241, 1
    %p245 = scmp.eq.s32.totalorder %s18, 1
    %p246 = scmp.ne.s32.totalorder %s241, %s243
    %p247 = scmp.eq.s32.totalorder %s18, 0
    %p248 = por %p246, %p247
    %p249 = scmp.ne.s32.totalorder %s241, %s243
    %p250 = scmp.eq.s32.totalorder %s23, 1
    %p251 = por %p249, %p250
    %p252 = scmp.ne.s32.totalorder %s243, %s244
    %p253 = scmp.eq.s32.totalorder %s23, 0
    %p254 = por %p252, %p253
    %p255 = scmp.ne.s32.totalorder %s243, %s244
    %p256 = scmp.eq.s32.totalorder %s24, 1
    %p257 = por %p255, %p256
    %p259 = scmp.ne.s32.totalorder %s244, %s258
    %p260 = scmp.eq.s32.totalorder %s24, 0
    %p261 = por %p259, %p260
    %s263 = sadd.s32 %s262, 1
    %p266 = scmp.eq.s32.totalorder %s18, 1
    %p267 = scmp.ne.s32.totalorder %s262, %s264
    %p268 = scmp.eq.s32.totalorder %s18, 0
    %p269 = por %p267, %p268
    %p270 = scmp.ne.s32.totalorder %s262, %s264
    %p271 = scmp.eq.s32.totalorder %s23, 1
    %p272 = por %p270, %p271
    %p273 = scmp.ne.s32.totalorder %s264, %s265
    %p274 = scmp.eq.s32.totalorder %s23, 0
    %p275 = por %p273, %p274
    %p276 = scmp.ne.s32.totalorder %s264, %s265
    %p277 = scmp.eq.s32.totalorder %s24, 1
    %p278 = por %p276, %p277
    %p280 = scmp.ne.s32.totalorder %s265, %s279
    %p281 = scmp.eq.s32.totalorder %s24, 0
    %p282 = por %p280, %p281
    %s283 = ssub.s32 %s18, %s25
    %p284 = scmp.eq.s32.totalorder %s283, 0
    %s286 = sadd.s32 %s285, 1
    %s287 = scalar_select %p284, %s285, %s286
    %p290 = pneg %p284
    %p291 = scmp.eq.s32.totalorder %s18, 1
    %p292 = por %p290, %p291
    %p293 = scmp.ne.s32.totalorder %s285, %s288
    %p294 = scmp.eq.s32.totalorder %s18, 0
    %p295 = por %p293, %p294
    %p296 = scmp.ne.s32.totalorder %s285, %s288
    %p297 = scmp.eq.s32.totalorder %s23, 1
    %p298 = por %p296, %p297
    %p299 = scmp.ne.s32.totalorder %s288, %s289
    %p300 = scmp.eq.s32.totalorder %s23, 0
    %p301 = por %p299, %p300
    %p302 = scmp.ne.s32.totalorder %s288, %s289
    %p303 = scmp.eq.s32.totalorder %s24, 1
    %p304 = por %p302, %p303
    %p306 = scmp.ne.s32.totalorder %s289, %s305
    %p307 = scmp.eq.s32.totalorder %s24, 0
    %p308 = por %p306, %p307
    %p309 = scmp.le.s32.totalorder 1, %s18
    %p310 = scmp.lt.s32.totalorder %s18, 3
    %p311 = pnand %p309, %p310
    %p312 = pneg %p311
    // Predicated region
    $region9: #{resonance_forward.6} parent=5 // pred_check
      _
    $region10: #{resonance_forward.6} parent=5 // pred_check_branch
      %314 = sbr.rel (%p311) target = $region12
    $region11: #{resonance_forward.6} parent=5 // pred_region
      %s315 = ssub.s32 %s18, 1
      // Predicated region
      $region13: #{resonance_forward.6} parent=11 // pred_check
        %p316 = pneg %p65
      $region14: #{resonance_forward.6} parent=11 // pred_check_branch
        %318 = sbr.rel (%p316) target = $region16
      $region15: #{resonance_forward.6} parent=11 // pred_region
        _
      $region16: #{resonance_forward.6} parent=11 // pred_fallthru
        _
      // Predicated region
      $region17: #{resonance_forward.6} parent=11 // pred_check
        %p319 = pneg %p86
      $region18: #{resonance_forward.6} parent=11 // pred_check_branch
        %321 = sbr.rel (%p319) target = $region20
      $region19: #{resonance_forward.6} parent=11 // pred_region
        _
      $region20: #{resonance_forward.6} parent=11 // pred_fallthru
        _
      // Predicated region
      $region21: #{resonance_forward.6} parent=11 // pred_check
        %p322 = pneg %p107
      $region22: #{resonance_forward.6} parent=11 // pred_check_branch
        %324 = sbr.rel (%p322) target = $region24
      $region23: #{resonance_forward.6} parent=11 // pred_region
        _
      $region24: #{resonance_forward.6} parent=11 // pred_fallthru
        _
      // Predicated region
      $region25: #{resonance_forward.6} parent=11 // pred_check
        %p325 = pneg %p128
      $region26: #{resonance_forward.6} parent=11 // pred_check_branch
        %327 = sbr.rel (%p325) target = $region28
      $region27: #{resonance_forward.6} parent=11 // pred_region
        _
      $region28: #{resonance_forward.6} parent=11 // pred_fallthru
        _
      // Predicated region
      $region29: #{resonance_forward.6} parent=11 // pred_check
        %p328 = pneg %p149
      $region30: #{resonance_forward.6} parent=11 // pred_check_branch
        %330 = sbr.rel (%p328) target = $region32
      $region31: #{resonance_forward.6} parent=11 // pred_region
        _
      $region32: #{resonance_forward.6} parent=11 // pred_fallthru
        _
      // Predicated region
      $region33: #{resonance_forward.6} parent=11 // pred_check
        %p331 = pneg %p170
      $region34: #{resonance_forward.6} parent=11 // pred_check_branch
        %333 = sbr.rel (%p331) target = $region36
      $region35: #{resonance_forward.6} parent=11 // pred_region
        _
      $region36: #{resonance_forward.6} parent=11 // pred_fallthru
        _
      // Predicated region
      $region37: #{resonance_forward.6} parent=11 // pred_check
        %p334 = pneg %p191
      $region38: #{resonance_forward.6} parent=11 // pred_check_branch
        %336 = sbr.rel (%p334) target = $region40
      $region39: #{resonance_forward.6} parent=11 // pred_region
        _
      $region40: #{resonance_forward.6} parent=11 // pred_fallthru
        _
      // Predicated region
      $region41: #{resonance_forward.6} parent=11 // pred_check
        %p337 = pneg %p212
      $region42: #{resonance_forward.6} parent=11 // pred_check_branch
        %339 = sbr.rel (%p337) target = $region44
      $region43: #{resonance_forward.6} parent=11 // pred_region
        _
      $region44: #{resonance_forward.6} parent=11 // pred_fallthru
        _
      // Predicated region
      $region45: #{resonance_forward.6} parent=11 // pred_check
        %p340 = pneg %p233
      $region46: #{resonance_forward.6} parent=11 // pred_check_branch
        %342 = sbr.rel (%p340) target = $region48
      $region47: #{resonance_forward.6} parent=11 // pred_region
        _
      $region48: #{resonance_forward.6} parent=11 // pred_fallthru
        _
      // Predicated region
      $region49: #{resonance_forward.6} parent=11 // pred_check
        %p343 = pneg %p254
      $region50: #{resonance_forward.6} parent=11 // pred_check_branch
        %345 = sbr.rel (%p343) target = $region52
      $region51: #{resonance_forward.6} parent=11 // pred_region
        _
      $region52: #{resonance_forward.6} parent=11 // pred_fallthru
        _
      // Predicated region
      $region53: #{resonance_forward.6} parent=11 // pred_check
        %p346 = pneg %p275
      $region54: #{resonance_forward.6} parent=11 // pred_check_branch
        %348 = sbr.rel (%p346) target = $region56
      $region55: #{resonance_forward.6} parent=11 // pred_region
        _
      $region56: #{resonance_forward.6} parent=11 // pred_fallthru
        _
    $region12: #{resonance_forward.6} parent=5 // pred_fallthru
      _
    %p349 = scmp.lt.s32.totalorder %s18, 2
    // Predicated region
    $region57: #{resonance_forward.6} parent=5 // pred_check
      %p350 = pneg %p349
    $region58: #{resonance_forward.6} parent=5 // pred_check_branch
      %352 = sbr.rel (%p350) target = $region60
    $region59: #{resonance_forward.6} parent=5 // pred_region
      // Predicated region
      $region61: #{resonance_forward.6} parent=59 // pred_check
        %p353 = pneg %p38
      $region62: #{resonance_forward.6} parent=59 // pred_check_branch
        %355 = sbr.rel (%p353) target = $region64
      $region63: #{resonance_forward.6} parent=59 // pred_region
        %p356 = scmp.lt.s32.totalorder %s18, 1
        %s357 = scalar_select %p356, %s18, 1
        %s358 = smul.addr %s357, 8
        %s359 = scalar_lea.vmem %s0, %s358
      $region64: #{resonance_forward.6} parent=59 // pred_fallthru
        _
    $region60: #{resonance_forward.6} parent=5 // pred_fallthru
      _
    %p360 = scmp.le.s32.totalorder 1, %s18
    %p361 = scmp.lt.s32.totalorder %s18, 3
    %p362 = pnand %p360, %p361
    %p363 = pneg %p362
    // Predicated region
    $region65: #{resonance_forward.6} parent=5 // pred_check
      _
    $region66: #{resonance_forward.6} parent=5 // pred_check_branch
      %365 = sbr.rel (%p362) target = $region68
    $region67: #{resonance_forward.6} parent=5 // pred_region
      %s366 = ssub.s32 %s18, 1
      %p367 = scmp.lt.s32.totalorder %s23, 1
      %s368 = scalar_select %p367, %s23, 1
      %s369 = smul.addr %s368, 8
      %s370 = scalar_lea.vmem %s0, %s369
      %p371 = pneg %p44
      %p372 = pneg %p41
      %p373 = pneg %p65
      %p374 = pneg %p62
      %p375 = pneg %p86
      %p376 = pneg %p83
      %p377 = pneg %p107
      %p378 = pneg %p104
      %p379 = pneg %p128
      %p380 = pneg %p125
      %p381 = pneg %p149
      %p382 = pneg %p146
      %p383 = pneg %p170
      %p384 = pneg %p167
      %p385 = pneg %p191
      %p386 = pneg %p188
      %p387 = pneg %p212
      %p388 = pneg %p209
      %p389 = pneg %p233
      %p390 = pneg %p230
      %p391 = pneg %p254
      %p392 = pneg %p251
      %p393 = pneg %p275
      %p394 = pneg %p272
      %p395 = pneg %p301
      %p396 = pneg %p298
      %p397 = scmp.lt.s32.totalorder %s23, 1
      %s398 = scalar_select %p397, %s23, 1
      %s399 = smul.addr %s398, 8
      %s400 = scalar_lea.vmem %s12, %s399
      %p401 = scmp.lt.s32.totalorder %s23, 1
      %s402 = scalar_select %p401, %s23, 1
      %s403 = smul.addr %s402, 8
      %s404 = scalar_lea.vmem %s0, %s403
      %p405 = scmp.lt.s32.totalorder %s23, 1
      %s406 = scalar_select %p405, %s23, 1
      %s407 = smul.addr %s406, 8
      %s408 = scalar_lea.vmem %s12, %s407
      %v410 = vld [vmem:[%s404] sm:$0xff]
      %v411 = vld [vmem:[%s3] sm:$0xf]
      %v412 = vld [vmem:[%s3 + $0x4] sm:$0xf]
      %v413 = vld [vmem:[%s3 + $0x8] sm:$0xf]
      %v414 = vld [vmem:[%s3 + $0xc] sm:$0xf]
      %v415 = vld [vmem:[%s3 + $0x10] sm:$0xf]
      %v416 = vld [vmem:[%s3 + $0x14] sm:$0xf]
      %v417 = vld [vmem:[%s3 + $0x18] sm:$0xf]
      %v418 = vld [vmem:[%s3 + $0x1c] sm:$0xf]
      %v419 = vld [vmem:[%s3 + $0x20] sm:$0xf]
      %v420 = vld [vmem:[%s3 + $0x24] sm:$0xf]
      %v421 = vld [vmem:[%s3 + $0x28] sm:$0xf]
      %v422 = vld [vmem:[%s3 + $0x2c] sm:$0xf]
      %v423 = vld [vmem:[%s3 + $0x30] sm:$0xf]
      %v424 = vld [vmem:[%s3 + $0x34] sm:$0xf]
      %v425 = vld [vmem:[%s3 + $0x38] sm:$0xf]
      %v426 = vld [vmem:[%s3 + $0x3c] sm:$0xf]
      %v427 = vld [vmem:[%s4] sm:$0x1]
      %v428 = vpack.c.bf16 %v410, %v410
      %v430 = vlaneseq
      %v431 = vshrl.u32 %v430, 7
      %v432 = vsub.s32 0, %v431
      %v433 = vrot.slane %v427, %v432
      %v451 = vunpack.c.l.b16 %v411
      %v452 = vunpack.c.l.b16 %v412
      %v453 = vunpack.c.l.b16 %v413
      %v454 = vunpack.c.l.b16 %v414
      %v455 = vunpack.c.l.b16 %v415
      %v456 = vunpack.c.l.b16 %v416
      %v457 = vunpack.c.l.b16 %v417
      %v458 = vunpack.c.l.b16 %v418
      %v459 = vunpack.c.l.b16 %v419
      %v460 = vunpack.c.l.b16 %v420
      %v461 = vunpack.c.l.b16 %v421
      %v462 = vunpack.c.l.b16 %v422
      %v463 = vunpack.c.l.b16 %v423
      %v464 = vunpack.c.l.b16 %v424
      %v465 = vunpack.c.l.b16 %v425
      %v466 = vunpack.c.l.b16 %v426
      %v467 = vpack.c.b16 %v452, %v451
      %v468 = vpack.c.b16 %v454, %v453
      %v469 = vpack.c.b16 %v456, %v455
      %v470 = vpack.c.b16 %v458, %v457
      %v471 = vpack.c.b16 %v460, %v459
      %v472 = vpack.c.b16 %v462, %v461
      %v473 = vpack.c.b16 %v464, %v463
      %v474 = vpack.c.b16 %v466, %v465
      %483 = vmatprep.subr.bf16.mxu0 0
      %484 = vmatpush1.bf16.msra.mxu0 %v467
      %485 = vmatprep.subr.bf16.mxu0 0
      %486 = vmatpush1.bf16.msra.mxu0 %v468
      %487 = vmatprep.subr.bf16.mxu0 0
      %488 = vmatpush1.bf16.msra.mxu0 %v469
      %489 = vmatprep.subr.bf16.mxu0 0
      %490 = vmatpush1.bf16.msra.mxu0 %v470
      %491 = vmatprep.subr.bf16.mxu0 0
      %492 = vmatpush1.bf16.msra.mxu0 %v471
      %493 = vmatprep.subr.bf16.mxu0 0
      %494 = vmatpush1.bf16.msra.mxu0 %v472
      %495 = vmatprep.subr.bf16.mxu0 0
      %496 = vmatpush1.bf16.msra.mxu0 %v473
      %497 = vmatprep.subr.bf16.mxu0 0
      %498 = vmatpush1.bf16.msra.mxu0 %v474
      %499 = vmatprep.subr.bf16.mxu0 0
      %500 = vmatpush1.bf16.msra.mxu0 0
      %501 = vmatprep.subr.bf16.mxu0 0
      %502 = vmatpush1.bf16.msra.mxu0 0
      %503 = vmatprep.subr.bf16.mxu0 0
      %504 = vmatpush1.bf16.msra.mxu0 0
      %505 = vmatprep.subr.bf16.mxu0 0
      %506 = vmatpush1.bf16.msra.mxu0 0
      %507 = vmatprep.subr.bf16.mxu0 0
      %508 = vmatpush1.bf16.msra.mxu0 0
      %509 = vmatprep.subr.bf16.mxu0 0
      %510 = vmatpush1.bf16.msra.mxu0 0
      %511 = vmatprep.subr.bf16.mxu0 0
      %512 = vmatpush1.bf16.msra.mxu0 0
      %513 = vmatprep.subr.bf16.mxu0 0
      %514 = vmatpush1.bf16.msra.mxu0 0
      %515 = vmatprep.mubr.bf16.mxu0 0
      %516 = vmatmul.mubr.bf16.gmra.mrb[0].mxu0 %v428
      %v517 = vpop.f32.mrb[0].mxu0
      %v518 = vadd.f32 %v433, %v517
      %v519 = vpop.f32.mrb[0].mxu0
      %v520 = vpop.f32.mrb[0].mxu0
      %v521 = vpop.f32.mrb[0].mxu0
      %522 = vdwg.mxu0
      %v523 = vmul.f32 %v518, 0.17677669
      %v524 = vpack.c.bf16 %v523, %v523
      %v525 = vld [vmem:[%s1] sm:$0xf]
      %v526 = vld [vmem:[%s1 + $0x4] sm:$0xf]
      %v527 = vld [vmem:[%s1 + $0x8] sm:$0xf]
      %v528 = vld [vmem:[%s1 + $0xc] sm:$0xf]
      %v529 = vld [vmem:[%s2] sm:$0xf]
      %v530 = vld [vmem:[%s2 + $0x4] sm:$0xf]
      %v531 = vld [vmem:[%s2 + $0x8] sm:$0xf]
      %v532 = vld [vmem:[%s2 + $0xc] sm:$0xf]
      %v537 = vunpack.c.l.b16 %v525
      %v538 = vunpack.c.l.b16 %v526
      %v539 = vunpack.c.l.b16 %v527
      %v540 = vunpack.c.l.b16 %v528
      %v541 = vpack.c.b16 %v538, %v537
      %v542 = vpack.c.b16 %v540, %v539
      %vm543 = vcmask 261120
      %v545 = vsel %vm543, %v524, 0
      %v548 = vsel %vm543, %v541, 0
      %v551 = vsel %vm543, %v542, 0
      %553 = vmatprep.subr.bf16.mxu0 0
      %554 = vmatpush1.bf16.xpose.msra.mxu0 %v548
      %555 = vmatprep.subr.bf16.mxu0 0
      %556 = vmatpush1.bf16.xpose.msra.mxu0 %v551
      %557 = vmatprep.subr.bf16.mxu0 0
      %558 = vmatpush1.bf16.xpose.msra.mxu0 0
      %559 = vmatprep.subr.bf16.mxu0 0
      %560 = vmatpush1.bf16.xpose.msra.mxu0 0
      %561 = vmatprep.subr.bf16.mxu0 0
      %562 = vmatpush1.bf16.xpose.msra.mxu0 0
      %563 = vmatprep.subr.bf16.mxu0 0
      %564 = vmatpush1.bf16.xpose.msra.mxu0 0
      %565 = vmatprep.subr.bf16.mxu0 0
      %566 = vmatpush1.bf16.xpose.msra.mxu0 0
      %567 = vmatprep.subr.bf16.mxu0 0
      %568 = vmatpush1.bf16.xpose.msra.mxu0 0
      %569 = vmatprep.subr.bf16.mxu0 0
      %570 = vmatpush1.bf16.xpose.msra.mxu0 0
      %571 = vmatprep.subr.bf16.mxu0 0
      %572 = vmatpush1.bf16.xpose.msra.mxu0 0
      %573 = vmatprep.subr.bf16.mxu0 0
      %574 = vmatpush1.bf16.xpose.msra.mxu0 0
      %575 = vmatprep.subr.bf16.mxu0 0
      %576 = vmatpush1.bf16.xpose.msra.mxu0 0
      %577 = vmatprep.subr.bf16.mxu0 0
      %578 = vmatpush1.bf16.xpose.msra.mxu0 0
      %579 = vmatprep.subr.bf16.mxu0 0
      %580 = vmatpush1.bf16.xpose.msra.mxu0 0
      %581 = vmatprep.subr.bf16.mxu0 0
      %582 = vmatpush1.bf16.xpose.msra.mxu0 0
      %583 = vmatprep.subr.bf16.mxu0 0
      %584 = vmatpush1.bf16.xpose.msra.mxu0 0
      %585 = vmatprep.mubr.bf16.mxu0 0
      %586 = vmatmul.mubr.bf16.gmra.mrb[0].mxu0 %v545
      %v587 = vpop.f32.mrb[0].mxu0
      %v588 = vadd.f32 0.0, %v587
      %v589 = vpop.f32.mrb[0].mxu0
      %v590 = vpop.f32.mrb[0].mxu0
      %v591 = vpop.f32.mrb[0].mxu0
      %592 = vdwg.mxu0
      %v593 = vsel %vm543, %v588, -inf
      %594 = vmax.xlane.f32.xlu0 %v593
      %v595 = vpop.xlane.xlu0 %594
      %v596 = vsub.f32 %v588, %v595
      %v597 = vmul.f32 %v596, 1.442695
      %v598 = vpow.pop %v597
      %v599 = vsel %vm543, %v598, 0.0
      %600 = vadd.xlane.f32.xlu0 %v599
      %v601 = vpop.xlane.xlu0 %600
      %v602 = vrcp.pop %v601
      %v603 = vmul.f32 %v598, %v602
      %v604 = vpack.c.bf16 %v603, %v603
      %v609 = vunpack.c.l.b16 %v529
      %v610 = vunpack.c.l.b16 %v530
      %v611 = vunpack.c.l.b16 %v531
      %v612 = vunpack.c.l.b16 %v532
      %v613 = vpack.c.b16 %v610, %v609
      %v614 = vpack.c.b16 %v612, %v611
      %v618 = vsel %vm543, %v604, 0
      %620 = vmatprep.subr.bf16.mxu0 0
      %621 = vmatpush1.bf16.msra.mxu0 %v613
      %622 = vmatprep.subr.bf16.mxu0 0
      %623 = vmatpush1.bf16.msra.mxu0 %v614
      %624 = vmatprep.subr.bf16.mxu0 0
      %625 = vmatpush1.bf16.msra.mxu0 0
      %626 = vmatprep.subr.bf16.mxu0 0
      %627 = vmatpush1.bf16.msra.mxu0 0
      %628 = vmatprep.subr.bf16.mxu0 0
      %629 = vmatpush1.bf16.msra.mxu0 0
      %630 = vmatprep.subr.bf16.mxu0 0
      %631 = vmatpush1.bf16.msra.mxu0 0
      %632 = vmatprep.subr.bf16.mxu0 0
      %633 = vmatpush1.bf16.msra.mxu0 0
      %634 = vmatprep.subr.bf16.mxu0 0
      %635 = vmatpush1.bf16.msra.mxu0 0
      %636 = vmatprep.subr.bf16.mxu0 0
      %637 = vmatpush1.bf16.msra.mxu0 0
      %638 = vmatprep.subr.bf16.mxu0 0
      %639 = vmatpush1.bf16.msra.mxu0 0
      %640 = vmatprep.subr.bf16.mxu0 0
      %641 = vmatpush1.bf16.msra.mxu0 0
      %642 = vmatprep.subr.bf16.mxu0 0
      %643 = vmatpush1.bf16.msra.mxu0 0
      %644 = vmatprep.subr.bf16.mxu0 0
      %645 = vmatpush1.bf16.msra.mxu0 0
      %646 = vmatprep.subr.bf16.mxu0 0
      %647 = vmatpush1.bf16.msra.mxu0 0
      %648 = vmatprep.subr.bf16.mxu0 0
      %649 = vmatpush1.bf16.msra.mxu0 0
      %650 = vmatprep.subr.bf16.mxu0 0
      %651 = vmatpush1.bf16.msra.mxu0 0
      %652 = vmatprep.mubr.bf16.mxu0 0
      %653 = vmatmul.mubr.bf16.gmra.mrb[0].mxu0 %v618
      %v654 = vpop.f32.mrb[0].mxu0
      %v655 = vadd.f32 0.0, %v654
      %v656 = vpop.f32.mrb[0].mxu0
      %v657 = vpop.f32.mrb[0].mxu0
      %v658 = vpop.f32.mrb[0].mxu0
      %659 = vdwg.mxu0
      %661 = vrot.lane.b32.xlu0 %v524, 96
      %v662 = vpop.permute.xlu0 %661
      %663 = vrot.lane.b32.xlu0 %v541, 96
      %v664 = vpop.permute.xlu0 %663
      %665 = vrot.lane.b32.xlu0 %v542, 96
      %v666 = vpop.permute.xlu0 %665
      %v668 = vsel %vm543, %v662, 0
      %v671 = vsel %vm543, %v664, 0
      %v674 = vsel %vm543, %v666, 0
      %676 = vmatprep.subr.bf16.mxu0 0
      %677 = vmatpush1.bf16.xpose.msra.mxu0 %v671
      %678 = vmatprep.subr.bf16.mxu0 0
      %679 = vmatpush1.bf16.xpose.msra.mxu0 %v674
      %680 = vmatprep.subr.bf16.mxu0 0
      %681 = vmatpush1.bf16.xpose.msra.mxu0 0
      %682 = vmatprep.subr.bf16.mxu0 0
      %683 = vmatpush1.bf16.xpose.msra.mxu0 0
      %684 = vmatprep.subr.bf16.mxu0 0
      %685 = vmatpush1.bf16.xpose.msra.mxu0 0
      %686 = vmatprep.subr.bf16.mxu0 0
      %687 = vmatpush1.bf16.xpose.msra.mxu0 0
      %688 = vmatprep.subr.bf16.mxu0 0
      %689 = vmatpush1.bf16.xpose.msra.mxu0 0
      %690 = vmatprep.subr.bf16.mxu0 0
      %691 = vmatpush1.bf16.xpose.msra.mxu0 0
      %692 = vmatprep.subr.bf16.mxu0 0
      %693 = vmatpush1.bf16.xpose.msra.mxu0 0
      %694 = vmatprep.subr.bf16.mxu0 0
      %695 = vmatpush1.bf16.xpose.msra.mxu0 0
      %696 = vmatprep.subr.bf16.mxu0 0
      %697 = vmatpush1.bf16.xpose.msra.mxu0 0
      %698 = vmatprep.subr.bf16.mxu0 0
      %699 = vmatpush1.bf16.xpose.msra.mxu0 0
      %700 = vmatprep.subr.bf16.mxu0 0
      %701 = vmatpush1.bf16.xpose.msra.mxu0 0
      %702 = vmatprep.subr.bf16.mxu0 0
      %703 = vmatpush1.bf16.xpose.msra.mxu0 0
      %704 = vmatprep.subr.bf16.mxu0 0
      %705 = vmatpush1.bf16.xpose.msra.mxu0 0
      %706 = vmatprep.subr.bf16.mxu0 0
      %707 = vmatpush1.bf16.xpose.msra.mxu0 0
      %708 = vmatprep.mubr.bf16.mxu0 0
      %709 = vmatmul.mubr.bf16.gmra.mrb[0].mxu0 %v668
      %v710 = vpop.f32.mrb[0].mxu0
      %v711 = vadd.f32 0.0, %v710
      %v712 = vpop.f32.mrb[0].mxu0
      %v713 = vpop.f32.mrb[0].mxu0
      %v714 = vpop.f32.mrb[0].mxu0
      %715 = vdwg.mxu0
      %v716 = vsel %vm543, %v711, -inf
      %717 = vmax.xlane.f32.xlu0 %v716
      %v718 = vpop.xlane.xlu0 %717
      %v719 = vsub.f32 %v711, %v718
      %v720 = vmul.f32 %v719, 1.442695
      %v721 = vpow.pop %v720
      %v722 = vsel %vm543, %v721, 0.0
      %723 = vadd.xlane.f32.xlu0 %v722
      %v724 = vpop.xlane.xlu0 %723
      %v725 = vrcp.pop %v724
      %v726 = vmul.f32 %v721, %v725
      %v727 = vpack.c.bf16 %v726, %v726
      %728 = vrot.lane.b32.xlu0 %v613, 96
      %v729 = vpop.permute.xlu0 %728
      %730 = vrot.lane.b32.xlu0 %v614, 96
      %v731 = vpop.permute.xlu0 %730
      %v735 = vsel %vm543, %v727, 0
      %737 = vmatprep.subr.bf16.mxu0 0
      %738 = vmatpush1.bf16.msra.mxu0 %v729
      %739 = vmatprep.subr.bf16.mxu0 0
      %740 = vmatpush1.bf16.msra.mxu0 %v731
      %741 = vmatprep.subr.bf16.mxu0 0
      %742 = vmatpush1.bf16.msra.mxu0 0
      %743 = vmatprep.subr.bf16.mxu0 0
      %744 = vmatpush1.bf16.msra.mxu0 0
      %745 = vmatprep.subr.bf16.mxu0 0
      %746 = vmatpush1.bf16.msra.mxu0 0
      %747 = vmatprep.subr.bf16.mxu0 0
      %748 = vmatpush1.bf16.msra.mxu0 0
      %749 = vmatprep.subr.bf16.mxu0 0
      %750 = vmatpush1.bf16.msra.mxu0 0
      %751 = vmatprep.subr.bf16.mxu0 0
      %752 = vmatpush1.bf16.msra.mxu0 0
      %753 = vmatprep.subr.bf16.mxu0 0
      %754 = vmatpush1.bf16.msra.mxu0 0
      %755 = vmatprep.subr.bf16.mxu0 0
      %756 = vmatpush1.bf16.msra.mxu0 0
      %757 = vmatprep.subr.bf16.mxu0 0
      %758 = vmatpush1.bf16.msra.mxu0 0
      %759 = vmatprep.subr.bf16.mxu0 0
      %760 = vmatpush1.bf16.msra.mxu0 0
      %761 = vmatprep.subr.bf16.mxu0 0
      %762 = vmatpush1.bf16.msra.mxu0 0
      %763 = vmatprep.subr.bf16.mxu0 0
      %764 = vmatpush1.bf16.msra.mxu0 0
      %765 = vmatprep.subr.bf16.mxu0 0
      %766 = vmatpush1.bf16.msra.mxu0 0
      %767 = vmatprep.subr.bf16.mxu0 0
      %768 = vmatpush1.bf16.msra.mxu0 0
      %769 = vmatprep.mubr.bf16.mxu0 0
      %770 = vmatmul.mubr.bf16.gmra.mrb[0].mxu0 %v735
      %v771 = vpop.f32.mrb[0].mxu0
      %v772 = vadd.f32 0.0, %v771
      %v773 = vpop.f32.mrb[0].mxu0
      %v774 = vpop.f32.mrb[0].mxu0
      %v775 = vpop.f32.mrb[0].mxu0
      %776 = vdwg.mxu0
      %777 = vrot.lane.b32.xlu0 %v524, 64
      %v778 = vpop.permute.xlu0 %777
      %779 = vrot.lane.b32.xlu0 %v541, 64
      %v780 = vpop.permute.xlu0 %779
      %781 = vrot.lane.b32.xlu0 %v542, 64
      %v782 = vpop.permute.xlu0 %781
      %v784 = vsel %vm543, %v778, 0
      %v787 = vsel %vm543, %v780, 0
      %v790 = vsel %vm543, %v782, 0
      %792 = vmatprep.subr.bf16.mxu0 0
      %793 = vmatpush1.bf16.xpose.msra.mxu0 %v787
      %794 = vmatprep.subr.bf16.mxu0 0
      %795 = vmatpush1.bf16.xpose.msra.mxu0 %v790
      %796 = vmatprep.subr.bf16.mxu0 0
      %797 = vmatpush1.bf16.xpose.msra.mxu0 0
      %798 = vmatprep.subr.bf16.mxu0 0
      %799 = vmatpush1.bf16.xpose.msra.mxu0 0
      %800 = vmatprep.subr.bf16.mxu0 0
      %801 = vmatpush1.bf16.xpose.msra.mxu0 0
      %802 = vmatprep.subr.bf16.mxu0 0
      %803 = vmatpush1.bf16.xpose.msra.mxu0 0
      %804 = vmatprep.subr.bf16.mxu0 0
      %805 = vmatpush1.bf16.xpose.msra.mxu0 0
      %806 = vmatprep.subr.bf16.mxu0 0
      %807 = vmatpush1.bf16.xpose.msra.mxu0 0
      %808 = vmatprep.subr.bf16.mxu0 0
      %809 = vmatpush1.bf16.xpose.msra.mxu0 0
      %810 = vmatprep.subr.bf16.mxu0 0
      %811 = vmatpush1.bf16.xpose.msra.mxu0 0
      %812 = vmatprep.subr.bf16.mxu0 0
      %813 = vmatpush1.bf16.xpose.msra.mxu0 0
      %814 = vmatprep.subr.bf16.mxu0 0
      %815 = vmatpush1.bf16.xpose.msra.mxu0 0
      %816 = vmatprep.subr.bf16.mxu0 0
      %817 = vmatpush1.bf16.xpose.msra.mxu0 0
      %818 = vmatprep.subr.bf16.mxu0 0
      %819 = vmatpush1.bf16.xpose.msra.mxu0 0
      %820 = vmatprep.subr.bf16.mxu0 0
      %821 = vmatpush1.bf16.xpose.msra.mxu0 0
      %822 = vmatprep.subr.bf16.mxu0 0
      %823 = vmatpush1.bf16.xpose.msra.mxu0 0
      %824 = vmatprep.mubr.bf16.mxu0 0
      %825 = vmatmul.mubr.bf16.gmra.mrb[0].mxu0 %v784
      %v826 = vpop.f32.mrb[0].mxu0
      %v827 = vadd.f32 0.0, %v826
      %v828 = vpop.f32.mrb[0].mxu0
      %v829 = vpop.f32.mrb[0].mxu0
      %v830 = vpop.f32.mrb[0].mxu0
      %831 = vdwg.mxu0
      %v832 = vsel %vm543, %v827, -inf
      %833 = vmax.xlane.f32.xlu0 %v832
      %v834 = vpop.xlane.xlu0 %833
      %v835 = vsub.f32 %v827, %v834
      %v836 = vmul.f32 %v835, 1.442695
      %v837 = vpow.pop %v836
      %v838 = vsel %vm543, %v837, 0.0
      %839 = vadd.xlane.f32.xlu0 %v838
      %v840 = vpop.xlane.xlu0 %839
      %v841 = vrcp.pop %v840
      %v842 = vmul.f32 %v837, %v841
      %v843 = vpack.c.bf16 %v842, %v842
      %844 = vrot.lane.b32.xlu0 %v613, 64
      %v845 = vpop.permute.xlu0 %844
      %846 = vrot.lane.b32.xlu0 %v614, 64
      %v847 = vpop.permute.xlu0 %846
      %v851 = vsel %vm543, %v843, 0
      %853 = vmatprep.subr.bf16.mxu0 0
      %854 = vmatpush1.bf16.msra.mxu0 %v845
      %855 = vmatprep.subr.bf16.mxu0 0
      %856 = vmatpush1.bf16.msra.mxu0 %v847
      %857 = vmatprep.subr.bf16.mxu0 0
      %858 = vmatpush1.bf16.msra.mxu0 0
      %859 = vmatprep.subr.bf16.mxu0 0
      %860 = vmatpush1.bf16.msra.mxu0 0
      %861 = vmatprep.subr.bf16.mxu0 0
      %862 = vmatpush1.bf16.msra.mxu0 0
      %863 = vmatprep.subr.bf16.mxu0 0
      %864 = vmatpush1.bf16.msra.mxu0 0
      %865 = vmatprep.subr.bf16.mxu0 0
      %866 = vmatpush1.bf16.msra.mxu0 0
      %867 = vmatprep.subr.bf16.mxu0 0
      %868 = vmatpush1.bf16.msra.mxu0 0
      %869 = vmatprep.subr.bf16.mxu0 0
      %870 = vmatpush1.bf16.msra.mxu0 0
      %871 = vmatprep.subr.bf16.mxu0 0
      %872 = vmatpush1.bf16.msra.mxu0 0
      %873 = vmatprep.subr.bf16.mxu0 0
      %874 = vmatpush1.bf16.msra.mxu0 0
      %875 = vmatprep.subr.bf16.mxu0 0
      %876 = vmatpush1.bf16.msra.mxu0 0
      %877 = vmatprep.subr.bf16.mxu0 0
      %878 = vmatpush1.bf16.msra.mxu0 0
      %879 = vmatprep.subr.bf16.mxu0 0
      %880 = vmatpush1.bf16.msra.mxu0 0
      %881 = vmatprep.subr.bf16.mxu0 0
      %882 = vmatpush1.bf16.msra.mxu0 0
      %883 = vmatprep.subr.bf16.mxu0 0
      %884 = vmatpush1.bf16.msra.mxu0 0
      %885 = vmatprep.mubr.bf16.mxu0 0
      %886 = vmatmul.mubr.bf16.gmra.mrb[0].mxu0 %v851
      %v887 = vpop.f32.mrb[0].mxu0
      %v888 = vadd.f32 0.0, %v887
      %v889 = vpop.f32.mrb[0].mxu0
      %v890 = vpop.f32.mrb[0].mxu0
      %v891 = vpop.f32.mrb[0].mxu0
      %892 = vdwg.mxu0
      %893 = vrot.lane.b32.xlu0 %v524, 32
      %v894 = vpop.permute.xlu0 %893
      %895 = vrot.lane.b32.xlu0 %v541, 32
      %v896 = vpop.permute.xlu0 %895
      %897 = vrot.lane.b32.xlu0 %v542, 32
      %v898 = vpop.permute.xlu0 %897
      %v900 = vsel %vm543, %v894, 0
      %v903 = vsel %vm543, %v896, 0
      %v906 = vsel %vm543, %v898, 0
      %908 = vmatprep.subr.bf16.mxu0 0
      %909 = vmatpush1.bf16.xpose.msra.mxu0 %v903
      %910 = vmatprep.subr.bf16.mxu0 0
      %911 = vmatpush1.bf16.xpose.msra.mxu0 %v906
      %912 = vmatprep.subr.bf16.mxu0 0
      %913 = vmatpush1.bf16.xpose.msra.mxu0 0
      %914 = vmatprep.subr.bf16.mxu0 0
      %915 = vmatpush1.bf16.xpose.msra.mxu0 0
      %916 = vmatprep.subr.bf16.mxu0 0
      %917 = vmatpush1.bf16.xpose.msra.mxu0 0
      %918 = vmatprep.subr.bf16.mxu0 0
      %919 = vmatpush1.bf16.xpose.msra.mxu0 0
      %920 = vmatprep.subr.bf16.mxu0 0
      %921 = vmatpush1.bf16.xpose.msra.mxu0 0
      %922 = vmatprep.subr.bf16.mxu0 0
      %923 = vmatpush1.bf16.xpose.msra.mxu0 0
      %924 = vmatprep.subr.bf16.mxu0 0
      %925 = vmatpush1.bf16.xpose.msra.mxu0 0
      %926 = vmatprep.subr.bf16.mxu0 0
      %927 = vmatpush1.bf16.xpose.msra.mxu0 0
      %928 = vmatprep.subr.bf16.mxu0 0
      %929 = vmatpush1.bf16.xpose.msra.mxu0 0
      %930 = vmatprep.subr.bf16.mxu0 0
      %931 = vmatpush1.bf16.xpose.msra.mxu0 0
      %932 = vmatprep.subr.bf16.mxu0 0
      %933 = vmatpush1.bf16.xpose.msra.mxu0 0
      %934 = vmatprep.subr.bf16.mxu0 0
      %935 = vmatpush1.bf16.xpose.msra.mxu0 0
      %936 = vmatprep.subr.bf16.mxu0 0
      %937 = vmatpush1.bf16.xpose.msra.mxu0 0
      %938 = vmatprep.subr.bf16.mxu0 0
      %939 = vmatpush1.bf16.xpose.msra.mxu0 0
      %940 = vmatprep.mubr.bf16.mxu0 0
      %941 = vmatmul.mubr.bf16.gmra.mrb[0].mxu0 %v900
      %v942 = vpop.f32.mrb[0].mxu0
      %v943 = vadd.f32 0.0, %v942
      %v944 = vpop.f32.mrb[0].mxu0
      %v945 = vpop.f32.mrb[0].mxu0
      %v946 = vpop.f32.mrb[0].mxu0
      %947 = vdwg.mxu0
      %v948 = vsel %vm543, %v943, -inf
      %949 = vmax.xlane.f32.xlu0 %v948
      %v950 = vpop.xlane.xlu0 %949
      %v951 = vsub.f32 %v943, %v950
      %v952 = vmul.f32 %v951, 1.442695
      %v953 = vpow.pop %v952
      %v954 = vsel %vm543, %v953, 0.0
      %955 = vadd.xlane.f32.xlu0 %v954
      %v956 = vpop.xlane.xlu0 %955
      %v957 = vrcp.pop %v956
      %v958 = vmul.f32 %v953, %v957
      %v959 = vpack.c.bf16 %v958, %v958
      %960 = vrot.lane.b32.xlu0 %v613, 32
      %v961 = vpop.permute.xlu0 %960
      %962 = vrot.lane.b32.xlu0 %v614, 32
      %v963 = vpop.permute.xlu0 %962
      %v967 = vsel %vm543, %v959, 0
      %969 = vmatprep.subr.bf16.mxu0 0
      %970 = vmatpush1.bf16.msra.mxu0 %v961
      %971 = vmatprep.subr.bf16.mxu0 0
      %972 = vmatpush1.bf16.msra.mxu0 %v963
      %973 = vmatprep.subr.bf16.mxu0 0
      %974 = vmatpush1.bf16.msra.mxu0 0
      %975 = vmatprep.subr.bf16.mxu0 0
      %976 = vmatpush1.bf16.msra.mxu0 0
      %977 = vmatprep.subr.bf16.mxu0 0
      %978 = vmatpush1.bf16.msra.mxu0 0
      %979 = vmatprep.subr.bf16.mxu0 0
      %980 = vmatpush1.bf16.msra.mxu0 0
      %981 = vmatprep.subr.bf16.mxu0 0
      %982 = vmatpush1.bf16.msra.mxu0 0
      %983 = vmatprep.subr.bf16.mxu0 0
      %984 = vmatpush1.bf16.msra.mxu0 0
      %985 = vmatprep.subr.bf16.mxu0 0
      %986 = vmatpush1.bf16.msra.mxu0 0
      %987 = vmatprep.subr.bf16.mxu0 0
      %988 = vmatpush1.bf16.msra.mxu0 0
      %989 = vmatprep.subr.bf16.mxu0 0
      %990 = vmatpush1.bf16.msra.mxu0 0
      %991 = vmatprep.subr.bf16.mxu0 0
      %992 = vmatpush1.bf16.msra.mxu0 0
      %993 = vmatprep.subr.bf16.mxu0 0
      %994 = vmatpush1.bf16.msra.mxu0 0
      %995 = vmatprep.subr.bf16.mxu0 0
      %996 = vmatpush1.bf16.msra.mxu0 0
      %997 = vmatprep.subr.bf16.mxu0 0
      %998 = vmatpush1.bf16.msra.mxu0 0
      %999 = vmatprep.subr.bf16.mxu0 0
      %1000 = vmatpush1.bf16.msra.mxu0 0
      %1001 = vmatprep.mubr.bf16.mxu0 0
      %1002 = vmatmul.mubr.bf16.gmra.mrb[0].mxu0 %v967
      %v1003 = vpop.f32.mrb[0].mxu0
      %v1004 = vadd.f32 0.0, %v1003
      %v1005 = vpop.f32.mrb[0].mxu0
      %v1006 = vpop.f32.mrb[0].mxu0
      %v1007 = vpop.f32.mrb[0].mxu0
      %1008 = vdwg.mxu0
      %1010 = vrot.lane.b32.xlu0 %v772, 32
      %v1011 = vpop.permute.xlu0 %1010
      %1014 = vrot.lane.b32.xlu0 %v888, 64
      %v1015 = vpop.permute.xlu0 %1014
      %1018 = vrot.lane.b32.xlu0 %v1004, 96
      %v1019 = vpop.permute.xlu0 %1018
      %v1021 = vsel %vm543, %v655, %v1011
      %vm1022 = vcmask 523264
      %v1023 = vsel %vm1022, %v1021, %v1015
      %vm1024 = vcmask 785408
      %v1025 = vsel %vm1024, %v1023, %v1019
      %v1026 = vld [vmem:[%s5] sm:$0xf]
      %v1027 = vld [vmem:[%s5 + $0x4] sm:$0xf]
      %v1028 = vld [vmem:[%s5 + $0x8] sm:$0xf]
      %v1029 = vld [vmem:[%s5 + $0xc] sm:$0xf]
      %v1030 = vld [vmem:[%s5 + $0x10] sm:$0xf]
      %v1031 = vld [vmem:[%s5 + $0x14] sm:$0xf]
      %v1032 = vld [vmem:[%s5 + $0x18] sm:$0xf]
      %v1033 = vld [vmem:[%s5 + $0x1c] sm:$0xf]
      %v1034 = vld [vmem:[%s5 + $0x20] sm:$0xf]
      %v1035 = vld [vmem:[%s5 + $0x24] sm:$0xf]
      %v1036 = vld [vmem:[%s5 + $0x28] sm:$0xf]
      %v1037 = vld [vmem:[%s5 + $0x2c] sm:$0xf]
      %v1038 = vld [vmem:[%s5 + $0x30] sm:$0xf]
      %v1039 = vld [vmem:[%s5 + $0x34] sm:$0xf]
      %v1040 = vld [vmem:[%s5 + $0x38] sm:$0xf]
      %v1041 = vld [vmem:[%s5 + $0x3c] sm:$0xf]
      %v1042 = vld [vmem:[%s6] sm:$0x1]
      %v1043 = vpack.c.bf16 %v1025, %v1025
      %v1045 = vlaneseq
      %v1046 = vshrl.u32 %v1045, 7
      %v1047 = vsub.s32 0, %v1046
      %v1048 = vrot.slane %v1042, %v1047
      %v1066 = vunpack.c.l.b16 %v1026
      %v1067 = vunpack.c.l.b16 %v1027
      %v1068 = vunpack.c.l.b16 %v1028
      %v1069 = vunpack.c.l.b16 %v1029
      %v1070 = vunpack.c.l.b16 %v1030
      %v1071 = vunpack.c.l.b16 %v1031
      %v1072 = vunpack.c.l.b16 %v1032
      %v1073 = vunpack.c.l.b16 %v1033
      %v1074 = vunpack.c.l.b16 %v1034
      %v1075 = vunpack.c.l.b16 %v1035
      %v1076 = vunpack.c.l.b16 %v1036
      %v1077 = vunpack.c.l.b16 %v1037
      %v1078 = vunpack.c.l.b16 %v1038
      %v1079 = vunpack.c.l.b16 %v1039
      %v1080 = vunpack.c.l.b16 %v1040
      %v1081 = vunpack.c.l.b16 %v1041
      %v1082 = vpack.c.b16 %v1067, %v1066
      %v1083 = vpack.c.b16 %v1069, %v1068
      %v1084 = vpack.c.b16 %v1071, %v1070
      %v1085 = vpack.c.b16 %v1073, %v1072
      %v1086 = vpack.c.b16 %v1075, %v1074
      %v1087 = vpack.c.b16 %v1077, %v1076
      %v1088 = vpack.c.b16 %v1079, %v1078
      %v1089 = vpack.c.b16 %v1081, %v1080
      %1098 = vmatprep.subr.bf16.mxu0 0
      %1099 = vmatpush1.bf16.msra.mxu0 %v1082
      %1100 = vmatprep.subr.bf16.mxu0 0
      %1101 = vmatpush1.bf16.msra.mxu0 %v1083
      %1102 = vmatprep.subr.bf16.mxu0 0
      %1103 = vmatpush1.bf16.msra.mxu0 %v1084
      %1104 = vmatprep.subr.bf16.mxu0 0
      %1105 = vmatpush1.bf16.msra.mxu0 %v1085
      %1106 = vmatprep.subr.bf16.mxu0 0
      %1107 = vmatpush1.bf16.msra.mxu0 %v1086
      %1108 = vmatprep.subr.bf16.mxu0 0
      %1109 = vmatpush1.bf16.msra.mxu0 %v1087
      %1110 = vmatprep.subr.bf16.mxu0 0
      %1111 = vmatpush1.bf16.msra.mxu0 %v1088
      %1112 = vmatprep.subr.bf16.mxu0 0
      %1113 = vmatpush1.bf16.msra.mxu0 %v1089
      %1114 = vmatprep.subr.bf16.mxu0 0
      %1115 = vmatpush1.bf16.msra.mxu0 0
      %1116 = vmatprep.subr.bf16.mxu0 0
      %1117 = vmatpush1.bf16.msra.mxu0 0
      %1118 = vmatprep.subr.bf16.mxu0 0
      %1119 = vmatpush1.bf16.msra.mxu0 0
      %1120 = vmatprep.subr.bf16.mxu0 0
      %1121 = vmatpush1.bf16.msra.mxu0 0
      %1122 = vmatprep.subr.bf16.mxu0 0
      %1123 = vmatpush1.bf16.msra.mxu0 0
      %1124 = vmatprep.subr.bf16.mxu0 0
      %1125 = vmatpush1.bf16.msra.mxu0 0
      %1126 = vmatprep.subr.bf16.mxu0 0
      %1127 = vmatpush1.bf16.msra.mxu0 0
      %1128 = vmatprep.subr.bf16.mxu0 0
      %1129 = vmatpush1.bf16.msra.mxu0 0
      %1130 = vmatprep.mubr.bf16.mxu0 0
      %1131 = vmatmul.mubr.bf16.gmra.mrb[0].mxu0 %v1043
      %v1132 = vpop.f32.mrb[0].mxu0
      %v1133 = vadd.f32 %v1048, %v1132
      %v1134 = vpop.f32.mrb[0].mxu0
      %v1135 = vpop.f32.mrb[0].mxu0
      %v1136 = vpop.f32.mrb[0].mxu0
      %1137 = vdwg.mxu0
      %v1138 = vld [vmem:[%s7] sm:$0xf]
      %v1139 = vld [vmem:[%s7 + $0x4] sm:$0xf]
      %v1140 = vld [vmem:[%s7 + $0x8] sm:$0xf]
      %v1141 = vld [vmem:[%s7 + $0xc] sm:$0xf]
      %v1142 = vld [vmem:[%s7 + $0x10] sm:$0xf]
      %v1143 = vld [vmem:[%s7 + $0x14] sm:$0xf]
      %v1144 = vld [vmem:[%s7 + $0x18] sm:$0xf]
      %v1145 = vld [vmem:[%s7 + $0x1c] sm:$0xf]
      %v1146 = vld [vmem:[%s7 + $0x20] sm:$0xf]
      %v1147 = vld [vmem:[%s7 + $0x24] sm:$0xf]
      %v1148 = vld [vmem:[%s7 + $0x28] sm:$0xf]
      %v1149 = vld [vmem:[%s7 + $0x2c] sm:$0xf]
      %v1150 = vld [vmem:[%s7 + $0x30] sm:$0xf]
      %v1151 = vld [vmem:[%s7 + $0x34] sm:$0xf]
      %v1152 = vld [vmem:[%s7 + $0x38] sm:$0xf]
      %v1153 = vld [vmem:[%s7 + $0x3c] sm:$0xf]
      %v1154 = vld [vmem:[%s9] sm:$0x1]
      %v1156 = vlaneseq
      %v1157 = vshrl.u32 %v1156, 7
      %v1158 = vsub.s32 0, %v1157
      %v1159 = vrot.slane %v1154, %v1158
      %v1177 = vunpack.c.l.b16 %v1138
      %v1178 = vunpack.c.l.b16 %v1139
      %v1179 = vunpack.c.l.b16 %v1140
      %v1180 = vunpack.c.l.b16 %v1141
      %v1181 = vunpack.c.l.b16 %v1142
      %v1182 = vunpack.c.l.b16 %v1143
      %v1183 = vunpack.c.l.b16 %v1144
      %v1184 = vunpack.c.l.b16 %v1145
      %v1185 = vunpack.c.l.b16 %v1146
      %v1186 = vunpack.c.l.b16 %v1147
      %v1187 = vunpack.c.l.b16 %v1148
      %v1188 = vunpack.c.l.b16 %v1149
      %v1189 = vunpack.c.l.b16 %v1150
      %v1190 = vunpack.c.l.b16 %v1151
      %v1191 = vunpack.c.l.b16 %v1152
      %v1192 = vunpack.c.l.b16 %v1153
      %v1193 = vpack.c.b16 %v1178, %v1177
      %v1194 = vpack.c.b16 %v1180, %v1179
      %v1195 = vpack.c.b16 %v1182, %v1181
      %v1196 = vpack.c.b16 %v1184, %v1183
      %v1197 = vpack.c.b16 %v1186, %v1185
      %v1198 = vpack.c.b16 %v1188, %v1187
      %v1199 = vpack.c.b16 %v1190, %v1189
      %v1200 = vpack.c.b16 %v1192, %v1191
      %1209 = vmatprep.subr.bf16.mxu0 0
      %1210 = vmatpush1.bf16.msra.mxu0 %v1193
      %1211 = vmatprep.subr.bf16.mxu0 0
      %1212 = vmatpush1.bf16.msra.mxu0 %v1194
      %1213 = vmatprep.subr.bf16.mxu0 0
      %1214 = vmatpush1.bf16.msra.mxu0 %v1195
      %1215 = vmatprep.subr.bf16.mxu0 0
      %1216 = vmatpush1.bf16.msra.mxu0 %v1196
      %1217 = vmatprep.subr.bf16.mxu0 0
      %1218 = vmatpush1.bf16.msra.mxu0 %v1197
      %1219 = vmatprep.subr.bf16.mxu0 0
      %1220 = vmatpush1.bf16.msra.mxu0 %v1198
      %1221 = vmatprep.subr.bf16.mxu0 0
      %1222 = vmatpush1.bf16.msra.mxu0 %v1199
      %1223 = vmatprep.subr.bf16.mxu0 0
      %1224 = vmatpush1.bf16.msra.mxu0 %v1200
      %1225 = vmatprep.subr.bf16.mxu0 0
      %1226 = vmatpush1.bf16.msra.mxu0 0
      %1227 = vmatprep.subr.bf16.mxu0 0
      %1228 = vmatpush1.bf16.msra.mxu0 0
      %1229 = vmatprep.subr.bf16.mxu0 0
      %1230 = vmatpush1.bf16.msra.mxu0 0
      %1231 = vmatprep.subr.bf16.mxu0 0
      %1232 = vmatpush1.bf16.msra.mxu0 0
      %1233 = vmatprep.subr.bf16.mxu0 0
      %1234 = vmatpush1.bf16.msra.mxu0 0
      %1235 = vmatprep.subr.bf16.mxu0 0
      %1236 = vmatpush1.bf16.msra.mxu0 0
      %1237 = vmatprep.subr.bf16.mxu0 0
      %1238 = vmatpush1.bf16.msra.mxu0 0
      %1239 = vmatprep.subr.bf16.mxu0 0
      %1240 = vmatpush1.bf16.msra.mxu0 0
      %1241 = vmatprep.mubr.bf16.mxu0 0
      %1242 = vmatmul.mubr.bf16.gmra.mrb[0].mxu0 %v428
      %v1243 = vpop.f32.mrb[0].mxu0
      %v1244 = vadd.f32 %v1159, %v1243
      %v1245 = vpop.f32.mrb[0].mxu0
      %v1246 = vpop.f32.mrb[0].mxu0
      %v1247 = vpop.f32.mrb[0].mxu0
      %1248 = vdwg.mxu0
      %v1249 = vld [vmem:[%s8] sm:$0xf]
      %v1250 = vld [vmem:[%s8 + $0x4] sm:$0xf]
      %v1251 = vld [vmem:[%s8 + $0x8] sm:$0xf]
      %v1252 = vld [vmem:[%s8 + $0xc] sm:$0xf]
      %v1253 = vld [vmem:[%s8 + $0x10] sm:$0xf]
      %v1254 = vld [vmem:[%s8 + $0x14] sm:$0xf]
      %v1255 = vld [vmem:[%s8 + $0x18] sm:$0xf]
      %v1256 = vld [vmem:[%s8 + $0x1c] sm:$0xf]
      %v1257 = vld [vmem:[%s8 + $0x20] sm:$0xf]
      %v1258 = vld [vmem:[%s8 + $0x24] sm:$0xf]
      %v1259 = vld [vmem:[%s8 + $0x28] sm:$0xf]
      %v1260 = vld [vmem:[%s8 + $0x2c] sm:$0xf]
      %v1261 = vld [vmem:[%s8 + $0x30] sm:$0xf]
      %v1262 = vld [vmem:[%s8 + $0x34] sm:$0xf]
      %v1263 = vld [vmem:[%s8 + $0x38] sm:$0xf]
      %v1264 = vld [vmem:[%s8 + $0x3c] sm:$0xf]
      %v1265 = vpack.c.bf16 %v1133, %v1133
      %v1282 = vunpack.c.l.b16 %v1249
      %v1283 = vunpack.c.l.b16 %v1250
      %v1284 = vunpack.c.l.b16 %v1251
      %v1285 = vunpack.c.l.b16 %v1252
      %v1286 = vunpack.c.l.b16 %v1253
      %v1287 = vunpack.c.l.b16 %v1254
      %v1288 = vunpack.c.l.b16 %v1255
      %v1289 = vunpack.c.l.b16 %v1256
      %v1290 = vunpack.c.l.b16 %v1257
      %v1291 = vunpack.c.l.b16 %v1258
      %v1292 = vunpack.c.l.b16 %v1259
      %v1293 = vunpack.c.l.b16 %v1260
      %v1294 = vunpack.c.l.b16 %v1261
      %v1295 = vunpack.c.l.b16 %v1262
      %v1296 = vunpack.c.l.b16 %v1263
      %v1297 = vunpack.c.l.b16 %v1264
      %v1298 = vpack.c.b16 %v1283, %v1282
      %v1299 = vpack.c.b16 %v1285, %v1284
      %v1300 = vpack.c.b16 %v1287, %v1286
      %v1301 = vpack.c.b16 %v1289, %v1288
      %v1302 = vpack.c.b16 %v1291, %v1290
      %v1303 = vpack.c.b16 %v1293, %v1292
      %v1304 = vpack.c.b16 %v1295, %v1294
      %v1305 = vpack.c.b16 %v1297, %v1296
      %1314 = vmatprep.subr.bf16.mxu0 0
      %1315 = vmatpush1.bf16.msra.mxu0 %v1298
      %1316 = vmatprep.subr.bf16.mxu0 0
      %1317 = vmatpush1.bf16.msra.mxu0 %v1299
      %1318 = vmatprep.subr.bf16.mxu0 0
      %1319 = vmatpush1.bf16.msra.mxu0 %v1300
      %1320 = vmatprep.subr.bf16.mxu0 0
      %1321 = vmatpush1.bf16.msra.mxu0 %v1301
      %1322 = vmatprep.subr.bf16.mxu0 0
      %1323 = vmatpush1.bf16.msra.mxu0 %v1302
      %1324 = vmatprep.subr.bf16.mxu0 0
      %1325 = vmatpush1.bf16.msra.mxu0 %v1303
      %1326 = vmatprep.subr.bf16.mxu0 0
      %1327 = vmatpush1.bf16.msra.mxu0 %v1304
      %1328 = vmatprep.subr.bf16.mxu0 0
      %1329 = vmatpush1.bf16.msra.mxu0 %v1305
      %1330 = vmatprep.subr.bf16.mxu0 0
      %1331 = vmatpush1.bf16.msra.mxu0 0
      %1332 = vmatprep.subr.bf16.mxu0 0
      %1333 = vmatpush1.bf16.msra.mxu0 0
      %1334 = vmatprep.subr.bf16.mxu0 0
      %1335 = vmatpush1.bf16.msra.mxu0 0
      %1336 = vmatprep.subr.bf16.mxu0 0
      %1337 = vmatpush1.bf16.msra.mxu0 0
      %1338 = vmatprep.subr.bf16.mxu0 0
      %1339 = vmatpush1.bf16.msra.mxu0 0
      %1340 = vmatprep.subr.bf16.mxu0 0
      %1341 = vmatpush1.bf16.msra.mxu0 0
      %1342 = vmatprep.subr.bf16.mxu0 0
      %1343 = vmatpush1.bf16.msra.mxu0 0
      %1344 = vmatprep.subr.bf16.mxu0 0
      %1345 = vmatpush1.bf16.msra.mxu0 0
      %1346 = vmatprep.mubr.bf16.mxu0 0
      %1347 = vmatmul.mubr.bf16.gmra.mrb[0].mxu0 %v1265
      %v1348 = vpop.f32.mrb[0].mxu0
      %v1349 = vadd.f32 0.0, %v1348
      %v1350 = vpop.f32.mrb[0].mxu0
      %v1351 = vpop.f32.mrb[0].mxu0
      %v1352 = vpop.f32.mrb[0].mxu0
      %1353 = vdwg.mxu0
      %v1354 = vadd.f32 %v1244, %v1349
      %v1355 = vxor.u32 %v1354, 2147483648
      %v1356 = vmul.f32 %v1355, 1.442695
      %v1357 = vpow.pop %v1356
      %v1358 = vadd.f32 %v1357, 1.0
      %v1359 = vrcp.pop %v1358
      %v1360 = vmul.f32 1.0, %v1359
      %v1361 = vmul.f32 %v1360, %v1133
      %v1362 = vadd.f32 %v410, %v1361
      %v1363 = vld [vmem:[%s10] sm:$0x1]
      %v1364 = vld [vmem:[%s11] sm:$0x1]
      %1365 = vadd.xlane.f32.xlu0 %v1362
      %v1366 = vpop.xlane.xlu0 %1365
      %v1367 = vrcp.pop 128.0
      %v1368 = vmul.f32 %v1366, %v1367
      %v1369 = vsub.f32 %v1362, %v1368
      %v1370 = vmul.f32 %v1369, %v1369
      %1371 = vadd.xlane.f32.xlu0 %v1370
      %v1372 = vpop.xlane.xlu0 %1371
      %v1373 = vmul.f32 %v1372, %v1367
      %v1374 = vadd.f32 %v1373, 1e-05
      %v1375 = vrsqrt.pop %v1374
      %v1376 = vmul.f32 %v1369, %v1375
      %v1378 = vlaneseq
      %v1379 = vshrl.u32 %v1378, 7
      %v1380 = vsub.s32 0, %v1379
      %v1381 = vrot.slane %v1363, %v1380
      %v1383 = vmul.f32 %v1376, %v1381
      %v1385 = vlaneseq
      %v1386 = vshrl.u32 %v1385, 7
      %v1387 = vsub.s32 0, %v1386
      %v1388 = vrot.slane %v1364, %v1387
      %v1390 = vadd.f32 %v1383, %v1388
      %1391 = vst [vmem:[%s408] sm:$0xff] %v1390
      %p1392 = scmp.lt.s32.totalorder %s23, 1
      %s1393 = scalar_select %p1392, %s23, 1
      %s1394 = smul.addr %s1393, 8
      %s1395 = scalar_lea.vmem %s12, %s1394
      // Predicated region
      $region69: #{resonance_forward.6} parent=67 // pred_check
        %p1396 = pneg %p298
      $region70: #{resonance_forward.6} parent=67 // pred_check_branch
        %1398 = sbr.rel (%p1396) target = $region72
      $region71: #{resonance_forward.6} parent=67 // pred_region
        _
      $region72: #{resonance_forward.6} parent=67 // pred_fallthru
        _
    $region68: #{resonance_forward.6} parent=5 // pred_fallthru
      _
    %p1399 = scmp.le.s32.totalorder 2, %s18
    // Predicated region
    $region73: #{resonance_forward.6} parent=5 // pred_check
      %p1400 = pneg %p1399
    $region74: #{resonance_forward.6} parent=5 // pred_check_branch
      %1402 = sbr.rel (%p1400) target = $region76
    $region75: #{resonance_forward.6} parent=5 // pred_region
      %s1403 = ssub.s32 %s18, 2
      // Predicated region
      $region77: #{resonance_forward.6} parent=75 // pred_check
        %p1404 = pneg %p304
      $region78: #{resonance_forward.6} parent=75 // pred_check_branch
        %1406 = sbr.rel (%p1404) target = $region80
      $region79: #{resonance_forward.6} parent=75 // pred_region
        %p1407 = scmp.lt.s32.totalorder %s24, 1
        %s1408 = scalar_select %p1407, %s24, 1
        %s1409 = smul.addr %s1408, 8
        %s1410 = scalar_lea.vmem %s12, %s1409
      $region80: #{resonance_forward.6} parent=75 // pred_fallthru
        _
    $region76: #{resonance_forward.6} parent=5 // pred_fallthru
      _
  $region6: #{resonance_forward.6} parent=0 // loop_footer
    %s22 = sadd.s32 1, %s18
  $region7: #{resonance_forward.6} parent=0 // loop_footer_branch
    %17 = sbr.rel target = $region3
  $region8: #{resonance_forward.6} parent=0 // loop_exit
    _

// kernel: resonance_forward.5
$region0: #{resonance_forward.5}
  #allocation0 [shape = 'u32[]', space=smem, size = 0x4, offset = 0x4, fixed_abs, tag = 'smem constant byte address 0x4 - core index']
  #allocation1 [shape = 'u32[144,128]{1,0:T(1,128)}', space=vmem, size = 0x12000, scoped, tag = 'internal scratch']
  %s0 = inlined_call_operand.vmem [shape: f32[2,8,128], index: 0, kind: input, shape index: {}]
  %s1 = inlined_call_operand.vmem [shape: bf16[128,384], index: 1, kind: input, shape index: {}]
  %s2 = inlined_call_operand.vmem [shape: f32[1,384], index: 2, kind: input, shape index: {}]
  %s3 = inlined_call_operand.vmem [shape: bf16[128,128], index: 3, kind: input, shape index: {}]
  %s4 = inlined_call_operand.vmem [shape: f32[1,128], index: 4, kind: input, shape index: {}]
  %s5 = inlined_call_operand.vmem [shape: f32[1,128], index: 5, kind: input, shape index: {}]
  %s6 = inlined_call_operand.vmem [shape: f32[1,128], index: 6, kind: input, shape index: {}]
  %s7 = inlined_call_operand.vmem [shape: f32[2,8,128], index: 7, kind: output, shape index: {}]
  %s8 = sld [smem:[#allocation0]]
  $region61: #{resonance_forward.5} parent=0
    _
  %s10 = ssub.s32 1, %s8
  %s11 = scalar_select 0, %s10, %s8
  loop: start=0, step=1, limit=4
  $region2: #{resonance_forward.5} parent=0 // loop_pre_header
    _
  $region3: #{resonance_forward.5} parent=0 // loop_header
    %s13 = sphi 0, %s17
    %p14 = scmp.ge.s32.totalorder %s13, 4
    %s23 = sphi 0, %s25
    %s26 = sphi 0, %s23
    %s27 = sphi 0, %s26
    %s43 = sphi 0, %s27
    %s47 = sphi 0, %s47
    %s49 = sphi 0, %s47
    %s50 = sphi 0, %s49
    %s64 = sphi 0, %s50
    %s68 = sphi 0, %s68
    %s70 = sphi 0, %s68
    %s71 = sphi 0, %s70
    %s85 = sphi 0, %s71
    %s89 = sphi 0, %s89
    %s91 = sphi 0, %s89
    %s92 = sphi 0, %s91
    %s106 = sphi 0, %s92
    %s110 = sphi 0, %s110
    %s112 = sphi 0, %s110
    %s113 = sphi 0, %s112
    %s127 = sphi 0, %s113
    %s131 = sphi 0, %s131
    %s133 = sphi 0, %s131
    %s134 = sphi 0, %s133
    %s148 = sphi 0, %s134
    %s152 = sphi 0, %s152
    %s154 = sphi 0, %s152
    %s155 = sphi 0, %s154
    %s169 = sphi 0, %s155
    %s175 = sphi 0, %s177
    %s178 = sphi 0, %s175
    %s179 = sphi 0, %s178
    %s195 = sphi 0, %s179
  $region4: #{resonance_forward.5} parent=0 // loop_header_branch
    %16 = sbr.rel (%p14) target = $region8
  $region5: #{resonance_forward.5} parent=0 // loop_body
    %s18 = ssub.s32 %s13, 1
    %s19 = ssub.s32 %s13, 2
    %s20 = sadd.s32 %s13, 1
    %s21 = ssub.s32 %s13, %s20
    %p22 = scmp.eq.s32.totalorder %s21, 0
    %s24 = sadd.s32 %s23, 1
    %s25 = scalar_select %p22, %s23, %s24
    %p28 = pneg %p22
    %p29 = scmp.eq.s32.totalorder %s13, 1
    %p30 = por %p28, %p29
    %p31 = scmp.ne.s32.totalorder %s23, %s26
    %p32 = scmp.eq.s32.totalorder %s13, 0
    %p33 = por %p31, %p32
    %p34 = scmp.ne.s32.totalorder %s23, %s26
    %p35 = scmp.eq.s32.totalorder %s18, 1
    %p36 = por %p34, %p35
    %p37 = scmp.ne.s32.totalorder %s26, %s27
    %p38 = scmp.eq.s32.totalorder %s18, 0
    %p39 = por %p37, %p38
    %p40 = scmp.ne.s32.totalorder %s26, %s27
    %p41 = scmp.eq.s32.totalorder %s19, 1
    %p42 = por %p40, %p41
    %p44 = scmp.ne.s32.totalorder %s27, %s43
    %p45 = scmp.eq.s32.totalorder %s19, 0
    %p46 = por %p44, %p45
    %s48 = sadd.s32 %s47, 1
    %p51 = scmp.eq.s32.totalorder %s13, 1
    %p52 = scmp.ne.s32.totalorder %s47, %s49
    %p53 = scmp.eq.s32.totalorder %s13, 0
    %p54 = por %p52, %p53
    %p55 = scmp.ne.s32.totalorder %s47, %s49
    %p56 = scmp.eq.s32.totalorder %s18, 1
    %p57 = por %p55, %p56
    %p58 = scmp.ne.s32.totalorder %s49, %s50
    %p59 = scmp.eq.s32.totalorder %s18, 0
    %p60 = por %p58, %p59
    %p61 = scmp.ne.s32.totalorder %s49, %s50
    %p62 = scmp.eq.s32.totalorder %s19, 1
    %p63 = por %p61, %p62
    %p65 = scmp.ne.s32.totalorder %s50, %s64
    %p66 = scmp.eq.s32.totalorder %s19, 0
    %p67 = por %p65, %p66
    %s69 = sadd.s32 %s68, 1
    %p72 = scmp.eq.s32.totalorder %s13, 1
    %p73 = scmp.ne.s32.totalorder %s68, %s70
    %p74 = scmp.eq.s32.totalorder %s13, 0
    %p75 = por %p73, %p74
    %p76 = scmp.ne.s32.totalorder %s68, %s70
    %p77 = scmp.eq.s32.totalorder %s18, 1
    %p78 = por %p76, %p77
    %p79 = scmp.ne.s32.totalorder %s70, %s71
    %p80 = scmp.eq.s32.totalorder %s18, 0
    %p81 = por %p79, %p80
    %p82 = scmp.ne.s32.totalorder %s70, %s71
    %p83 = scmp.eq.s32.totalorder %s19, 1
    %p84 = por %p82, %p83
    %p86 = scmp.ne.s32.totalorder %s71, %s85
    %p87 = scmp.eq.s32.totalorder %s19, 0
    %p88 = por %p86, %p87
    %s90 = sadd.s32 %s89, 1
    %p93 = scmp.eq.s32.totalorder %s13, 1
    %p94 = scmp.ne.s32.totalorder %s89, %s91
    %p95 = scmp.eq.s32.totalorder %s13, 0
    %p96 = por %p94, %p95
    %p97 = scmp.ne.s32.totalorder %s89, %s91
    %p98 = scmp.eq.s32.totalorder %s18, 1
    %p99 = por %p97, %p98
    %p100 = scmp.ne.s32.totalorder %s91, %s92
    %p101 = scmp.eq.s32.totalorder %s18, 0
    %p102 = por %p100, %p101
    %p103 = scmp.ne.s32.totalorder %s91, %s92
    %p104 = scmp.eq.s32.totalorder %s19, 1
    %p105 = por %p103, %p104
    %p107 = scmp.ne.s32.totalorder %s92, %s106
    %p108 = scmp.eq.s32.totalorder %s19, 0
    %p109 = por %p107, %p108
    %s111 = sadd.s32 %s110, 1
    %p114 = scmp.eq.s32.totalorder %s13, 1
    %p115 = scmp.ne.s32.totalorder %s110, %s112
    %p116 = scmp.eq.s32.totalorder %s13, 0
    %p117 = por %p115, %p116
    %p118 = scmp.ne.s32.totalorder %s110, %s112
    %p119 = scmp.eq.s32.totalorder %s18, 1
    %p120 = por %p118, %p119
    %p121 = scmp.ne.s32.totalorder %s112, %s113
    %p122 = scmp.eq.s32.totalorder %s18, 0
    %p123 = por %p121, %p122
    %p124 = scmp.ne.s32.totalorder %s112, %s113
    %p125 = scmp.eq.s32.totalorder %s19, 1
    %p126 = por %p124, %p125
    %p128 = scmp.ne.s32.totalorder %s113, %s127
    %p129 = scmp.eq.s32.totalorder %s19, 0
    %p130 = por %p128, %p129
    %s132 = sadd.s32 %s131, 1
    %p135 = scmp.eq.s32.totalorder %s13, 1
    %p136 = scmp.ne.s32.totalorder %s131, %s133
    %p137 = scmp.eq.s32.totalorder %s13, 0
    %p138 = por %p136, %p137
    %p139 = scmp.ne.s32.totalorder %s131, %s133
    %p140 = scmp.eq.s32.totalorder %s18, 1
    %p141 = por %p139, %p140
    %p142 = scmp.ne.s32.totalorder %s133, %s134
    %p143 = scmp.eq.s32.totalorder %s18, 0
    %p144 = por %p142, %p143
    %p145 = scmp.ne.s32.totalorder %s133, %s134
    %p146 = scmp.eq.s32.totalorder %s19, 1
    %p147 = por %p145, %p146
    %p149 = scmp.ne.s32.totalorder %s134, %s148
    %p150 = scmp.eq.s32.totalorder %s19, 0
    %p151 = por %p149, %p150
    %s153 = sadd.s32 %s152, 1
    %p156 = scmp.eq.s32.totalorder %s13, 1
    %p157 = scmp.ne.s32.totalorder %s152, %s154
    %p158 = scmp.eq.s32.totalorder %s13, 0
    %p159 = por %p157, %p158
    %p160 = scmp.ne.s32.totalorder %s152, %s154
    %p161 = scmp.eq.s32.totalorder %s18, 1
    %p162 = por %p160, %p161
    %p163 = scmp.ne.s32.totalorder %s154, %s155
    %p164 = scmp.eq.s32.totalorder %s18, 0
    %p165 = por %p163, %p164
    %p166 = scmp.ne.s32.totalorder %s154, %s155
    %p167 = scmp.eq.s32.totalorder %s19, 1
    %p168 = por %p166, %p167
    %p170 = scmp.ne.s32.totalorder %s155, %s169
    %p171 = scmp.eq.s32.totalorder %s19, 0
    %p172 = por %p170, %p171
    %s173 = ssub.s32 %s13, %s20
    %p174 = scmp.eq.s32.totalorder %s173, 0
    %s176 = sadd.s32 %s175, 1
    %s177 = scalar_select %p174, %s175, %s176
    %p180 = pneg %p174
    %p181 = scmp.eq.s32.totalorder %s13, 1
    %p182 = por %p180, %p181
    %p183 = scmp.ne.s32.totalorder %s175, %s178
    %p184 = scmp.eq.s32.totalorder %s13, 0
    %p185 = por %p183, %p184
    %p186 = scmp.ne.s32.totalorder %s175, %s178
    %p187 = scmp.eq.s32.totalorder %s18, 1
    %p188 = por %p186, %p187
    %p189 = scmp.ne.s32.totalorder %s178, %s179
    %p190 = scmp.eq.s32.totalorder %s18, 0
    %p191 = por %p189, %p190
    %p192 = scmp.ne.s32.totalorder %s178, %s179
    %p193 = scmp.eq.s32.totalorder %s19, 1
    %p194 = por %p192, %p193
    %p196 = scmp.ne.s32.totalorder %s179, %s195
    %p197 = scmp.eq.s32.totalorder %s19, 0
    %p198 = por %p196, %p197
    %p199 = scmp.le.s32.totalorder 1, %s13
    %p200 = scmp.lt.s32.totalorder %s13, 3
    %p201 = pnand %p199, %p200
    %p202 = pneg %p201
    // Predicated region
    $region9: #{resonance_forward.5} parent=5 // pred_check
      _
    $region10: #{resonance_forward.5} parent=5 // pred_check_branch
      %204 = sbr.rel (%p201) target = $region12
    $region11: #{resonance_forward.5} parent=5 // pred_region
      %s205 = ssub.s32 %s13, 1
      // Predicated region
      $region13: #{resonance_forward.5} parent=11 // pred_check
        %p206 = pneg %p60
      $region14: #{resonance_forward.5} parent=11 // pred_check_branch
        %208 = sbr.rel (%p206) target = $region16
      $region15: #{resonance_forward.5} parent=11 // pred_region
        _
      $region16: #{resonance_forward.5} parent=11 // pred_fallthru
        _
      // Predicated region
      $region17: #{resonance_forward.5} parent=11 // pred_check
        %p209 = pneg %p81
      $region18: #{resonance_forward.5} parent=11 // pred_check_branch
        %211 = sbr.rel (%p209) target = $region20
      $region19: #{resonance_forward.5} parent=11 // pred_region
        _
      $region20: #{resonance_forward.5} parent=11 // pred_fallthru
        _
      // Predicated region
      $region21: #{resonance_forward.5} parent=11 // pred_check
        %p212 = pneg %p102
      $region22: #{resonance_forward.5} parent=11 // pred_check_branch
        %214 = sbr.rel (%p212) target = $region24
      $region23: #{resonance_forward.5} parent=11 // pred_region
        _
      $region24: #{resonance_forward.5} parent=11 // pred_fallthru
        _
      // Predicated region
      $region25: #{resonance_forward.5} parent=11 // pred_check
        %p215 = pneg %p123
      $region26: #{resonance_forward.5} parent=11 // pred_check_branch
        %217 = sbr.rel (%p215) target = $region28
      $region27: #{resonance_forward.5} parent=11 // pred_region
        _
      $region28: #{resonance_forward.5} parent=11 // pred_fallthru
        _
      // Predicated region
      $region29: #{resonance_forward.5} parent=11 // pred_check
        %p218 = pneg %p144
      $region30: #{resonance_forward.5} parent=11 // pred_check_branch
        %220 = sbr.rel (%p218) target = $region32
      $region31: #{resonance_forward.5} parent=11 // pred_region
        _
      $region32: #{resonance_forward.5} parent=11 // pred_fallthru
        _
      // Predicated region
      $region33: #{resonance_forward.5} parent=11 // pred_check
        %p221 = pneg %p165
      $region34: #{resonance_forward.5} parent=11 // pred_check_branch
        %223 = sbr.rel (%p221) target = $region36
      $region35: #{resonance_forward.5} parent=11 // pred_region
        _
      $region36: #{resonance_forward.5} parent=11 // pred_fallthru
        _
    $region12: #{resonance_forward.5} parent=5 // pred_fallthru
      _
    %p224 = scmp.lt.s32.totalorder %s13, 2
    // Predicated region
    $region37: #{resonance_forward.5} parent=5 // pred_check
      %p225 = pneg %p224
    $region38: #{resonance_forward.5} parent=5 // pred_check_branch
      %227 = sbr.rel (%p225) target = $region40
    $region39: #{resonance_forward.5} parent=5 // pred_region
      // Predicated region
      $region41: #{resonance_forward.5} parent=39 // pred_check
        %p228 = pneg %p33
      $region42: #{resonance_forward.5} parent=39 // pred_check_branch
        %230 = sbr.rel (%p228) target = $region44
      $region43: #{resonance_forward.5} parent=39 // pred_region
        %p231 = scmp.lt.s32.totalorder %s13, 1
        %s232 = scalar_select %p231, %s13, 1
        %s233 = smul.addr %s232, 8
        %s234 = scalar_lea.vmem %s0, %s233
      $region44: #{resonance_forward.5} parent=39 // pred_fallthru
        _
    $region40: #{resonance_forward.5} parent=5 // pred_fallthru
      _
    %p235 = scmp.le.s32.totalorder 1, %s13
    %p236 = scmp.lt.s32.totalorder %s13, 3
    %p237 = pnand %p235, %p236
    %p238 = pneg %p237
    // Predicated region
    $region45: #{resonance_forward.5} parent=5 // pred_check
      _
    $region46: #{resonance_forward.5} parent=5 // pred_check_branch
      %240 = sbr.rel (%p237) target = $region48
    $region47: #{resonance_forward.5} parent=5 // pred_region
      %s241 = ssub.s32 %s13, 1
      %p242 = scmp.lt.s32.totalorder %s18, 1
      %s243 = scalar_select %p242, %s18, 1
      %s244 = smul.addr %s243, 8
      %s245 = scalar_lea.vmem %s0, %s244
      %p246 = pneg %p39
      %p247 = pneg %p36
      %p248 = pneg %p60
      %p249 = pneg %p57
      %p250 = pneg %p81
      %p251 = pneg %p78
      %p252 = pneg %p102
      %p253 = pneg %p99
      %p254 = pneg %p123
      %p255 = pneg %p120
      %p256 = pneg %p144
      %p257 = pneg %p141
      %p258 = pneg %p165
      %p259 = pneg %p162
      %p260 = pneg %p191
      %p261 = pneg %p188
      %p262 = scmp.lt.s32.totalorder %s18, 1
      %s263 = scalar_select %p262, %s18, 1
      %s264 = smul.addr %s263, 8
      %s265 = scalar_lea.vmem %s7, %s264
      %p266 = scmp.lt.s32.totalorder %s18, 1
      %s267 = scalar_select %p266, %s18, 1
      %s268 = smul.addr %s267, 8
      %s269 = scalar_lea.vmem %s0, %s268
      %p270 = scmp.lt.s32.totalorder %s18, 1
      %s271 = scalar_select %p270, %s18, 1
      %s272 = smul.addr %s271, 8
      %s273 = scalar_lea.vmem %s7, %s272
      %v275 = vld [vmem:[%s269] sm:$0xff]
      %v276 = vld [vmem:[%s1] sm:$0xff]
      %v277 = vld [vmem:[%s1 + $0x8] sm:$0xf]
      %v278 = vld [vmem:[%s1 + $0xc] sm:$0xff]
      %v279 = vld [vmem:[%s1 + $0x14] sm:$0xf]
      %v280 = vld [vmem:[%s1 + $0x18] sm:$0xff]
      %v281 = vld [vmem:[%s1 + $0x20] sm:$0xf]
      %v282 = vld [vmem:[%s1 + $0x24] sm:$0xff]
      %v283 = vld [vmem:[%s1 + $0x2c] sm:$0xf]
      %v284 = vld [vmem:[%s1 + $0x30] sm:$0xff]
      %v285 = vld [vmem:[%s1 + $0x38] sm:$0xf]
      %v286 = vld [vmem:[%s1 + $0x3c] sm:$0xff]
      %v287 = vld [vmem:[%s1 + $0x44] sm:$0xf]
      %v288 = vld [vmem:[%s1 + $0x48] sm:$0xff]
      %v289 = vld [vmem:[%s1 + $0x50] sm:$0xf]
      %v290 = vld [vmem:[%s1 + $0x54] sm:$0xff]
      %v291 = vld [vmem:[%s1 + $0x5c] sm:$0xf]
      %v292 = vld [vmem:[%s1 + $0x60] sm:$0xff]
      %v293 = vld [vmem:[%s1 + $0x68] sm:$0xf]
      %v294 = vld [vmem:[%s1 + $0x6c] sm:$0xff]
      %v295 = vld [vmem:[%s1 + $0x74] sm:$0xf]
      %v296 = vld [vmem:[%s1 + $0x78] sm:$0xff]
      %v297 = vld [vmem:[%s1 + $0x80] sm:$0xf]
      %v298 = vld [vmem:[%s1 + $0x84] sm:$0xff]
      %v299 = vld [vmem:[%s1 + $0x8c] sm:$0xf]
      %v300 = vld [vmem:[%s1 + $0x90] sm:$0xff]
      %v301 = vld [vmem:[%s1 + $0x98] sm:$0xf]
      %v302 = vld [vmem:[%s1 + $0x9c] sm:$0xff]
      %v303 = vld [vmem:[%s1 + $0xa4] sm:$0xf]
      %v304 = vld [vmem:[%s1 + $0xa8] sm:$0xff]
      %v305 = vld [vmem:[%s1 + $0xb0] sm:$0xf]
      %v306 = vld [vmem:[%s1 + $0xb4] sm:$0xff]
      %v307 = vld [vmem:[%s1 + $0xbc] sm:$0xf]
      %v308 = vld [vmem:[%s2] sm:$0x7]
      %v309 = vpack.c.bf16 %v275, %v275
      %v311 = vlaneseq
      %v312 = vshrl.u32 %v311, 7
      %v313 = vsub.s32 0, %v312
      %v314 = vrot.slane %v308, %v313
      %v315 = vlaneseq
      %v316 = vshrl.u32 %v315, 7
      %v317 = vsub.s32 1, %v316
      %v318 = vrot.slane %v308, %v317
      %v319 = vlaneseq
      %v320 = vshrl.u32 %v319, 7
      %v321 = vsub.s32 2, %v320
      %v322 = vrot.slane %v308, %v321
      %v358 = vunpack.c.l.b16 %v276
      %v359 = vunpack.c.h.b16 %v276
      %v360 = vunpack.c.l.b16 %v277
      %v361 = vunpack.c.l.b16 %v278
      %v362 = vunpack.c.h.b16 %v278
      %v363 = vunpack.c.l.b16 %v279
      %v364 = vunpack.c.l.b16 %v280
      %v365 = vunpack.c.h.b16 %v280
      %v366 = vunpack.c.l.b16 %v281
      %v367 = vunpack.c.l.b16 %v282
      %v368 = vunpack.c.h.b16 %v282
      %v369 = vunpack.c.l.b16 %v283
      %v370 = vunpack.c.l.b16 %v284
      %v371 = vunpack.c.h.b16 %v284
      %v372 = vunpack.c.l.b16 %v285
      %v373 = vunpack.c.l.b16 %v286
      %v374 = vunpack.c.h.b16 %v286
      %v375 = vunpack.c.l.b16 %v287
      %v376 = vunpack.c.l.b16 %v288
      %v377 = vunpack.c.h.b16 %v288
      %v378 = vunpack.c.l.b16 %v289
      %v379 = vunpack.c.l.b16 %v290
      %v380 = vunpack.c.h.b16 %v290
      %v381 = vunpack.c.l.b16 %v291
      %v382 = vunpack.c.l.b16 %v292
      %v383 = vunpack.c.h.b16 %v292
      %v384 = vunpack.c.l.b16 %v293
      %v385 = vunpack.c.l.b16 %v294
      %v386 = vunpack.c.h.b16 %v294
      %v387 = vunpack.c.l.b16 %v295
      %v388 = vunpack.c.l.b16 %v296
      %v389 = vunpack.c.h.b16 %v296
      %v390 = vunpack.c.l.b16 %v297
      %v391 = vunpack.c.l.b16 %v298
      %v392 = vunpack.c.h.b16 %v298
      %v393 = vunpack.c.l.b16 %v299
      %v394 = vunpack.c.l.b16 %v300
      %v395 = vunpack.c.h.b16 %v300
      %v396 = vunpack.c.l.b16 %v301
      %v397 = vunpack.c.l.b16 %v302
      %v398 = vunpack.c.h.b16 %v302
      %v399 = vunpack.c.l.b16 %v303
      %v400 = vunpack.c.l.b16 %v304
      %v401 = vunpack.c.h.b16 %v304
      %v402 = vunpack.c.l.b16 %v305
      %v403 = vunpack.c.l.b16 %v306
      %v404 = vunpack.c.h.b16 %v306
      %v405 = vunpack.c.l.b16 %v307
      %v406 = vpack.c.b16 %v361, %v358
      %v407 = vpack.c.b16 %v362, %v359
      %v408 = vpack.c.b16 %v363, %v360
      %v409 = vpack.c.b16 %v367, %v364
      %v410 = vpack.c.b16 %v368, %v365
      %v411 = vpack.c.b16 %v369, %v366
      %v412 = vpack.c.b16 %v373, %v370
      %v413 = vpack.c.b16 %v374, %v371
      %v414 = vpack.c.b16 %v375, %v372
      %v415 = vpack.c.b16 %v379, %v376
      %v416 = vpack.c.b16 %v380, %v377
      %v417 = vpack.c.b16 %v381, %v378
      %v418 = vpack.c.b16 %v385, %v382
      %v419 = vpack.c.b16 %v386, %v383
      %v420 = vpack.c.b16 %v387, %v384
      %v421 = vpack.c.b16 %v391, %v388
      %v422 = vpack.c.b16 %v392, %v389
      %v423 = vpack.c.b16 %v393, %v390
      %v424 = vpack.c.b16 %v397, %v394
      %v425 = vpack.c.b16 %v398, %v395
      %v426 = vpack.c.b16 %v399, %v396
      %v427 = vpack.c.b16 %v403, %v400
      %v428 = vpack.c.b16 %v404, %v401
      %v429 = vpack.c.b16 %v405, %v402
      %454 = vmatprep.subr.bf16.mxu0 %v407
      %455 = vmatpush1.bf16.msra.mxu0 %v406
      %456 = vmatprep.subr.bf16.mxu0 %v410
      %457 = vmatpush1.bf16.msra.mxu0 %v409
      %458 = vmatprep.subr.bf16.mxu0 %v413
      %459 = vmatpush1.bf16.msra.mxu0 %v412
      %460 = vmatprep.subr.bf16.mxu0 %v416
      %461 = vmatpush1.bf16.msra.mxu0 %v415
      %462 = vmatprep.subr.bf16.mxu0 %v419
      %463 = vmatpush1.bf16.msra.mxu0 %v418
      %464 = vmatprep.subr.bf16.mxu0 %v422
      %465 = vmatpush1.bf16.msra.mxu0 %v421
      %466 = vmatprep.subr.bf16.mxu0 %v425
      %467 = vmatpush1.bf16.msra.mxu0 %v424
      %468 = vmatprep.subr.bf16.mxu0 %v428
      %469 = vmatpush1.bf16.msra.mxu0 %v427
      %470 = vmatprep.subr.bf16.mxu0 0
      %471 = vmatpush1.bf16.msra.mxu0 0
      %472 = vmatprep.subr.bf16.mxu0 0
      %473 = vmatpush1.bf16.msra.mxu0 0
      %474 = vmatprep.subr.bf16.mxu0 0
      %475 = vmatpush1.bf16.msra.mxu0 0
      %476 = vmatprep.subr.bf16.mxu0 0
      %477 = vmatpush1.bf16.msra.mxu0 0
      %478 = vmatprep.subr.bf16.mxu0 0
      %479 = vmatpush1.bf16.msra.mxu0 0
      %480 = vmatprep.subr.bf16.mxu0 0
      %481 = vmatpush1.bf16.msra.mxu0 0
      %482 = vmatprep.subr.bf16.mxu0 0
      %483 = vmatpush1.bf16.msra.mxu0 0
      %484 = vmatprep.subr.bf16.mxu0 0
      %485 = vmatpush1.bf16.msra.mxu0 0
      %486 = vmatprep.mubr.bf16.mxu0 0
      %487 = vmatmul.mubr.bf16.gmra.mrb[0].mxu0 %v309
      %v488 = vpop.f32.mrb[0].mxu0
      %v489 = vadd.f32 %v314, %v488
      %v490 = vpop.f32.mrb[0].mxu0
      %v491 = vadd.f32 %v318, %v490
      %v492 = vpop.f32.mrb[0].mxu0
      %v493 = vpop.f32.mrb[0].mxu0
      %494 = vdwg.mxu0
      %495 = vmatprep.subr.bf16.mxu0 0
      %496 = vmatpush1.bf16.msra.mxu0 %v408
      %497 = vmatprep.subr.bf16.mxu0 0
      %498 = vmatpush1.bf16.msra.mxu0 %v411
      %499 = vmatprep.subr.bf16.mxu0 0
      %500 = vmatpush1.bf16.msra.mxu0 %v414
      %501 = vmatprep.subr.bf16.mxu0 0
      %502 = vmatpush1.bf16.msra.mxu0 %v417
      %503 = vmatprep.subr.bf16.mxu0 0
      %504 = vmatpush1.bf16.msra.mxu0 %v420
      %505 = vmatprep.subr.bf16.mxu0 0
      %506 = vmatpush1.bf16.msra.mxu0 %v423
      %507 = vmatprep.subr.bf16.mxu0 0
      %508 = vmatpush1.bf16.msra.mxu0 %v426
      %509 = vmatprep.subr.bf16.mxu0 0
      %510 = vmatpush1.bf16.msra.mxu0 %v429
      %511 = vmatprep.subr.bf16.mxu0 0
      %512 = vmatpush1.bf16.msra.mxu0 0
      %513 = vmatprep.subr.bf16.mxu0 0
      %514 = vmatpush1.bf16.msra.mxu0 0
      %515 = vmatprep.subr.bf16.mxu0 0
      %516 = vmatpush1.bf16.msra.mxu0 0
      %517 = vmatprep.subr.bf16.mxu0 0
      %518 = vmatpush1.bf16.msra.mxu0 0
      %519 = vmatprep.subr.bf16.mxu0 0
      %520 = vmatpush1.bf16.msra.mxu0 0
      %521 = vmatprep.subr.bf16.mxu0 0
      %522 = vmatpush1.bf16.msra.mxu0 0
      %523 = vmatprep.subr.bf16.mxu0 0
      %524 = vmatpush1.bf16.msra.mxu0 0
      %525 = vmatprep.subr.bf16.mxu0 0
      %526 = vmatpush1.bf16.msra.mxu0 0
      %527 = vmatprep.mubr.bf16.mxu0 0
      %528 = vmatmul.mubr.bf16.gmra.mrb[0].mxu0 %v309
      %v529 = vpop.f32.mrb[0].mxu0
      %v530 = vadd.f32 %v322, %v529
      %v531 = vpop.f32.mrb[0].mxu0
      %v532 = vpop.f32.mrb[0].mxu0
      %v533 = vpop.f32.mrb[0].mxu0
      %534 = vdwg.mxu0
      %v535 = vmul.f32 %v489, 0.17677669
      %v536 = vpack.c.bf16 %v535, %v535
      %v537 = vpack.c.bf16 %v491, %v491
      %v538 = vpack.c.bf16 %v530, %v530
      %vm539 = vcmask 261120
      %v541 = vsel %vm539, %v536, 0
      %v544 = vsel %vm539, %v537, 0
      %546 = vmatprep.subr.bf16.mxu0 0
      %547 = vmatpush1.bf16.xpose.msra.mxu0 %v544
      %548 = vmatprep.subr.bf16.mxu0 0
      %549 = vmatpush1.bf16.xpose.msra.mxu0 0
      %550 = vmatprep.subr.bf16.mxu0 0
      %551 = vmatpush1.bf16.xpose.msra.mxu0 0
      %552 = vmatprep.subr.bf16.mxu0 0
      %553 = vmatpush1.bf16.xpose.msra.mxu0 0
      %554 = vmatprep.subr.bf16.mxu0 0
      %555 = vmatpush1.bf16.xpose.msra.mxu0 0
      %556 = vmatprep.subr.bf16.mxu0 0
      %557 = vmatpush1.bf16.xpose.msra.mxu0 0
      %558 = vmatprep.subr.bf16.mxu0 0
      %559 = vmatpush1.bf16.xpose.msra.mxu0 0
      %560 = vmatprep.subr.bf16.mxu0 0
      %561 = vmatpush1.bf16.xpose.msra.mxu0 0
      %562 = vmatprep.subr.bf16.mxu0 0
      %563 = vmatpush1.bf16.xpose.msra.mxu0 0
      %564 = vmatprep.subr.bf16.mxu0 0
      %565 = vmatpush1.bf16.xpose.msra.mxu0 0
      %566 = vmatprep.subr.bf16.mxu0 0
      %567 = vmatpush1.bf16.xpose.msra.mxu0 0
      %568 = vmatprep.subr.bf16.mxu0 0
      %569 = vmatpush1.bf16.xpose.msra.mxu0 0
      %570 = vmatprep.subr.bf16.mxu0 0
      %571 = vmatpush1.bf16.xpose.msra.mxu0 0
      %572 = vmatprep.subr.bf16.mxu0 0
      %573 = vmatpush1.bf16.xpose.msra.mxu0 0
      %574 = vmatprep.subr.bf16.mxu0 0
      %575 = vmatpush1.bf16.xpose.msra.mxu0 0
      %576 = vmatprep.subr.bf16.mxu0 0
      %577 = vmatpush1.bf16.xpose.msra.mxu0 0
      %578 = vmatprep.mubr.bf16.mxu0 0
      %579 = vmatmul.mubr.bf16.gmra.mrb[0].mxu0 %v541
      %v580 = vpop.f32.mrb[0].mxu0
      %v581 = vadd.f32 0.0, %v580
      %v582 = vpop.f32.mrb[0].mxu0
      %v583 = vpop.f32.mrb[0].mxu0
      %v584 = vpop.f32.mrb[0].mxu0
      %585 = vdwg.mxu0
      %vm586 = vcmask 64512
      %v587 = vsel %vm586, %v581, -inf
      %588 = vmax.xlane.f32.xlu0 %v587
      %v589 = vpop.xlane.xlu0 %588
      %v590 = vsub.f32 %v581, %v589
      %v591 = vmul.f32 %v590, 1.442695
      %v592 = vpow.pop %v591
      %v593 = vsel %vm586, %v592, 0.0
      %594 = vadd.xlane.f32.xlu0 %v593
      %v595 = vpop.xlane.xlu0 %594
      %v596 = vrcp.pop %v595
      %v597 = vmul.f32 %v592, %v596
      %v598 = vpack.c.bf16 %v597, %v597
      %v600 = vsel %vm586, %v598, 0
      %vm602 = vcmask 1043456
      %v604 = vsel %vm602, %v538, 0
      %606 = vmatprep.subr.bf16.mxu0 0
      %607 = vmatpush1.bf16.msra.mxu0 %v604
      %608 = vmatprep.subr.bf16.mxu0 0
      %609 = vmatpush1.bf16.msra.mxu0 0
      %610 = vmatprep.subr.bf16.mxu0 0
      %611 = vmatpush1.bf16.msra.mxu0 0
      %612 = vmatprep.subr.bf16.mxu0 0
      %613 = vmatpush1.bf16.msra.mxu0 0
      %614 = vmatprep.subr.bf16.mxu0 0
      %615 = vmatpush1.bf16.msra.mxu0 0
      %616 = vmatprep.subr.bf16.mxu0 0
      %617 = vmatpush1.bf16.msra.mxu0 0
      %618 = vmatprep.subr.bf16.mxu0 0
      %619 = vmatpush1.bf16.msra.mxu0 0
      %620 = vmatprep.subr.bf16.mxu0 0
      %621 = vmatpush1.bf16.msra.mxu0 0
      %622 = vmatprep.subr.bf16.mxu0 0
      %623 = vmatpush1.bf16.msra.mxu0 0
      %624 = vmatprep.subr.bf16.mxu0 0
      %625 = vmatpush1.bf16.msra.mxu0 0
      %626 = vmatprep.subr.bf16.mxu0 0
      %627 = vmatpush1.bf16.msra.mxu0 0
      %628 = vmatprep.subr.bf16.mxu0 0
      %629 = vmatpush1.bf16.msra.mxu0 0
      %630 = vmatprep.subr.bf16.mxu0 0
      %631 = vmatpush1.bf16.msra.mxu0 0
      %632 = vmatprep.subr.bf16.mxu0 0
      %633 = vmatpush1.bf16.msra.mxu0 0
      %634 = vmatprep.subr.bf16.mxu0 0
      %635 = vmatpush1.bf16.msra.mxu0 0
      %636 = vmatprep.subr.bf16.mxu0 0
      %637 = vmatpush1.bf16.msra.mxu0 0
      %638 = vmatprep.mubr.bf16.mxu0 0
      %639 = vmatmul.mubr.bf16.gmra.mrb[0].mxu0 %v600
      %v640 = vpop.f32.mrb[0].mxu0
      %v641 = vadd.f32 0.0, %v640
      %v642 = vpop.f32.mrb[0].mxu0
      %v643 = vpop.f32.mrb[0].mxu0
      %v644 = vpop.f32.mrb[0].mxu0
      %645 = vdwg.mxu0
      %647 = vrot.lane.b32.xlu0 %v536, 96
      %v648 = vpop.permute.xlu0 %647
      %650 = vrot.lane.b32.xlu0 %v537, 96
      %v651 = vpop.permute.xlu0 %650
      %v653 = vsel %vm539, %v648, 0
      %v656 = vsel %vm539, %v651, 0
      %658 = vmatprep.subr.bf16.mxu0 0
      %659 = vmatpush1.bf16.xpose.msra.mxu0 %v656
      %660 = vmatprep.subr.bf16.mxu0 0
      %661 = vmatpush1.bf16.xpose.msra.mxu0 0
      %662 = vmatprep.subr.bf16.mxu0 0
      %663 = vmatpush1.bf16.xpose.msra.mxu0 0
      %664 = vmatprep.subr.bf16.mxu0 0
      %665 = vmatpush1.bf16.xpose.msra.mxu0 0
      %666 = vmatprep.subr.bf16.mxu0 0
      %667 = vmatpush1.bf16.xpose.msra.mxu0 0
      %668 = vmatprep.subr.bf16.mxu0 0
      %669 = vmatpush1.bf16.xpose.msra.mxu0 0
      %670 = vmatprep.subr.bf16.mxu0 0
      %671 = vmatpush1.bf16.xpose.msra.mxu0 0
      %672 = vmatprep.subr.bf16.mxu0 0
      %673 = vmatpush1.bf16.xpose.msra.mxu0 0
      %674 = vmatprep.subr.bf16.mxu0 0
      %675 = vmatpush1.bf16.xpose.msra.mxu0 0
      %676 = vmatprep.subr.bf16.mxu0 0
      %677 = vmatpush1.bf16.xpose.msra.mxu0 0
      %678 = vmatprep.subr.bf16.mxu0 0
      %679 = vmatpush1.bf16.xpose.msra.mxu0 0
      %680 = vmatprep.subr.bf16.mxu0 0
      %681 = vmatpush1.bf16.xpose.msra.mxu0 0
      %682 = vmatprep.subr.bf16.mxu0 0
      %683 = vmatpush1.bf16.xpose.msra.mxu0 0
      %684 = vmatprep.subr.bf16.mxu0 0
      %685 = vmatpush1.bf16.xpose.msra.mxu0 0
      %686 = vmatprep.subr.bf16.mxu0 0
      %687 = vmatpush1.bf16.xpose.msra.mxu0 0
      %688 = vmatprep.subr.bf16.mxu0 0
      %689 = vmatpush1.bf16.xpose.msra.mxu0 0
      %690 = vmatprep.mubr.bf16.mxu0 0
      %691 = vmatmul.mubr.bf16.gmra.mrb[0].mxu0 %v653
      %v692 = vpop.f32.mrb[0].mxu0
      %v693 = vadd.f32 0.0, %v692
      %v694 = vpop.f32.mrb[0].mxu0
      %v695 = vpop.f32.mrb[0].mxu0
      %v696 = vpop.f32.mrb[0].mxu0
      %697 = vdwg.mxu0
      %v698 = vsel %vm586, %v693, -inf
      %699 = vmax.xlane.f32.xlu0 %v698
      %v700 = vpop.xlane.xlu0 %699
      %v701 = vsub.f32 %v693, %v700
      %v702 = vmul.f32 %v701, 1.442695
      %v703 = vpow.pop %v702
      %v704 = vsel %vm586, %v703, 0.0
      %705 = vadd.xlane.f32.xlu0 %v704
      %v706 = vpop.xlane.xlu0 %705
      %v707 = vrcp.pop %v706
      %v708 = vmul.f32 %v703, %v707
      %v709 = vpack.c.bf16 %v708, %v708
      %711 = vrot.lane.b32.xlu0 %v538, 96
      %v712 = vpop.permute.xlu0 %711
      %v714 = vsel %vm586, %v709, 0
      %v717 = vsel %vm602, %v712, 0
      %719 = vmatprep.subr.bf16.mxu0 0
      %720 = vmatpush1.bf16.msra.mxu0 %v717
      %721 = vmatprep.subr.bf16.mxu0 0
      %722 = vmatpush1.bf16.msra.mxu0 0
      %723 = vmatprep.subr.bf16.mxu0 0
      %724 = vmatpush1.bf16.msra.mxu0 0
      %725 = vmatprep.subr.bf16.mxu0 0
      %726 = vmatpush1.bf16.msra.mxu0 0
      %727 = vmatprep.subr.bf16.mxu0 0
      %728 = vmatpush1.bf16.msra.mxu0 0
      %729 = vmatprep.subr.bf16.mxu0 0
      %730 = vmatpush1.bf16.msra.mxu0 0
      %731 = vmatprep.subr.bf16.mxu0 0
      %732 = vmatpush1.bf16.msra.mxu0 0
      %733 = vmatprep.subr.bf16.mxu0 0
      %734 = vmatpush1.bf16.msra.mxu0 0
      %735 = vmatprep.subr.bf16.mxu0 0
      %736 = vmatpush1.bf16.msra.mxu0 0
      %737 = vmatprep.subr.bf16.mxu0 0
      %738 = vmatpush1.bf16.msra.mxu0 0
      %739 = vmatprep.subr.bf16.mxu0 0
      %740 = vmatpush1.bf16.msra.mxu0 0
      %741 = vmatprep.subr.bf16.mxu0 0
      %742 = vmatpush1.bf16.msra.mxu0 0
      %743 = vmatprep.subr.bf16.mxu0 0
      %744 = vmatpush1.bf16.msra.mxu0 0
      %745 = vmatprep.subr.bf16.mxu0 0
      %746 = vmatpush1.bf16.msra.mxu0 0
      %747 = vmatprep.subr.bf16.mxu0 0
      %748 = vmatpush1.bf16.msra.mxu0 0
      %749 = vmatprep.subr.bf16.mxu0 0
      %750 = vmatpush1.bf16.msra.mxu0 0
      %751 = vmatprep.mubr.bf16.mxu0 0
      %752 = vmatmul.mubr.bf16.gmra.mrb[0].mxu0 %v714
      %v753 = vpop.f32.mrb[0].mxu0
      %v754 = vadd.f32 0.0, %v753
      %v755 = vpop.f32.mrb[0].mxu0
      %v756 = vpop.f32.mrb[0].mxu0
      %v757 = vpop.f32.mrb[0].mxu0
      %758 = vdwg.mxu0
      %759 = vrot.lane.b32.xlu0 %v536, 64
      %v760 = vpop.permute.xlu0 %759
      %761 = vrot.lane.b32.xlu0 %v537, 64
      %v762 = vpop.permute.xlu0 %761
      %v764 = vsel %vm539, %v760, 0
      %v767 = vsel %vm539, %v762, 0
      %769 = vmatprep.subr.bf16.mxu0 0
      %770 = vmatpush1.bf16.xpose.msra.mxu0 %v767
      %771 = vmatprep.subr.bf16.mxu0 0
      %772 = vmatpush1.bf16.xpose.msra.mxu0 0
      %773 = vmatprep.subr.bf16.mxu0 0
      %774 = vmatpush1.bf16.xpose.msra.mxu0 0
      %775 = vmatprep.subr.bf16.mxu0 0
      %776 = vmatpush1.bf16.xpose.msra.mxu0 0
      %777 = vmatprep.subr.bf16.mxu0 0
      %778 = vmatpush1.bf16.xpose.msra.mxu0 0
      %779 = vmatprep.subr.bf16.mxu0 0
      %780 = vmatpush1.bf16.xpose.msra.mxu0 0
      %781 = vmatprep.subr.bf16.mxu0 0
      %782 = vmatpush1.bf16.xpose.msra.mxu0 0
      %783 = vmatprep.subr.bf16.mxu0 0
      %784 = vmatpush1.bf16.xpose.msra.mxu0 0
      %785 = vmatprep.subr.bf16.mxu0 0
      %786 = vmatpush1.bf16.xpose.msra.mxu0 0
      %787 = vmatprep.subr.bf16.mxu0 0
      %788 = vmatpush1.bf16.xpose.msra.mxu0 0
      %789 = vmatprep.subr.bf16.mxu0 0
      %790 = vmatpush1.bf16.xpose.msra.mxu0 0
      %791 = vmatprep.subr.bf16.mxu0 0
      %792 = vmatpush1.bf16.xpose.msra.mxu0 0
      %793 = vmatprep.subr.bf16.mxu0 0
      %794 = vmatpush1.bf16.xpose.msra.mxu0 0
      %795 = vmatprep.subr.bf16.mxu0 0
      %796 = vmatpush1.bf16.xpose.msra.mxu0 0
      %797 = vmatprep.subr.bf16.mxu0 0
      %798 = vmatpush1.bf16.xpose.msra.mxu0 0
      %799 = vmatprep.subr.bf16.mxu0 0
      %800 = vmatpush1.bf16.xpose.msra.mxu0 0
      %801 = vmatprep.mubr.bf16.mxu0 0
      %802 = vmatmul.mubr.bf16.gmra.mrb[0].mxu0 %v764
      %v803 = vpop.f32.mrb[0].mxu0
      %v804 = vadd.f32 0.0, %v803
      %v805 = vpop.f32.mrb[0].mxu0
      %v806 = vpop.f32.mrb[0].mxu0
      %v807 = vpop.f32.mrb[0].mxu0
      %808 = vdwg.mxu0
      %v809 = vsel %vm586, %v804, -inf
      %810 = vmax.xlane.f32.xlu0 %v809
      %v811 = vpop.xlane.xlu0 %810
      %v812 = vsub.f32 %v804, %v811
      %v813 = vmul.f32 %v812, 1.442695
      %v814 = vpow.pop %v813
      %v815 = vsel %vm586, %v814, 0.0
      %816 = vadd.xlane.f32.xlu0 %v815
      %v817 = vpop.xlane.xlu0 %816
      %v818 = vrcp.pop %v817
      %v819 = vmul.f32 %v814, %v818
      %v820 = vpack.c.bf16 %v819, %v819
      %821 = vrot.lane.b32.xlu0 %v538, 64
      %v822 = vpop.permute.xlu0 %821
      %v824 = vsel %vm586, %v820, 0
      %v827 = vsel %vm602, %v822, 0
      %829 = vmatprep.subr.bf16.mxu0 0
      %830 = vmatpush1.bf16.msra.mxu0 %v827
      %831 = vmatprep.subr.bf16.mxu0 0
      %832 = vmatpush1.bf16.msra.mxu0 0
      %833 = vmatprep.subr.bf16.mxu0 0
      %834 = vmatpush1.bf16.msra.mxu0 0
      %835 = vmatprep.subr.bf16.mxu0 0
      %836 = vmatpush1.bf16.msra.mxu0 0
      %837 = vmatprep.subr.bf16.mxu0 0
      %838 = vmatpush1.bf16.msra.mxu0 0
      %839 = vmatprep.subr.bf16.mxu0 0
      %840 = vmatpush1.bf16.msra.mxu0 0
      %841 = vmatprep.subr.bf16.mxu0 0
      %842 = vmatpush1.bf16.msra.mxu0 0
      %843 = vmatprep.subr.bf16.mxu0 0
      %844 = vmatpush1.bf16.msra.mxu0 0
      %845 = vmatprep.subr.bf16.mxu0 0
      %846 = vmatpush1.bf16.msra.mxu0 0
      %847 = vmatprep.subr.bf16.mxu0 0
      %848 = vmatpush1.bf16.msra.mxu0 0
      %849 = vmatprep.subr.bf16.mxu0 0
      %850 = vmatpush1.bf16.msra.mxu0 0
      %851 = vmatprep.subr.bf16.mxu0 0
      %852 = vmatpush1.bf16.msra.mxu0 0
      %853 = vmatprep.subr.bf16.mxu0 0
      %854 = vmatpush1.bf16.msra.mxu0 0
      %855 = vmatprep.subr.bf16.mxu0 0
      %856 = vmatpush1.bf16.msra.mxu0 0
      %857 = vmatprep.subr.bf16.mxu0 0
      %858 = vmatpush1.bf16.msra.mxu0 0
      %859 = vmatprep.subr.bf16.mxu0 0
      %860 = vmatpush1.bf16.msra.mxu0 0
      %861 = vmatprep.mubr.bf16.mxu0 0
      %862 = vmatmul.mubr.bf16.gmra.mrb[0].mxu0 %v824
      %v863 = vpop.f32.mrb[0].mxu0
      %v864 = vadd.f32 0.0, %v863
      %v865 = vpop.f32.mrb[0].mxu0
      %v866 = vpop.f32.mrb[0].mxu0
      %v867 = vpop.f32.mrb[0].mxu0
      %868 = vdwg.mxu0
      %869 = vrot.lane.b32.xlu0 %v536, 32
      %v870 = vpop.permute.xlu0 %869
      %871 = vrot.lane.b32.xlu0 %v537, 32
      %v872 = vpop.permute.xlu0 %871
      %v874 = vsel %vm539, %v870, 0
      %v877 = vsel %vm539, %v872, 0
      %879 = vmatprep.subr.bf16.mxu0 0
      %880 = vmatpush1.bf16.xpose.msra.mxu0 %v877
      %881 = vmatprep.subr.bf16.mxu0 0
      %882 = vmatpush1.bf16.xpose.msra.mxu0 0
      %883 = vmatprep.subr.bf16.mxu0 0
      %884 = vmatpush1.bf16.xpose.msra.mxu0 0
      %885 = vmatprep.subr.bf16.mxu0 0
      %886 = vmatpush1.bf16.xpose.msra.mxu0 0
      %887 = vmatprep.subr.bf16.mxu0 0
      %888 = vmatpush1.bf16.xpose.msra.mxu0 0
      %889 = vmatprep.subr.bf16.mxu0 0
      %890 = vmatpush1.bf16.xpose.msra.mxu0 0
      %891 = vmatprep.subr.bf16.mxu0 0
      %892 = vmatpush1.bf16.xpose.msra.mxu0 0
      %893 = vmatprep.subr.bf16.mxu0 0
      %894 = vmatpush1.bf16.xpose.msra.mxu0 0
      %895 = vmatprep.subr.bf16.mxu0 0
      %896 = vmatpush1.bf16.xpose.msra.mxu0 0
      %897 = vmatprep.subr.bf16.mxu0 0
      %898 = vmatpush1.bf16.xpose.msra.mxu0 0
      %899 = vmatprep.subr.bf16.mxu0 0
      %900 = vmatpush1.bf16.xpose.msra.mxu0 0
      %901 = vmatprep.subr.bf16.mxu0 0
      %902 = vmatpush1.bf16.xpose.msra.mxu0 0
      %903 = vmatprep.subr.bf16.mxu0 0
      %904 = vmatpush1.bf16.xpose.msra.mxu0 0
      %905 = vmatprep.subr.bf16.mxu0 0
      %906 = vmatpush1.bf16.xpose.msra.mxu0 0
      %907 = vmatprep.subr.bf16.mxu0 0
      %908 = vmatpush1.bf16.xpose.msra.mxu0 0
      %909 = vmatprep.subr.bf16.mxu0 0
      %910 = vmatpush1.bf16.xpose.msra.mxu0 0
      %911 = vmatprep.mubr.bf16.mxu0 0
      %912 = vmatmul.mubr.bf16.gmra.mrb[0].mxu0 %v874
      %v913 = vpop.f32.mrb[0].mxu0
      %v914 = vadd.f32 0.0, %v913
      %v915 = vpop.f32.mrb[0].mxu0
      %v916 = vpop.f32.mrb[0].mxu0
      %v917 = vpop.f32.mrb[0].mxu0
      %918 = vdwg.mxu0
      %v919 = vsel %vm586, %v914, -inf
      %920 = vmax.xlane.f32.xlu0 %v919
      %v921 = vpop.xlane.xlu0 %920
      %v922 = vsub.f32 %v914, %v921
      %v923 = vmul.f32 %v922, 1.442695
      %v924 = vpow.pop %v923
      %v925 = vsel %vm586, %v924, 0.0
      %926 = vadd.xlane.f32.xlu0 %v925
      %v927 = vpop.xlane.xlu0 %926
      %v928 = vrcp.pop %v927
      %v929 = vmul.f32 %v924, %v928
      %v930 = vpack.c.bf16 %v929, %v929
      %931 = vrot.lane.b32.xlu0 %v538, 32
      %v932 = vpop.permute.xlu0 %931
      %v934 = vsel %vm586, %v930, 0
      %v937 = vsel %vm602, %v932, 0
      %939 = vmatprep.subr.bf16.mxu0 0
      %940 = vmatpush1.bf16.msra.mxu0 %v937
      %941 = vmatprep.subr.bf16.mxu0 0
      %942 = vmatpush1.bf16.msra.mxu0 0
      %943 = vmatprep.subr.bf16.mxu0 0
      %944 = vmatpush1.bf16.msra.mxu0 0
      %945 = vmatprep.subr.bf16.mxu0 0
      %946 = vmatpush1.bf16.msra.mxu0 0
      %947 = vmatprep.subr.bf16.mxu0 0
      %948 = vmatpush1.bf16.msra.mxu0 0
      %949 = vmatprep.subr.bf16.mxu0 0
      %950 = vmatpush1.bf16.msra.mxu0 0
      %951 = vmatprep.subr.bf16.mxu0 0
      %952 = vmatpush1.bf16.msra.mxu0 0
      %953 = vmatprep.subr.bf16.mxu0 0
      %954 = vmatpush1.bf16.msra.mxu0 0
      %955 = vmatprep.subr.bf16.mxu0 0
      %956 = vmatpush1.bf16.msra.mxu0 0
      %957 = vmatprep.subr.bf16.mxu0 0
      %958 = vmatpush1.bf16.msra.mxu0 0
      %959 = vmatprep.subr.bf16.mxu0 0
      %960 = vmatpush1.bf16.msra.mxu0 0
      %961 = vmatprep.subr.bf16.mxu0 0
      %962 = vmatpush1.bf16.msra.mxu0 0
      %963 = vmatprep.subr.bf16.mxu0 0
      %964 = vmatpush1.bf16.msra.mxu0 0
      %965 = vmatprep.subr.bf16.mxu0 0
      %966 = vmatpush1.bf16.msra.mxu0 0
      %967 = vmatprep.subr.bf16.mxu0 0
      %968 = vmatpush1.bf16.msra.mxu0 0
      %969 = vmatprep.subr.bf16.mxu0 0
      %970 = vmatpush1.bf16.msra.mxu0 0
      %971 = vmatprep.mubr.bf16.mxu0 0
      %972 = vmatmul.mubr.bf16.gmra.mrb[0].mxu0 %v934
      %v973 = vpop.f32.mrb[0].mxu0
      %v974 = vadd.f32 0.0, %v973
      %v975 = vpop.f32.mrb[0].mxu0
      %v976 = vpop.f32.mrb[0].mxu0
      %v977 = vpop.f32.mrb[0].mxu0
      %978 = vdwg.mxu0
      %980 = vrot.lane.b32.xlu0 %v754, 32
      %v981 = vpop.permute.xlu0 %980
      %984 = vrot.lane.b32.xlu0 %v864, 64
      %v985 = vpop.permute.xlu0 %984
      %988 = vrot.lane.b32.xlu0 %v974, 96
      %v989 = vpop.permute.xlu0 %988
      %v991 = vsel %vm539, %v641, %v981
      %vm992 = vcmask 523264
      %v993 = vsel %vm992, %v991, %v985
      %vm994 = vcmask 785408
      %v995 = vsel %vm994, %v993, %v989
      %v996 = vld [vmem:[%s3] sm:$0xf]
      %v997 = vld [vmem:[%s3 + $0x4] sm:$0xf]
      %v998 = vld [vmem:[%s3 + $0x8] sm:$0xf]
      %v999 = vld [vmem:[%s3 + $0xc] sm:$0xf]
      %v1000 = vld [vmem:[%s3 + $0x10] sm:$0xf]
      %v1001 = vld [vmem:[%s3 + $0x14] sm:$0xf]
      %v1002 = vld [vmem:[%s3 + $0x18] sm:$0xf]
      %v1003 = vld [vmem:[%s3 + $0x1c] sm:$0xf]
      %v1004 = vld [vmem:[%s3 + $0x20] sm:$0xf]
      %v1005 = vld [vmem:[%s3 + $0x24] sm:$0xf]
      %v1006 = vld [vmem:[%s3 + $0x28] sm:$0xf]
      %v1007 = vld [vmem:[%s3 + $0x2c] sm:$0xf]
      %v1008 = vld [vmem:[%s3 + $0x30] sm:$0xf]
      %v1009 = vld [vmem:[%s3 + $0x34] sm:$0xf]
      %v1010 = vld [vmem:[%s3 + $0x38] sm:$0xf]
      %v1011 = vld [vmem:[%s3 + $0x3c] sm:$0xf]
      %v1012 = vld [vmem:[%s4] sm:$0x1]
      %v1013 = vpack.c.bf16 %v995, %v995
      %v1015 = vlaneseq
      %v1016 = vshrl.u32 %v1015, 7
      %v1017 = vsub.s32 0, %v1016
      %v1018 = vrot.slane %v1012, %v1017
      %v1036 = vunpack.c.l.b16 %v996
      %v1037 = vunpack.c.l.b16 %v997
      %v1038 = vunpack.c.l.b16 %v998
      %v1039 = vunpack.c.l.b16 %v999
      %v1040 = vunpack.c.l.b16 %v1000
      %v1041 = vunpack.c.l.b16 %v1001
      %v1042 = vunpack.c.l.b16 %v1002
      %v1043 = vunpack.c.l.b16 %v1003
      %v1044 = vunpack.c.l.b16 %v1004
      %v1045 = vunpack.c.l.b16 %v1005
      %v1046 = vunpack.c.l.b16 %v1006
      %v1047 = vunpack.c.l.b16 %v1007
      %v1048 = vunpack.c.l.b16 %v1008
      %v1049 = vunpack.c.l.b16 %v1009
      %v1050 = vunpack.c.l.b16 %v1010
      %v1051 = vunpack.c.l.b16 %v1011
      %v1052 = vpack.c.b16 %v1037, %v1036
      %v1053 = vpack.c.b16 %v1039, %v1038
      %v1054 = vpack.c.b16 %v1041, %v1040
      %v1055 = vpack.c.b16 %v1043, %v1042
      %v1056 = vpack.c.b16 %v1045, %v1044
      %v1057 = vpack.c.b16 %v1047, %v1046
      %v1058 = vpack.c.b16 %v1049, %v1048
      %v1059 = vpack.c.b16 %v1051, %v1050
      %1068 = vmatprep.subr.bf16.mxu0 0
      %1069 = vmatpush1.bf16.msra.mxu0 %v1052
      %1070 = vmatprep.subr.bf16.mxu0 0
      %1071 = vmatpush1.bf16.msra.mxu0 %v1053
      %1072 = vmatprep.subr.bf16.mxu0 0
      %1073 = vmatpush1.bf16.msra.mxu0 %v1054
      %1074 = vmatprep.subr.bf16.mxu0 0
      %1075 = vmatpush1.bf16.msra.mxu0 %v1055
      %1076 = vmatprep.subr.bf16.mxu0 0
      %1077 = vmatpush1.bf16.msra.mxu0 %v1056
      %1078 = vmatprep.subr.bf16.mxu0 0
      %1079 = vmatpush1.bf16.msra.mxu0 %v1057
      %1080 = vmatprep.subr.bf16.mxu0 0
      %1081 = vmatpush1.bf16.msra.mxu0 %v1058
      %1082 = vmatprep.subr.bf16.mxu0 0
      %1083 = vmatpush1.bf16.msra.mxu0 %v1059
      %1084 = vmatprep.subr.bf16.mxu0 0
      %1085 = vmatpush1.bf16.msra.mxu0 0
      %1086 = vmatprep.subr.bf16.mxu0 0
      %1087 = vmatpush1.bf16.msra.mxu0 0
      %1088 = vmatprep.subr.bf16.mxu0 0
      %1089 = vmatpush1.bf16.msra.mxu0 0
      %1090 = vmatprep.subr.bf16.mxu0 0
      %1091 = vmatpush1.bf16.msra.mxu0 0
      %1092 = vmatprep.subr.bf16.mxu0 0
      %1093 = vmatpush1.bf16.msra.mxu0 0
      %1094 = vmatprep.subr.bf16.mxu0 0
      %1095 = vmatpush1.bf16.msra.mxu0 0
      %1096 = vmatprep.subr.bf16.mxu0 0
      %1097 = vmatpush1.bf16.msra.mxu0 0
      %1098 = vmatprep.subr.bf16.mxu0 0
      %1099 = vmatpush1.bf16.msra.mxu0 0
      %1100 = vmatprep.mubr.bf16.mxu0 0
      %1101 = vmatmul.mubr.bf16.gmra.mrb[0].mxu0 %v1013
      %v1102 = vpop.f32.mrb[0].mxu0
      %v1103 = vadd.f32 %v1018, %v1102
      %v1104 = vpop.f32.mrb[0].mxu0
      %v1105 = vpop.f32.mrb[0].mxu0
      %v1106 = vpop.f32.mrb[0].mxu0
      %1107 = vdwg.mxu0
      %v1108 = vadd.f32 %v1103, %v275
      %v1109 = vld [vmem:[%s5] sm:$0x1]
      %v1110 = vld [vmem:[%s6] sm:$0x1]
      %1111 = vadd.xlane.f32.xlu0 %v1108
      %v1112 = vpop.xlane.xlu0 %1111
      %v1113 = vrcp.pop 128.0
      %v1114 = vmul.f32 %v1112, %v1113
      %v1115 = vsub.f32 %v1108, %v1114
      %v1116 = vmul.f32 %v1115, %v1115
      %1117 = vadd.xlane.f32.xlu0 %v1116
      %v1118 = vpop.xlane.xlu0 %1117
      %v1119 = vmul.f32 %v1118, %v1113
      %v1120 = vadd.f32 %v1119, 1e-05
      %v1121 = vrsqrt.pop %v1120
      %v1122 = vmul.f32 %v1115, %v1121
      %v1124 = vlaneseq
      %v1125 = vshrl.u32 %v1124, 7
      %v1126 = vsub.s32 0, %v1125
      %v1127 = vrot.slane %v1109, %v1126
      %v1129 = vmul.f32 %v1122, %v1127
      %v1131 = vlaneseq
      %v1132 = vshrl.u32 %v1131, 7
      %v1133 = vsub.s32 0, %v1132
      %v1134 = vrot.slane %v1110, %v1133
      %v1136 = vadd.f32 %v1129, %v1134
      %1137 = vst [vmem:[%s273] sm:$0xff] %v1136
      %p1138 = scmp.lt.s32.totalorder %s18, 1
      %s1139 = scalar_select %p1138, %s18, 1
      %s1140 = smul.addr %s1139, 8
      %s1141 = scalar_lea.vmem %s7, %s1140
      // Predicated region
      $region49: #{resonance_forward.5} parent=47 // pred_check
        %p1142 = pneg %p188
      $region50: #{resonance_forward.5} parent=47 // pred_check_branch
        %1144 = sbr.rel (%p1142) target = $region52
      $region51: #{resonance_forward.5} parent=47 // pred_region
        _
      $region52: #{resonance_forward.5} parent=47 // pred_fallthru
        _
    $region48: #{resonance_forward.5} parent=5 // pred_fallthru
      _
    %p1145 = scmp.le.s32.totalorder 2, %s13
    // Predicated region
    $region53: #{resonance_forward.5} parent=5 // pred_check
      %p1146 = pneg %p1145
    $region54: #{resonance_forward.5} parent=5 // pred_check_branch
      %1148 = sbr.rel (%p1146) target = $region56
    $region55: #{resonance_forward.5} parent=5 // pred_region
      %s1149 = ssub.s32 %s13, 2
      // Predicated region
      $region57: #{resonance_forward.5} parent=55 // pred_check
        %p1150 = pneg %p194
      $region58: #{resonance_forward.5} parent=55 // pred_check_branch
        %1152 = sbr.rel (%p1150) target = $region60
      $region59: #{resonance_forward.5} parent=55 // pred_region
        %p1153 = scmp.lt.s32.totalorder %s19, 1
        %s1154 = scalar_select %p1153, %s19, 1
        %s1155 = smul.addr %s1154, 8
        %s1156 = scalar_lea.vmem %s7, %s1155
      $region60: #{resonance_forward.5} parent=55 // pred_fallthru
        _
    $region56: #{resonance_forward.5} parent=5 // pred_fallthru
      _
  $region6: #{resonance_forward.5} parent=0 // loop_footer
    %s17 = sadd.s32 1, %s13
  $region7: #{resonance_forward.5} parent=0 // loop_footer_branch
    %12 = sbr.rel target = $region3
  $region8: #{resonance_forward.5} parent=0 // loop_exit
    _

// kernel: resonance_forward.7
$region0: #{resonance_forward.7}
  #allocation0 [shape = 'u32[]', space=smem, size = 0x4, offset = 0x4, fixed_abs, tag = 'smem constant byte address 0x4 - core index']
  #allocation1 [shape = 'u32[144,128]{1,0:T(1,128)}', space=vmem, size = 0x12000, scoped, tag = 'internal scratch']
  #allocation2 [shape = 'bf16[8,64]{1,0:T(8,128)(2,1)}', space=vmem, size = 0x800, scoped, tag = 'scratch operand']
  %s0 = inlined_call_operand.vmem [shape: f32[2,8,128], index: 0, kind: input, shape index: {}]
  %s1 = inlined_call_operand.vmem [shape: bf16[128,64], index: 1, kind: input, shape index: {}]
  %s2 = inlined_call_operand.vmem [shape: f32[1,64], index: 2, kind: input, shape index: {}]
  %s3 = inlined_call_operand.vmem [shape: f32[1,64], index: 3, kind: input, shape index: {}]
  %s4 = inlined_call_operand.vmem [shape: f32[1,64], index: 4, kind: input, shape index: {}]
  %s5 = inlined_call_operand.vmem [shape: f32[1,64], index: 5, kind: input, shape index: {}]
  %s6 = inlined_call_operand.vmem [shape: f32[1,64], index: 6, kind: input, shape index: {}]
  %s7 = inlined_call_operand.vmem [shape: bf16[64,128], index: 7, kind: input, shape index: {}]
  %s8 = inlined_call_operand.vmem [shape: f32[1,128], index: 8, kind: input, shape index: {}]
  %s9 = inlined_call_operand.vmem [shape: f32[1,128], index: 9, kind: input, shape index: {}]
  %s10 = inlined_call_operand.vmem [shape: f32[1,128], index: 10, kind: input, shape index: {}]
  %s11 = inlined_call_operand.vmem [shape: bf16[128,64], index: 11, kind: input, shape index: {}]
  %s12 = inlined_call_operand.vmem [shape: f32[1,64], index: 12, kind: input, shape index: {}]
  %s13 = inlined_call_operand.vmem [shape: f32[1,64], index: 13, kind: input, shape index: {}]
  %s14 = inlined_call_operand.vmem [shape: f32[1,64], index: 14, kind: input, shape index: {}]
  %s15 = inlined_call_operand.vmem [shape: bf16[64,256], index: 15, kind: input, shape index: {}]
  %s16 = inlined_call_operand.vmem [shape: f32[1,256], index: 16, kind: input, shape index: {}]
  %s17 = inlined_call_operand.hbm [shape: f32[2,8,64], index: 17, kind: output, shape index: {0}]
  %s18 = inlined_call_operand.hbm [shape: bf16[2,8,256], index: 18, kind: output, shape index: {1}]
  %19 = xla_tuple %s17, %s18
  %s20 = sld [smem:[#allocation0]]
  $region154: #{resonance_forward.7} parent=0
    _
  %s22 = ssub.s32 1, %s20
  %s23 = scalar_select 0, %s22, %s20
  $region1: #{resonance_forward.7} parent=0
    #allocation3 [shape = 'u8[32768]{0}', space=vmem, size = 0x8000, scoped, tag = 'input window, operand 15']
    #allocation4 [shape = 'u8[8192]{0}', space=vmem, size = 0x2000, scoped, tag = 'output window, operand 0']
    #allocation5 [shape = 's32[2]{0}', space=sflag, size = 0x8, scoped, tag = 'scoped memory for resonance_forward.7']
    #allocation6 [shape = 'u8[4096]{0}', space=vmem, size = 0x1000, scoped, tag = 'output window, operand 1']
    #allocation7 [shape = 's32[2]{0}', space=sflag, size = 0x8, scoped, tag = 'scoped memory for resonance_forward.7']
    %24 = vsyncpa [#allocation5], 0
    %s25 = scalar_lea.sflag [#allocation5], 1
    %26 = vsyncpa %s25, 0
    %27 = vsyncpa [#allocation7], 0
    %s28 = scalar_lea.sflag [#allocation7], 1
    %29 = vsyncpa %s28, 0
    loop: start=0, step=1, limit=6
    $region2: #{resonance_forward.7} parent=1 // loop_pre_header
      _
    $region3: #{resonance_forward.7} parent=1 // loop_header
      %s31 = sphi 0, %s35
      %p32 = scmp.ge.s32.totalorder %s31, 6
      %s38 = sphi 0, %s50
      %s39 = sphi 0, %s46
      %s40 = sphi 0, %s38
      %s41 = sphi 0, %s39
      %s42 = sphi 0, %s40
      %s43 = sphi 0, %s41
      %s53 = sphi 0, %s55
      %s56 = sphi 0, %s53
      %s57 = sphi 0, %s56
      %s73 = sphi 0, %s57
      %s77 = sphi 0, %s77
      %s79 = sphi 0, %s77
      %s80 = sphi 0, %s79
      %s94 = sphi 0, %s80
      %s98 = sphi 0, %s98
      %s100 = sphi 0, %s98
      %s101 = sphi 0, %s100
      %s115 = sphi 0, %s101
      %s119 = sphi 0, %s119
      %s121 = sphi 0, %s119
      %s122 = sphi 0, %s121
      %s136 = sphi 0, %s122
      %s140 = sphi 0, %s140
      %s142 = sphi 0, %s140
      %s143 = sphi 0, %s142
      %s157 = sphi 0, %s143
      %s161 = sphi 0, %s161
      %s163 = sphi 0, %s161
      %s164 = sphi 0, %s163
      %s178 = sphi 0, %s164
      %s182 = sphi 0, %s182
      %s184 = sphi 0, %s182
      %s185 = sphi 0, %s184
      %s199 = sphi 0, %s185
      %s203 = sphi 0, %s203
      %s205 = sphi 0, %s203
      %s206 = sphi 0, %s205
      %s220 = sphi 0, %s206
      %s224 = sphi 0, %s224
      %s226 = sphi 0, %s224
      %s227 = sphi 0, %s226
      %s241 = sphi 0, %s227
      %s245 = sphi 0, %s245
      %s247 = sphi 0, %s245
      %s248 = sphi 0, %s247
      %s262 = sphi 0, %s248
      %s266 = sphi 0, %s266
      %s268 = sphi 0, %s266
      %s269 = sphi 0, %s268
      %s283 = sphi 0, %s269
      %s287 = sphi 0, %s287
      %s289 = sphi 0, %s287
      %s290 = sphi 0, %s289
      %s304 = sphi 0, %s290
      %s308 = sphi 0, %s308
      %s310 = sphi 0, %s308
      %s311 = sphi 0, %s310
      %s325 = sphi 0, %s311
      %s329 = sphi 0, %s329
      %s331 = sphi 0, %s329
      %s332 = sphi 0, %s331
      %s346 = sphi 0, %s332
      %s350 = sphi 0, %s350
      %s352 = sphi 0, %s350
      %s353 = sphi 0, %s352
      %s367 = sphi 0, %s353
      %s373 = sphi 0, %s375
      %s376 = sphi 0, %s373
      %s377 = sphi 0, %s376
      %s393 = sphi 0, %s377
      %s399 = sphi 0, %s401
      %s402 = sphi 0, %s399
      %s403 = sphi 0, %s402
      %s419 = sphi 0, %s403
      %s425 = sphi 0, %s427
      %s428 = sphi 0, %s425
      %s429 = sphi 0, %s428
      %s445 = sphi 0, %s429
      %s453 = sphi 0, %s455
      %s456 = sphi 0, %s453
      %s457 = sphi 0, %s456
      %s473 = sphi 0, %s457
    $region4: #{resonance_forward.7} parent=1 // loop_header_branch
      %34 = sbr.rel (%p32) target = $region8
    $region5: #{resonance_forward.7} parent=1 // loop_body
      %s36 = ssub.s32 %s31, 1
      %s37 = ssub.s32 %s31, 2
      %s44 = sadd.s32 1, %s39
      %p45 = scmp.ge.s32.totalorder %s44, 2
      %s46 = scalar_select %p45, 0, %s44
      %s47 = sadd.s32 1, %s38
      %s48 = scalar_select %p45, %s47, %s38
      %p49 = scmp.ge.s32.totalorder %s48, 2
      %s50 = scalar_select %p49, 0, %s48
      %s51 = ssub.s32 %s38, %s50
      %p52 = scmp.eq.s32.totalorder %s51, 0
      %s54 = sadd.s32 %s53, 1
      %s55 = scalar_select %p52, %s53, %s54
      %p58 = pneg %p52
      %p59 = scmp.eq.s32.totalorder %s31, 3
      %p60 = por %p58, %p59
      %p61 = scmp.ne.s32.totalorder %s53, %s56
      %p62 = scmp.eq.s32.totalorder %s31, 0
      %p63 = por %p61, %p62
      %p64 = scmp.ne.s32.totalorder %s53, %s56
      %p65 = scmp.eq.s32.totalorder %s36, 3
      %p66 = por %p64, %p65
      %p67 = scmp.ne.s32.totalorder %s56, %s57
      %p68 = scmp.eq.s32.totalorder %s36, 0
      %p69 = por %p67, %p68
      %p70 = scmp.ne.s32.totalorder %s56, %s57
      %p71 = scmp.eq.s32.totalorder %s37, 3
      %p72 = por %p70, %p71
      %p74 = scmp.ne.s32.totalorder %s57, %s73
      %p75 = scmp.eq.s32.totalorder %s37, 0
      %p76 = por %p74, %p75
      %s78 = sadd.s32 %s77, 1
      %p81 = scmp.eq.s32.totalorder %s31, 3
      %p82 = scmp.ne.s32.totalorder %s77, %s79
      %p83 = scmp.eq.s32.totalorder %s31, 0
      %p84 = por %p82, %p83
      %p85 = scmp.ne.s32.totalorder %s77, %s79
      %p86 = scmp.eq.s32.totalorder %s36, 3
      %p87 = por %p85, %p86
      %p88 = scmp.ne.s32.totalorder %s79, %s80
      %p89 = scmp.eq.s32.totalorder %s36, 0
      %p90 = por %p88, %p89
      %p91 = scmp.ne.s32.totalorder %s79, %s80
      %p92 = scmp.eq.s32.totalorder %s37, 3
      %p93 = por %p91, %p92
      %p95 = scmp.ne.s32.totalorder %s80, %s94
      %p96 = scmp.eq.s32.totalorder %s37, 0
      %p97 = por %p95, %p96
      %s99 = sadd.s32 %s98, 1
      %p102 = scmp.eq.s32.totalorder %s31, 3
      %p103 = scmp.ne.s32.totalorder %s98, %s100
      %p104 = scmp.eq.s32.totalorder %s31, 0
      %p105 = por %p103, %p104
      %p106 = scmp.ne.s32.totalorder %s98, %s100
      %p107 = scmp.eq.s32.totalorder %s36, 3
      %p108 = por %p106, %p107
      %p109 = scmp.ne.s32.totalorder %s100, %s101
      %p110 = scmp.eq.s32.totalorder %s36, 0
      %p111 = por %p109, %p110
      %p112 = scmp.ne.s32.totalorder %s100, %s101
      %p113 = scmp.eq.s32.totalorder %s37, 3
      %p114 = por %p112, %p113
      %p116 = scmp.ne.s32.totalorder %s101, %s115
      %p117 = scmp.eq.s32.totalorder %s37, 0
      %p118 = por %p116, %p117
      %s120 = sadd.s32 %s119, 1
      %p123 = scmp.eq.s32.totalorder %s31, 3
      %p124 = scmp.ne.s32.totalorder %s119, %s121
      %p125 = scmp.eq.s32.totalorder %s31, 0
      %p126 = por %p124, %p125
      %p127 = scmp.ne.s32.totalorder %s119, %s121
      %p128 = scmp.eq.s32.totalorder %s36, 3
      %p129 = por %p127, %p128
      %p130 = scmp.ne.s32.totalorder %s121, %s122
      %p131 = scmp.eq.s32.totalorder %s36, 0
      %p132 = por %p130, %p131
      %p133 = scmp.ne.s32.totalorder %s121, %s122
      %p134 = scmp.eq.s32.totalorder %s37, 3
      %p135 = por %p133, %p134
      %p137 = scmp.ne.s32.totalorder %s122, %s136
      %p138 = scmp.eq.s32.totalorder %s37, 0
      %p139 = por %p137, %p138
      %s141 = sadd.s32 %s140, 1
      %p144 = scmp.eq.s32.totalorder %s31, 3
      %p145 = scmp.ne.s32.totalorder %s140, %s142
      %p146 = scmp.eq.s32.totalorder %s31, 0
      %p147 = por %p145, %p146
      %p148 = scmp.ne.s32.totalorder %s140, %s142
      %p149 = scmp.eq.s32.totalorder %s36, 3
      %p150 = por %p148, %p149
      %p151 = scmp.ne.s32.totalorder %s142, %s143
      %p152 = scmp.eq.s32.totalorder %s36, 0
      %p153 = por %p151, %p152
      %p154 = scmp.ne.s32.totalorder %s142, %s143
      %p155 = scmp.eq.s32.totalorder %s37, 3
      %p156 = por %p154, %p155
      %p158 = scmp.ne.s32.totalorder %s143, %s157
      %p159 = scmp.eq.s32.totalorder %s37, 0
      %p160 = por %p158, %p159
      %s162 = sadd.s32 %s161, 1
      %p165 = scmp.eq.s32.totalorder %s31, 3
      %p166 = scmp.ne.s32.totalorder %s161, %s163
      %p167 = scmp.eq.s32.totalorder %s31, 0
      %p168 = por %p166, %p167
      %p169 = scmp.ne.s32.totalorder %s161, %s163
      %p170 = scmp.eq.s32.totalorder %s36, 3
      %p171 = por %p169, %p170
      %p172 = scmp.ne.s32.totalorder %s163, %s164
      %p173 = scmp.eq.s32.totalorder %s36, 0
      %p174 = por %p172, %p173
      %p175 = scmp.ne.s32.totalorder %s163, %s164
      %p176 = scmp.eq.s32.totalorder %s37, 3
      %p177 = por %p175, %p176
      %p179 = scmp.ne.s32.totalorder %s164, %s178
      %p180 = scmp.eq.s32.totalorder %s37, 0
      %p181 = por %p179, %p180
      %s183 = sadd.s32 %s182, 1
      %p186 = scmp.eq.s32.totalorder %s31, 3
      %p187 = scmp.ne.s32.totalorder %s182, %s184
      %p188 = scmp.eq.s32.totalorder %s31, 0
      %p189 = por %p187, %p188
      %p190 = scmp.ne.s32.totalorder %s182, %s184
      %p191 = scmp.eq.s32.totalorder %s36, 3
      %p192 = por %p190, %p191
      %p193 = scmp.ne.s32.totalorder %s184, %s185
      %p194 = scmp.eq.s32.totalorder %s36, 0
      %p195 = por %p193, %p194
      %p196 = scmp.ne.s32.totalorder %s184, %s185
      %p197 = scmp.eq.s32.totalorder %s37, 3
      %p198 = por %p196, %p197
      %p200 = scmp.ne.s32.totalorder %s185, %s199
      %p201 = scmp.eq.s32.totalorder %s37, 0
      %p202 = por %p200, %p201
      %s204 = sadd.s32 %s203, 1
      %p207 = scmp.eq.s32.totalorder %s31, 3
      %p208 = scmp.ne.s32.totalorder %s203, %s205
      %p209 = scmp.eq.s32.totalorder %s31, 0
      %p210 = por %p208, %p209
      %p211 = scmp.ne.s32.totalorder %s203, %s205
      %p212 = scmp.eq.s32.totalorder %s36, 3
      %p213 = por %p211, %p212
      %p214 = scmp.ne.s32.totalorder %s205, %s206
      %p215 = scmp.eq.s32.totalorder %s36, 0
      %p216 = por %p214, %p215
      %p217 = scmp.ne.s32.totalorder %s205, %s206
      %p218 = scmp.eq.s32.totalorder %s37, 3
      %p219 = por %p217, %p218
      %p221 = scmp.ne.s32.totalorder %s206, %s220
      %p222 = scmp.eq.s32.totalorder %s37, 0
      %p223 = por %p221, %p222
      %s225 = sadd.s32 %s224, 1
      %p228 = scmp.eq.s32.totalorder %s31, 3
      %p229 = scmp.ne.s32.totalorder %s224, %s226
      %p230 = scmp.eq.s32.totalorder %s31, 0
      %p231 = por %p229, %p230
      %p232 = scmp.ne.s32.totalorder %s224, %s226
      %p233 = scmp.eq.s32.totalorder %s36, 3
      %p234 = por %p232, %p233
      %p235 = scmp.ne.s32.totalorder %s226, %s227
      %p236 = scmp.eq.s32.totalorder %s36, 0
      %p237 = por %p235, %p236
      %p238 = scmp.ne.s32.totalorder %s226, %s227
      %p239 = scmp.eq.s32.totalorder %s37, 3
      %p240 = por %p238, %p239
      %p242 = scmp.ne.s32.totalorder %s227, %s241
      %p243 = scmp.eq.s32.totalorder %s37, 0
      %p244 = por %p242, %p243
      %s246 = sadd.s32 %s245, 1
      %p249 = scmp.eq.s32.totalorder %s31, 3
      %p250 = scmp.ne.s32.totalorder %s245, %s247
      %p251 = scmp.eq.s32.totalorder %s31, 0
      %p252 = por %p250, %p251
      %p253 = scmp.ne.s32.totalorder %s245, %s247
      %p254 = scmp.eq.s32.totalorder %s36, 3
      %p255 = por %p253, %p254
      %p256 = scmp.ne.s32.totalorder %s247, %s248
      %p257 = scmp.eq.s32.totalorder %s36, 0
      %p258 = por %p256, %p257
      %p259 = scmp.ne.s32.totalorder %s247, %s248
      %p260 = scmp.eq.s32.totalorder %s37, 3
      %p261 = por %p259, %p260
      %p263 = scmp.ne.s32.totalorder %s248, %s262
      %p264 = scmp.eq.s32.totalorder %s37, 0
      %p265 = por %p263, %p264
      %s267 = sadd.s32 %s266, 1
      %p270 = scmp.eq.s32.totalorder %s31, 3
      %p271 = scmp.ne.s32.totalorder %s266, %s268
      %p272 = scmp.eq.s32.totalorder %s31, 0
      %p273 = por %p271, %p272
      %p274 = scmp.ne.s32.totalorder %s266, %s268
      %p275 = scmp.eq.s32.totalorder %s36, 3
      %p276 = por %p274, %p275
      %p277 = scmp.ne.s32.totalorder %s268, %s269
      %p278 = scmp.eq.s32.totalorder %s36, 0
      %p279 = por %p277, %p278
      %p280 = scmp.ne.s32.totalorder %s268, %s269
      %p281 = scmp.eq.s32.totalorder %s37, 3
      %p282 = por %p280, %p281
      %p284 = scmp.ne.s32.totalorder %s269, %s283
      %p285 = scmp.eq.s32.totalorder %s37, 0
      %p286 = por %p284, %p285
      %s288 = sadd.s32 %s287, 1
      %p291 = scmp.eq.s32.totalorder %s31, 3
      %p292 = scmp.ne.s32.totalorder %s287, %s289
      %p293 = scmp.eq.s32.totalorder %s31, 0
      %p294 = por %p292, %p293
      %p295 = scmp.ne.s32.totalorder %s287, %s289
      %p296 = scmp.eq.s32.totalorder %s36, 3
      %p297 = por %p295, %p296
      %p298 = scmp.ne.s32.totalorder %s289, %s290
      %p299 = scmp.eq.s32.totalorder %s36, 0
      %p300 = por %p298, %p299
      %p301 = scmp.ne.s32.totalorder %s289, %s290
      %p302 = scmp.eq.s32.totalorder %s37, 3
      %p303 = por %p301, %p302
      %p305 = scmp.ne.s32.totalorder %s290, %s304
      %p306 = scmp.eq.s32.totalorder %s37, 0
      %p307 = por %p305, %p306
      %s309 = sadd.s32 %s308, 1
      %p312 = scmp.eq.s32.totalorder %s31, 3
      %p313 = scmp.ne.s32.totalorder %s308, %s310
      %p314 = scmp.eq.s32.totalorder %s31, 0
      %p315 = por %p313, %p314
      %p316 = scmp.ne.s32.totalorder %s308, %s310
      %p317 = scmp.eq.s32.totalorder %s36, 3
      %p318 = por %p316, %p317
      %p319 = scmp.ne.s32.totalorder %s310, %s311
      %p320 = scmp.eq.s32.totalorder %s36, 0
      %p321 = por %p319, %p320
      %p322 = scmp.ne.s32.totalorder %s310, %s311
      %p323 = scmp.eq.s32.totalorder %s37, 3
      %p324 = por %p322, %p323
      %p326 = scmp.ne.s32.totalorder %s311, %s325
      %p327 = scmp.eq.s32.totalorder %s37, 0
      %p328 = por %p326, %p327
      %s330 = sadd.s32 %s329, 1
      %p333 = scmp.eq.s32.totalorder %s31, 3
      %p334 = scmp.ne.s32.totalorder %s329, %s331
      %p335 = scmp.eq.s32.totalorder %s31, 0
      %p336 = por %p334, %p335
      %p337 = scmp.ne.s32.totalorder %s329, %s331
      %p338 = scmp.eq.s32.totalorder %s36, 3
      %p339 = por %p337, %p338
      %p340 = scmp.ne.s32.totalorder %s331, %s332
      %p341 = scmp.eq.s32.totalorder %s36, 0
      %p342 = por %p340, %p341
      %p343 = scmp.ne.s32.totalorder %s331, %s332
      %p344 = scmp.eq.s32.totalorder %s37, 3
      %p345 = por %p343, %p344
      %p347 = scmp.ne.s32.totalorder %s332, %s346
      %p348 = scmp.eq.s32.totalorder %s37, 0
      %p349 = por %p347, %p348
      %s351 = sadd.s32 %s350, 1
      %p354 = scmp.eq.s32.totalorder %s31, 3
      %p355 = scmp.ne.s32.totalorder %s350, %s352
      %p356 = scmp.eq.s32.totalorder %s31, 0
      %p357 = por %p355, %p356
      %p358 = scmp.ne.s32.totalorder %s350, %s352
      %p359 = scmp.eq.s32.totalorder %s36, 3
      %p360 = por %p358, %p359
      %p361 = scmp.ne.s32.totalorder %s352, %s353
      %p362 = scmp.eq.s32.totalorder %s36, 0
      %p363 = por %p361, %p362
      %p364 = scmp.ne.s32.totalorder %s352, %s353
      %p365 = scmp.eq.s32.totalorder %s37, 3
      %p366 = por %p364, %p365
      %p368 = scmp.ne.s32.totalorder %s353, %s367
      %p369 = scmp.eq.s32.totalorder %s37, 0
      %p370 = por %p368, %p369
      %s371 = ssub.s32 %s39, %s46
      %p372 = scmp.eq.s32.totalorder %s371, 0
      %s374 = sadd.s32 %s373, 1
      %s375 = scalar_select %p372, %s373, %s374
      %p378 = pneg %p372
      %p379 = scmp.eq.s32.totalorder %s31, 3
      %p380 = por %p378, %p379
      %p381 = scmp.ne.s32.totalorder %s373, %s376
      %p382 = scmp.eq.s32.totalorder %s31, 0
      %p383 = por %p381, %p382
      %p384 = scmp.ne.s32.totalorder %s373, %s376
      %p385 = scmp.eq.s32.totalorder %s36, 3
      %p386 = por %p384, %p385
      %p387 = scmp.ne.s32.totalorder %s376, %s377
      %p388 = scmp.eq.s32.totalorder %s36, 0
      %p389 = por %p387, %p388
      %p390 = scmp.ne.s32.totalorder %s376, %s377
      %p391 = scmp.eq.s32.totalorder %s37, 3
      %p392 = por %p390, %p391
      %p394 = scmp.ne.s32.totalorder %s377, %s393
      %p395 = scmp.eq.s32.totalorder %s37, 0
      %p396 = por %p394, %p395
      %s397 = ssub.s32 %s39, %s46
      %p398 = scmp.eq.s32.totalorder %s397, 0
      %s400 = sadd.s32 %s399, 1
      %s401 = scalar_select %p398, %s399, %s400
      %p404 = pneg %p398
      %p405 = scmp.eq.s32.totalorder %s31, 3
      %p406 = por %p404, %p405
      %p407 = scmp.ne.s32.totalorder %s399, %s402
      %p408 = scmp.eq.s32.totalorder %s31, 0
      %p409 = por %p407, %p408
      %p410 = scmp.ne.s32.totalorder %s399, %s402
      %p411 = scmp.eq.s32.totalorder %s36, 3
      %p412 = por %p410, %p411
      %p413 = scmp.ne.s32.totalorder %s402, %s403
      %p414 = scmp.eq.s32.totalorder %s36, 0
      %p415 = por %p413, %p414
      %p416 = scmp.ne.s32.totalorder %s402, %s403
      %p417 = scmp.eq.s32.totalorder %s37, 3
      %p418 = por %p416, %p417
      %p420 = scmp.ne.s32.totalorder %s403, %s419
      %p421 = scmp.eq.s32.totalorder %s37, 0
      %p422 = por %p420, %p421
      %s423 = ssub.s32 %s38, %s50
      %p424 = scmp.eq.s32.totalorder %s423, 0
      %s426 = sadd.s32 %s425, 1
      %s427 = scalar_select %p424, %s425, %s426
      %p430 = pneg %p424
      %p431 = scmp.eq.s32.totalorder %s31, 3
      %p432 = por %p430, %p431
      %p433 = scmp.ne.s32.totalorder %s425, %s428
      %p434 = scmp.eq.s32.totalorder %s31, 0
      %p435 = por %p433, %p434
      %p436 = scmp.ne.s32.totalorder %s425, %s428
      %p437 = scmp.eq.s32.totalorder %s36, 3
      %p438 = por %p436, %p437
      %p439 = scmp.ne.s32.totalorder %s428, %s429
      %p440 = scmp.eq.s32.totalorder %s36, 0
      %p441 = por %p439, %p440
      %p442 = scmp.ne.s32.totalorder %s428, %s429
      %p443 = scmp.eq.s32.totalorder %s37, 3
      %p444 = por %p442, %p443
      %p446 = scmp.ne.s32.totalorder %s429, %s445
      %p447 = scmp.eq.s32.totalorder %s37, 0
      %p448 = por %p446, %p447
      %s449 = ssub.s32 %s38, %s50
      %s450 = ssub.s32 %s39, %s46
      %s451 = sor.u32 %s449, %s450
      %p452 = scmp.eq.s32.totalorder %s451, 0
      %s454 = sadd.s32 %s453, 1
      %s455 = scalar_select %p452, %s453, %s454
      %p458 = pneg %p452
      %p459 = scmp.eq.s32.totalorder %s31, 3
      %p460 = por %p458, %p459
      %p461 = scmp.ne.s32.totalorder %s453, %s456
      %p462 = scmp.eq.s32.totalorder %s31, 0
      %p463 = por %p461, %p462
      %p464 = scmp.ne.s32.totalorder %s453, %s456
      %p465 = scmp.eq.s32.totalorder %s36, 3
      %p466 = por %p464, %p465
      %p467 = scmp.ne.s32.totalorder %s456, %s457
      %p468 = scmp.eq.s32.totalorder %s36, 0
      %p469 = por %p467, %p468
      %p470 = scmp.ne.s32.totalorder %s456, %s457
      %p471 = scmp.eq.s32.totalorder %s37, 3
      %p472 = por %p470, %p471
      %p474 = scmp.ne.s32.totalorder %s457, %s473
      %p475 = scmp.eq.s32.totalorder %s37, 0
      %p476 = por %p474, %p475
      %p477 = scmp.le.s32.totalorder 1, %s31
      %p478 = scmp.lt.s32.totalorder %s31, 5
      %p479 = pnand %p477, %p478
      %p480 = pneg %p479
      // Predicated region
      $region9: #{resonance_forward.7} parent=5 // pred_check
        _
      $region10: #{resonance_forward.7} parent=5 // pred_check_branch
        %482 = sbr.rel (%p479) target = $region12
      $region11: #{resonance_forward.7} parent=5 // pred_region
        %s483 = ssub.s32 %s31, 1
        // Predicated region
        $region13: #{resonance_forward.7} parent=11 // pred_check
          %p484 = pneg %p90
        $region14: #{resonance_forward.7} parent=11 // pred_check_branch
          %486 = sbr.rel (%p484) target = $region16
        $region15: #{resonance_forward.7} parent=11 // pred_region
          _
        $region16: #{resonance_forward.7} parent=11 // pred_fallthru
          _
        // Predicated region
        $region17: #{resonance_forward.7} parent=11 // pred_check
          %p487 = pneg %p111
        $region18: #{resonance_forward.7} parent=11 // pred_check_branch
          %489 = sbr.rel (%p487) target = $region20
        $region19: #{resonance_forward.7} parent=11 // pred_region
          _
        $region20: #{resonance_forward.7} parent=11 // pred_fallthru
          _
        // Predicated region
        $region21: #{resonance_forward.7} parent=11 // pred_check
          %p490 = pneg %p132
        $region22: #{resonance_forward.7} parent=11 // pred_check_branch
          %492 = sbr.rel (%p490) target = $region24
        $region23: #{resonance_forward.7} parent=11 // pred_region
          _
        $region24: #{resonance_forward.7} parent=11 // pred_fallthru
          _
        // Predicated region
        $region25: #{resonance_forward.7} parent=11 // pred_check
          %p493 = pneg %p153
        $region26: #{resonance_forward.7} parent=11 // pred_check_branch
          %495 = sbr.rel (%p493) target = $region28
        $region27: #{resonance_forward.7} parent=11 // pred_region
          _
        $region28: #{resonance_forward.7} parent=11 // pred_fallthru
          _
        // Predicated region
        $region29: #{resonance_forward.7} parent=11 // pred_check
          %p496 = pneg %p174
        $region30: #{resonance_forward.7} parent=11 // pred_check_branch
          %498 = sbr.rel (%p496) target = $region32
        $region31: #{resonance_forward.7} parent=11 // pred_region
          _
        $region32: #{resonance_forward.7} parent=11 // pred_fallthru
          _
        // Predicated region
        $region33: #{resonance_forward.7} parent=11 // pred_check
          %p499 = pneg %p195
        $region34: #{resonance_forward.7} parent=11 // pred_check_branch
          %501 = sbr.rel (%p499) target = $region36
        $region35: #{resonance_forward.7} parent=11 // pred_region
          _
        $region36: #{resonance_forward.7} parent=11 // pred_fallthru
          _
        // Predicated region
        $region37: #{resonance_forward.7} parent=11 // pred_check
          %p502 = pneg %p216
        $region38: #{resonance_forward.7} parent=11 // pred_check_branch
          %504 = sbr.rel (%p502) target = $region40
        $region39: #{resonance_forward.7} parent=11 // pred_region
          _
        $region40: #{resonance_forward.7} parent=11 // pred_fallthru
          _
        // Predicated region
        $region41: #{resonance_forward.7} parent=11 // pred_check
          %p505 = pneg %p237
        $region42: #{resonance_forward.7} parent=11 // pred_check_branch
          %507 = sbr.rel (%p505) target = $region44
        $region43: #{resonance_forward.7} parent=11 // pred_region
          _
        $region44: #{resonance_forward.7} parent=11 // pred_fallthru
          _
        // Predicated region
        $region45: #{resonance_forward.7} parent=11 // pred_check
          %p508 = pneg %p258
        $region46: #{resonance_forward.7} parent=11 // pred_check_branch
          %510 = sbr.rel (%p508) target = $region48
        $region47: #{resonance_forward.7} parent=11 // pred_region
          _
        $region48: #{resonance_forward.7} parent=11 // pred_fallthru
          _
        // Predicated region
        $region49: #{resonance_forward.7} parent=11 // pred_check
          %p511 = pneg %p279
        $region50: #{resonance_forward.7} parent=11 // pred_check_branch
          %513 = sbr.rel (%p511) target = $region52
        $region51: #{resonance_forward.7} parent=11 // pred_region
          _
        $region52: #{resonance_forward.7} parent=11 // pred_fallthru
          _
        // Predicated region
        $region53: #{resonance_forward.7} parent=11 // pred_check
          %p514 = pneg %p300
        $region54: #{resonance_forward.7} parent=11 // pred_check_branch
          %516 = sbr.rel (%p514) target = $region56
        $region55: #{resonance_forward.7} parent=11 // pred_region
          _
        $region56: #{resonance_forward.7} parent=11 // pred_fallthru
          _
        // Predicated region
        $region57: #{resonance_forward.7} parent=11 // pred_check
          %p517 = pneg %p321
        $region58: #{resonance_forward.7} parent=11 // pred_check_branch
          %519 = sbr.rel (%p517) target = $region60
        $region59: #{resonance_forward.7} parent=11 // pred_region
          _
        $region60: #{resonance_forward.7} parent=11 // pred_fallthru
          _
        // Predicated region
        $region61: #{resonance_forward.7} parent=11 // pred_check
          %p520 = pneg %p342
        $region62: #{resonance_forward.7} parent=11 // pred_check_branch
          %522 = sbr.rel (%p520) target = $region64
        $region63: #{resonance_forward.7} parent=11 // pred_region
          _
        $region64: #{resonance_forward.7} parent=11 // pred_fallthru
          _
        // Predicated region
        $region65: #{resonance_forward.7} parent=11 // pred_check
          %p523 = pneg %p363
        $region66: #{resonance_forward.7} parent=11 // pred_check_branch
          %525 = sbr.rel (%p523) target = $region68
        $region67: #{resonance_forward.7} parent=11 // pred_region
          _
        $region68: #{resonance_forward.7} parent=11 // pred_fallthru
          _
      $region12: #{resonance_forward.7} parent=5 // pred_fallthru
        _
      %p526 = scmp.lt.s32.totalorder %s31, 4
      // Predicated region
      $region69: #{resonance_forward.7} parent=5 // pred_check
        %p527 = pneg %p526
      $region70: #{resonance_forward.7} parent=5 // pred_check_branch
        %529 = sbr.rel (%p527) target = $region72
      $region71: #{resonance_forward.7} parent=5 // pred_region
        // Predicated region
        $region73: #{resonance_forward.7} parent=71 // pred_check
          %p530 = pneg %p63
        $region74: #{resonance_forward.7} parent=71 // pred_check_branch
          %532 = sbr.rel (%p530) target = $region76
        $region75: #{resonance_forward.7} parent=71 // pred_region
          %p533 = scmp.lt.s32.totalorder %s38, 1
          %s534 = scalar_select %p533, %s38, 1
          %s535 = smul.addr %s534, 8
          %s536 = scalar_lea.vmem %s0, %s535
        $region76: #{resonance_forward.7} parent=71 // pred_fallthru
          _
        // Predicated region
        $region77: #{resonance_forward.7} parent=71 // pred_check
          %p537 = pneg %p383
        $region78: #{resonance_forward.7} parent=71 // pred_check_branch
          %539 = sbr.rel (%p537) target = $region80
        $region79: #{resonance_forward.7} parent=71 // pred_region
          %s540 = sand.u32 %s373, 1
          %s541 = sand.u32 %s373, 1
          %s542 = smul.addr %s541, 32
          %s543 = scalar_lea.vmem [#allocation3], %s542
          %s544 = smul.addr %s39, 4
          %s545 = scalar_lea.vmem %s15, %s544
          // Predicated region
          $region81: #{resonance_forward.7} parent=79 // pred_check
            _
          $region82: #{resonance_forward.7} parent=79 // pred_check_branch
            %547 = sbr.rel (0) target = $region84
          $region83: #{resonance_forward.7} parent=79 // pred_region
            // Predicated region
            $region85: #{resonance_forward.7} parent=83 // pred_check
              _
            $region86: #{resonance_forward.7} parent=83 // pred_check_branch
              %549 = sbr.rel target = $region88
            $region87: #{resonance_forward.7} parent=83 // pred_region
              // Predicated region
              $region100: #{resonance_forward.7} parent=87 // pred_check
                _
              $region101: #{resonance_forward.7} parent=87 // pred_check_branch
                %578 = sbr.rel (0) target = $region103
              $region102: #{resonance_forward.7} parent=87 // pred_region
                loop: start=0, step=1, limit=1
                $region104: #{resonance_forward.7} parent=102 // loop_pre_header
                  _
                $region105: #{resonance_forward.7} parent=102 // loop_header
                  %s580 = sphi 0, %s584
                  %p581 = scmp.ge.s32.totalorder %s580, 1
                  %s585 = sphi %s545, %s545
                  %s586 = sphi %s543, %s543
                $region106: #{resonance_forward.7} parent=102 // loop_header_branch
                  %583 = sbr.rel (%p581) target = $region110
                $region107: #{resonance_forward.7} parent=102 // loop_body
                  _
                $region108: #{resonance_forward.7} parent=102 // loop_footer
                  %s584 = sadd.s32 1, %s580
                $region109: #{resonance_forward.7} parent=102 // loop_footer_branch
                  %579 = sbr.rel target = $region105
                $region110: #{resonance_forward.7} parent=102 // loop_exit
                  _
                loop: start=0, step=1, limit=1
                $region111: #{resonance_forward.7} parent=102 // loop_pre_header
                  _
                $region112: #{resonance_forward.7} parent=102 // loop_header
                  %s589 = sphi 0, %s593
                  %p590 = scmp.ge.s32.totalorder %s589, 1
                  %s594 = sphi %s545, %s545
                  %s595 = sphi %s543, %s543
                $region113: #{resonance_forward.7} parent=102 // loop_header_branch
                  %592 = sbr.rel (%p590) target = $region117
                $region114: #{resonance_forward.7} parent=102 // loop_body
                  %v596 = vld [vmem:[%s594] sm:$0xf]
                  %597 = vst [vmem:[%s595] sm:$0xf] %v596
                  %v598 = vld [vmem:[%s594 + $0x8] sm:$0xf]
                  %599 = vst [vmem:[%s595 + $0x4] sm:$0xf] %v598
                  %v600 = vld [vmem:[%s594 + $0x10] sm:$0xf]
                  %601 = vst [vmem:[%s595 + $0x8] sm:$0xf] %v600
                  %v602 = vld [vmem:[%s594 + $0x18] sm:$0xf]
                  %603 = vst [vmem:[%s595 + $0xc] sm:$0xf] %v602
                  %v604 = vld [vmem:[%s594 + $0x20] sm:$0xf]
                  %605 = vst [vmem:[%s595 + $0x10] sm:$0xf] %v604
                  %v606 = vld [vmem:[%s594 + $0x28] sm:$0xf]
                  %607 = vst [vmem:[%s595 + $0x14] sm:$0xf] %v606
                  %v608 = vld [vmem:[%s594 + $0x30] sm:$0xf]
                  %609 = vst [vmem:[%s595 + $0x18] sm:$0xf] %v608
                  %v610 = vld [vmem:[%s594 + $0x38] sm:$0xf]
                  %611 = vst [vmem:[%s595 + $0x1c] sm:$0xf] %v610
                $region115: #{resonance_forward.7} parent=102 // loop_footer
                  %s593 = sadd.s32 1, %s589
                $region116: #{resonance_forward.7} parent=102 // loop_footer_branch
                  %588 = sbr.rel target = $region112
                $region117: #{resonance_forward.7} parent=102 // loop_exit
                  _
              $region103: #{resonance_forward.7} parent=87 // pred_fallthru
                _
            $region88: #{resonance_forward.7} parent=83 // pred_fallthru
              _
            // Predicated region
            $region89: #{resonance_forward.7} parent=83 // pred_check
              _
            $region90: #{resonance_forward.7} parent=83 // pred_check_branch
              %551 = sbr.rel (0) target = $region92
            $region91: #{resonance_forward.7} parent=83 // pred_region
              loop: start=0, step=1, limit=1
              $region93: #{resonance_forward.7} parent=91 // loop_pre_header
                _
              $region94: #{resonance_forward.7} parent=91 // loop_header
                %s554 = sphi 0, %s558
                %p555 = scmp.ge.s32.totalorder %s554, 1
                %s559 = sphi %s545, %s545
                %s560 = sphi %s543, %s543
              $region95: #{resonance_forward.7} parent=91 // loop_header_branch
                %557 = sbr.rel (%p555) target = $region99
              $region96: #{resonance_forward.7} parent=91 // loop_body
                %v561 = vld [vmem:[%s559] sm:$0xf]
                %562 = vst [vmem:[%s560] sm:$0xf] %v561
                %v563 = vld [vmem:[%s559 + $0x8] sm:$0xf]
                %564 = vst [vmem:[%s560 + $0x4] sm:$0xf] %v563
                %v565 = vld [vmem:[%s559 + $0x10] sm:$0xf]
                %566 = vst [vmem:[%s560 + $0x8] sm:$0xf] %v565
                %v567 = vld [vmem:[%s559 + $0x18] sm:$0xf]
                %568 = vst [vmem:[%s560 + $0xc] sm:$0xf] %v567
                %v569 = vld [vmem:[%s559 + $0x20] sm:$0xf]
                %570 = vst [vmem:[%s560 + $0x10] sm:$0xf] %v569
                %v571 = vld [vmem:[%s559 + $0x28] sm:$0xf]
                %572 = vst [vmem:[%s560 + $0x14] sm:$0xf] %v571
                %v573 = vld [vmem:[%s559 + $0x30] sm:$0xf]
                %574 = vst [vmem:[%s560 + $0x18] sm:$0xf] %v573
                %v575 = vld [vmem:[%s559 + $0x38] sm:$0xf]
                %576 = vst [vmem:[%s560 + $0x1c] sm:$0xf] %v575
              $region97: #{resonance_forward.7} parent=91 // loop_footer
                %s558 = sadd.s32 1, %s554
              $region98: #{resonance_forward.7} parent=91 // loop_footer_branch
                %553 = sbr.rel target = $region94
              $region99: #{resonance_forward.7} parent=91 // loop_exit
                _
            $region92: #{resonance_forward.7} parent=83 // pred_fallthru
              _
          $region84: #{resonance_forward.7} parent=79 // pred_fallthru
            _
          %612 = vnop
        $region80: #{resonance_forward.7} parent=71 // pred_fallthru
          _
        // Predicated region
        $region118: #{resonance_forward.7} parent=71 // pred_check
          %p613 = pneg %p409
        $region119: #{resonance_forward.7} parent=71 // pred_check_branch
          %615 = sbr.rel (%p613) target = $region121
        $region120: #{resonance_forward.7} parent=71 // pred_region
          %p616 = scmp.lt.s32.totalorder %s39, 1
          %s617 = scalar_select %p616, %s39, 1
          %s618 = scalar_lea.vmem %s16, %s617
        $region121: #{resonance_forward.7} parent=71 // pred_fallthru
          _
      $region72: #{resonance_forward.7} parent=5 // pred_fallthru
        _
      %p619 = scmp.le.s32.totalorder 1, %s31
      %p620 = scmp.lt.s32.totalorder %s31, 5
      %p621 = pnand %p619, %p620
      %p622 = pneg %p621
      // Predicated region
      $region122: #{resonance_forward.7} parent=5 // pred_check
        _
      $region123: #{resonance_forward.7} parent=5 // pred_check_branch
        %624 = sbr.rel (%p621) target = $region125
      $region124: #{resonance_forward.7} parent=5 // pred_region
        %s625 = ssub.s32 %s31, 1
        %s626 = sand.u32 %s376, 1
        %s627 = sand.u32 %s376, 1
        %s628 = smul.addr %s627, 32
        %s629 = scalar_lea.vmem [#allocation3], %s628
        // Predicated region
        $region126: #{resonance_forward.7} parent=124 // pred_check
          %p630 = pneg %p389
        $region127: #{resonance_forward.7} parent=124 // pred_check_branch
          %632 = sbr.rel (%p630) target = $region129
        $region128: #{resonance_forward.7} parent=124 // pred_region
          _
        $region129: #{resonance_forward.7} parent=124 // pred_fallthru
          _
        %p633 = scmp.lt.s32.totalorder %s40, 1
        %s634 = scalar_select %p633, %s40, 1
        %s635 = smul.addr %s634, 8
        %s636 = scalar_lea.vmem %s0, %s635
        %p637 = pneg %p69
        %p638 = pneg %p66
        %p639 = pneg %p90
        %p640 = pneg %p87
        %p641 = pneg %p111
        %p642 = pneg %p108
        %p643 = pneg %p132
        %p644 = pneg %p129
        %p645 = pneg %p153
        %p646 = pneg %p150
        %p647 = pneg %p174
        %p648 = pneg %p171
        %p649 = pneg %p195
        %p650 = pneg %p192
        %p651 = pneg %p216
        %p652 = pneg %p213
        %p653 = pneg %p237
        %p654 = pneg %p234
        %p655 = pneg %p258
        %p656 = pneg %p255
        %p657 = pneg %p279
        %p658 = pneg %p276
        %p659 = pneg %p300
        %p660 = pneg %p297
        %p661 = pneg %p321
        %p662 = pneg %p318
        %p663 = pneg %p342
        %p664 = pneg %p339
        %p665 = pneg %p363
        %p666 = pneg %p360
        %s667 = sand.u32 %s376, 1
        %s668 = sand.u32 %s376, 1
        %s669 = smul.addr %s668, 32
        %s670 = scalar_lea.vmem [#allocation3], %s669
        %p671 = pneg %p389
        %p672 = pneg %p386
        %p673 = scmp.lt.s32.totalorder %s41, 1
        %s674 = scalar_select %p673, %s41, 1
        %s675 = scalar_lea.vmem %s16, %s674
        %p676 = pneg %p415
        %p677 = pneg %p412
        %p678 = pneg %p441
        %p679 = pneg %p438
        %s680 = sand.u32 %s428, 1
        %s681 = scalar_lea.sflag [#allocation5], %s680
        %s682 = sand.u32 %s428, 1
        %s683 = smul.addr %s682, 8
        %s684 = scalar_lea.vmem [#allocation4], %s683
        %p685 = pneg %p469
        %p686 = pneg %p466
        %s687 = sand.u32 %s456, 1
        %s688 = scalar_lea.sflag [#allocation7], %s687
        %s689 = sand.u32 %s456, 1
        %s690 = smul.addr %s689, 4
        %s691 = scalar_lea.vmem [#allocation6], %s690
        %p692 = scmp.lt.s32.totalorder %s40, 1
        %s693 = scalar_select %p692, %s40, 1
        %s694 = smul.addr %s693, 8
        %s695 = scalar_lea.vmem %s0, %s694
        %p696 = scmp.lt.s32.totalorder %s41, 1
        %s697 = scalar_select %p696, %s41, 1
        %s698 = scalar_lea.vmem %s16, %s697
        %p700 = scmp.eq.s32.totalorder %s41, 0
        // Predicated region
        $region130: #{resonance_forward.7} parent=124 // pred_check
          %p701 = pneg %p700
        $region131: #{resonance_forward.7} parent=124 // pred_check_branch
          %703 = sbr.rel (%p701) target = $region133
        $region132: #{resonance_forward.7} parent=124 // pred_region
          %v704 = vld [vmem:[%s695] sm:$0xff]
          %v705 = vld [vmem:[%s1] sm:$0xf]
          %v706 = vld [vmem:[%s1 + $0x4] sm:$0xf]
          %v707 = vld [vmem:[%s1 + $0x8] sm:$0xf]
          %v708 = vld [vmem:[%s1 + $0xc] sm:$0xf]
          %v709 = vld [vmem:[%s1 + $0x10] sm:$0xf]
          %v710 = vld [vmem:[%s1 + $0x14] sm:$0xf]
          %v711 = vld [vmem:[%s1 + $0x18] sm:$0xf]
          %v712 = vld [vmem:[%s1 + $0x1c] sm:$0xf]
          %v713 = vld [vmem:[%s1 + $0x20] sm:$0xf]
          %v714 = vld [vmem:[%s1 + $0x24] sm:$0xf]
          %v715 = vld [vmem:[%s1 + $0x28] sm:$0xf]
          %v716 = vld [vmem:[%s1 + $0x2c] sm:$0xf]
          %v717 = vld [vmem:[%s1 + $0x30] sm:$0xf]
          %v718 = vld [vmem:[%s1 + $0x34] sm:$0xf]
          %v719 = vld [vmem:[%s1 + $0x38] sm:$0xf]
          %v720 = vld [vmem:[%s1 + $0x3c] sm:$0xf]
          %v721 = vld [vmem:[%s2] sm:$0x1]
          %v722 = vpack.c.bf16 %v704, %v704
          %v724 = vlaneseq
          %v725 = vshrl.u32 %v724, 7
          %v726 = vsub.s32 0, %v725
          %v727 = vrot.slane %v721, %v726
          %v745 = vunpack.c.l.b16 %v705
          %v746 = vunpack.c.l.b16 %v706
          %v747 = vunpack.c.l.b16 %v707
          %v748 = vunpack.c.l.b16 %v708
          %v749 = vunpack.c.l.b16 %v709
          %v750 = vunpack.c.l.b16 %v710
          %v751 = vunpack.c.l.b16 %v711
          %v752 = vunpack.c.l.b16 %v712
          %v753 = vunpack.c.l.b16 %v713
          %v754 = vunpack.c.l.b16 %v714
          %v755 = vunpack.c.l.b16 %v715
          %v756 = vunpack.c.l.b16 %v716
          %v757 = vunpack.c.l.b16 %v717
          %v758 = vunpack.c.l.b16 %v718
          %v759 = vunpack.c.l.b16 %v719
          %v760 = vunpack.c.l.b16 %v720
          %v761 = vpack.c.b16 %v746, %v745
          %v762 = vpack.c.b16 %v748, %v747
          %v763 = vpack.c.b16 %v750, %v749
          %v764 = vpack.c.b16 %v752, %v751
          %v765 = vpack.c.b16 %v754, %v753
          %v766 = vpack.c.b16 %v756, %v755
          %v767 = vpack.c.b16 %v758, %v757
          %v768 = vpack.c.b16 %v760, %v759
          %777 = vmatprep.subr.bf16.mxu0 0
          %778 = vmatpush1.bf16.msra.mxu0 %v761
          %779 = vmatprep.subr.bf16.mxu0 0
          %780 = vmatpush1.bf16.msra.mxu0 %v762
          %781 = vmatprep.subr.bf16.mxu0 0
          %782 = vmatpush1.bf16.msra.mxu0 %v763
          %783 = vmatprep.subr.bf16.mxu0 0
          %784 = vmatpush1.bf16.msra.mxu0 %v764
          %785 = vmatprep.subr.bf16.mxu0 0
          %786 = vmatpush1.bf16.msra.mxu0 %v765
          %787 = vmatprep.subr.bf16.mxu0 0
          %788 = vmatpush1.bf16.msra.mxu0 %v766
          %789 = vmatprep.subr.bf16.mxu0 0
          %790 = vmatpush1.bf16.msra.mxu0 %v767
          %791 = vmatprep.subr.bf16.mxu0 0
          %792 = vmatpush1.bf16.msra.mxu0 %v768
          %793 = vmatprep.subr.bf16.mxu0 0
          %794 = vmatpush1.bf16.msra.mxu0 0
          %795 = vmatprep.subr.bf16.mxu0 0
          %796 = vmatpush1.bf16.msra.mxu0 0
          %797 = vmatprep.subr.bf16.mxu0 0
          %798 = vmatpush1.bf16.msra.mxu0 0
          %799 = vmatprep.subr.bf16.mxu0 0
          %800 = vmatpush1.bf16.msra.mxu0 0
          %801 = vmatprep.subr.bf16.mxu0 0
          %802 = vmatpush1.bf16.msra.mxu0 0
          %803 = vmatprep.subr.bf16.mxu0 0
          %804 = vmatpush1.bf16.msra.mxu0 0
          %805 = vmatprep.subr.bf16.mxu0 0
          %806 = vmatpush1.bf16.msra.mxu0 0
          %807 = vmatprep.subr.bf16.mxu0 0
          %808 = vmatpush1.bf16.msra.mxu0 0
          %809 = vmatprep.mubr.bf16.mxu0 0
          %810 = vmatmul.mubr.bf16.gmra.mrb[0].mxu0 %v722
          %v811 = vpop.f32.mrb[0].mxu0
          %v812 = vadd.f32 %v727, %v811
          %v813 = vpop.f32.mrb[0].mxu0
          %v814 = vpop.f32.mrb[0].mxu0
          %v815 = vpop.f32.mrb[0].mxu0
          %816 = vdwg.mxu0
          %v817 = vld [vmem:[%s3] sm:$0x1]
          %v818 = vld [vmem:[%s4] sm:$0x1]
          %vm819 = vcmask 523264
          %v820 = vsel %vm819, %v812, 0.0
          %821 = vadd.xlane.f32.xlu0 %v820
          %v822 = vpop.xlane.xlu0 %821
          %v823 = vrcp.pop 64.0
          %v824 = vmul.f32 %v822, %v823
          %v825 = vsub.f32 %v812, %v824
          %v826 = vmul.f32 %v825, %v825
          %v827 = vsel %vm819, %v826, 0.0
          %828 = vadd.xlane.f32.xlu0 %v827
          %v829 = vpop.xlane.xlu0 %828
          %v830 = vmul.f32 %v829, %v823
          %v831 = vadd.f32 %v830, 1e-05
          %v832 = vrsqrt.pop %v831
          %v833 = vmul.f32 %v825, %v832
          %v835 = vlaneseq
          %v836 = vshrl.u32 %v835, 7
          %v837 = vsub.s32 0, %v836
          %v838 = vrot.slane %v817, %v837
          %v840 = vmul.f32 %v833, %v838
          %v842 = vlaneseq
          %v843 = vshrl.u32 %v842, 7
          %v844 = vsub.s32 0, %v843
          %v845 = vrot.slane %v818, %v844
          %v847 = vadd.f32 %v840, %v845
          %v848 = vmul.f32 %v847, 0.5
          %v849 = vmul.f32 %v847, 0.044715
          %v850 = vmul.f32 %v849, %v847
          %v851 = vmul.f32 %v850, %v847
          %v852 = vadd.f32 %v847, %v851
          %v853 = vmul.f32 %v852, 0.7978846
          %v854 = vtanh.pop %v853
          %v855 = vadd.f32 %v854, 1.0
          %v856 = vmul.f32 %v848, %v855
          %v857 = vld [vmem:[%s5] sm:$0x1]
          %v858 = vld [vmem:[%s6] sm:$0x1]
          %v859 = vsel %vm819, %v856, 0.0
          %860 = vadd.xlane.f32.xlu0 %v859
          %v861 = vpop.xlane.xlu0 %860
          %v862 = vmul.f32 %v861, %v823
          %v863 = vsub.f32 %v856, %v862
          %v864 = vmul.f32 %v863, %v863
          %v865 = vsel %vm819, %v864, 0.0
          %866 = vadd.xlane.f32.xlu0 %v865
          %v867 = vpop.xlane.xlu0 %866
          %v868 = vmul.f32 %v867, %v823
          %v869 = vadd.f32 %v868, 1e-05
          %v870 = vrsqrt.pop %v869
          %v871 = vmul.f32 %v863, %v870
          %v873 = vlaneseq
          %v874 = vshrl.u32 %v873, 7
          %v875 = vsub.s32 0, %v874
          %v876 = vrot.slane %v857, %v875
          %v878 = vmul.f32 %v871, %v876
          %v880 = vlaneseq
          %v881 = vshrl.u32 %v880, 7
          %v882 = vsub.s32 0, %v881
          %v883 = vrot.slane %v858, %v882
          %v885 = vadd.f32 %v878, %v883
          %886 = vst.msk [vmem:[%s684] sm:$0xff] %vm819, %v885
          %v887 = vld [vmem:[%s7] sm:$0xf]
          %v888 = vld [vmem:[%s7 + $0x4] sm:$0xf]
          %v889 = vld [vmem:[%s7 + $0x8] sm:$0xf]
          %v890 = vld [vmem:[%s7 + $0xc] sm:$0xf]
          %v891 = vld [vmem:[%s7 + $0x10] sm:$0xf]
          %v892 = vld [vmem:[%s7 + $0x14] sm:$0xf]
          %v893 = vld [vmem:[%s7 + $0x18] sm:$0xf]
          %v894 = vld [vmem:[%s7 + $0x1c] sm:$0xf]
          %v895 = vld [vmem:[%s8] sm:$0x1]
          %v896 = vpack.c.bf16 %v885, %v885
          %v898 = vlaneseq
          %v899 = vshrl.u32 %v898, 7
          %v900 = vsub.s32 0, %v899
          %v901 = vrot.slane %v895, %v900
          %v911 = vunpack.c.l.b16 %v887
          %v912 = vunpack.c.l.b16 %v888
          %v913 = vunpack.c.l.b16 %v889
          %v914 = vunpack.c.l.b16 %v890
          %v915 = vunpack.c.l.b16 %v891
          %v916 = vunpack.c.l.b16 %v892
          %v917 = vunpack.c.l.b16 %v893
          %v918 = vunpack.c.l.b16 %v894
          %v919 = vpack.c.b16 %v912, %v911
          %v920 = vpack.c.b16 %v914, %v913
          %v921 = vpack.c.b16 %v916, %v915
          %v922 = vpack.c.b16 %v918, %v917
          %v928 = vsel %vm819, %v896, 0
          %930 = vmatprep.subr.bf16.mxu0 0
          %931 = vmatpush1.bf16.msra.mxu0 %v919
          %932 = vmatprep.subr.bf16.mxu0 0
          %933 = vmatpush1.bf16.msra.mxu0 %v920
          %934 = vmatprep.subr.bf16.mxu0 0
          %935 = vmatpush1.bf16.msra.mxu0 %v921
          %936 = vmatprep.subr.bf16.mxu0 0
          %937 = vmatpush1.bf16.msra.mxu0 %v922
          %938 = vmatprep.subr.bf16.mxu0 0
          %939 = vmatpush1.bf16.msra.mxu0 0
          %940 = vmatprep.subr.bf16.mxu0 0
          %941 = vmatpush1.bf16.msra.mxu0 0
          %942 = vmatprep.subr.bf16.mxu0 0
          %943 = vmatpush1.bf16.msra.mxu0 0
          %944 = vmatprep.subr.bf16.mxu0 0
          %945 = vmatpush1.bf16.msra.mxu0 0
          %946 = vmatprep.subr.bf16.mxu0 0
          %947 = vmatpush1.bf16.msra.mxu0 0
          %948 = vmatprep.subr.bf16.mxu0 0
          %949 = vmatpush1.bf16.msra.mxu0 0
          %950 = vmatprep.subr.bf16.mxu0 0
          %951 = vmatpush1.bf16.msra.mxu0 0
          %952 = vmatprep.subr.bf16.mxu0 0
          %953 = vmatpush1.bf16.msra.mxu0 0
          %954 = vmatprep.subr.bf16.mxu0 0
          %955 = vmatpush1.bf16.msra.mxu0 0
          %956 = vmatprep.subr.bf16.mxu0 0
          %957 = vmatpush1.bf16.msra.mxu0 0
          %958 = vmatprep.subr.bf16.mxu0 0
          %959 = vmatpush1.bf16.msra.mxu0 0
          %960 = vmatprep.subr.bf16.mxu0 0
          %961 = vmatpush1.bf16.msra.mxu0 0
          %962 = vmatprep.mubr.bf16.mxu0 0
          %963 = vmatmul.mubr.bf16.gmra.mrb[0].mxu0 %v928
          %v964 = vpop.f32.mrb[0].mxu0
          %v965 = vadd.f32 %v901, %v964
          %v966 = vpop.f32.mrb[0].mxu0
          %v967 = vpop.f32.mrb[0].mxu0
          %v968 = vpop.f32.mrb[0].mxu0
          %969 = vdwg.mxu0
          %v970 = vld [vmem:[%s9] sm:$0x1]
          %v971 = vld [vmem:[%s10] sm:$0x1]
          %972 = vadd.xlane.f32.xlu0 %v965
          %v973 = vpop.xlane.xlu0 %972
          %v974 = vrcp.pop 128.0
          %v975 = vmul.f32 %v973, %v974
          %v976 = vsub.f32 %v965, %v975
          %v977 = vmul.f32 %v976, %v976
          %978 = vadd.xlane.f32.xlu0 %v977
          %v979 = vpop.xlane.xlu0 %978
          %v980 = vmul.f32 %v979, %v974
          %v981 = vadd.f32 %v980, 1e-05
          %v982 = vrsqrt.pop %v981
          %v983 = vmul.f32 %v976, %v982
          %v985 = vlaneseq
          %v986 = vshrl.u32 %v985, 7
          %v987 = vsub.s32 0, %v986
          %v988 = vrot.slane %v970, %v987
          %v990 = vmul.f32 %v983, %v988
          %v992 = vlaneseq
          %v993 = vshrl.u32 %v992, 7
          %v994 = vsub.s32 0, %v993
          %v995 = vrot.slane %v971, %v994
          %v997 = vadd.f32 %v990, %v995
          %v998 = vmul.f32 %v997, 0.5
          %v999 = vmul.f32 %v997, 0.044715
          %v1000 = vmul.f32 %v999, %v997
          %v1001 = vmul.f32 %v1000, %v997
          %v1002 = vadd.f32 %v997, %v1001
          %v1003 = vmul.f32 %v1002, 0.7978846
          %v1004 = vtanh.pop %v1003
          %v1005 = vadd.f32 %v1004, 1.0
          %v1006 = vmul.f32 %v998, %v1005
          %v1007 = vld [vmem:[%s11] sm:$0xf]
          %v1008 = vld [vmem:[%s11 + $0x4] sm:$0xf]
          %v1009 = vld [vmem:[%s11 + $0x8] sm:$0xf]
          %v1010 = vld [vmem:[%s11 + $0xc] sm:$0xf]
          %v1011 = vld [vmem:[%s11 + $0x10] sm:$0xf]
          %v1012 = vld [vmem:[%s11 + $0x14] sm:$0xf]
          %v1013 = vld [vmem:[%s11 + $0x18] sm:$0xf]
          %v1014 = vld [vmem:[%s11 + $0x1c] sm:$0xf]
          %v1015 = vld [vmem:[%s11 + $0x20] sm:$0xf]
          %v1016 = vld [vmem:[%s11 + $0x24] sm:$0xf]
          %v1017 = vld [vmem:[%s11 + $0x28] sm:$0xf]
          %v1018 = vld [vmem:[%s11 + $0x2c] sm:$0xf]
          %v1019 = vld [vmem:[%s11 + $0x30] sm:$0xf]
          %v1020 = vld [vmem:[%s11 + $0x34] sm:$0xf]
          %v1021 = vld [vmem:[%s11 + $0x38] sm:$0xf]
          %v1022 = vld [vmem:[%s11 + $0x3c] sm:$0xf]
          %v1023 = vld [vmem:[%s12] sm:$0x1]
          %v1024 = vpack.c.bf16 %v1006, %v1006
          %v1026 = vlaneseq
          %v1027 = vshrl.u32 %v1026, 7
          %v1028 = vsub.s32 0, %v1027
          %v1029 = vrot.slane %v1023, %v1028
          %v1047 = vunpack.c.l.b16 %v1007
          %v1048 = vunpack.c.l.b16 %v1008
          %v1049 = vunpack.c.l.b16 %v1009
          %v1050 = vunpack.c.l.b16 %v1010
          %v1051 = vunpack.c.l.b16 %v1011
          %v1052 = vunpack.c.l.b16 %v1012
          %v1053 = vunpack.c.l.b16 %v1013
          %v1054 = vunpack.c.l.b16 %v1014
          %v1055 = vunpack.c.l.b16 %v1015
          %v1056 = vunpack.c.l.b16 %v1016
          %v1057 = vunpack.c.l.b16 %v1017
          %v1058 = vunpack.c.l.b16 %v1018
          %v1059 = vunpack.c.l.b16 %v1019
          %v1060 = vunpack.c.l.b16 %v1020
          %v1061 = vunpack.c.l.b16 %v1021
          %v1062 = vunpack.c.l.b16 %v1022
          %v1063 = vpack.c.b16 %v1048, %v1047
          %v1064 = vpack.c.b16 %v1050, %v1049
          %v1065 = vpack.c.b16 %v1052, %v1051
          %v1066 = vpack.c.b16 %v1054, %v1053
          %v1067 = vpack.c.b16 %v1056, %v1055
          %v1068 = vpack.c.b16 %v1058, %v1057
          %v1069 = vpack.c.b16 %v1060, %v1059
          %v1070 = vpack.c.b16 %v1062, %v1061
          %1079 = vmatprep.subr.bf16.mxu0 0
          %1080 = vmatpush1.bf16.msra.mxu0 %v1063
          %1081 = vmatprep.subr.bf16.mxu0 0
          %1082 = vmatpush1.bf16.msra.mxu0 %v1064
          %1083 = vmatprep.subr.bf16.mxu0 0
          %1084 = vmatpush1.bf16.msra.mxu0 %v1065
          %1085 = vmatprep.subr.bf16.mxu0 0
          %1086 = vmatpush1.bf16.msra.mxu0 %v1066
          %1087 = vmatprep.subr.bf16.mxu0 0
          %1088 = vmatpush1.bf16.msra.mxu0 %v1067
          %1089 = vmatprep.subr.bf16.mxu0 0
          %1090 = vmatpush1.bf16.msra.mxu0 %v1068
          %1091 = vmatprep.subr.bf16.mxu0 0
          %1092 = vmatpush1.bf16.msra.mxu0 %v1069
          %1093 = vmatprep.subr.bf16.mxu0 0
          %1094 = vmatpush1.bf16.msra.mxu0 %v1070
          %1095 = vmatprep.subr.bf16.mxu0 0
          %1096 = vmatpush1.bf16.msra.mxu0 0
          %1097 = vmatprep.subr.bf16.mxu0 0
          %1098 = vmatpush1.bf16.msra.mxu0 0
          %1099 = vmatprep.subr.bf16.mxu0 0
          %1100 = vmatpush1.bf16.msra.mxu0 0
          %1101 = vmatprep.subr.bf16.mxu0 0
          %1102 = vmatpush1.bf16.msra.mxu0 0
          %1103 = vmatprep.subr.bf16.mxu0 0
          %1104 = vmatpush1.bf16.msra.mxu0 0
          %1105 = vmatprep.subr.bf16.mxu0 0
          %1106 = vmatpush1.bf16.msra.mxu0 0
          %1107 = vmatprep.subr.bf16.mxu0 0
          %1108 = vmatpush1.bf16.msra.mxu0 0
          %1109 = vmatprep.subr.bf16.mxu0 0
          %1110 = vmatpush1.bf16.msra.mxu0 0
          %1111 = vmatprep.mubr.bf16.mxu0 0
          %1112 = vmatmul.mubr.bf16.gmra.mrb[0].mxu0 %v1024
          %v1113 = vpop.f32.mrb[0].mxu0
          %v1114 = vadd.f32 %v1029, %v1113
          %v1115 = vpop.f32.mrb[0].mxu0
          %v1116 = vpop.f32.mrb[0].mxu0
          %v1117 = vpop.f32.mrb[0].mxu0
          %1118 = vdwg.mxu0
          %v1119 = vld [vmem:[%s13] sm:$0x1]
          %v1120 = vld [vmem:[%s14] sm:$0x1]
          %v1121 = vsel %vm819, %v1114, 0.0
          %1122 = vadd.xlane.f32.xlu0 %v1121
          %v1123 = vpop.xlane.xlu0 %1122
          %v1124 = vmul.f32 %v1123, %v823
          %v1125 = vsub.f32 %v1114, %v1124
          %v1126 = vmul.f32 %v1125, %v1125
          %v1127 = vsel %vm819, %v1126, 0.0
          %1128 = vadd.xlane.f32.xlu0 %v1127
          %v1129 = vpop.xlane.xlu0 %1128
          %v1130 = vmul.f32 %v1129, %v823
          %v1131 = vadd.f32 %v1130, 1e-05
          %v1132 = vrsqrt.pop %v1131
          %v1133 = vmul.f32 %v1125, %v1132
          %v1135 = vlaneseq
          %v1136 = vshrl.u32 %v1135, 7
          %v1137 = vsub.s32 0, %v1136
          %v1138 = vrot.slane %v1119, %v1137
          %v1140 = vmul.f32 %v1133, %v1138
          %v1142 = vlaneseq
          %v1143 = vshrl.u32 %v1142, 7
          %v1144 = vsub.s32 0, %v1143
          %v1145 = vrot.slane %v1120, %v1144
          %v1147 = vadd.f32 %v1140, %v1145
          %v1148 = vpack.c.bf16 %v1147, %v1147
          %vm1149 = vcmask 519168
          %1150 = vst.msk [vmem:[#allocation2] sm:$0xf] %vm1149, %v1148
        $region133: #{resonance_forward.7} parent=124 // pred_fallthru
          _
        %v1151 = vld [vmem:[#allocation2] sm:$0xf]
        %v1152 = vld [vmem:[%s629] sm:$0xf]
        %v1153 = vld [vmem:[%s629 + $0x4] sm:$0xf]
        %v1154 = vld [vmem:[%s629 + $0x8] sm:$0xf]
        %v1155 = vld [vmem:[%s629 + $0xc] sm:$0xf]
        %v1156 = vld [vmem:[%s629 + $0x10] sm:$0xf]
        %v1157 = vld [vmem:[%s629 + $0x14] sm:$0xf]
        %v1158 = vld [vmem:[%s629 + $0x18] sm:$0xf]
        %v1159 = vld [vmem:[%s629 + $0x1c] sm:$0xf]
        %v1160 = vld [vmem:[%s698] sm:$0x1]
        %v1162 = vlaneseq
        %v1163 = vshrl.u32 %v1162, 7
        %v1164 = vsub.s32 0, %v1163
        %v1165 = vrot.slane %v1160, %v1164
        %v1175 = vunpack.c.l.b16 %v1152
        %v1176 = vunpack.c.l.b16 %v1153
        %v1177 = vunpack.c.l.b16 %v1154
        %v1178 = vunpack.c.l.b16 %v1155
        %v1179 = vunpack.c.l.b16 %v1156
        %v1180 = vunpack.c.l.b16 %v1157
        %v1181 = vunpack.c.l.b16 %v1158
        %v1182 = vunpack.c.l.b16 %v1159
        %v1183 = vpack.c.b16 %v1176, %v1175
        %v1184 = vpack.c.b16 %v1178, %v1177
        %v1185 = vpack.c.b16 %v1180, %v1179
        %v1186 = vpack.c.b16 %v1182, %v1181
        %vm1191 = vcmask 523264
        %v1193 = vsel %vm1191, %v1151, 0
        %1195 = vmatprep.subr.bf16.mxu0 0
        %1196 = vmatpush1.bf16.msra.mxu0 %v1183
        %1197 = vmatprep.subr.bf16.mxu0 0
        %1198 = vmatpush1.bf16.msra.mxu0 %v1184
        %1199 = vmatprep.subr.bf16.mxu0 0
        %1200 = vmatpush1.bf16.msra.mxu0 %v1185
        %1201 = vmatprep.subr.bf16.mxu0 0
        %1202 = vmatpush1.bf16.msra.mxu0 %v1186
        %1203 = vmatprep.subr.bf16.mxu0 0
        %1204 = vmatpush1.bf16.msra.mxu0 0
        %1205 = vmatprep.subr.bf16.mxu0 0
        %1206 = vmatpush1.bf16.msra.mxu0 0
        %1207 = vmatprep.subr.bf16.mxu0 0
        %1208 = vmatpush1.bf16.msra.mxu0 0
        %1209 = vmatprep.subr.bf16.mxu0 0
        %1210 = vmatpush1.bf16.msra.mxu0 0
        %1211 = vmatprep.subr.bf16.mxu0 0
        %1212 = vmatpush1.bf16.msra.mxu0 0
        %1213 = vmatprep.subr.bf16.mxu0 0
        %1214 = vmatpush1.bf16.msra.mxu0 0
        %1215 = vmatprep.subr.bf16.mxu0 0
        %1216 = vmatpush1.bf16.msra.mxu0 0
        %1217 = vmatprep.subr.bf16.mxu0 0
        %1218 = vmatpush1.bf16.msra.mxu0 0
        %1219 = vmatprep.subr.bf16.mxu0 0
        %1220 = vmatpush1.bf16.msra.mxu0 0
        %1221 = vmatprep.subr.bf16.mxu0 0
        %1222 = vmatpush1.bf16.msra.mxu0 0
        %1223 = vmatprep.subr.bf16.mxu0 0
        %1224 = vmatpush1.bf16.msra.mxu0 0
        %1225 = vmatprep.subr.bf16.mxu0 0
        %1226 = vmatpush1.bf16.msra.mxu0 0
        %1227 = vmatprep.mubr.bf16.mxu0 0
        %1228 = vmatmul.mubr.bf16.gmra.mrb[0].mxu0 %v1193
        %v1229 = vpop.f32.mrb[0].mxu0
        %v1230 = vadd.f32 %v1165, %v1229
        %v1231 = vpop.f32.mrb[0].mxu0
        %v1232 = vpop.f32.mrb[0].mxu0
        %v1233 = vpop.f32.mrb[0].mxu0
        %1234 = vdwg.mxu0
        %v1235 = vpack.c.bf16 %v1230, %v1230
        %1236 = vst [vmem:[%s691] sm:$0xf] %v1235
        %s1237 = sand.u32 %s428, 1
        %s1238 = scalar_lea.sflag [#allocation5], %s1237
        %s1239 = sand.u32 %s428, 1
        %s1240 = smul.addr %s1239, 8
        %s1241 = scalar_lea.vmem [#allocation4], %s1240
        %s1242 = sand.u32 %s456, 1
        %s1243 = scalar_lea.sflag [#allocation7], %s1242
        %s1244 = sand.u32 %s456, 1
        %s1245 = smul.addr %s1244, 4
        %s1246 = scalar_lea.vmem [#allocation6], %s1245
        // Predicated region
        $region134: #{resonance_forward.7} parent=124 // pred_check
          %p1247 = pneg %p438
        $region135: #{resonance_forward.7} parent=124 // pred_check_branch
          %1249 = sbr.rel (%p1247) target = $region137
        $region136: #{resonance_forward.7} parent=124 // pred_region
          %s1251 = ssub.s32 128, 128
          %1252 = vsyncadd %s1238, %s1251
          %s1253 = smul.addr %s40, 128
          %s1254 = scalar_lea.hbm %s17, %s1253
          %s1256 = sshll.u32 %s1241, 4
          %s1257 = int_to_ptr.vmem [resolvable:$true] %s1256
          %1259 = dma.vmem_to_hbm [thread:$0]  %s1257, 128, %s1254, %s1238
        $region137: #{resonance_forward.7} parent=124 // pred_fallthru
          _
        // Predicated region
        $region138: #{resonance_forward.7} parent=124 // pred_check
          %p1260 = pneg %p466
        $region139: #{resonance_forward.7} parent=124 // pred_check_branch
          %1262 = sbr.rel (%p1260) target = $region141
        $region140: #{resonance_forward.7} parent=124 // pred_region
          %s1264 = ssub.s32 64, 64
          %1265 = vsyncadd %s1243, %s1264
          %s1266 = smul.addr %s40, 2
          %s1267 = sadd.s32 %s41, %s1266
          %s1268 = smul.addr %s1267, 64
          %s1269 = scalar_lea.hbm %s18, %s1268
          %s1271 = sshll.u32 %s1246, 4
          %s1272 = int_to_ptr.vmem [resolvable:$true] %s1271
          %1274 = dma.vmem_to_hbm [thread:$0]  %s1272, 64, %s1269, %s1243
        $region141: #{resonance_forward.7} parent=124 // pred_fallthru
          _
      $region125: #{resonance_forward.7} parent=5 // pred_fallthru
        _
      %p1275 = scmp.le.s32.totalorder 2, %s31
      // Predicated region
      $region142: #{resonance_forward.7} parent=5 // pred_check
        %p1276 = pneg %p1275
      $region143: #{resonance_forward.7} parent=5 // pred_check_branch
        %1278 = sbr.rel (%p1276) target = $region145
      $region144: #{resonance_forward.7} parent=5 // pred_region
        %s1279 = ssub.s32 %s31, 2
        // Predicated region
        $region146: #{resonance_forward.7} parent=144 // pred_check
          %p1280 = pneg %p444
        $region147: #{resonance_forward.7} parent=144 // pred_check_branch
          %1282 = sbr.rel (%p1280) target = $region149
        $region148: #{resonance_forward.7} parent=144 // pred_region
          %s1283 = sand.u32 %s429, 1
          %s1284 = scalar_lea.sflag [#allocation5], %s1283
          %s1285 = sand.u32 %s429, 1
          %s1286 = smul.addr %s1285, 8
          %s1287 = scalar_lea.vmem [#allocation4], %s1286
          %1288 = dma.done %s1284, 128
        $region149: #{resonance_forward.7} parent=144 // pred_fallthru
          _
        // Predicated region
        $region150: #{resonance_forward.7} parent=144 // pred_check
          %p1289 = pneg %p472
        $region151: #{resonance_forward.7} parent=144 // pred_check_branch
          %1291 = sbr.rel (%p1289) target = $region153
        $region152: #{resonance_forward.7} parent=144 // pred_region
          %s1292 = sand.u32 %s457, 1
          %s1293 = scalar_lea.sflag [#allocation7], %s1292
          %s1294 = sand.u32 %s457, 1
          %s1295 = smul.addr %s1294, 4
          %s1296 = scalar_lea.vmem [#allocation6], %s1295
          %1297 = dma.done %s1293, 64
        $region153: #{resonance_forward.7} parent=144 // pred_fallthru
          _
      $region145: #{resonance_forward.7} parent=5 // pred_fallthru
        _
    $region6: #{resonance_forward.7} parent=1 // loop_footer
      %s35 = sadd.s32 1, %s31
    $region7: #{resonance_forward.7} parent=1 // loop_footer_branch
      %30 = sbr.rel target = $region3
    $region8: #{resonance_forward.7} parent=1 // loop_exit
      _
    %1298 = vsyncpa [#allocation5], 1
    %s1299 = scalar_lea.sflag [#allocation5], 1
    %1300 = vsyncpa %s1299, 1
    %1301 = vsyncpa [#allocation7], 1
    %s1302 = scalar_lea.sflag [#allocation7], 1
    %1303 = vsyncpa %s1302, 1

// kernel: resonance_forward.4
$region0: #{resonance_forward.4}
  #allocation0 [shape = 'u32[]', space=smem, size = 0x4, offset = 0x4, fixed_abs, tag = 'smem constant byte address 0x4 - core index']
  #allocation1 [shape = 'u32[144,128]{1,0:T(1,128)}', space=vmem, size = 0x12000, scoped, tag = 'internal scratch']
  #allocation2 [shape = 'bf16[8,2,192]{2,1,0:T(2,128)(2,1)}', space=vmem, size = 0x2000, scoped, tag = 'scratch operand']
  %s0 = inlined_call_operand.vmem [shape: s32[2,1], index: 0, kind: input, shape index: {}]
  %s1 = inlined_call_operand.vmem [shape: f32[8,2,64], index: 1, kind: input, shape index: {}]
  %s2 = inlined_call_operand.vmem [shape: bf16[2,64,192], index: 2, kind: input, shape index: {}]
  %s3 = inlined_call_operand.vmem [shape: bf16[2,64,192], index: 3, kind: input, shape index: {}]
  %s4 = inlined_call_operand.vmem [shape: f32[2,1,192], index: 4, kind: input, shape index: {}]
  %s5 = inlined_call_operand.vmem [shape: f32[2,1,192], index: 5, kind: input, shape index: {}]
  %s6 = inlined_call_operand.vmem [shape: f32[2,8,2,64], index: 6, kind: output, shape index: {0}]
  %s7 = inlined_call_operand.hbm [shape: f32[2,2,64], index: 7, kind: output, shape index: {1}]
  %8 = xla_tuple %s6, %s7
  %s9 = sld [smem:[#allocation0]]
  $region65: #{resonance_forward.4} parent=0
    _
  %s11 = ssub.s32 1, %s9
  %s12 = scalar_select 0, %s11, %s9
  $region1: #{resonance_forward.4} parent=0
    #allocation3 [shape = 'u8[2048]{0}', space=vmem, size = 0x800, scoped, tag = 'output window, operand 1']
    #allocation4 [shape = 's32[2]{0}', space=sflag, size = 0x8, scoped, tag = 'scoped memory for resonance_forward.4']
    %13 = vsyncpa [#allocation4], 0
    %s14 = scalar_lea.sflag [#allocation4], 1
    %15 = vsyncpa %s14, 0
    loop: start=0, step=1, limit=4
    $region2: #{resonance_forward.4} parent=1 // loop_pre_header
      _
    $region3: #{resonance_forward.4} parent=1 // loop_header
      %s17 = sphi 0, %s21
      %p18 = scmp.ge.s32.totalorder %s17, 4
      %s25 = sphi 0, %s25
      %s27 = sphi 0, %s25
      %s28 = sphi 0, %s27
      %s42 = sphi 0, %s28
      %s46 = sphi 0, %s46
      %s48 = sphi 0, %s46
      %s49 = sphi 0, %s48
      %s63 = sphi 0, %s49
      %s69 = sphi 0, %s71
      %s72 = sphi 0, %s69
      %s73 = sphi 0, %s72
      %s89 = sphi 0, %s73
      %s95 = sphi 0, %s97
      %s98 = sphi 0, %s95
      %s99 = sphi 0, %s98
      %s115 = sphi 0, %s99
      %s121 = sphi 0, %s123
      %s124 = sphi 0, %s121
      %s125 = sphi 0, %s124
      %s141 = sphi 0, %s125
      %s147 = sphi 0, %s149
      %s150 = sphi 0, %s147
      %s151 = sphi 0, %s150
      %s167 = sphi 0, %s151
      %s173 = sphi 0, %s175
      %s176 = sphi 0, %s173
      %s177 = sphi 0, %s176
      %s193 = sphi 0, %s177
      %s199 = sphi 0, %s201
      %s202 = sphi 0, %s199
      %s203 = sphi 0, %s202
      %s219 = sphi 0, %s203
    $region4: #{resonance_forward.4} parent=1 // loop_header_branch
      %20 = sbr.rel (%p18) target = $region8
    $region5: #{resonance_forward.4} parent=1 // loop_body
      %s22 = ssub.s32 %s17, 1
      %s23 = ssub.s32 %s17, 2
      %s24 = sadd.s32 %s17, 1
      %s26 = sadd.s32 %s25, 1
      %p29 = scmp.eq.s32.totalorder %s17, 1
      %p30 = scmp.ne.s32.totalorder %s25, %s27
      %p31 = scmp.eq.s32.totalorder %s17, 0
      %p32 = por %p30, %p31
      %p33 = scmp.ne.s32.totalorder %s25, %s27
      %p34 = scmp.eq.s32.totalorder %s22, 1
      %p35 = por %p33, %p34
      %p36 = scmp.ne.s32.totalorder %s27, %s28
      %p37 = scmp.eq.s32.totalorder %s22, 0
      %p38 = por %p36, %p37
      %p39 = scmp.ne.s32.totalorder %s27, %s28
      %p40 = scmp.eq.s32.totalorder %s23, 1
      %p41 = por %p39, %p40
      %p43 = scmp.ne.s32.totalorder %s28, %s42
      %p44 = scmp.eq.s32.totalorder %s23, 0
      %p45 = por %p43, %p44
      %s47 = sadd.s32 %s46, 1
      %p50 = scmp.eq.s32.totalorder %s17, 1
      %p51 = scmp.ne.s32.totalorder %s46, %s48
      %p52 = scmp.eq.s32.totalorder %s17, 0
      %p53 = por %p51, %p52
      %p54 = scmp.ne.s32.totalorder %s46, %s48
      %p55 = scmp.eq.s32.totalorder %s22, 1
      %p56 = por %p54, %p55
      %p57 = scmp.ne.s32.totalorder %s48, %s49
      %p58 = scmp.eq.s32.totalorder %s22, 0
      %p59 = por %p57, %p58
      %p60 = scmp.ne.s32.totalorder %s48, %s49
      %p61 = scmp.eq.s32.totalorder %s23, 1
      %p62 = por %p60, %p61
      %p64 = scmp.ne.s32.totalorder %s49, %s63
      %p65 = scmp.eq.s32.totalorder %s23, 0
      %p66 = por %p64, %p65
      %s67 = ssub.s32 %s17, %s24
      %p68 = scmp.eq.s32.totalorder %s67, 0
      %s70 = sadd.s32 %s69, 1
      %s71 = scalar_select %p68, %s69, %s70
      %p74 = pneg %p68
      %p75 = scmp.eq.s32.totalorder %s17, 1
      %p76 = por %p74, %p75
      %p77 = scmp.ne.s32.totalorder %s69, %s72
      %p78 = scmp.eq.s32.totalorder %s17, 0
      %p79 = por %p77, %p78
      %p80 = scmp.ne.s32.totalorder %s69, %s72
      %p81 = scmp.eq.s32.totalorder %s22, 1
      %p82 = por %p80, %p81
      %p83 = scmp.ne.s32.totalorder %s72, %s73
      %p84 = scmp.eq.s32.totalorder %s22, 0
      %p85 = por %p83, %p84
      %p86 = scmp.ne.s32.totalorder %s72, %s73
      %p87 = scmp.eq.s32.totalorder %s23, 1
      %p88 = por %p86, %p87
      %p90 = scmp.ne.s32.totalorder %s73, %s89
      %p91 = scmp.eq.s32.totalorder %s23, 0
      %p92 = por %p90, %p91
      %s93 = ssub.s32 %s17, %s24
      %p94 = scmp.eq.s32.totalorder %s93, 0
      %s96 = sadd.s32 %s95, 1
      %s97 = scalar_select %p94, %s95, %s96
      %p100 = pneg %p94
      %p101 = scmp.eq.s32.totalorder %s17, 1
      %p102 = por %p100, %p101
      %p103 = scmp.ne.s32.totalorder %s95, %s98
      %p104 = scmp.eq.s32.totalorder %s17, 0
      %p105 = por %p103, %p104
      %p106 = scmp.ne.s32.totalorder %s95, %s98
      %p107 = scmp.eq.s32.totalorder %s22, 1
      %p108 = por %p106, %p107
      %p109 = scmp.ne.s32.totalorder %s98, %s99
      %p110 = scmp.eq.s32.totalorder %s22, 0
      %p111 = por %p109, %p110
      %p112 = scmp.ne.s32.totalorder %s98, %s99
      %p113 = scmp.eq.s32.totalorder %s23, 1
      %p114 = por %p112, %p113
      %p116 = scmp.ne.s32.totalorder %s99, %s115
      %p117 = scmp.eq.s32.totalorder %s23, 0
      %p118 = por %p116, %p117
      %s119 = ssub.s32 %s17, %s24
      %p120 = scmp.eq.s32.totalorder %s119, 0
      %s122 = sadd.s32 %s121, 1
      %s123 = scalar_select %p120, %s121, %s122
      %p126 = pneg %p120
      %p127 = scmp.eq.s32.totalorder %s17, 1
      %p128 = por %p126, %p127
      %p129 = scmp.ne.s32.totalorder %s121, %s124
      %p130 = scmp.eq.s32.totalorder %s17, 0
      %p131 = por %p129, %p130
      %p132 = scmp.ne.s32.totalorder %s121, %s124
      %p133 = scmp.eq.s32.totalorder %s22, 1
      %p134 = por %p132, %p133
      %p135 = scmp.ne.s32.totalorder %s124, %s125
      %p136 = scmp.eq.s32.totalorder %s22, 0
      %p137 = por %p135, %p136
      %p138 = scmp.ne.s32.totalorder %s124, %s125
      %p139 = scmp.eq.s32.totalorder %s23, 1
      %p140 = por %p138, %p139
      %p142 = scmp.ne.s32.totalorder %s125, %s141
      %p143 = scmp.eq.s32.totalorder %s23, 0
      %p144 = por %p142, %p143
      %s145 = ssub.s32 %s17, %s24
      %p146 = scmp.eq.s32.totalorder %s145, 0
      %s148 = sadd.s32 %s147, 1
      %s149 = scalar_select %p146, %s147, %s148
      %p152 = pneg %p146
      %p153 = scmp.eq.s32.totalorder %s17, 1
      %p154 = por %p152, %p153
      %p155 = scmp.ne.s32.totalorder %s147, %s150
      %p156 = scmp.eq.s32.totalorder %s17, 0
      %p157 = por %p155, %p156
      %p158 = scmp.ne.s32.totalorder %s147, %s150
      %p159 = scmp.eq.s32.totalorder %s22, 1
      %p160 = por %p158, %p159
      %p161 = scmp.ne.s32.totalorder %s150, %s151
      %p162 = scmp.eq.s32.totalorder %s22, 0
      %p163 = por %p161, %p162
      %p164 = scmp.ne.s32.totalorder %s150, %s151
      %p165 = scmp.eq.s32.totalorder %s23, 1
      %p166 = por %p164, %p165
      %p168 = scmp.ne.s32.totalorder %s151, %s167
      %p169 = scmp.eq.s32.totalorder %s23, 0
      %p170 = por %p168, %p169
      %s171 = ssub.s32 %s17, %s24
      %p172 = scmp.eq.s32.totalorder %s171, 0
      %s174 = sadd.s32 %s173, 1
      %s175 = scalar_select %p172, %s173, %s174
      %p178 = pneg %p172
      %p179 = scmp.eq.s32.totalorder %s17, 1
      %p180 = por %p178, %p179
      %p181 = scmp.ne.s32.totalorder %s173, %s176
      %p182 = scmp.eq.s32.totalorder %s17, 0
      %p183 = por %p181, %p182
      %p184 = scmp.ne.s32.totalorder %s173, %s176
      %p185 = scmp.eq.s32.totalorder %s22, 1
      %p186 = por %p184, %p185
      %p187 = scmp.ne.s32.totalorder %s176, %s177
      %p188 = scmp.eq.s32.totalorder %s22, 0
      %p189 = por %p187, %p188
      %p190 = scmp.ne.s32.totalorder %s176, %s177
      %p191 = scmp.eq.s32.totalorder %s23, 1
      %p192 = por %p190, %p191
      %p194 = scmp.ne.s32.totalorder %s177, %s193
      %p195 = scmp.eq.s32.totalorder %s23, 0
      %p196 = por %p194, %p195
      %s197 = ssub.s32 %s17, %s24
      %p198 = scmp.eq.s32.totalorder %s197, 0
      %s200 = sadd.s32 %s199, 1
      %s201 = scalar_select %p198, %s199, %s200
      %p204 = pneg %p198
      %p205 = scmp.eq.s32.totalorder %s17, 1
      %p206 = por %p204, %p205
      %p207 = scmp.ne.s32.totalorder %s199, %s202
      %p208 = scmp.eq.s32.totalorder %s17, 0
      %p209 = por %p207, %p208
      %p210 = scmp.ne.s32.totalorder %s199, %s202
      %p211 = scmp.eq.s32.totalorder %s22, 1
      %p212 = por %p210, %p211
      %p213 = scmp.ne.s32.totalorder %s202, %s203
      %p214 = scmp.eq.s32.totalorder %s22, 0
      %p215 = por %p213, %p214
      %p216 = scmp.ne.s32.totalorder %s202, %s203
      %p217 = scmp.eq.s32.totalorder %s23, 1
      %p218 = por %p216, %p217
      %p220 = scmp.ne.s32.totalorder %s203, %s219
      %p221 = scmp.eq.s32.totalorder %s23, 0
      %p222 = por %p220, %p221
      %p223 = scmp.le.s32.totalorder 1, %s17
      %p224 = scmp.lt.s32.totalorder %s17, 3
      %p225 = pnand %p223, %p224
      %p226 = pneg %p225
      // Predicated region
      $region9: #{resonance_forward.4} parent=5 // pred_check
        _
      $region10: #{resonance_forward.4} parent=5 // pred_check_branch
        %228 = sbr.rel (%p225) target = $region12
      $region11: #{resonance_forward.4} parent=5 // pred_region
        %s229 = ssub.s32 %s17, 1
        // Predicated region
        $region13: #{resonance_forward.4} parent=11 // pred_check
          %p230 = pneg %p38
        $region14: #{resonance_forward.4} parent=11 // pred_check_branch
          %232 = sbr.rel (%p230) target = $region16
        $region15: #{resonance_forward.4} parent=11 // pred_region
          _
        $region16: #{resonance_forward.4} parent=11 // pred_fallthru
          _
        // Predicated region
        $region17: #{resonance_forward.4} parent=11 // pred_check
          %p233 = pneg %p59
        $region18: #{resonance_forward.4} parent=11 // pred_check_branch
          %235 = sbr.rel (%p233) target = $region20
        $region19: #{resonance_forward.4} parent=11 // pred_region
          _
        $region20: #{resonance_forward.4} parent=11 // pred_fallthru
          _
      $region12: #{resonance_forward.4} parent=5 // pred_fallthru
        _
      %p236 = scmp.lt.s32.totalorder %s17, 2
      // Predicated region
      $region21: #{resonance_forward.4} parent=5 // pred_check
        %p237 = pneg %p236
      $region22: #{resonance_forward.4} parent=5 // pred_check_branch
        %239 = sbr.rel (%p237) target = $region24
      $region23: #{resonance_forward.4} parent=5 // pred_region
        // Predicated region
        $region25: #{resonance_forward.4} parent=23 // pred_check
          %p240 = pneg %p79
        $region26: #{resonance_forward.4} parent=23 // pred_check_branch
          %242 = sbr.rel (%p240) target = $region28
        $region27: #{resonance_forward.4} parent=23 // pred_region
          %p243 = scmp.lt.s32.totalorder %s17, 1
          %s244 = scalar_select %p243, %s17, 1
          %s245 = smul.addr %s244, 16
          %s246 = smul.addr %s245, 4
          %s247 = scalar_lea.vmem %s2, %s246
        $region28: #{resonance_forward.4} parent=23 // pred_fallthru
          _
        // Predicated region
        $region29: #{resonance_forward.4} parent=23 // pred_check
          %p248 = pneg %p105
        $region30: #{resonance_forward.4} parent=23 // pred_check_branch
          %250 = sbr.rel (%p248) target = $region32
        $region31: #{resonance_forward.4} parent=23 // pred_region
          %p251 = scmp.lt.s32.totalorder %s17, 1
          %s252 = scalar_select %p251, %s17, 1
          %s253 = smul.addr %s252, 16
          %s254 = smul.addr %s253, 4
          %s255 = scalar_lea.vmem %s3, %s254
        $region32: #{resonance_forward.4} parent=23 // pred_fallthru
          _
        // Predicated region
        $region33: #{resonance_forward.4} parent=23 // pred_check
          %p256 = pneg %p131
        $region34: #{resonance_forward.4} parent=23 // pred_check_branch
          %258 = sbr.rel (%p256) target = $region36
        $region35: #{resonance_forward.4} parent=23 // pred_region
          %p259 = scmp.lt.s32.totalorder %s17, 1
          %s260 = scalar_select %p259, %s17, 1
          %s261 = smul.addr %s260, 2
          %s262 = scalar_lea.vmem %s4, %s261
        $region36: #{resonance_forward.4} parent=23 // pred_fallthru
          _
        // Predicated region
        $region37: #{resonance_forward.4} parent=23 // pred_check
          %p263 = pneg %p157
        $region38: #{resonance_forward.4} parent=23 // pred_check_branch
          %265 = sbr.rel (%p263) target = $region40
        $region39: #{resonance_forward.4} parent=23 // pred_region
          %p266 = scmp.lt.s32.totalorder %s17, 1
          %s267 = scalar_select %p266, %s17, 1
          %s268 = smul.addr %s267, 2
          %s269 = scalar_lea.vmem %s5, %s268
        $region40: #{resonance_forward.4} parent=23 // pred_fallthru
          _
      $region24: #{resonance_forward.4} parent=5 // pred_fallthru
        _
      %p270 = scmp.le.s32.totalorder 1, %s17
      %p271 = scmp.lt.s32.totalorder %s17, 3
      %p272 = pnand %p270, %p271
      %p273 = pneg %p272
      // Predicated region
      $region41: #{resonance_forward.4} parent=5 // pred_check
        _
      $region42: #{resonance_forward.4} parent=5 // pred_check_branch
        %275 = sbr.rel (%p272) target = $region44
      $region43: #{resonance_forward.4} parent=5 // pred_region
        %s276 = ssub.s32 %s17, 1
        %p277 = pneg %p38
        %p278 = pneg %p35
        %p279 = pneg %p59
        %p280 = pneg %p56
        %p281 = scmp.lt.s32.totalorder %s22, 1
        %s282 = scalar_select %p281, %s22, 1
        %s283 = smul.addr %s282, 16
        %s284 = smul.addr %s283, 4
        %s285 = scalar_lea.vmem %s2, %s284
        %p286 = pneg %p85
        %p287 = pneg %p82
        %p288 = scmp.lt.s32.totalorder %s22, 1
        %s289 = scalar_select %p288, %s22, 1
        %s290 = smul.addr %s289, 16
        %s291 = smul.addr %s290, 4
        %s292 = scalar_lea.vmem %s3, %s291
        %p293 = pneg %p111
        %p294 = pneg %p108
        %p295 = scmp.lt.s32.totalorder %s22, 1
        %s296 = scalar_select %p295, %s22, 1
        %s297 = smul.addr %s296, 2
        %s298 = scalar_lea.vmem %s4, %s297
        %p299 = pneg %p137
        %p300 = pneg %p134
        %p301 = scmp.lt.s32.totalorder %s22, 1
        %s302 = scalar_select %p301, %s22, 1
        %s303 = smul.addr %s302, 2
        %s304 = scalar_lea.vmem %s5, %s303
        %p305 = pneg %p163
        %p306 = pneg %p160
        %p307 = pneg %p189
        %p308 = pneg %p186
        %p309 = scmp.lt.s32.totalorder %s22, 1
        %s310 = scalar_select %p309, %s22, 1
        %s311 = smul.addr %s310, 8
        %s312 = smul.addr %s311, 2
        %s313 = scalar_lea.vmem %s6, %s312
        %p314 = pneg %p215
        %p315 = pneg %p212
        %s316 = sand.u32 %s202, 1
        %s317 = scalar_lea.sflag [#allocation4], %s316
        %s318 = sand.u32 %s202, 1
        %s319 = smul.addr %s318, 2
        %s320 = scalar_lea.vmem [#allocation3], %s319
        %p321 = scmp.lt.s32.totalorder %s22, 1
        %s322 = scalar_select %p321, %s22, 1
        %s323 = smul.addr %s322, 16
        %s324 = smul.addr %s323, 4
        %s325 = scalar_lea.vmem %s2, %s324
        %p326 = scmp.lt.s32.totalorder %s22, 1
        %s327 = scalar_select %p326, %s22, 1
        %s328 = smul.addr %s327, 16
        %s329 = smul.addr %s328, 4
        %s330 = scalar_lea.vmem %s3, %s329
        %p331 = scmp.lt.s32.totalorder %s22, 1
        %s332 = scalar_select %p331, %s22, 1
        %s333 = smul.addr %s332, 2
        %s334 = scalar_lea.vmem %s4, %s333
        %p335 = scmp.lt.s32.totalorder %s22, 1
        %s336 = scalar_select %p335, %s22, 1
        %s337 = smul.addr %s336, 2
        %s338 = scalar_lea.vmem %s5, %s337
        %p339 = scmp.lt.s32.totalorder %s22, 1
        %s340 = scalar_select %p339, %s22, 1
        %s341 = smul.addr %s340, 8
        %s342 = smul.addr %s341, 2
        %s343 = scalar_lea.vmem %s6, %s342
        %p345 = scmp.eq.s32.totalorder %s22, 0
        %v346 = vld [vmem:[%s0] sm:$0x3]
        %v347 = vld [vmem:[%s1] sm:$0x3]
        %v348 = vld [vmem:[%s1 + $0x2] sm:$0x3]
        %v349 = vld [vmem:[%s1 + $0x4] sm:$0x3]
        %v350 = vld [vmem:[%s1 + $0x6] sm:$0x3]
        %v351 = vld [vmem:[%s1 + $0x8] sm:$0x3]
        %v352 = vld [vmem:[%s1 + $0xa] sm:$0x3]
        %v353 = vld [vmem:[%s1 + $0xc] sm:$0x3]
        %v354 = vld [vmem:[%s1 + $0xe] sm:$0x3]
        %v363 = vcombine.low %v347, %v348
        %v364 = vcombine.low %v349, %v350
        %v366 = vunpack.c.l.s4 1983009808
        %v367 = vunpack.c.0.s8 %v366
        %v368 = vlaneseq
        %v369 = vshrl.u32 %v368, 7
        %v370 = vsub.s32 %v367, %v369
        %v371 = vrot.slane %v363, %v370
        %v373 = vunpack.c.l.s4 1983009808
        %v374 = vunpack.c.0.s8 %v373
        %v375 = vlaneseq
        %v376 = vshrl.u32 %v375, 7
        %v377 = vsub.s32 %v374, %v376
        %v378 = vrot.slane %v364, %v377
        %v379 = vcombine.low %v371, %v378
        %v380 = vcombine.low %v351, %v352
        %v381 = vcombine.low %v353, %v354
        %v383 = vunpack.c.l.s4 1983009808
        %v384 = vunpack.c.0.s8 %v383
        %v385 = vlaneseq
        %v386 = vshrl.u32 %v385, 7
        %v387 = vsub.s32 %v384, %v386
        %v388 = vrot.slane %v380, %v387
        %v390 = vunpack.c.l.s4 1983009808
        %v391 = vunpack.c.0.s8 %v390
        %v392 = vlaneseq
        %v393 = vshrl.u32 %v392, 7
        %v394 = vsub.s32 %v391, %v393
        %v395 = vrot.slane %v381, %v394
        %v396 = vcombine.low %v388, %v395
        %v399 = vpack.c.bf16 %v396, %v379
        %v400 = vld [vmem:[%s325] sm:$0xff]
        %v401 = vld [vmem:[%s325 + $0x8] sm:$0xff]
        %v402 = vld [vmem:[%s325 + $0x10] sm:$0xff]
        %v403 = vld [vmem:[%s325 + $0x18] sm:$0xff]
        %v404 = vld [vmem:[%s325 + $0x20] sm:$0xff]
        %v405 = vld [vmem:[%s325 + $0x28] sm:$0xff]
        %v406 = vld [vmem:[%s325 + $0x30] sm:$0xff]
        %v407 = vld [vmem:[%s325 + $0x38] sm:$0xff]
        %v408 = vld [vmem:[%s334] sm:$0x3]
        %v410 = vlaneseq
        %v411 = vshrl.u32 %v410, 7
        %v412 = vsub.s32 0, %v411
        %v413 = vrot.slane %v408, %v412
        %v414 = vlaneseq
        %v415 = vshrl.u32 %v414, 7
        %v416 = vsub.s32 1, %v415
        %v417 = vrot.slane %v408, %v416
        %v428 = vunpack.c.l.b16 %v400
        %v429 = vunpack.c.h.b16 %v400
        %v430 = vunpack.c.l.b16 %v401
        %v431 = vunpack.c.h.b16 %v401
        %v432 = vunpack.c.l.b16 %v402
        %v433 = vunpack.c.h.b16 %v402
        %v434 = vunpack.c.l.b16 %v403
        %v435 = vunpack.c.h.b16 %v403
        %v436 = vunpack.c.l.b16 %v404
        %v437 = vunpack.c.h.b16 %v404
        %v438 = vunpack.c.l.b16 %v405
        %v439 = vunpack.c.h.b16 %v405
        %v440 = vunpack.c.l.b16 %v406
        %v441 = vunpack.c.h.b16 %v406
        %v442 = vunpack.c.l.b16 %v407
        %v443 = vunpack.c.h.b16 %v407
        %v444 = vpack.c.b16 %v430, %v428
        %v445 = vpack.c.b16 %v431, %v429
        %v446 = vpack.c.b16 %v434, %v432
        %v447 = vpack.c.b16 %v435, %v433
        %v448 = vpack.c.b16 %v438, %v436
        %v449 = vpack.c.b16 %v439, %v437
        %v450 = vpack.c.b16 %v442, %v440
        %v451 = vpack.c.b16 %v443, %v441
        %vm460 = vcmask 523264
        %v462 = vsel %vm460, %v399, 0
        %464 = vmatprep.subr.bf16.mxu0 %v445
        %465 = vmatpush1.bf16.msra.mxu0 %v444
        %466 = vmatprep.subr.bf16.mxu0 %v447
        %467 = vmatpush1.bf16.msra.mxu0 %v446
        %468 = vmatprep.subr.bf16.mxu0 %v449
        %469 = vmatpush1.bf16.msra.mxu0 %v448
        %470 = vmatprep.subr.bf16.mxu0 %v451
        %471 = vmatpush1.bf16.msra.mxu0 %v450
        %472 = vmatprep.subr.bf16.mxu0 0
        %473 = vmatpush1.bf16.msra.mxu0 0
        %474 = vmatprep.subr.bf16.mxu0 0
        %475 = vmatpush1.bf16.msra.mxu0 0
        %476 = vmatprep.subr.bf16.mxu0 0
        %477 = vmatpush1.bf16.msra.mxu0 0
        %478 = vmatprep.subr.bf16.mxu0 0
        %479 = vmatpush1.bf16.msra.mxu0 0
        %480 = vmatprep.subr.bf16.mxu0 0
        %481 = vmatpush1.bf16.msra.mxu0 0
        %482 = vmatprep.subr.bf16.mxu0 0
        %483 = vmatpush1.bf16.msra.mxu0 0
        %484 = vmatprep.subr.bf16.mxu0 0
        %485 = vmatpush1.bf16.msra.mxu0 0
        %486 = vmatprep.subr.bf16.mxu0 0
        %487 = vmatpush1.bf16.msra.mxu0 0
        %488 = vmatprep.subr.bf16.mxu0 0
        %489 = vmatpush1.bf16.msra.mxu0 0
        %490 = vmatprep.subr.bf16.mxu0 0
        %491 = vmatpush1.bf16.msra.mxu0 0
        %492 = vmatprep.subr.bf16.mxu0 0
        %493 = vmatpush1.bf16.msra.mxu0 0
        %494 = vmatprep.subr.bf16.mxu0 0
        %495 = vmatpush1.bf16.msra.mxu0 0
        %496 = vmatprep.mubr.bf16.mxu0 0
        %497 = vmatmul.mubr.bf16.gmra.mrb[0].mxu0 %v462
        %v498 = vpop.f32.mrb[0].mxu0
        %v499 = vadd.f32 %v413, %v498
        %v500 = vpop.f32.mrb[0].mxu0
        %v501 = vadd.f32 %v417, %v500
        %v502 = vpop.f32.mrb[0].mxu0
        %v503 = vadd.f32 %v413, %v502
        %v504 = vpop.f32.mrb[0].mxu0
        %v505 = vadd.f32 %v417, %v504
        %506 = vdwg.mxu0
        %v511 = vcombine.low %v499, %v501
        %v512 = vcombine.high %v499, %v501
        %v514 = vunpack.c.l.s4 1983009808
        %v515 = vunpack.c.0.s8 %v514
        %v516 = vlaneseq
        %v517 = vshrl.u32 %v516, 7
        %v518 = vsub.s32 %v515, %v517
        %v519 = vrot.slane %v511, %v518
        %v521 = vunpack.c.l.s4 1983009808
        %v522 = vunpack.c.0.s8 %v521
        %v523 = vlaneseq
        %v524 = vshrl.u32 %v523, 7
        %v525 = vsub.s32 %v522, %v524
        %v526 = vrot.slane %v512, %v525
        %v527 = vcombine.high %v519, %v519
        %v528 = vcombine.high %v526, %v526
        %v529 = vcombine.low %v503, %v505
        %v530 = vcombine.high %v503, %v505
        %v532 = vunpack.c.l.s4 1983009808
        %v533 = vunpack.c.0.s8 %v532
        %v534 = vlaneseq
        %v535 = vshrl.u32 %v534, 7
        %v536 = vsub.s32 %v533, %v535
        %v537 = vrot.slane %v529, %v536
        %v539 = vunpack.c.l.s4 1983009808
        %v540 = vunpack.c.0.s8 %v539
        %v541 = vlaneseq
        %v542 = vshrl.u32 %v541, 7
        %v543 = vsub.s32 %v540, %v542
        %v544 = vrot.slane %v530, %v543
        %v545 = vcombine.high %v537, %v537
        %v546 = vcombine.high %v544, %v544
        %v548 = vunpack.c.l.s4 1983009808
        %v549 = vunpack.c.0.s8 %v548
        %v550 = vlaneseq
        %v551 = vshrl.u32 %v550, 7
        %v552 = vsub.s32 %v549, %v551
        %v553 = vrot.slane %v519, %v552
        %v554 = vcombine.high %v553, %v553
        %v556 = vunpack.c.l.s4 1983009808
        %v557 = vunpack.c.0.s8 %v556
        %v558 = vlaneseq
        %v559 = vshrl.u32 %v558, 7
        %v560 = vsub.s32 %v557, %v559
        %v561 = vrot.slane %v527, %v560
        %v562 = vcombine.high %v561, %v561
        %v564 = vunpack.c.l.s4 1983009808
        %v565 = vunpack.c.0.s8 %v564
        %v566 = vlaneseq
        %v567 = vshrl.u32 %v566, 7
        %v568 = vsub.s32 %v565, %v567
        %v569 = vrot.slane %v526, %v568
        %v570 = vcombine.high %v569, %v569
        %v572 = vunpack.c.l.s4 1983009808
        %v573 = vunpack.c.0.s8 %v572
        %v574 = vlaneseq
        %v575 = vshrl.u32 %v574, 7
        %v576 = vsub.s32 %v573, %v575
        %v577 = vrot.slane %v528, %v576
        %v578 = vcombine.high %v577, %v577
        %v580 = vunpack.c.l.s4 1983009808
        %v581 = vunpack.c.0.s8 %v580
        %v582 = vlaneseq
        %v583 = vshrl.u32 %v582, 7
        %v584 = vsub.s32 %v581, %v583
        %v585 = vrot.slane %v537, %v584
        %v586 = vcombine.high %v585, %v585
        %v588 = vunpack.c.l.s4 1983009808
        %v589 = vunpack.c.0.s8 %v588
        %v590 = vlaneseq
        %v591 = vshrl.u32 %v590, 7
        %v592 = vsub.s32 %v589, %v591
        %v593 = vrot.slane %v545, %v592
        %v594 = vcombine.high %v593, %v593
        %v596 = vunpack.c.l.s4 1983009808
        %v597 = vunpack.c.0.s8 %v596
        %v598 = vlaneseq
        %v599 = vshrl.u32 %v598, 7
        %v600 = vsub.s32 %v597, %v599
        %v601 = vrot.slane %v544, %v600
        %v602 = vcombine.high %v601, %v601
        %v604 = vunpack.c.l.s4 1983009808
        %v605 = vunpack.c.0.s8 %v604
        %v606 = vlaneseq
        %v607 = vshrl.u32 %v606, 7
        %v608 = vsub.s32 %v605, %v607
        %v609 = vrot.slane %v546, %v608
        %v610 = vcombine.high %v609, %v609
        %v627 = vpack.c.bf16 %v553, %v553
        %v628 = vpack.c.bf16 %v554, %v554
        %v629 = vpack.c.bf16 %v561, %v561
        %v630 = vpack.c.bf16 %v562, %v562
        %v631 = vpack.c.bf16 %v569, %v569
        %v632 = vpack.c.bf16 %v570, %v570
        %v633 = vpack.c.bf16 %v577, %v577
        %v634 = vpack.c.bf16 %v578, %v578
        %v635 = vpack.c.bf16 %v585, %v585
        %v636 = vpack.c.bf16 %v586, %v586
        %v637 = vpack.c.bf16 %v593, %v593
        %v638 = vpack.c.bf16 %v594, %v594
        %v639 = vpack.c.bf16 %v601, %v601
        %v640 = vpack.c.bf16 %v602, %v602
        %v641 = vpack.c.bf16 %v609, %v609
        %v642 = vpack.c.bf16 %v610, %v610
        %v659 = vcombine.low %v627, %v628
        %v661 = vunpack.c.l.s4 1966171168
        %v662 = vunpack.c.0.s8 %v661
        %v663 = vlaneseq
        %v664 = vshrl.u32 %v663, 7
        %v665 = vsub.s32 %v662, %v664
        %v666 = vrot.slane %v659, %v665
        %v668 = vunpack.c.l.s4 1966171168
        %v669 = vunpack.c.0.s8 %v668
        %v670 = vlaneseq
        %v671 = vshrl.u32 %v670, 7
        %v672 = vsub.s32 %v669, %v671
        %v673 = vrot.slane %v666, %v672
        %v674 = vcombine.low %v629, %v630
        %v676 = vunpack.c.l.s4 1966171168
        %v677 = vunpack.c.0.s8 %v676
        %v678 = vlaneseq
        %v679 = vshrl.u32 %v678, 7
        %v680 = vsub.s32 %v677, %v679
        %v681 = vrot.slane %v674, %v680
        %v683 = vunpack.c.l.s4 1966171168
        %v684 = vunpack.c.0.s8 %v683
        %v685 = vlaneseq
        %v686 = vshrl.u32 %v685, 7
        %v687 = vsub.s32 %v684, %v686
        %v688 = vrot.slane %v681, %v687
        %v689 = vcombine.low %v631, %v632
        %v691 = vunpack.c.l.s4 1966171168
        %v692 = vunpack.c.0.s8 %v691
        %v693 = vlaneseq
        %v694 = vshrl.u32 %v693, 7
        %v695 = vsub.s32 %v692, %v694
        %v696 = vrot.slane %v689, %v695
        %v698 = vunpack.c.l.s4 1966171168
        %v699 = vunpack.c.0.s8 %v698
        %v700 = vlaneseq
        %v701 = vshrl.u32 %v700, 7
        %v702 = vsub.s32 %v699, %v701
        %v703 = vrot.slane %v696, %v702
        %v704 = vcombine.low %v633, %v634
        %v706 = vunpack.c.l.s4 1966171168
        %v707 = vunpack.c.0.s8 %v706
        %v708 = vlaneseq
        %v709 = vshrl.u32 %v708, 7
        %v710 = vsub.s32 %v707, %v709
        %v711 = vrot.slane %v704, %v710
        %v713 = vunpack.c.l.s4 1966171168
        %v714 = vunpack.c.0.s8 %v713
        %v715 = vlaneseq
        %v716 = vshrl.u32 %v715, 7
        %v717 = vsub.s32 %v714, %v716
        %v718 = vrot.slane %v711, %v717
        %v719 = vcombine.low %v635, %v636
        %v721 = vunpack.c.l.s4 1966171168
        %v722 = vunpack.c.0.s8 %v721
        %v723 = vlaneseq
        %v724 = vshrl.u32 %v723, 7
        %v725 = vsub.s32 %v722, %v724
        %v726 = vrot.slane %v719, %v725
        %v728 = vunpack.c.l.s4 1966171168
        %v729 = vunpack.c.0.s8 %v728
        %v730 = vlaneseq
        %v731 = vshrl.u32 %v730, 7
        %v732 = vsub.s32 %v729, %v731
        %v733 = vrot.slane %v726, %v732
        %v734 = vcombine.low %v637, %v638
        %v736 = vunpack.c.l.s4 1966171168
        %v737 = vunpack.c.0.s8 %v736
        %v738 = vlaneseq
        %v739 = vshrl.u32 %v738, 7
        %v740 = vsub.s32 %v737, %v739
        %v741 = vrot.slane %v734, %v740
        %v743 = vunpack.c.l.s4 1966171168
        %v744 = vunpack.c.0.s8 %v743
        %v745 = vlaneseq
        %v746 = vshrl.u32 %v745, 7
        %v747 = vsub.s32 %v744, %v746
        %v748 = vrot.slane %v741, %v747
        %v749 = vcombine.low %v639, %v640
        %v751 = vunpack.c.l.s4 1966171168
        %v752 = vunpack.c.0.s8 %v751
        %v753 = vlaneseq
        %v754 = vshrl.u32 %v753, 7
        %v755 = vsub.s32 %v752, %v754
        %v756 = vrot.slane %v749, %v755
        %v758 = vunpack.c.l.s4 1966171168
        %v759 = vunpack.c.0.s8 %v758
        %v760 = vlaneseq
        %v761 = vshrl.u32 %v760, 7
        %v762 = vsub.s32 %v759, %v761
        %v763 = vrot.slane %v756, %v762
        %v764 = vcombine.low %v641, %v642
        %v766 = vunpack.c.l.s4 1966171168
        %v767 = vunpack.c.0.s8 %v766
        %v768 = vlaneseq
        %v769 = vshrl.u32 %v768, 7
        %v770 = vsub.s32 %v767, %v769
        %v771 = vrot.slane %v764, %v770
        %v773 = vunpack.c.l.s4 1966171168
        %v774 = vunpack.c.0.s8 %v773
        %v775 = vlaneseq
        %v776 = vshrl.u32 %v775, 7
        %v777 = vsub.s32 %v774, %v776
        %v778 = vrot.slane %v771, %v777
        %vm787 = vcmask 1040384
        %vm788 = vcmask 517121
        %vm789 = vmor %vm788, %vm787
        %790 = vst.msk [vmem:[#allocation2] sm:$0x3] %vm789, %v673
        %791 = vst.msk [vmem:[#allocation2 + $0x2] sm:$0x3] %vm789, %v688
        %792 = vst.msk [vmem:[#allocation2 + $0x4] sm:$0x3] %vm789, %v703
        %793 = vst.msk [vmem:[#allocation2 + $0x6] sm:$0x3] %vm789, %v718
        %794 = vst.msk [vmem:[#allocation2 + $0x8] sm:$0x3] %vm789, %v733
        %795 = vst.msk [vmem:[#allocation2 + $0xa] sm:$0x3] %vm789, %v748
        %796 = vst.msk [vmem:[#allocation2 + $0xc] sm:$0x3] %vm789, %v763
        %797 = vst.msk [vmem:[#allocation2 + $0xe] sm:$0x3] %vm789, %v778
        %s798 = scalar_select %p345, 0, 7
        %v799 = vld [vmem:[%s330] sm:$0xff]
        %v800 = vld [vmem:[%s330 + $0x8] sm:$0xff]
        %v801 = vld [vmem:[%s330 + $0x10] sm:$0xff]
        %v802 = vld [vmem:[%s330 + $0x18] sm:$0xff]
        %v803 = vld [vmem:[%s330 + $0x20] sm:$0xff]
        %v804 = vld [vmem:[%s330 + $0x28] sm:$0xff]
        %v805 = vld [vmem:[%s330 + $0x30] sm:$0xff]
        %v806 = vld [vmem:[%s330 + $0x38] sm:$0xff]
        %v807 = vld [vmem:[%s338] sm:$0x3]
        %v809 = vlaneseq
        %v810 = vshrl.u32 %v809, 7
        %v811 = vsub.s32 0, %v810
        %v812 = vrot.slane %v807, %v811
        %v813 = vlaneseq
        %v814 = vshrl.u32 %v813, 7
        %v815 = vsub.s32 1, %v814
        %v816 = vrot.slane %v807, %v815
        %v827 = vunpack.c.l.b16 %v799
        %v828 = vunpack.c.h.b16 %v799
        %v829 = vunpack.c.l.b16 %v800
        %v830 = vunpack.c.h.b16 %v800
        %v831 = vunpack.c.l.b16 %v801
        %v832 = vunpack.c.h.b16 %v801
        %v833 = vunpack.c.l.b16 %v802
        %v834 = vunpack.c.h.b16 %v802
        %v835 = vunpack.c.l.b16 %v803
        %v836 = vunpack.c.h.b16 %v803
        %v837 = vunpack.c.l.b16 %v804
        %v838 = vunpack.c.h.b16 %v804
        %v839 = vunpack.c.l.b16 %v805
        %v840 = vunpack.c.h.b16 %v805
        %v841 = vunpack.c.l.b16 %v806
        %v842 = vunpack.c.h.b16 %v806
        %v843 = vpack.c.b16 %v829, %v827
        %v844 = vpack.c.b16 %v830, %v828
        %v845 = vpack.c.b16 %v833, %v831
        %v846 = vpack.c.b16 %v834, %v832
        %v847 = vpack.c.b16 %v837, %v835
        %v848 = vpack.c.b16 %v838, %v836
        %v849 = vpack.c.b16 %v841, %v839
        %v850 = vpack.c.b16 %v842, %v840
        %v860 = vsel %vm460, 0, 0
        %862 = vmatprep.subr.bf16.mxu0 %v844
        %863 = vmatpush1.bf16.msra.mxu0 %v843
        %864 = vmatprep.subr.bf16.mxu0 %v846
        %865 = vmatpush1.bf16.msra.mxu0 %v845
        %866 = vmatprep.subr.bf16.mxu0 %v848
        %867 = vmatpush1.bf16.msra.mxu0 %v847
        %868 = vmatprep.subr.bf16.mxu0 %v850
        %869 = vmatpush1.bf16.msra.mxu0 %v849
        %870 = vmatprep.subr.bf16.mxu0 0
        %871 = vmatpush1.bf16.msra.mxu0 0
        %872 = vmatprep.subr.bf16.mxu0 0
        %873 = vmatpush1.bf16.msra.mxu0 0
        %874 = vmatprep.subr.bf16.mxu0 0
        %875 = vmatpush1.bf16.msra.mxu0 0
        %876 = vmatprep.subr.bf16.mxu0 0
        %877 = vmatpush1.bf16.msra.mxu0 0
        %878 = vmatprep.subr.bf16.mxu0 0
        %879 = vmatpush1.bf16.msra.mxu0 0
        %880 = vmatprep.subr.bf16.mxu0 0
        %881 = vmatpush1.bf16.msra.mxu0 0
        %882 = vmatprep.subr.bf16.mxu0 0
        %883 = vmatpush1.bf16.msra.mxu0 0
        %884 = vmatprep.subr.bf16.mxu0 0
        %885 = vmatpush1.bf16.msra.mxu0 0
        %886 = vmatprep.subr.bf16.mxu0 0
        %887 = vmatpush1.bf16.msra.mxu0 0
        %888 = vmatprep.subr.bf16.mxu0 0
        %889 = vmatpush1.bf16.msra.mxu0 0
        %890 = vmatprep.subr.bf16.mxu0 0
        %891 = vmatpush1.bf16.msra.mxu0 0
        %892 = vmatprep.subr.bf16.mxu0 0
        %893 = vmatpush1.bf16.msra.mxu0 0
        %894 = vmatprep.mubr.bf16.mxu0 0
        %895 = vmatmul.mubr.bf16.gmra.mrb[0].mxu0 %v860
        %v896 = vpop.f32.mrb[0].mxu0
        %v897 = vadd.f32 %v812, %v896
        %v898 = vpop.f32.mrb[0].mxu0
        %v899 = vadd.f32 %v816, %v898
        %v900 = vpop.f32.mrb[0].mxu0
        %v901 = vpop.f32.mrb[0].mxu0
        %902 = vdwg.mxu0
        %s903 = smul.u32 %s798, 2
        %s904 = scalar_lea.vmem [#allocation2], %s903
        %v905 = vld [vmem:[%s904] sm:$0x3]
        %v906 = vunpack.c.l.bf16 %v905
        %v907 = vadd.f32 %v906, %v897
        %v908 = vxor.u32 %v907, 2147483648
        %v909 = vmul.f32 %v908, 1.442695
        %v910 = vpow.pop %v909
        %v911 = vadd.f32 %v910, 1.0
        %v912 = vrcp.pop %v911
        %v913 = vmul.f32 1.0, %v912
        %v914 = vmul.f32 %v913, %v899
        %v916 = vrot.slane %v906, 2
        %v918 = vadd.f32 %v916, %v914
        %v919 = vtanh.pop %v918
        %v920 = vsub.f32 1.0, %v913
        %922 = vrot.lane.b32.xlu0 %v919, 64
        %v923 = vpop.permute.xlu0 %922
        %v925 = vmul.f32 %v920, %v923
        %v926 = vmul.f32 %v913, 0.0
        %v927 = vadd.f32 %v925, %v926
        %v928 = vstv %s798
        %vm929 = vcmp.lt.s32.totalorder %v928, %v346
        %v930 = vsel %vm929, 1, 0
        %931 = vset.pattern.permute.xlu0 0
        %932 = vperm.xlu0 %931, %v930
        %v933 = vpop.permute.xlu0 %932
        %vm934 = vcmp.eq.s32.totalorder %v933, 1
        %v937 = vunpack.c.l.s4 1983009808
        %v938 = vunpack.c.0.s8 %v937
        %v939 = vlaneseq
        %v940 = vshrl.u32 %v939, 7
        %v941 = vsub.s32 %v938, %v940
        %v942 = vrot.slane %v927, %v941
        %943 = vrot.lane.b32.xlu0 %v942, 64
        %v944 = vpop.permute.xlu0 %943
        %v946 = vsel %vm934, %v944, 0.0
        %s947 = scalar_lea.vmem %s343, %s903
        %vm948 = vcmask 517120
        %949 = vst.msk [vmem:[%s947] sm:$0x3] %vm948, %v946
        %s950 = scalar_select %p345, 1, 6
        %v951 = vpack.c.bf16 %v946, %v946
        %v952 = vld [vmem:[%s330] sm:$0xff]
        %v953 = vld [vmem:[%s330 + $0x8] sm:$0xff]
        %v954 = vld [vmem:[%s330 + $0x10] sm:$0xff]
        %v955 = vld [vmem:[%s330 + $0x18] sm:$0xff]
        %v956 = vld [vmem:[%s330 + $0x20] sm:$0xff]
        %v957 = vld [vmem:[%s330 + $0x28] sm:$0xff]
        %v958 = vld [vmem:[%s330 + $0x30] sm:$0xff]
        %v959 = vld [vmem:[%s330 + $0x38] sm:$0xff]
        %v960 = vld [vmem:[%s338] sm:$0x3]
        %v962 = vlaneseq
        %v963 = vshrl.u32 %v962, 7
        %v964 = vsub.s32 0, %v963
        %v965 = vrot.slane %v960, %v964
        %v966 = vlaneseq
        %v967 = vshrl.u32 %v966, 7
        %v968 = vsub.s32 1, %v967
        %v969 = vrot.slane %v960, %v968
        %v980 = vunpack.c.l.b16 %v952
        %v981 = vunpack.c.h.b16 %v952
        %v982 = vunpack.c.l.b16 %v953
        %v983 = vunpack.c.h.b16 %v953
        %v984 = vunpack.c.l.b16 %v954
        %v985 = vunpack.c.h.b16 %v954
        %v986 = vunpack.c.l.b16 %v955
        %v987 = vunpack.c.h.b16 %v955
        %v988 = vunpack.c.l.b16 %v956
        %v989 = vunpack.c.h.b16 %v956
        %v990 = vunpack.c.l.b16 %v957
        %v991 = vunpack.c.h.b16 %v957
        %v992 = vunpack.c.l.b16 %v958
        %v993 = vunpack.c.h.b16 %v958
        %v994 = vunpack.c.l.b16 %v959
        %v995 = vunpack.c.h.b16 %v959
        %v996 = vpack.c.b16 %v982, %v980
        %v997 = vpack.c.b16 %v983, %v981
        %v998 = vpack.c.b16 %v986, %v984
        %v999 = vpack.c.b16 %v987, %v985
        %v1000 = vpack.c.b16 %v990, %v988
        %v1001 = vpack.c.b16 %v991, %v989
        %v1002 = vpack.c.b16 %v994, %v992
        %v1003 = vpack.c.b16 %v995, %v993
        %v1013 = vsel %vm460, %v951, 0
        %1015 = vmatprep.subr.bf16.mxu0 %v997
        %1016 = vmatpush1.bf16.msra.mxu0 %v996
        %1017 = vmatprep.subr.bf16.mxu0 %v999
        %1018 = vmatpush1.bf16.msra.mxu0 %v998
        %1019 = vmatprep.subr.bf16.mxu0 %v1001
        %1020 = vmatpush1.bf16.msra.mxu0 %v1000
        %1021 = vmatprep.subr.bf16.mxu0 %v1003
        %1022 = vmatpush1.bf16.msra.mxu0 %v1002
        %1023 = vmatprep.subr.bf16.mxu0 0
        %1024 = vmatpush1.bf16.msra.mxu0 0
        %1025 = vmatprep.subr.bf16.mxu0 0
        %1026 = vmatpush1.bf16.msra.mxu0 0
        %1027 = vmatprep.subr.bf16.mxu0 0
        %1028 = vmatpush1.bf16.msra.mxu0 0
        %1029 = vmatprep.subr.bf16.mxu0 0
        %1030 = vmatpush1.bf16.msra.mxu0 0
        %1031 = vmatprep.subr.bf16.mxu0 0
        %1032 = vmatpush1.bf16.msra.mxu0 0
        %1033 = vmatprep.subr.bf16.mxu0 0
        %1034 = vmatpush1.bf16.msra.mxu0 0
        %1035 = vmatprep.subr.bf16.mxu0 0
        %1036 = vmatpush1.bf16.msra.mxu0 0
        %1037 = vmatprep.subr.bf16.mxu0 0
        %1038 = vmatpush1.bf16.msra.mxu0 0
        %1039 = vmatprep.subr.bf16.mxu0 0
        %1040 = vmatpush1.bf16.msra.mxu0 0
        %1041 = vmatprep.subr.bf16.mxu0 0
        %1042 = vmatpush1.bf16.msra.mxu0 0
        %1043 = vmatprep.subr.bf16.mxu0 0
        %1044 = vmatpush1.bf16.msra.mxu0 0
        %1045 = vmatprep.subr.bf16.mxu0 0
        %1046 = vmatpush1.bf16.msra.mxu0 0
        %1047 = vmatprep.mubr.bf16.mxu0 0
        %1048 = vmatmul.mubr.bf16.gmra.mrb[0].mxu0 %v1013
        %v1049 = vpop.f32.mrb[0].mxu0
        %v1050 = vadd.f32 %v965, %v1049
        %v1051 = vpop.f32.mrb[0].mxu0
        %v1052 = vadd.f32 %v969, %v1051
        %v1053 = vpop.f32.mrb[0].mxu0
        %v1054 = vpop.f32.mrb[0].mxu0
        %1055 = vdwg.mxu0
        %s1056 = smul.u32 %s950, 2
        %s1057 = scalar_lea.vmem [#allocation2], %s1056
        %v1058 = vld [vmem:[%s1057] sm:$0x3]
        %v1059 = vunpack.c.l.bf16 %v1058
        %v1060 = vadd.f32 %v1059, %v1050
        %v1061 = vxor.u32 %v1060, 2147483648
        %v1062 = vmul.f32 %v1061, 1.442695
        %v1063 = vpow.pop %v1062
        %v1064 = vadd.f32 %v1063, 1.0
        %v1065 = vrcp.pop %v1064
        %v1066 = vmul.f32 1.0, %v1065
        %v1067 = vmul.f32 %v1066, %v1052
        %v1069 = vrot.slane %v1059, 2
        %v1071 = vadd.f32 %v1069, %v1067
        %v1072 = vtanh.pop %v1071
        %v1073 = vsub.f32 1.0, %v1066
        %1075 = vrot.lane.b32.xlu0 %v1072, 64
        %v1076 = vpop.permute.xlu0 %1075
        %v1078 = vmul.f32 %v1073, %v1076
        %v1081 = vunpack.c.l.s4 1983009808
        %v1082 = vunpack.c.0.s8 %v1081
        %v1083 = vlaneseq
        %v1084 = vshrl.u32 %v1083, 7
        %v1085 = vsub.s32 %v1082, %v1084
        %v1086 = vrot.slane %v946, %v1085
        %1087 = vrot.lane.b32.xlu0 %v1086, 64
        %v1088 = vpop.permute.xlu0 %1087
        %v1090 = vmul.f32 %v1066, %v1088
        %v1091 = vadd.f32 %v1078, %v1090
        %v1092 = vstv %s950
        %vm1093 = vcmp.lt.s32.totalorder %v1092, %v346
        %v1094 = vsel %vm1093, 1, 0
        %1095 = vset.pattern.permute.xlu0 0
        %1096 = vperm.xlu0 %1095, %v1094
        %v1097 = vpop.permute.xlu0 %1096
        %vm1098 = vcmp.eq.s32.totalorder %v1097, 1
        %v1101 = vunpack.c.l.s4 1983009808
        %v1102 = vunpack.c.0.s8 %v1101
        %v1103 = vlaneseq
        %v1104 = vshrl.u32 %v1103, 7
        %v1105 = vsub.s32 %v1102, %v1104
        %v1106 = vrot.slane %v1091, %v1105
        %1107 = vrot.lane.b32.xlu0 %v1106, 64
        %v1108 = vpop.permute.xlu0 %1107
        %v1110 = vsel %vm1098, %v1108, %v946
        %v1111 = vsel %vm1098, %v1108, 0.0
        %s1112 = scalar_lea.vmem %s343, %s1056
        %1113 = vst.msk [vmem:[%s1112] sm:$0x3] %vm948, %v1111
        %s1114 = scalar_select %p345, 2, 5
        %v1115 = vpack.c.bf16 %v1110, %v1110
        %v1116 = vld [vmem:[%s330] sm:$0xff]
        %v1117 = vld [vmem:[%s330 + $0x8] sm:$0xff]
        %v1118 = vld [vmem:[%s330 + $0x10] sm:$0xff]
        %v1119 = vld [vmem:[%s330 + $0x18] sm:$0xff]
        %v1120 = vld [vmem:[%s330 + $0x20] sm:$0xff]
        %v1121 = vld [vmem:[%s330 + $0x28] sm:$0xff]
        %v1122 = vld [vmem:[%s330 + $0x30] sm:$0xff]
        %v1123 = vld [vmem:[%s330 + $0x38] sm:$0xff]
        %v1124 = vld [vmem:[%s338] sm:$0x3]
        %v1126 = vlaneseq
        %v1127 = vshrl.u32 %v1126, 7
        %v1128 = vsub.s32 0, %v1127
        %v1129 = vrot.slane %v1124, %v1128
        %v1130 = vlaneseq
        %v1131 = vshrl.u32 %v1130, 7
        %v1132 = vsub.s32 1, %v1131
        %v1133 = vrot.slane %v1124, %v1132
        %v1144 = vunpack.c.l.b16 %v1116
        %v1145 = vunpack.c.h.b16 %v1116
        %v1146 = vunpack.c.l.b16 %v1117
        %v1147 = vunpack.c.h.b16 %v1117
        %v1148 = vunpack.c.l.b16 %v1118
        %v1149 = vunpack.c.h.b16 %v1118
        %v1150 = vunpack.c.l.b16 %v1119
        %v1151 = vunpack.c.h.b16 %v1119
        %v1152 = vunpack.c.l.b16 %v1120
        %v1153 = vunpack.c.h.b16 %v1120
        %v1154 = vunpack.c.l.b16 %v1121
        %v1155 = vunpack.c.h.b16 %v1121
        %v1156 = vunpack.c.l.b16 %v1122
        %v1157 = vunpack.c.h.b16 %v1122
        %v1158 = vunpack.c.l.b16 %v1123
        %v1159 = vunpack.c.h.b16 %v1123
        %v1160 = vpack.c.b16 %v1146, %v1144
        %v1161 = vpack.c.b16 %v1147, %v1145
        %v1162 = vpack.c.b16 %v1150, %v1148
        %v1163 = vpack.c.b16 %v1151, %v1149
        %v1164 = vpack.c.b16 %v1154, %v1152
        %v1165 = vpack.c.b16 %v1155, %v1153
        %v1166 = vpack.c.b16 %v1158, %v1156
        %v1167 = vpack.c.b16 %v1159, %v1157
        %v1177 = vsel %vm460, %v1115, 0
        %1179 = vmatprep.subr.bf16.mxu0 %v1161
        %1180 = vmatpush1.bf16.msra.mxu0 %v1160
        %1181 = vmatprep.subr.bf16.mxu0 %v1163
        %1182 = vmatpush1.bf16.msra.mxu0 %v1162
        %1183 = vmatprep.subr.bf16.mxu0 %v1165
        %1184 = vmatpush1.bf16.msra.mxu0 %v1164
        %1185 = vmatprep.subr.bf16.mxu0 %v1167
        %1186 = vmatpush1.bf16.msra.mxu0 %v1166
        %1187 = vmatprep.subr.bf16.mxu0 0
        %1188 = vmatpush1.bf16.msra.mxu0 0
        %1189 = vmatprep.subr.bf16.mxu0 0
        %1190 = vmatpush1.bf16.msra.mxu0 0
        %1191 = vmatprep.subr.bf16.mxu0 0
        %1192 = vmatpush1.bf16.msra.mxu0 0
        %1193 = vmatprep.subr.bf16.mxu0 0
        %1194 = vmatpush1.bf16.msra.mxu0 0
        %1195 = vmatprep.subr.bf16.mxu0 0
        %1196 = vmatpush1.bf16.msra.mxu0 0
        %1197 = vmatprep.subr.bf16.mxu0 0
        %1198 = vmatpush1.bf16.msra.mxu0 0
        %1199 = vmatprep.subr.bf16.mxu0 0
        %1200 = vmatpush1.bf16.msra.mxu0 0
        %1201 = vmatprep.subr.bf16.mxu0 0
        %1202 = vmatpush1.bf16.msra.mxu0 0
        %1203 = vmatprep.subr.bf16.mxu0 0
        %1204 = vmatpush1.bf16.msra.mxu0 0
        %1205 = vmatprep.subr.bf16.mxu0 0
        %1206 = vmatpush1.bf16.msra.mxu0 0
        %1207 = vmatprep.subr.bf16.mxu0 0
        %1208 = vmatpush1.bf16.msra.mxu0 0
        %1209 = vmatprep.subr.bf16.mxu0 0
        %1210 = vmatpush1.bf16.msra.mxu0 0
        %1211 = vmatprep.mubr.bf16.mxu0 0
        %1212 = vmatmul.mubr.bf16.gmra.mrb[0].mxu0 %v1177
        %v1213 = vpop.f32.mrb[0].mxu0
        %v1214 = vadd.f32 %v1129, %v1213
        %v1215 = vpop.f32.mrb[0].mxu0
        %v1216 = vadd.f32 %v1133, %v1215
        %v1217 = vpop.f32.mrb[0].mxu0
        %v1218 = vpop.f32.mrb[0].mxu0
        %1219 = vdwg.mxu0
        %s1220 = smul.u32 %s1114, 2
        %s1221 = scalar_lea.vmem [#allocation2], %s1220
        %v1222 = vld [vmem:[%s1221] sm:$0x3]
        %v1223 = vunpack.c.l.bf16 %v1222
        %v1224 = vadd.f32 %v1223, %v1214
        %v1225 = vxor.u32 %v1224, 2147483648
        %v1226 = vmul.f32 %v1225, 1.442695
        %v1227 = vpow.pop %v1226
        %v1228 = vadd.f32 %v1227, 1.0
        %v1229 = vrcp.pop %v1228
        %v1230 = vmul.f32 1.0, %v1229
        %v1231 = vmul.f32 %v1230, %v1216
        %v1233 = vrot.slane %v1223, 2
        %v1235 = vadd.f32 %v1233, %v1231
        %v1236 = vtanh.pop %v1235
        %v1237 = vsub.f32 1.0, %v1230
        %1239 = vrot.lane.b32.xlu0 %v1236, 64
        %v1240 = vpop.permute.xlu0 %1239
        %v1242 = vmul.f32 %v1237, %v1240
        %v1245 = vunpack.c.l.s4 1983009808
        %v1246 = vunpack.c.0.s8 %v1245
        %v1247 = vlaneseq
        %v1248 = vshrl.u32 %v1247, 7
        %v1249 = vsub.s32 %v1246, %v1248
        %v1250 = vrot.slane %v1110, %v1249
        %1251 = vrot.lane.b32.xlu0 %v1250, 64
        %v1252 = vpop.permute.xlu0 %1251
        %v1254 = vmul.f32 %v1230, %v1252
        %v1255 = vadd.f32 %v1242, %v1254
        %v1256 = vstv %s1114
        %vm1257 = vcmp.lt.s32.totalorder %v1256, %v346
        %v1258 = vsel %vm1257, 1, 0
        %1259 = vset.pattern.permute.xlu0 0
        %1260 = vperm.xlu0 %1259, %v1258
        %v1261 = vpop.permute.xlu0 %1260
        %vm1262 = vcmp.eq.s32.totalorder %v1261, 1
        %v1265 = vunpack.c.l.s4 1983009808
        %v1266 = vunpack.c.0.s8 %v1265
        %v1267 = vlaneseq
        %v1268 = vshrl.u32 %v1267, 7
        %v1269 = vsub.s32 %v1266, %v1268
        %v1270 = vrot.slane %v1255, %v1269
        %1271 = vrot.lane.b32.xlu0 %v1270, 64
        %v1272 = vpop.permute.xlu0 %1271
        %v1274 = vsel %vm1262, %v1272, %v1110
        %v1275 = vsel %vm1262, %v1272, 0.0
        %s1276 = scalar_lea.vmem %s343, %s1220
        %1277 = vst.msk [vmem:[%s1276] sm:$0x3] %vm948, %v1275
        %s1278 = scalar_select %p345, 3, 4
        %v1279 = vpack.c.bf16 %v1274, %v1274
        %v1280 = vld [vmem:[%s330] sm:$0xff]
        %v1281 = vld [vmem:[%s330 + $0x8] sm:$0xff]
        %v1282 = vld [vmem:[%s330 + $0x10] sm:$0xff]
        %v1283 = vld [vmem:[%s330 + $0x18] sm:$0xff]
        %v1284 = vld [vmem:[%s330 + $0x20] sm:$0xff]
        %v1285 = vld [vmem:[%s330 + $0x28] sm:$0xff]
        %v1286 = vld [vmem:[%s330 + $0x30] sm:$0xff]
        %v1287 = vld [vmem:[%s330 + $0x38] sm:$0xff]
        %v1288 = vld [vmem:[%s338] sm:$0x3]
        %v1290 = vlaneseq
        %v1291 = vshrl.u32 %v1290, 7
        %v1292 = vsub.s32 0, %v1291
        %v1293 = vrot.slane %v1288, %v1292
        %v1294 = vlaneseq
        %v1295 = vshrl.u32 %v1294, 7
        %v1296 = vsub.s32 1, %v1295
        %v1297 = vrot.slane %v1288, %v1296
        %v1308 = vunpack.c.l.b16 %v1280
        %v1309 = vunpack.c.h.b16 %v1280
        %v1310 = vunpack.c.l.b16 %v1281
        %v1311 = vunpack.c.h.b16 %v1281
        %v1312 = vunpack.c.l.b16 %v1282
        %v1313 = vunpack.c.h.b16 %v1282
        %v1314 = vunpack.c.l.b16 %v1283
        %v1315 = vunpack.c.h.b16 %v1283
        %v1316 = vunpack.c.l.b16 %v1284
        %v1317 = vunpack.c.h.b16 %v1284
        %v1318 = vunpack.c.l.b16 %v1285
        %v1319 = vunpack.c.h.b16 %v1285
        %v1320 = vunpack.c.l.b16 %v1286
        %v1321 = vunpack.c.h.b16 %v1286
        %v1322 = vunpack.c.l.b16 %v1287
        %v1323 = vunpack.c.h.b16 %v1287
        %v1324 = vpack.c.b16 %v1310, %v1308
        %v1325 = vpack.c.b16 %v1311, %v1309
        %v1326 = vpack.c.b16 %v1314, %v1312
        %v1327 = vpack.c.b16 %v1315, %v1313
        %v1328 = vpack.c.b16 %v1318, %v1316
        %v1329 = vpack.c.b16 %v1319, %v1317
        %v1330 = vpack.c.b16 %v1322, %v1320
        %v1331 = vpack.c.b16 %v1323, %v1321
        %v1341 = vsel %vm460, %v1279, 0
        %1343 = vmatprep.subr.bf16.mxu0 %v1325
        %1344 = vmatpush1.bf16.msra.mxu0 %v1324
        %1345 = vmatprep.subr.bf16.mxu0 %v1327
        %1346 = vmatpush1.bf16.msra.mxu0 %v1326
        %1347 = vmatprep.subr.bf16.mxu0 %v1329
        %1348 = vmatpush1.bf16.msra.mxu0 %v1328
        %1349 = vmatprep.subr.bf16.mxu0 %v1331
        %1350 = vmatpush1.bf16.msra.mxu0 %v1330
        %1351 = vmatprep.subr.bf16.mxu0 0
        %1352 = vmatpush1.bf16.msra.mxu0 0
        %1353 = vmatprep.subr.bf16.mxu0 0
        %1354 = vmatpush1.bf16.msra.mxu0 0
        %1355 = vmatprep.subr.bf16.mxu0 0
        %1356 = vmatpush1.bf16.msra.mxu0 0
        %1357 = vmatprep.subr.bf16.mxu0 0
        %1358 = vmatpush1.bf16.msra.mxu0 0
        %1359 = vmatprep.subr.bf16.mxu0 0
        %1360 = vmatpush1.bf16.msra.mxu0 0
        %1361 = vmatprep.subr.bf16.mxu0 0
        %1362 = vmatpush1.bf16.msra.mxu0 0
        %1363 = vmatprep.subr.bf16.mxu0 0
        %1364 = vmatpush1.bf16.msra.mxu0 0
        %1365 = vmatprep.subr.bf16.mxu0 0
        %1366 = vmatpush1.bf16.msra.mxu0 0
        %1367 = vmatprep.subr.bf16.mxu0 0
        %1368 = vmatpush1.bf16.msra.mxu0 0
        %1369 = vmatprep.subr.bf16.mxu0 0
        %1370 = vmatpush1.bf16.msra.mxu0 0
        %1371 = vmatprep.subr.bf16.mxu0 0
        %1372 = vmatpush1.bf16.msra.mxu0 0
        %1373 = vmatprep.subr.bf16.mxu0 0
        %1374 = vmatpush1.bf16.msra.mxu0 0
        %1375 = vmatprep.mubr.bf16.mxu0 0
        %1376 = vmatmul.mubr.bf16.gmra.mrb[0].mxu0 %v1341
        %v1377 = vpop.f32.mrb[0].mxu0
        %v1378 = vadd.f32 %v1293, %v1377
        %v1379 = vpop.f32.mrb[0].mxu0
        %v1380 = vadd.f32 %v1297, %v1379
        %v1381 = vpop.f32.mrb[0].mxu0
        %v1382 = vpop.f32.mrb[0].mxu0
        %1383 = vdwg.mxu0
        %s1384 = smul.u32 %s1278, 2
        %s1385 = scalar_lea.vmem [#allocation2], %s1384
        %v1386 = vld [vmem:[%s1385] sm:$0x3]
        %v1387 = vunpack.c.l.bf16 %v1386
        %v1388 = vadd.f32 %v1387, %v1378
        %v1389 = vxor.u32 %v1388, 2147483648
        %v1390 = vmul.f32 %v1389, 1.442695
        %v1391 = vpow.pop %v1390
        %v1392 = vadd.f32 %v1391, 1.0
        %v1393 = vrcp.pop %v1392
        %v1394 = vmul.f32 1.0, %v1393
        %v1395 = vmul.f32 %v1394, %v1380
        %v1397 = vrot.slane %v1387, 2
        %v1399 = vadd.f32 %v1397, %v1395
        %v1400 = vtanh.pop %v1399
        %v1401 = vsub.f32 1.0, %v1394
        %1403 = vrot.lane.b32.xlu0 %v1400, 64
        %v1404 = vpop.permute.xlu0 %1403
        %v1406 = vmul.f32 %v1401, %v1404
        %v1409 = vunpack.c.l.s4 1983009808
        %v1410 = vunpack.c.0.s8 %v1409
        %v1411 = vlaneseq
        %v1412 = vshrl.u32 %v1411, 7
        %v1413 = vsub.s32 %v1410, %v1412
        %v1414 = vrot.slane %v1274, %v1413
        %1415 = vrot.lane.b32.xlu0 %v1414, 64
        %v1416 = vpop.permute.xlu0 %1415
        %v1418 = vmul.f32 %v1394, %v1416
        %v1419 = vadd.f32 %v1406, %v1418
        %v1420 = vstv %s1278
        %vm1421 = vcmp.lt.s32.totalorder %v1420, %v346
        %v1422 = vsel %vm1421, 1, 0
        %1423 = vset.pattern.permute.xlu0 0
        %1424 = vperm.xlu0 %1423, %v1422
        %v1425 = vpop.permute.xlu0 %1424
        %vm1426 = vcmp.eq.s32.totalorder %v1425, 1
        %v1429 = vunpack.c.l.s4 1983009808
        %v1430 = vunpack.c.0.s8 %v1429
        %v1431 = vlaneseq
        %v1432 = vshrl.u32 %v1431, 7
        %v1433 = vsub.s32 %v1430, %v1432
        %v1434 = vrot.slane %v1419, %v1433
        %1435 = vrot.lane.b32.xlu0 %v1434, 64
        %v1436 = vpop.permute.xlu0 %1435
        %v1438 = vsel %vm1426, %v1436, %v1274
        %v1439 = vsel %vm1426, %v1436, 0.0
        %s1440 = scalar_lea.vmem %s343, %s1384
        %1441 = vst.msk [vmem:[%s1440] sm:$0x3] %vm948, %v1439
        %s1442 = scalar_select %p345, 4, 3
        %v1443 = vpack.c.bf16 %v1438, %v1438
        %v1444 = vld [vmem:[%s330] sm:$0xff]
        %v1445 = vld [vmem:[%s330 + $0x8] sm:$0xff]
        %v1446 = vld [vmem:[%s330 + $0x10] sm:$0xff]
        %v1447 = vld [vmem:[%s330 + $0x18] sm:$0xff]
        %v1448 = vld [vmem:[%s330 + $0x20] sm:$0xff]
        %v1449 = vld [vmem:[%s330 + $0x28] sm:$0xff]
        %v1450 = vld [vmem:[%s330 + $0x30] sm:$0xff]
        %v1451 = vld [vmem:[%s330 + $0x38] sm:$0xff]
        %v1452 = vld [vmem:[%s338] sm:$0x3]
        %v1454 = vlaneseq
        %v1455 = vshrl.u32 %v1454, 7
        %v1456 = vsub.s32 0, %v1455
        %v1457 = vrot.slane %v1452, %v1456
        %v1458 = vlaneseq
        %v1459 = vshrl.u32 %v1458, 7
        %v1460 = vsub.s32 1, %v1459
        %v1461 = vrot.slane %v1452, %v1460
        %v1472 = vunpack.c.l.b16 %v1444
        %v1473 = vunpack.c.h.b16 %v1444
        %v1474 = vunpack.c.l.b16 %v1445
        %v1475 = vunpack.c.h.b16 %v1445
        %v1476 = vunpack.c.l.b16 %v1446
        %v1477 = vunpack.c.h.b16 %v1446
        %v1478 = vunpack.c.l.b16 %v1447
        %v1479 = vunpack.c.h.b16 %v1447
        %v1480 = vunpack.c.l.b16 %v1448
        %v1481 = vunpack.c.h.b16 %v1448
        %v1482 = vunpack.c.l.b16 %v1449
        %v1483 = vunpack.c.h.b16 %v1449
        %v1484 = vunpack.c.l.b16 %v1450
        %v1485 = vunpack.c.h.b16 %v1450
        %v1486 = vunpack.c.l.b16 %v1451
        %v1487 = vunpack.c.h.b16 %v1451
        %v1488 = vpack.c.b16 %v1474, %v1472
        %v1489 = vpack.c.b16 %v1475, %v1473
        %v1490 = vpack.c.b16 %v1478, %v1476
        %v1491 = vpack.c.b16 %v1479, %v1477
        %v1492 = vpack.c.b16 %v1482, %v1480
        %v1493 = vpack.c.b16 %v1483, %v1481
        %v1494 = vpack.c.b16 %v1486, %v1484
        %v1495 = vpack.c.b16 %v1487, %v1485
        %v1505 = vsel %vm460, %v1443, 0
        %1507 = vmatprep.subr.bf16.mxu0 %v1489
        %1508 = vmatpush1.bf16.msra.mxu0 %v1488
        %1509 = vmatprep.subr.bf16.mxu0 %v1491
        %1510 = vmatpush1.bf16.msra.mxu0 %v1490
        %1511 = vmatprep.subr.bf16.mxu0 %v1493
        %1512 = vmatpush1.bf16.msra.mxu0 %v1492
        %1513 = vmatprep.subr.bf16.mxu0 %v1495
        %1514 = vmatpush1.bf16.msra.mxu0 %v1494
        %1515 = vmatprep.subr.bf16.mxu0 0
        %1516 = vmatpush1.bf16.msra.mxu0 0
        %1517 = vmatprep.subr.bf16.mxu0 0
        %1518 = vmatpush1.bf16.msra.mxu0 0
        %1519 = vmatprep.subr.bf16.mxu0 0
        %1520 = vmatpush1.bf16.msra.mxu0 0
        %1521 = vmatprep.subr.bf16.mxu0 0
        %1522 = vmatpush1.bf16.msra.mxu0 0
        %1523 = vmatprep.subr.bf16.mxu0 0
        %1524 = vmatpush1.bf16.msra.mxu0 0
        %1525 = vmatprep.subr.bf16.mxu0 0
        %1526 = vmatpush1.bf16.msra.mxu0 0
        %1527 = vmatprep.subr.bf16.mxu0 0
        %1528 = vmatpush1.bf16.msra.mxu0 0
        %1529 = vmatprep.subr.bf16.mxu0 0
        %1530 = vmatpush1.bf16.msra.mxu0 0
        %1531 = vmatprep.subr.bf16.mxu0 0
        %1532 = vmatpush1.bf16.msra.mxu0 0
        %1533 = vmatprep.subr.bf16.mxu0 0
        %1534 = vmatpush1.bf16.msra.mxu0 0
        %1535 = vmatprep.subr.bf16.mxu0 0
        %1536 = vmatpush1.bf16.msra.mxu0 0
        %1537 = vmatprep.subr.bf16.mxu0 0
        %1538 = vmatpush1.bf16.msra.mxu0 0
        %1539 = vmatprep.mubr.bf16.mxu0 0
        %1540 = vmatmul.mubr.bf16.gmra.mrb[0].mxu0 %v1505
        %v1541 = vpop.f32.mrb[0].mxu0
        %v1542 = vadd.f32 %v1457, %v1541
        %v1543 = vpop.f32.mrb[0].mxu0
        %v1544 = vadd.f32 %v1461, %v1543
        %v1545 = vpop.f32.mrb[0].mxu0
        %v1546 = vpop.f32.mrb[0].mxu0
        %1547 = vdwg.mxu0
        %s1548 = smul.u32 %s1442, 2
        %s1549 = scalar_lea.vmem [#allocation2], %s1548
        %v1550 = vld [vmem:[%s1549] sm:$0x3]
        %v1551 = vunpack.c.l.bf16 %v1550
        %v1552 = vadd.f32 %v1551, %v1542
        %v1553 = vxor.u32 %v1552, 2147483648
        %v1554 = vmul.f32 %v1553, 1.442695
        %v1555 = vpow.pop %v1554
        %v1556 = vadd.f32 %v1555, 1.0
        %v1557 = vrcp.pop %v1556
        %v1558 = vmul.f32 1.0, %v1557
        %v1559 = vmul.f32 %v1558, %v1544
        %v1561 = vrot.slane %v1551, 2
        %v1563 = vadd.f32 %v1561, %v1559
        %v1564 = vtanh.pop %v1563
        %v1565 = vsub.f32 1.0, %v1558
        %1567 = vrot.lane.b32.xlu0 %v1564, 64
        %v1568 = vpop.permute.xlu0 %1567
        %v1570 = vmul.f32 %v1565, %v1568
        %v1573 = vunpack.c.l.s4 1983009808
        %v1574 = vunpack.c.0.s8 %v1573
        %v1575 = vlaneseq
        %v1576 = vshrl.u32 %v1575, 7
        %v1577 = vsub.s32 %v1574, %v1576
        %v1578 = vrot.slane %v1438, %v1577
        %1579 = vrot.lane.b32.xlu0 %v1578, 64
        %v1580 = vpop.permute.xlu0 %1579
        %v1582 = vmul.f32 %v1558, %v1580
        %v1583 = vadd.f32 %v1570, %v1582
        %v1584 = vstv %s1442
        %vm1585 = vcmp.lt.s32.totalorder %v1584, %v346
        %v1586 = vsel %vm1585, 1, 0
        %1587 = vset.pattern.permute.xlu0 0
        %1588 = vperm.xlu0 %1587, %v1586
        %v1589 = vpop.permute.xlu0 %1588
        %vm1590 = vcmp.eq.s32.totalorder %v1589, 1
        %v1593 = vunpack.c.l.s4 1983009808
        %v1594 = vunpack.c.0.s8 %v1593
        %v1595 = vlaneseq
        %v1596 = vshrl.u32 %v1595, 7
        %v1597 = vsub.s32 %v1594, %v1596
        %v1598 = vrot.slane %v1583, %v1597
        %1599 = vrot.lane.b32.xlu0 %v1598, 64
        %v1600 = vpop.permute.xlu0 %1599
        %v1602 = vsel %vm1590, %v1600, %v1438
        %v1603 = vsel %vm1590, %v1600, 0.0
        %s1604 = scalar_lea.vmem %s343, %s1548
        %1605 = vst.msk [vmem:[%s1604] sm:$0x3] %vm948, %v1603
        %s1606 = scalar_select %p345, 5, 2
        %v1607 = vpack.c.bf16 %v1602, %v1602
        %v1608 = vld [vmem:[%s330] sm:$0xff]
        %v1609 = vld [vmem:[%s330 + $0x8] sm:$0xff]
        %v1610 = vld [vmem:[%s330 + $0x10] sm:$0xff]
        %v1611 = vld [vmem:[%s330 + $0x18] sm:$0xff]
        %v1612 = vld [vmem:[%s330 + $0x20] sm:$0xff]
        %v1613 = vld [vmem:[%s330 + $0x28] sm:$0xff]
        %v1614 = vld [vmem:[%s330 + $0x30] sm:$0xff]
        %v1615 = vld [vmem:[%s330 + $0x38] sm:$0xff]
        %v1616 = vld [vmem:[%s338] sm:$0x3]
        %v1618 = vlaneseq
        %v1619 = vshrl.u32 %v1618, 7
        %v1620 = vsub.s32 0, %v1619
        %v1621 = vrot.slane %v1616, %v1620
        %v1622 = vlaneseq
        %v1623 = vshrl.u32 %v1622, 7
        %v1624 = vsub.s32 1, %v1623
        %v1625 = vrot.slane %v1616, %v1624
        %v1636 = vunpack.c.l.b16 %v1608
        %v1637 = vunpack.c.h.b16 %v1608
        %v1638 = vunpack.c.l.b16 %v1609
        %v1639 = vunpack.c.h.b16 %v1609
        %v1640 = vunpack.c.l.b16 %v1610
        %v1641 = vunpack.c.h.b16 %v1610
        %v1642 = vunpack.c.l.b16 %v1611
        %v1643 = vunpack.c.h.b16 %v1611
        %v1644 = vunpack.c.l.b16 %v1612
        %v1645 = vunpack.c.h.b16 %v1612
        %v1646 = vunpack.c.l.b16 %v1613
        %v1647 = vunpack.c.h.b16 %v1613
        %v1648 = vunpack.c.l.b16 %v1614
        %v1649 = vunpack.c.h.b16 %v1614
        %v1650 = vunpack.c.l.b16 %v1615
        %v1651 = vunpack.c.h.b16 %v1615
        %v1652 = vpack.c.b16 %v1638, %v1636
        %v1653 = vpack.c.b16 %v1639, %v1637
        %v1654 = vpack.c.b16 %v1642, %v1640
        %v1655 = vpack.c.b16 %v1643, %v1641
        %v1656 = vpack.c.b16 %v1646, %v1644
        %v1657 = vpack.c.b16 %v1647, %v1645
        %v1658 = vpack.c.b16 %v1650, %v1648
        %v1659 = vpack.c.b16 %v1651, %v1649
        %v1669 = vsel %vm460, %v1607, 0
        %1671 = vmatprep.subr.bf16.mxu0 %v1653
        %1672 = vmatpush1.bf16.msra.mxu0 %v1652
        %1673 = vmatprep.subr.bf16.mxu0 %v1655
        %1674 = vmatpush1.bf16.msra.mxu0 %v1654
        %1675 = vmatprep.subr.bf16.mxu0 %v1657
        %1676 = vmatpush1.bf16.msra.mxu0 %v1656
        %1677 = vmatprep.subr.bf16.mxu0 %v1659
        %1678 = vmatpush1.bf16.msra.mxu0 %v1658
        %1679 = vmatprep.subr.bf16.mxu0 0
        %1680 = vmatpush1.bf16.msra.mxu0 0
        %1681 = vmatprep.subr.bf16.mxu0 0
        %1682 = vmatpush1.bf16.msra.mxu0 0
        %1683 = vmatprep.subr.bf16.mxu0 0
        %1684 = vmatpush1.bf16.msra.mxu0 0
        %1685 = vmatprep.subr.bf16.mxu0 0
        %1686 = vmatpush1.bf16.msra.mxu0 0
        %1687 = vmatprep.subr.bf16.mxu0 0
        %1688 = vmatpush1.bf16.msra.mxu0 0
        %1689 = vmatprep.subr.bf16.mxu0 0
        %1690 = vmatpush1.bf16.msra.mxu0 0
        %1691 = vmatprep.subr.bf16.mxu0 0
        %1692 = vmatpush1.bf16.msra.mxu0 0
        %1693 = vmatprep.subr.bf16.mxu0 0
        %1694 = vmatpush1.bf16.msra.mxu0 0
        %1695 = vmatprep.subr.bf16.mxu0 0
        %1696 = vmatpush1.bf16.msra.mxu0 0
        %1697 = vmatprep.subr.bf16.mxu0 0
        %1698 = vmatpush1.bf16.msra.mxu0 0
        %1699 = vmatprep.subr.bf16.mxu0 0
        %1700 = vmatpush1.bf16.msra.mxu0 0
        %1701 = vmatprep.subr.bf16.mxu0 0
        %1702 = vmatpush1.bf16.msra.mxu0 0
        %1703 = vmatprep.mubr.bf16.mxu0 0
        %1704 = vmatmul.mubr.bf16.gmra.mrb[0].mxu0 %v1669
        %v1705 = vpop.f32.mrb[0].mxu0
        %v1706 = vadd.f32 %v1621, %v1705
        %v1707 = vpop.f32.mrb[0].mxu0
        %v1708 = vadd.f32 %v1625, %v1707
        %v1709 = vpop.f32.mrb[0].mxu0
        %v1710 = vpop.f32.mrb[0].mxu0
        %1711 = vdwg.mxu0
        %s1712 = smul.u32 %s1606, 2
        %s1713 = scalar_lea.vmem [#allocation2], %s1712
        %v1714 = vld [vmem:[%s1713] sm:$0x3]
        %v1715 = vunpack.c.l.bf16 %v1714
        %v1716 = vadd.f32 %v1715, %v1706
        %v1717 = vxor.u32 %v1716, 2147483648
        %v1718 = vmul.f32 %v1717, 1.442695
        %v1719 = vpow.pop %v1718
        %v1720 = vadd.f32 %v1719, 1.0
        %v1721 = vrcp.pop %v1720
        %v1722 = vmul.f32 1.0, %v1721
        %v1723 = vmul.f32 %v1722, %v1708
        %v1725 = vrot.slane %v1715, 2
        %v1727 = vadd.f32 %v1725, %v1723
        %v1728 = vtanh.pop %v1727
        %v1729 = vsub.f32 1.0, %v1722
        %1731 = vrot.lane.b32.xlu0 %v1728, 64
        %v1732 = vpop.permute.xlu0 %1731
        %v1734 = vmul.f32 %v1729, %v1732
        %v1737 = vunpack.c.l.s4 1983009808
        %v1738 = vunpack.c.0.s8 %v1737
        %v1739 = vlaneseq
        %v1740 = vshrl.u32 %v1739, 7
        %v1741 = vsub.s32 %v1738, %v1740
        %v1742 = vrot.slane %v1602, %v1741
        %1743 = vrot.lane.b32.xlu0 %v1742, 64
        %v1744 = vpop.permute.xlu0 %1743
        %v1746 = vmul.f32 %v1722, %v1744
        %v1747 = vadd.f32 %v1734, %v1746
        %v1748 = vstv %s1606
        %vm1749 = vcmp.lt.s32.totalorder %v1748, %v346
        %v1750 = vsel %vm1749, 1, 0
        %1751 = vset.pattern.permute.xlu0 0
        %1752 = vperm.xlu0 %1751, %v1750
        %v1753 = vpop.permute.xlu0 %1752
        %vm1754 = vcmp.eq.s32.totalorder %v1753, 1
        %v1757 = vunpack.c.l.s4 1983009808
        %v1758 = vunpack.c.0.s8 %v1757
        %v1759 = vlaneseq
        %v1760 = vshrl.u32 %v1759, 7
        %v1761 = vsub.s32 %v1758, %v1760
        %v1762 = vrot.slane %v1747, %v1761
        %1763 = vrot.lane.b32.xlu0 %v1762, 64
        %v1764 = vpop.permute.xlu0 %1763
        %v1766 = vsel %vm1754, %v1764, %v1602
        %v1767 = vsel %vm1754, %v1764, 0.0
        %s1768 = scalar_lea.vmem %s343, %s1712
        %1769 = vst.msk [vmem:[%s1768] sm:$0x3] %vm948, %v1767
        %s1770 = scalar_select %p345, 6, 1
        %v1771 = vpack.c.bf16 %v1766, %v1766
        %v1772 = vld [vmem:[%s330] sm:$0xff]
        %v1773 = vld [vmem:[%s330 + $0x8] sm:$0xff]
        %v1774 = vld [vmem:[%s330 + $0x10] sm:$0xff]
        %v1775 = vld [vmem:[%s330 + $0x18] sm:$0xff]
        %v1776 = vld [vmem:[%s330 + $0x20] sm:$0xff]
        %v1777 = vld [vmem:[%s330 + $0x28] sm:$0xff]
        %v1778 = vld [vmem:[%s330 + $0x30] sm:$0xff]
        %v1779 = vld [vmem:[%s330 + $0x38] sm:$0xff]
        %v1780 = vld [vmem:[%s338] sm:$0x3]
        %v1782 = vlaneseq
        %v1783 = vshrl.u32 %v1782, 7
        %v1784 = vsub.s32 0, %v1783
        %v1785 = vrot.slane %v1780, %v1784
        %v1786 = vlaneseq
        %v1787 = vshrl.u32 %v1786, 7
        %v1788 = vsub.s32 1, %v1787
        %v1789 = vrot.slane %v1780, %v1788
        %v1800 = vunpack.c.l.b16 %v1772
        %v1801 = vunpack.c.h.b16 %v1772
        %v1802 = vunpack.c.l.b16 %v1773
        %v1803 = vunpack.c.h.b16 %v1773
        %v1804 = vunpack.c.l.b16 %v1774
        %v1805 = vunpack.c.h.b16 %v1774
        %v1806 = vunpack.c.l.b16 %v1775
        %v1807 = vunpack.c.h.b16 %v1775
        %v1808 = vunpack.c.l.b16 %v1776
        %v1809 = vunpack.c.h.b16 %v1776
        %v1810 = vunpack.c.l.b16 %v1777
        %v1811 = vunpack.c.h.b16 %v1777
        %v1812 = vunpack.c.l.b16 %v1778
        %v1813 = vunpack.c.h.b16 %v1778
        %v1814 = vunpack.c.l.b16 %v1779
        %v1815 = vunpack.c.h.b16 %v1779
        %v1816 = vpack.c.b16 %v1802, %v1800
        %v1817 = vpack.c.b16 %v1803, %v1801
        %v1818 = vpack.c.b16 %v1806, %v1804
        %v1819 = vpack.c.b16 %v1807, %v1805
        %v1820 = vpack.c.b16 %v1810, %v1808
        %v1821 = vpack.c.b16 %v1811, %v1809
        %v1822 = vpack.c.b16 %v1814, %v1812
        %v1823 = vpack.c.b16 %v1815, %v1813
        %v1833 = vsel %vm460, %v1771, 0
        %1835 = vmatprep.subr.bf16.mxu0 %v1817
        %1836 = vmatpush1.bf16.msra.mxu0 %v1816
        %1837 = vmatprep.subr.bf16.mxu0 %v1819
        %1838 = vmatpush1.bf16.msra.mxu0 %v1818
        %1839 = vmatprep.subr.bf16.mxu0 %v1821
        %1840 = vmatpush1.bf16.msra.mxu0 %v1820
        %1841 = vmatprep.subr.bf16.mxu0 %v1823
        %1842 = vmatpush1.bf16.msra.mxu0 %v1822
        %1843 = vmatprep.subr.bf16.mxu0 0
        %1844 = vmatpush1.bf16.msra.mxu0 0
        %1845 = vmatprep.subr.bf16.mxu0 0
        %1846 = vmatpush1.bf16.msra.mxu0 0
        %1847 = vmatprep.subr.bf16.mxu0 0
        %1848 = vmatpush1.bf16.msra.mxu0 0
        %1849 = vmatprep.subr.bf16.mxu0 0
        %1850 = vmatpush1.bf16.msra.mxu0 0
        %1851 = vmatprep.subr.bf16.mxu0 0
        %1852 = vmatpush1.bf16.msra.mxu0 0
        %1853 = vmatprep.subr.bf16.mxu0 0
        %1854 = vmatpush1.bf16.msra.mxu0 0
        %1855 = vmatprep.subr.bf16.mxu0 0
        %1856 = vmatpush1.bf16.msra.mxu0 0
        %1857 = vmatprep.subr.bf16.mxu0 0
        %1858 = vmatpush1.bf16.msra.mxu0 0
        %1859 = vmatprep.subr.bf16.mxu0 0
        %1860 = vmatpush1.bf16.msra.mxu0 0
        %1861 = vmatprep.subr.bf16.mxu0 0
        %1862 = vmatpush1.bf16.msra.mxu0 0
        %1863 = vmatprep.subr.bf16.mxu0 0
        %1864 = vmatpush1.bf16.msra.mxu0 0
        %1865 = vmatprep.subr.bf16.mxu0 0
        %1866 = vmatpush1.bf16.msra.mxu0 0
        %1867 = vmatprep.mubr.bf16.mxu0 0
        %1868 = vmatmul.mubr.bf16.gmra.mrb[0].mxu0 %v1833
        %v1869 = vpop.f32.mrb[0].mxu0
        %v1870 = vadd.f32 %v1785, %v1869
        %v1871 = vpop.f32.mrb[0].mxu0
        %v1872 = vadd.f32 %v1789, %v1871
        %v1873 = vpop.f32.mrb[0].mxu0
        %v1874 = vpop.f32.mrb[0].mxu0
        %1875 = vdwg.mxu0
        %s1876 = smul.u32 %s1770, 2
        %s1877 = scalar_lea.vmem [#allocation2], %s1876
        %v1878 = vld [vmem:[%s1877] sm:$0x3]
        %v1879 = vunpack.c.l.bf16 %v1878
        %v1880 = vadd.f32 %v1879, %v1870
        %v1881 = vxor.u32 %v1880, 2147483648
        %v1882 = vmul.f32 %v1881, 1.442695
        %v1883 = vpow.pop %v1882
        %v1884 = vadd.f32 %v1883, 1.0
        %v1885 = vrcp.pop %v1884
        %v1886 = vmul.f32 1.0, %v1885
        %v1887 = vmul.f32 %v1886, %v1872
        %v1889 = vrot.slane %v1879, 2
        %v1891 = vadd.f32 %v1889, %v1887
        %v1892 = vtanh.pop %v1891
        %v1893 = vsub.f32 1.0, %v1886
        %1895 = vrot.lane.b32.xlu0 %v1892, 64
        %v1896 = vpop.permute.xlu0 %1895
        %v1898 = vmul.f32 %v1893, %v1896
        %v1901 = vunpack.c.l.s4 1983009808
        %v1902 = vunpack.c.0.s8 %v1901
        %v1903 = vlaneseq
        %v1904 = vshrl.u32 %v1903, 7
        %v1905 = vsub.s32 %v1902, %v1904
        %v1906 = vrot.slane %v1766, %v1905
        %1907 = vrot.lane.b32.xlu0 %v1906, 64
        %v1908 = vpop.permute.xlu0 %1907
        %v1910 = vmul.f32 %v1886, %v1908
        %v1911 = vadd.f32 %v1898, %v1910
        %v1912 = vstv %s1770
        %vm1913 = vcmp.lt.s32.totalorder %v1912, %v346
        %v1914 = vsel %vm1913, 1, 0
        %1915 = vset.pattern.permute.xlu0 0
        %1916 = vperm.xlu0 %1915, %v1914
        %v1917 = vpop.permute.xlu0 %1916
        %vm1918 = vcmp.eq.s32.totalorder %v1917, 1
        %v1921 = vunpack.c.l.s4 1983009808
        %v1922 = vunpack.c.0.s8 %v1921
        %v1923 = vlaneseq
        %v1924 = vshrl.u32 %v1923, 7
        %v1925 = vsub.s32 %v1922, %v1924
        %v1926 = vrot.slane %v1911, %v1925
        %1927 = vrot.lane.b32.xlu0 %v1926, 64
        %v1928 = vpop.permute.xlu0 %1927
        %v1930 = vsel %vm1918, %v1928, %v1766
        %v1931 = vsel %vm1918, %v1928, 0.0
        %s1932 = scalar_lea.vmem %s343, %s1876
        %1933 = vst.msk [vmem:[%s1932] sm:$0x3] %vm948, %v1931
        %s1934 = scalar_select %p345, 7, 0
        %v1935 = vpack.c.bf16 %v1930, %v1930
        %v1936 = vld [vmem:[%s330] sm:$0xff]
        %v1937 = vld [vmem:[%s330 + $0x8] sm:$0xff]
        %v1938 = vld [vmem:[%s330 + $0x10] sm:$0xff]
        %v1939 = vld [vmem:[%s330 + $0x18] sm:$0xff]
        %v1940 = vld [vmem:[%s330 + $0x20] sm:$0xff]
        %v1941 = vld [vmem:[%s330 + $0x28] sm:$0xff]
        %v1942 = vld [vmem:[%s330 + $0x30] sm:$0xff]
        %v1943 = vld [vmem:[%s330 + $0x38] sm:$0xff]
        %v1944 = vld [vmem:[%s338] sm:$0x3]
        %v1946 = vlaneseq
        %v1947 = vshrl.u32 %v1946, 7
        %v1948 = vsub.s32 0, %v1947
        %v1949 = vrot.slane %v1944, %v1948
        %v1950 = vlaneseq
        %v1951 = vshrl.u32 %v1950, 7
        %v1952 = vsub.s32 1, %v1951
        %v1953 = vrot.slane %v1944, %v1952
        %v1964 = vunpack.c.l.b16 %v1936
        %v1965 = vunpack.c.h.b16 %v1936
        %v1966 = vunpack.c.l.b16 %v1937
        %v1967 = vunpack.c.h.b16 %v1937
        %v1968 = vunpack.c.l.b16 %v1938
        %v1969 = vunpack.c.h.b16 %v1938
        %v1970 = vunpack.c.l.b16 %v1939
        %v1971 = vunpack.c.h.b16 %v1939
        %v1972 = vunpack.c.l.b16 %v1940
        %v1973 = vunpack.c.h.b16 %v1940
        %v1974 = vunpack.c.l.b16 %v1941
        %v1975 = vunpack.c.h.b16 %v1941
        %v1976 = vunpack.c.l.b16 %v1942
        %v1977 = vunpack.c.h.b16 %v1942
        %v1978 = vunpack.c.l.b16 %v1943
        %v1979 = vunpack.c.h.b16 %v1943
        %v1980 = vpack.c.b16 %v1966, %v1964
        %v1981 = vpack.c.b16 %v1967, %v1965
        %v1982 = vpack.c.b16 %v1970, %v1968
        %v1983 = vpack.c.b16 %v1971, %v1969
        %v1984 = vpack.c.b16 %v1974, %v1972
        %v1985 = vpack.c.b16 %v1975, %v1973
        %v1986 = vpack.c.b16 %v1978, %v1976
        %v1987 = vpack.c.b16 %v1979, %v1977
        %v1997 = vsel %vm460, %v1935, 0
        %1999 = vmatprep.subr.bf16.mxu0 %v1981
        %2000 = vmatpush1.bf16.msra.mxu0 %v1980
        %2001 = vmatprep.subr.bf16.mxu0 %v1983
        %2002 = vmatpush1.bf16.msra.mxu0 %v1982
        %2003 = vmatprep.subr.bf16.mxu0 %v1985
        %2004 = vmatpush1.bf16.msra.mxu0 %v1984
        %2005 = vmatprep.subr.bf16.mxu0 %v1987
        %2006 = vmatpush1.bf16.msra.mxu0 %v1986
        %2007 = vmatprep.subr.bf16.mxu0 0
        %2008 = vmatpush1.bf16.msra.mxu0 0
        %2009 = vmatprep.subr.bf16.mxu0 0
        %2010 = vmatpush1.bf16.msra.mxu0 0
        %2011 = vmatprep.subr.bf16.mxu0 0
        %2012 = vmatpush1.bf16.msra.mxu0 0
        %2013 = vmatprep.subr.bf16.mxu0 0
        %2014 = vmatpush1.bf16.msra.mxu0 0
        %2015 = vmatprep.subr.bf16.mxu0 0
        %2016 = vmatpush1.bf16.msra.mxu0 0
        %2017 = vmatprep.subr.bf16.mxu0 0
        %2018 = vmatpush1.bf16.msra.mxu0 0
        %2019 = vmatprep.subr.bf16.mxu0 0
        %2020 = vmatpush1.bf16.msra.mxu0 0
        %2021 = vmatprep.subr.bf16.mxu0 0
        %2022 = vmatpush1.bf16.msra.mxu0 0
        %2023 = vmatprep.subr.bf16.mxu0 0
        %2024 = vmatpush1.bf16.msra.mxu0 0
        %2025 = vmatprep.subr.bf16.mxu0 0
        %2026 = vmatpush1.bf16.msra.mxu0 0
        %2027 = vmatprep.subr.bf16.mxu0 0
        %2028 = vmatpush1.bf16.msra.mxu0 0
        %2029 = vmatprep.subr.bf16.mxu0 0
        %2030 = vmatpush1.bf16.msra.mxu0 0
        %2031 = vmatprep.mubr.bf16.mxu0 0
        %2032 = vmatmul.mubr.bf16.gmra.mrb[0].mxu0 %v1997
        %v2033 = vpop.f32.mrb[0].mxu0
        %v2034 = vadd.f32 %v1949, %v2033
        %v2035 = vpop.f32.mrb[0].mxu0
        %v2036 = vadd.f32 %v1953, %v2035
        %v2037 = vpop.f32.mrb[0].mxu0
        %v2038 = vpop.f32.mrb[0].mxu0
        %2039 = vdwg.mxu0
        %s2040 = smul.u32 %s1934, 2
        %s2041 = scalar_lea.vmem [#allocation2], %s2040
        %v2042 = vld [vmem:[%s2041] sm:$0x3]
        %v2043 = vunpack.c.l.bf16 %v2042
        %v2044 = vadd.f32 %v2043, %v2034
        %v2045 = vxor.u32 %v2044, 2147483648
        %v2046 = vmul.f32 %v2045, 1.442695
        %v2047 = vpow.pop %v2046
        %v2048 = vadd.f32 %v2047, 1.0
        %v2049 = vrcp.pop %v2048
        %v2050 = vmul.f32 1.0, %v2049
        %v2051 = vmul.f32 %v2050, %v2036
        %v2053 = vrot.slane %v2043, 2
        %v2055 = vadd.f32 %v2053, %v2051
        %v2056 = vtanh.pop %v2055
        %v2057 = vsub.f32 1.0, %v2050
        %2059 = vrot.lane.b32.xlu0 %v2056, 64
        %v2060 = vpop.permute.xlu0 %2059
        %v2062 = vmul.f32 %v2057, %v2060
        %v2065 = vunpack.c.l.s4 1983009808
        %v2066 = vunpack.c.0.s8 %v2065
        %v2067 = vlaneseq
        %v2068 = vshrl.u32 %v2067, 7
        %v2069 = vsub.s32 %v2066, %v2068
        %v2070 = vrot.slane %v1930, %v2069
        %2071 = vrot.lane.b32.xlu0 %v2070, 64
        %v2072 = vpop.permute.xlu0 %2071
        %v2074 = vmul.f32 %v2050, %v2072
        %v2075 = vadd.f32 %v2062, %v2074
        %v2076 = vstv %s1934
        %vm2077 = vcmp.lt.s32.totalorder %v2076, %v346
        %v2078 = vsel %vm2077, 1, 0
        %2079 = vset.pattern.permute.xlu0 0
        %2080 = vperm.xlu0 %2079, %v2078
        %v2081 = vpop.permute.xlu0 %2080
        %vm2082 = vcmp.eq.s32.totalorder %v2081, 1
        %v2085 = vunpack.c.l.s4 1983009808
        %v2086 = vunpack.c.0.s8 %v2085
        %v2087 = vlaneseq
        %v2088 = vshrl.u32 %v2087, 7
        %v2089 = vsub.s32 %v2086, %v2088
        %v2090 = vrot.slane %v2075, %v2089
        %2091 = vrot.lane.b32.xlu0 %v2090, 64
        %v2092 = vpop.permute.xlu0 %2091
        %v2094 = vsel %vm2082, %v2092, %v1930
        %v2095 = vsel %vm2082, %v2092, 0.0
        %s2096 = scalar_lea.vmem %s343, %s2040
        %2097 = vst.msk [vmem:[%s2096] sm:$0x3] %vm948, %v2095
        %2098 = vst.msk [vmem:[%s320] sm:$0x3] %vm948, %v2094
        %p2099 = scmp.lt.s32.totalorder %s22, 1
        %s2100 = scalar_select %p2099, %s22, 1
        %s2101 = smul.addr %s2100, 8
        %s2102 = smul.addr %s2101, 2
        %s2103 = scalar_lea.vmem %s6, %s2102
        %s2104 = sand.u32 %s202, 1
        %s2105 = scalar_lea.sflag [#allocation4], %s2104
        %s2106 = sand.u32 %s202, 1
        %s2107 = smul.addr %s2106, 2
        %s2108 = scalar_lea.vmem [#allocation3], %s2107
        // Predicated region
        $region45: #{resonance_forward.4} parent=43 // pred_check
          %p2109 = pneg %p186
        $region46: #{resonance_forward.4} parent=43 // pred_check_branch
          %2111 = sbr.rel (%p2109) target = $region48
        $region47: #{resonance_forward.4} parent=43 // pred_region
          _
        $region48: #{resonance_forward.4} parent=43 // pred_fallthru
          _
        // Predicated region
        $region49: #{resonance_forward.4} parent=43 // pred_check
          %p2112 = pneg %p212
        $region50: #{resonance_forward.4} parent=43 // pred_check_branch
          %2114 = sbr.rel (%p2112) target = $region52
        $region51: #{resonance_forward.4} parent=43 // pred_region
          %s2116 = ssub.s32 32, 32
          %2117 = vsyncadd %s2105, %s2116
          %s2118 = smul.addr %s22, 32
          %s2119 = scalar_lea.hbm %s7, %s2118
          %s2121 = sshll.u32 %s2108, 4
          %s2122 = int_to_ptr.vmem [resolvable:$true] %s2121
          %2124 = dma.vmem_to_hbm [thread:$0]  %s2122, 32, %s2119, %s2105
        $region52: #{resonance_forward.4} parent=43 // pred_fallthru
          _
      $region44: #{resonance_forward.4} parent=5 // pred_fallthru
        _
      %p2125 = scmp.le.s32.totalorder 2, %s17
      // Predicated region
      $region53: #{resonance_forward.4} parent=5 // pred_check
        %p2126 = pneg %p2125
      $region54: #{resonance_forward.4} parent=5 // pred_check_branch
        %2128 = sbr.rel (%p2126) target = $region56
      $region55: #{resonance_forward.4} parent=5 // pred_region
        %s2129 = ssub.s32 %s17, 2
        // Predicated region
        $region57: #{resonance_forward.4} parent=55 // pred_check
          %p2130 = pneg %p192
        $region58: #{resonance_forward.4} parent=55 // pred_check_branch
          %2132 = sbr.rel (%p2130) target = $region60
        $region59: #{resonance_forward.4} parent=55 // pred_region
          %p2133 = scmp.lt.s32.totalorder %s23, 1
          %s2134 = scalar_select %p2133, %s23, 1
          %s2135 = smul.addr %s2134, 8
          %s2136 = smul.addr %s2135, 2
          %s2137 = scalar_lea.vmem %s6, %s2136
        $region60: #{resonance_forward.4} parent=55 // pred_fallthru
          _
        // Predicated region
        $region61: #{resonance_forward.4} parent=55 // pred_check
          %p2138 = pneg %p218
        $region62: #{resonance_forward.4} parent=55 // pred_check_branch
          %2140 = sbr.rel (%p2138) target = $region64
        $region63: #{resonance_forward.4} parent=55 // pred_region
          %s2141 = sand.u32 %s203, 1
          %s2142 = scalar_lea.sflag [#allocation4], %s2141
          %s2143 = sand.u32 %s203, 1
          %s2144 = smul.addr %s2143, 2
          %s2145 = scalar_lea.vmem [#allocation3], %s2144
          %2146 = dma.done %s2142, 32
        $region64: #{resonance_forward.4} parent=55 // pred_fallthru
          _
      $region56: #{resonance_forward.4} parent=5 // pred_fallthru
        _
    $region6: #{resonance_forward.4} parent=1 // loop_footer
      %s21 = sadd.s32 1, %s17
    $region7: #{resonance_forward.4} parent=1 // loop_footer_branch
      %16 = sbr.rel target = $region3
    $region8: #{resonance_forward.4} parent=1 // loop_exit
      _
    %2147 = vsyncpa [#allocation4], 1
    %s2148 = scalar_lea.sflag [#allocation4], 1
    %2149 = vsyncpa %s2148, 1

</llo_original>
